<compile_context>
chip_gen: v5e
topology: v5e:2x2
jax: 0.10.0
libtpu: 0.0.40
codegen_flags: <defaults>
</compile_context>

<pallas_src>
import functools

import jax
import jax.numpy as jnp
from jax.experimental import pallas as pl
from jax.experimental.pallas import tpu as pltpu


# ----------------------------------------------------------------------------------
# VMEM budget (per-generation, review item): 48 MiB is v7x-safe (64 MiB physical),
# 96 MiB on v5e/v6e (128 MiB physical).
# ----------------------------------------------------------------------------------

def _detect_vmem_limit():
    try:
        info = pltpu.get_tpu_info()
        cap = getattr(info, "vmem_capacity_bytes", None)
        if cap is not None and cap >= 128 * 1024 * 1024:
            return 96 * 1024 * 1024
    except Exception:
        pass
    return 48 * 1024 * 1024


_VMEM_LIMIT = _detect_vmem_limit()
_VMEM_BUDGET = int(0.75 * _VMEM_LIMIT)          # headroom for compiler scratch
_WEIGHT_RESIDENT_BYTES = 8 * 1024 * 1024        # full-weight residency threshold


# ----------------------------------------------------------------------------------
# Fused GEMM + bias + activation Pallas kernel (lane-dense layout)
#   out(N, M) = act( W(N, K) @ X(K, M) + b(N, 1) ),  M = B*H*W on the 128-lane axis.
# ----------------------------------------------------------------------------------

def _apply_act(y, act):
    if act == "relu":
        return jnp.maximum(y, 0.0)
    if act == "sigmoid":
        # tanh formulation: EUP slot, robust for large |y| (review).
        return 0.5 * jnp.tanh(0.5 * y) + 0.5
    return y


def _gemm_bias_act_kernel(w_ref, x_ref, b_ref, o_ref, acc_ref, *, act):
    # grid = (num_m, num_k); k (reduction) is the innermost / "arbitrary" axis.
    @pl.when(pl.program_id(1) == 0)
    def _init():
        # Bias folded into the accumulator init (review: no epilogue add).
        acc_ref[...] = jnp.zeros_like(acc_ref) + b_ref[...]

    # bf16 operands, f32 accumulation on the MXU.
    acc_ref[...] += jnp.dot(w_ref[...], x_ref[...], preferred_element_type=jnp.float32)

    @pl.when(pl.program_id(1) == pl.num_programs(1) - 1)
    def _finalize():
        o_ref[...] = _apply_act(acc_ref[...], act).astype(o_ref.dtype)


def _round_up(x, m):
    return (x + m - 1) // m * m


def _vmem_step_bytes(np_, tk, tm):
    # double-buffered bf16 W / X / out blocks + resident f32 accumulator
    return 2 * (np_ * tk * 2 + tk * tm * 2 + np_ * tm * 2) + np_ * tm * 4


def _pick_tm(Mp, Np, TK):
    """Largest M tile that divides Mp, fits the VMEM budget and (when possible) leaves
    an even number of >=2 parallel m blocks so both v7x TensorCores get work."""
    best = None
    for tm in (2048, 1024, 512, 256, 128):
        if Mp % tm != 0:
            continue
        if _vmem_step_bytes(Np, TK, tm) > _VMEM_BUDGET:
            continue
        nm = Mp // tm
        if nm >= 2 and nm % 2 == 0:
            return tm
        if best is None:
            best = tm
    return best if best is not None else 128


def matmul_bias_act_T(w_t, x_t, b, act=None):
    """out(N, M) = act(w_t(N, K) @ x_t(K, M) + b); M (B*H*W) is the lane axis.

    Returns bf16.  N is small at these scaled-down widths (<=16) so it is a single
    sublane block; TODO(synk): add an N grid axis (TN=128 v5e / 256 v6e,v7x) at real
    CelebAVAE widths.
    """
    N, K = w_t.shape
    K2, M = x_t.shape
    assert K == K2 and b.shape == (N,)

    if w_t.dtype != jnp.bfloat16:
        w_t = w_t.astype(jnp.bfloat16)
    if x_t.dtype != jnp.bfloat16:
        x_t = x_t.astype(jnp.bfloat16)

    Np = _round_up(N, 16)                      # bf16 native sublane tile is (16, 128)
    Mp = _round_up(M, 128)                     # lane-align (most layers already are)

    # Weight residency: a single (Np, K) block whose index_map is constant is DMA'd
    # exactly once for the whole grid -> no per-M-tile re-streaming (review).
    resident = (Np * K * 2 <= _WEIGHT_RESIDENT_BYTES
                and _vmem_step_bytes(Np, K, 128) <= _VMEM_BUDGET)
    if resident:
        TK, Kp = K, K
    else:
        TK = 1024
        Kp = _round_up(K, TK)

    TM = _pick_tm(Mp, Np, TK)

    if Np != N:
        w_t = jnp.pad(w_t, ((0, Np - N), (0, 0)))
        b = jnp.pad(b, (0, Np - N))
    if Kp != K:
        w_t = jnp.pad(w_t, ((0, 0), (0, Kp - K)))
        x_t = jnp.pad(x_t, ((0, Kp - K), (0, 0)))
    if Mp != M:
        x_t = jnp.pad(x_t, ((0, 0), (0, Mp - M)))

    b2 = b.reshape(Np, 1).astype(jnp.float32)

    out = pl.pallas_call(
        functools.partial(_gemm_bias_act_kernel, act=act),
        out_shape=jax.ShapeDtypeStruct((Np, Mp), jnp.bfloat16),   # bf16 activations
        grid=(Mp // TM, Kp // TK),
        in_specs=[
            pl.BlockSpec((Np, TK), lambda m, k: (0, k)),   # weight (block idx constant
            #                                                when resident -> single DMA)
            pl.BlockSpec((TK, TM), lambda m, k: (k, m)),   # patches^T tile
            pl.BlockSpec((Np, 1), lambda m, k: (0, 0)),    # bias
        ],
        out_specs=pl.BlockSpec((Np, TM), lambda m, k: (0, m)),
        scratch_shapes=[pltpu.VMEM((Np, TM), jnp.float32)],
        compiler_params=pltpu.CompilerParams(
            dimension_semantics=("parallel", "arbitrary"),
            vmem_limit_bytes=_VMEM_LIMIT,
        ),
    )(w_t, x_t, b2)

    if Np != N or Mp != M:
        out = out[:N, :M]
    return out


# ----------------------------------------------------------------------------------
# Conv2d via im2col (glue) + Pallas GEMM.  Activations live in (C, B, H, W) bf16 so
# patches^T (K, M) is built with slicing + stack only.
# TODO(synk): fuse the im2col gather into the kernel (manual DMA of row-strips via
#             memory_space=pl.ANY) to avoid materializing patches^T in HBM at real sizes.
# ----------------------------------------------------------------------------------

def conv2d(x, w_t, b, *, kh, kw, stride, padding, act):
    """x: (Cin, B, H, W) bf16. w_t: (Cout, kh*kw*Cin) bf16. Returns (Cout, B, Ho, Wo) bf16."""
    Cin, B, H, W = x.shape
    Ho = (H + 2 * padding - kh) // stride + 1
    Wo = (W + 2 * padding - kw) // stride + 1
    xp = jnp.pad(x, ((0, 0), (0, 0), (padding, padding), (padding, padding)))
    taps = []
    for i in range(kh):
        for j in range(kw):
            taps.append(xp[:, :, i:i + stride * Ho:stride, j:j + stride * Wo:stride])
    # patches^T: (kh*kw*Cin, B*Ho*Wo); K order (i, j, cin), M order (b, oy, ox)
    pat = jnp.stack(taps, axis=0).reshape(kh * kw * Cin, B * Ho * Wo)
    y = matmul_bias_act_T(w_t, pat, b, act)            # (Cout, B*Ho*Wo) bf16
    return y.reshape(-1, B, Ho, Wo)


# ----------------------------------------------------------------------------------
# ConvTranspose2d via stride-decomposition (sub-pixel phases): each of the stride^2
# output phases is a small stride-1 conv over the UN-dilated input -> no zero math.
# ----------------------------------------------------------------------------------

def _phase_taps_1d(k, s, p, phase):
    """Kernel taps hitting output phase `phase` (mod s), for PyTorch ConvTranspose."""
    r = (phase + p) % s
    taps = list(range(r, k, s))                 # ascending kernel indices
    assert taps, "kernel smaller than stride is not supported"
    a0 = (phase + p) // s
    T = len(taps)
    start = a0 - (T - 1)                        # input index of x_ext[0]
    return taps[::-1], start, T                 # descending taps = im2col tap order


def _shift_pad(x, axis, start, length):
    """y[m] = x[m + start] for m in [0, length), zero-padded outside the valid range."""
    n = x.shape[axis]
    pad_lo = max(0, -start)
    lo = max(0, start)
    hi = max(lo, min(n, start + length))
    take = hi - lo
    pad_hi = length - pad_lo - take
    sl = [slice(None)] * x.ndim
    sl[axis] = slice(lo, hi)
    pads = [(0, 0)] * x.ndim
    pads[axis] = (pad_lo, pad_hi)
    return jnp.pad(x[tuple(sl)], pads)


def conv_transpose2d(x, w_phases, b, *, kh, kw, stride, padding, out_pad, act):
    """x: (Cin, B, H, W) bf16. w_phases: list of (Cout, Ty*Tx*Cin) bf16 per phase (py, px)."""
    Cin, B, H, W = x.shape
    Ho = (H - 1) * stride - 2 * padding + kh + out_pad
    Wo = (W - 1) * stride - 2 * padding + kw + out_pad
    assert Ho % stride == 0 and Wo % stride == 0
    Qy, Qx = Ho // stride, Wo // stride
    Cout = w_phases[0].shape[0]

    phase_outs = []
    idx = 0
    for py in range(stride):
        _, start_y, Ty = _phase_taps_1d(kh, stride, padding, py)
        for px in range(stride):
            _, start_x, Tx = _phase_taps_1d(kw, stride, padding, px)
            w_t = w_phases[idx]
            idx += 1
            xe = _shift_pad(x, 2, start_y, Qy + Ty - 1)
            xe = _shift_pad(xe, 3, start_x, Qx + Tx - 1)
            taps = []
            for i in range(Ty):
                for j in range(Tx):
                    taps.append(xe[:, :, i:i + Qy, j:j + Qx])
            pat = jnp.stack(taps, axis=0).reshape(Ty * Tx * Cin, B * Qy * Qx)
            y = matmul_bias_act_T(w_t, pat, b, act)     # (Cout, B*Qy*Qx) bf16
            phase_outs.append(y.reshape(Cout, B, Qy, Qx))

    # Interleave phases on the two minor dims with trailing-axis stacks only
    # (no 6-D major transpose):  out[c,b,qy*s+py,qx*s+px] = phase[(py,px)][c,b,qy,qx]
    # TODO(synk): write each phase GEMM directly into a strided slice of the output
    #             (phase-blocked layout / input_output_aliases) to kill this shuffle.
    s = stride
    rows = []
    for py in range(s):
        row = jnp.stack(phase_outs[py * s:(py + 1) * s], axis=-1)   # (C,B,Qy,Qx,s)
        rows.append(row.reshape(Cout, B, Qy, Wo))
    return jnp.stack(rows, axis=3).reshape(Cout, B, Ho, Wo)


# ----------------------------------------------------------------------------------
# Model: scaled-down CelebAVAE
# ----------------------------------------------------------------------------------

LATENT = 8
ENC_CH = (16, 8, 8, 8)            # conv1..conv4 out-channels (scaled from 2048,1024,512,256)
DEC_CH = (16, 8, 8, 4)            # deconv channel chain (scaled from 2048,1024,512,256)

ENC_CFG = (dict(k=3, s=2, p=1), dict(k=3, s=2, p=1), dict(k=5, s=2, p=2), dict(k=5, s=2, p=2))
DEC_CFG = (dict(k=5, s=2, p=2, op=1), dict(k=5, s=2, p=2, op=1),
           dict(k=3, s=2, p=1, op=1), dict(k=3, s=2, p=1, op=1))


def init_params(key):
    """Raw parameters in PyTorch layouts (Conv2d OIHW, ConvTranspose2d IOHW, Linear (out,in))."""
    def normal(k, shape, scale):
        return scale * jax.random.normal(k, shape, jnp.float32)

    ks = jax.random.split(key, 20)
    c1, c2, c3, c4 = ENC_CH
    d0, d1, d2, d3 = DEC_CH
    return {
        "e_w1": normal(ks[0], (c1, 3, 3, 3), 0.2),  "e_b1": jnp.zeros((c1,), jnp.float32),
        "e_w2": normal(ks[1], (c2, c1, 3, 3), 0.1), "e_b2": jnp.zeros((c2,), jnp.float32),
        "e_w3": normal(ks[2], (c3, c2, 5, 5), 0.08), "e_b3": jnp.zeros((c3,), jnp.float32),
        "e_w4": normal(ks[3], (c4, c3, 5, 5), 0.08), "e_b4": jnp.zeros((c4,), jnp.float32),
        "e_fcw": normal(ks[4], (2 * LATENT, c4 * 4 * 4), 0.05),
        "e_fcb": jnp.zeros((2 * LATENT,), jnp.float32),
        "d_fcw": normal(ks[5], (d0 * 4 * 4, LATENT), 0.1),
        "d_fcb": jnp.zeros((d0 * 4 * 4,), jnp.float32),
        "d_w1": normal(ks[6], (d0, d1, 5, 5), 0.08), "d_b1": jnp.zeros((d1,), jnp.float32),
        "d_w2": normal(ks[7], (d1, d2, 5, 5), 0.08), "d_b2": jnp.zeros((d2,), jnp.float32),
        "d_w3": normal(ks[8], (d2, d3, 3, 3), 0.1),  "d_b3": jnp.zeros((d3,), jnp.float32),
        "d_w4": normal(ks[9], (d3, 3, 3, 3), 0.1),   "d_b4": jnp.zeros((3,), jnp.float32),
    }


def _prep_conv_w(w_oihw):
    """(Cout, Cin, kh, kw) -> (Cout, kh*kw*Cin) bf16, column order (i, j, cin)."""
    Cout, Cin, kh, kw = w_oihw.shape
    return jnp.transpose(w_oihw, (0, 2, 3, 1)).reshape(Cout, kh * kw * Cin).astype(jnp.bfloat16)


def _prep_deconv_w(w_iohw, k, stride, padding):
    """(Cin, Cout, kh, kw) -> list of per-phase (Cout, Ty*Tx*Cin) bf16 GEMM weights."""
    Cin, Cout = w_iohw.shape[0], w_iohw.shape[1]
    phases = []
    for py in range(stride):
        ty_desc, _, Ty = _phase_taps_1d(k, stride, padding, py)
        for px in range(stride):
            tx_desc, _, Tx = _phase_taps_1d(k, stride, padding, px)
            ws = w_iohw[:, :, ty_desc, :][:, :, :, tx_desc]        # (Cin, Cout, Ty, Tx)
            w_t = jnp.transpose(ws, (1, 2, 3, 0)).reshape(Cout, Ty * Tx * Cin)
            phases.append(w_t.astype(jnp.bfloat16))
    return phases


def prepare_params(raw):
    """One-time weight re-layout + bf16 cast (no per-forward transposes/flips/casts)."""
    enc = []
    for i in range(1, 5):
        enc.append({"w": _prep_conv_w(raw[f"e_w{i}"]), "b": raw[f"e_b{i}"].astype(jnp.float32)})
    dec = []
    for i, cfg in enumerate(DEC_CFG, start=1):
        dec.append({"w_phases": _prep_deconv_w(raw[f"d_w{i}"], cfg["k"], cfg["s"], cfg["p"]),
                    "b": raw[f"d_b{i}"].astype(jnp.float32)})
    return {
        "enc": enc,
        "dec": dec,
        # fc layers go through plain XLA dots at these shapes (M = batch -> lane-sparse),
        # so keep their weights f32 for mu/log_sigma precision.
        "e_fc": {"w": raw["e_fcw"].astype(jnp.float32), "b": raw["e_fcb"].astype(jnp.float32)},
        "d_fc": {"w": raw["d_fcw"].astype(jnp.float32), "b": raw["d_fcb"].astype(jnp.float32)},
    }


def celeba_vae_forward(params, x_nchw, eps):
    """Returns (recon NCHW, mu, sigma), mirroring CelebAVAE.forward."""
    B = x_nchw.shape[0]
    # Internal activation layout is (C, B, H, W) bf16: channels on sublanes, (b, h, w)
    # flattens to the lane-dense M axis of every GEMM.
    h = jnp.transpose(x_nchw, (1, 0, 2, 3)).astype(jnp.bfloat16)

    # ----- encoder -----
    for cfg, lp in zip(ENC_CFG, params["enc"]):
        h = conv2d(h, lp["w"], lp["b"], kh=cfg["k"], kw=cfg["k"],
                   stride=cfg["s"], padding=cfg["p"], act="relu")
    # flatten in torch .view(B, -1) order: feature rows ordered (c, h, w)
    C4, _, Hh, Ww = h.shape
    flat_t = jnp.transpose(h, (0, 2, 3, 1)).reshape(C4 * Hh * Ww, B).astype(jnp.float32)
    # fc GEMM with M = batch (2): pure launch overhead / 126 dead lanes in the Pallas
    # kernel -> plain XLA dot (review).
    # TODO(synk): at real widths route through the Pallas GEMM with the wide output
    #             dimension on the lane axis.
    fc = jnp.dot(params["e_fc"]["w"], flat_t,
                 preferred_element_type=jnp.float32) + params["e_fc"]["b"][:, None]
    mu = fc[:LATENT].T                         # (B, LATENT)   == torch.chunk(x, 2, dim=1)[0]
    log_sigma = fc[LATENT:].T

    # ----- reparameterize (plain JAX: a (2, 8) tensor is pure launch overhead) -----
    sigma = jax.nn.softplus(log_sigma)
    z = mu + eps * sigma

    # ----- decoder -----
    d = jnp.dot(params["d_fc"]["w"], z.T,
                preferred_element_type=jnp.float32) + params["d_fc"]["b"][:, None]
    d0 = DEC_CH[0]
    h = jnp.transpose(d.reshape(d0, 4, 4, B), (0, 3, 1, 2)).astype(jnp.bfloat16)
    n_dec = len(DEC_CFG)
    for li, (cfg, lp) in enumerate(zip(DEC_CFG, params["dec"])):
        act = "sigmoid" if li == n_dec - 1 else "relu"
        h = conv_transpose2d(h, lp["w_phases"], lp["b"], kh=cfg["k"], kw=cfg["k"],
                             stride=cfg["s"], padding=cfg["p"], out_pad=cfg["op"], act=act)
    recon = jnp.transpose(h, (1, 0, 2, 3)).astype(jnp.float32)   # (C,B,H,W) -> NCHW, f32 out
    return recon, mu, sigma


if __name__ == "__main__":
    key = jax.random.PRNGKey(0)
    k_param, k_x, k_eps = jax.random.split(key, 3)

    raw = init_params(k_param)
    params = prepare_params(raw)

    x = jax.random.normal(k_x, (2, 3, 64, 64), jnp.float32)    # NCHW, like the PyTorch input
    eps = jax.random.normal(k_eps, (2, LATENT), jnp.float32)   # torch.randn_like(sigma)

    fwd = jax.jit(celeba_vae_forward)
    recon, mu, sigma = fwd(params, x, eps)
    jax.block_until_ready((recon, mu, sigma))

    assert recon.shape == (2, 3, 64, 64)
    assert mu.shape == (2, LATENT) and sigma.shape == (2, LATENT)
    assert bool(jnp.all(jnp.isfinite(recon)))
    assert bool(jnp.all(sigma > 0))
    print("KERNEL_OK")
</pallas_src>

<mosaic_0001>
module attributes {stable_mosaic.version = 11 : i64} {
  func.func @_gemm_bias_act_kernel(%arg0: i32, %arg1: i32, %arg2: memref<16x27xbf16, #tpu.memory_space<vmem>>, %arg3: memref<27x1024xbf16, #tpu.memory_space<vmem>>, %arg4: memref<16x1xf32, #tpu.memory_space<vmem>>, %arg5: memref<16x1024xbf16, #tpu.memory_space<vmem>>, %arg6: memref<16x1024xf32, #tpu.memory_space<vmem>>) attributes {dimension_semantics = [#tpu.dimension_semantics<parallel>, #tpu.dimension_semantics<arbitrary>], iteration_bounds = array<i64: 2, 1>, scalar_prefetch = 0 : i64, scratch_operands = 1 : i64, tpu.core_type = #tpu.core_type<tc>, window_params = [{transform_indices = @transform_0, window_bounds = array<i64: 16, 27>}, {transform_indices = @transform_1, window_bounds = array<i64: 27, 1024>}, {pipeline_mode = #tpu.pipeline_mode<synchronous>, transform_indices = @transform_2, window_bounds = array<i64: 16, 1>}, {transform_indices = @transform_3, window_bounds = array<i64: 16, 1024>}]} {
    %c0_i32 = arith.constant 0 : i32
    %0 = arith.cmpi eq, %arg1, %c0_i32 : i32
    %1 = arith.extui %0 : i1 to i32
    %c0_i32_0 = arith.constant 0 : i32
    %2 = arith.cmpi ne, %1, %c0_i32_0 : i32
    scf.if %2 {
      %cst_10 = arith.constant 0.000000e+00 : f32
      %12 = vector.broadcast %cst_10 : f32 to vector<16x1024xf32>
      %c0_11 = arith.constant 0 : index
      %c0_12 = arith.constant 0 : index
      %13 = vector.load %arg4[%c0_11, %c0_12] : memref<16x1xf32, #tpu.memory_space<vmem>>, vector<16x1xf32>
      %14 = vector.broadcast %13 : vector<16x1xf32> to vector<16x1024xf32>
      %15 = arith.addf %12, %14 : vector<16x1024xf32>
      %c0_13 = arith.constant 0 : index
      %c0_14 = arith.constant 0 : index
      %16 = vector.load %arg6[%c0_13, %c0_14] : memref<16x1024xf32, #tpu.memory_space<vmem>>, vector<16x1024xf32>
      tpu.vector_store %arg6[%c0_13, %c0_14], %15 {strides = array<i32>} : memref<16x1024xf32, #tpu.memory_space<vmem>>, vector<16x1024xf32>,
    } else {
    }
    %c0 = arith.constant 0 : index
    %c0_1 = arith.constant 0 : index
    %3 = vector.load %arg6[%c0, %c0_1] : memref<16x1024xf32, #tpu.memory_space<vmem>>, vector<16x1024xf32>
    %c0_2 = arith.constant 0 : index
    %c0_3 = arith.constant 0 : index
    %4 = vector.load %arg2[%c0_2, %c0_3] : memref<16x27xbf16, #tpu.memory_space<vmem>>, vector<16x27xbf16>
    %c0_4 = arith.constant 0 : index
    %c0_5 = arith.constant 0 : index
    %5 = vector.load %arg3[%c0_4, %c0_5] : memref<27x1024xbf16, #tpu.memory_space<vmem>>, vector<27x1024xbf16>
    %cst = arith.constant dense<0.000000e+00> : vector<16x1024xf32>
    %6 = tpu.matmul %4, %5, %cst {dimension_numbers = #tpu.dot_dimension_numbers<[1], [0], [0], [1], [0, 0, 1, 1], [], []>} : vector<16x27xbf16>, vector<27x1024xbf16>, vector<16x1024xf32> -> vector<16x1024xf32>
    %7 = arith.addf %3, %6 : vector<16x1024xf32>
    %c0_6 = arith.constant 0 : index
    %c0_7 = arith.constant 0 : index
    %8 = vector.load %arg6[%c0_6, %c0_7] : memref<16x1024xf32, #tpu.memory_space<vmem>>, vector<16x1024xf32>
    tpu.vector_store %arg6[%c0_6, %c0_7], %7 {strides = array<i32>} : memref<16x1024xf32, #tpu.memory_space<vmem>>, vector<16x1024xf32>,
    %c0_i32_8 = arith.constant 0 : i32
    %9 = arith.cmpi eq, %arg1, %c0_i32_8 : i32
    %10 = arith.extui %9 : i1 to i32
    %c0_i32_9 = arith.constant 0 : i32
    %11 = arith.cmpi ne, %10, %c0_i32_9 : i32
    scf.if %11 {
      %c0_10 = arith.constant 0 : index
      %c0_11 = arith.constant 0 : index
      %12 = vector.load %arg6[%c0_10, %c0_11] : memref<16x1024xf32, #tpu.memory_space<vmem>>, vector<16x1024xf32>
      %cst_12 = arith.constant 0.000000e+00 : f32
      %13 = vector.broadcast %cst_12 : f32 to vector<16x1024xf32>
      %14 = arith.maximumf %12, %13 : vector<16x1024xf32>
      %15 = arith.truncf %14 : vector<16x1024xf32> to vector<16x1024xbf16>
      %c0_13 = arith.constant 0 : index
      %c0_14 = arith.constant 0 : index
      %16 = vector.load %arg5[%c0_13, %c0_14] : memref<16x1024xbf16, #tpu.memory_space<vmem>>, vector<16x1024xbf16>
      tpu.vector_store %arg5[%c0_13, %c0_14], %15 {strides = array<i32>} : memref<16x1024xbf16, #tpu.memory_space<vmem>>, vector<16x1024xbf16>,
    } else {
    }
    return
  }
  func.func @transform_0(%arg0: i32, %arg1: i32) -> (i32, i32) {
    %c0_i32 = arith.constant 0 : i32
    %c0_i32_0 = arith.constant 0 : i32
    return %c0_i32, %arg1 : i32, i32
  }
  func.func @transform_1(%arg0: i32, %arg1: i32) -> (i32, i32) {
    %c0_i32 = arith.constant 0 : i32
    return %arg1, %arg0 : i32, i32
  }
  func.func @transform_2(%arg0: i32, %arg1: i32) -> (i32, i32) {
    %c0_i32 = arith.constant 0 : i32
    %c0_i32_0 = arith.constant 0 : i32
    %c0_i32_1 = arith.constant 0 : i32
    return %c0_i32, %c0_i32_0 : i32, i32
  }
  func.func @transform_3(%arg0: i32, %arg1: i32) -> (i32, i32) {
    %c0_i32 = arith.constant 0 : i32
    %c0_i32_0 = arith.constant 0 : i32
    return %c0_i32, %arg0 : i32, i32
  }
}

module attributes {stable_mosaic.version = 11 : i64} {
  func.func @_gemm_bias_act_kernel(%arg0: i32, %arg1: i32, %arg2: memref<16x144xbf16, #tpu.memory_space<vmem>>, %arg3: memref<144x256xbf16, #tpu.memory_space<vmem>>, %arg4: memref<16x1xf32, #tpu.memory_space<vmem>>, %arg5: memref<16x256xbf16, #tpu.memory_space<vmem>>, %arg6: memref<16x256xf32, #tpu.memory_space<vmem>>) attributes {dimension_semantics = [#tpu.dimension_semantics<parallel>, #tpu.dimension_semantics<arbitrary>], iteration_bounds = array<i64: 2, 1>, scalar_prefetch = 0 : i64, scratch_operands = 1 : i64, tpu.core_type = #tpu.core_type<tc>, window_params = [{transform_indices = @transform_0, window_bounds = array<i64: 16, 144>}, {transform_indices = @transform_1, window_bounds = array<i64: 144, 256>}, {pipeline_mode = #tpu.pipeline_mode<synchronous>, transform_indices = @transform_2, window_bounds = array<i64: 16, 1>}, {transform_indices = @transform_3, window_bounds = array<i64: 16, 256>}]} {
    %c0_i32 = arith.constant 0 : i32
    %0 = arith.cmpi eq, %arg1, %c0_i32 : i32
    %1 = arith.extui %0 : i1 to i32
    %c0_i32_0 = arith.constant 0 : i32
    %2 = arith.cmpi ne, %1, %c0_i32_0 : i32
    scf.if %2 {
      %cst_10 = arith.constant 0.000000e+00 : f32
      %12 = vector.broadcast %cst_10 : f32 to vector<16x256xf32>
      %c0_11 = arith.constant 0 : index
      %c0_12 = arith.constant 0 : index
      %13 = vector.load %arg4[%c0_11, %c0_12] : memref<16x1xf32, #tpu.memory_space<vmem>>, vector<16x1xf32>
      %14 = vector.broadcast %13 : vector<16x1xf32> to vector<16x256xf32>
      %15 = arith.addf %12, %14 : vector<16x256xf32>
      %c0_13 = arith.constant 0 : index
      %c0_14 = arith.constant 0 : index
      %16 = vector.load %arg6[%c0_13, %c0_14] : memref<16x256xf32, #tpu.memory_space<vmem>>, vector<16x256xf32>
      tpu.vector_store %arg6[%c0_13, %c0_14], %15 {strides = array<i32>} : memref<16x256xf32, #tpu.memory_space<vmem>>, vector<16x256xf32>,
    } else {
    }
    %c0 = arith.constant 0 : index
    %c0_1 = arith.constant 0 : index
    %3 = vector.load %arg6[%c0, %c0_1] : memref<16x256xf32, #tpu.memory_space<vmem>>, vector<16x256xf32>
    %c0_2 = arith.constant 0 : index
    %c0_3 = arith.constant 0 : index
    %4 = vector.load %arg2[%c0_2, %c0_3] : memref<16x144xbf16, #tpu.memory_space<vmem>>, vector<16x144xbf16>
    %c0_4 = arith.constant 0 : index
    %c0_5 = arith.constant 0 : index
    %5 = vector.load %arg3[%c0_4, %c0_5] : memref<144x256xbf16, #tpu.memory_space<vmem>>, vector<144x256xbf16>
    %cst = arith.constant dense<0.000000e+00> : vector<16x256xf32>
    %6 = tpu.matmul %4, %5, %cst {dimension_numbers = #tpu.dot_dimension_numbers<[1], [0], [0], [1], [0, 0, 1, 1], [], []>} : vector<16x144xbf16>, vector<144x256xbf16>, vector<16x256xf32> -> vector<16x256xf32>
    %7 = arith.addf %3, %6 : vector<16x256xf32>
    %c0_6 = arith.constant 0 : index
    %c0_7 = arith.constant 0 : index
    %8 = vector.load %arg6[%c0_6, %c0_7] : memref<16x256xf32, #tpu.memory_space<vmem>>, vector<16x256xf32>
    tpu.vector_store %arg6[%c0_6, %c0_7], %7 {strides = array<i32>} : memref<16x256xf32, #tpu.memory_space<vmem>>, vector<16x256xf32>,
    %c0_i32_8 = arith.constant 0 : i32
    %9 = arith.cmpi eq, %arg1, %c0_i32_8 : i32
    %10 = arith.extui %9 : i1 to i32
    %c0_i32_9 = arith.constant 0 : i32
    %11 = arith.cmpi ne, %10, %c0_i32_9 : i32
    scf.if %11 {
      %c0_10 = arith.constant 0 : index
      %c0_11 = arith.constant 0 : index
      %12 = vector.load %arg6[%c0_10, %c0_11] : memref<16x256xf32, #tpu.memory_space<vmem>>, vector<16x256xf32>
      %cst_12 = arith.constant 0.000000e+00 : f32
      %13 = vector.broadcast %cst_12 : f32 to vector<16x256xf32>
      %14 = arith.maximumf %12, %13 : vector<16x256xf32>
      %15 = arith.truncf %14 : vector<16x256xf32> to vector<16x256xbf16>
      %c0_13 = arith.constant 0 : index
      %c0_14 = arith.constant 0 : index
      %16 = vector.load %arg5[%c0_13, %c0_14] : memref<16x256xbf16, #tpu.memory_space<vmem>>, vector<16x256xbf16>
      tpu.vector_store %arg5[%c0_13, %c0_14], %15 {strides = array<i32>} : memref<16x256xbf16, #tpu.memory_space<vmem>>, vector<16x256xbf16>,
    } else {
    }
    return
  }
  func.func @transform_0(%arg0: i32, %arg1: i32) -> (i32, i32) {
    %c0_i32 = arith.constant 0 : i32
    %c0_i32_0 = arith.constant 0 : i32
    return %c0_i32, %arg1 : i32, i32
  }
  func.func @transform_1(%arg0: i32, %arg1: i32) -> (i32, i32) {
    %c0_i32 = arith.constant 0 : i32
    return %arg1, %arg0 : i32, i32
  }
  func.func @transform_2(%arg0: i32, %arg1: i32) -> (i32, i32) {
    %c0_i32 = arith.constant 0 : i32
    %c0_i32_0 = arith.constant 0 : i32
    %c0_i32_1 = arith.constant 0 : i32
    return %c0_i32, %c0_i32_0 : i32, i32
  }
  func.func @transform_3(%arg0: i32, %arg1: i32) -> (i32, i32) {
    %c0_i32 = arith.constant 0 : i32
    %c0_i32_0 = arith.constant 0 : i32
    return %c0_i32, %arg0 : i32, i32
  }
}

module attributes {stable_mosaic.version = 11 : i64} {
  func.func @_gemm_bias_act_kernel(%arg0: i32, %arg1: i32, %arg2: memref<16x200xbf16, #tpu.memory_space<vmem>>, %arg3: memref<200x128xbf16, #tpu.memory_space<vmem>>, %arg4: memref<16x1xf32, #tpu.memory_space<vmem>>, %arg5: memref<16x128xbf16, #tpu.memory_space<vmem>>, %arg6: memref<16x128xf32, #tpu.memory_space<vmem>>) attributes {dimension_semantics = [#tpu.dimension_semantics<parallel>, #tpu.dimension_semantics<arbitrary>], iteration_bounds = array<i64: 1, 1>, scalar_prefetch = 0 : i64, scratch_operands = 1 : i64, tpu.core_type = #tpu.core_type<tc>, window_params = [{transform_indices = @transform_0, window_bounds = array<i64: 16, 200>}, {transform_indices = @transform_1, window_bounds = array<i64: 200, 128>}, {pipeline_mode = #tpu.pipeline_mode<synchronous>, transform_indices = @transform_2, window_bounds = array<i64: 16, 1>}, {transform_indices = @transform_3, window_bounds = array<i64: 16, 128>}]} {
    %c0_i32 = arith.constant 0 : i32
    %0 = arith.cmpi eq, %arg1, %c0_i32 : i32
    %1 = arith.extui %0 : i1 to i32
    %c0_i32_0 = arith.constant 0 : i32
    %2 = arith.cmpi ne, %1, %c0_i32_0 : i32
    scf.if %2 {
      %cst_10 = arith.constant 0.000000e+00 : f32
      %12 = vector.broadcast %cst_10 : f32 to vector<16x128xf32>
      %c0_11 = arith.constant 0 : index
      %c0_12 = arith.constant 0 : index
      %13 = vector.load %arg4[%c0_11, %c0_12] : memref<16x1xf32, #tpu.memory_space<vmem>>, vector<16x1xf32>
      %14 = vector.broadcast %13 : vector<16x1xf32> to vector<16x128xf32>
      %15 = arith.addf %12, %14 : vector<16x128xf32>
      %c0_13 = arith.constant 0 : index
      %c0_14 = arith.constant 0 : index
      %16 = vector.load %arg6[%c0_13, %c0_14] : memref<16x128xf32, #tpu.memory_space<vmem>>, vector<16x128xf32>
      tpu.vector_store %arg6[%c0_13, %c0_14], %15 {strides = array<i32>} : memref<16x128xf32, #tpu.memory_space<vmem>>, vector<16x128xf32>,
    } else {
    }
    %c0 = arith.constant 0 : index
    %c0_1 = arith.constant 0 : index
    %3 = vector.load %arg6[%c0, %c0_1] : memref<16x128xf32, #tpu.memory_space<vmem>>, vector<16x128xf32>
    %c0_2 = arith.constant 0 : index
    %c0_3 = arith.constant 0 : index
    %4 = vector.load %arg2[%c0_2, %c0_3] : memref<16x200xbf16, #tpu.memory_space<vmem>>, vector<16x200xbf16>
    %c0_4 = arith.constant 0 : index
    %c0_5 = arith.constant 0 : index
    %5 = vector.load %arg3[%c0_4, %c0_5] : memref<200x128xbf16, #tpu.memory_space<vmem>>, vector<200x128xbf16>
    %cst = arith.constant dense<0.000000e+00> : vector<16x128xf32>
    %6 = tpu.matmul %4, %5, %cst {dimension_numbers = #tpu.dot_dimension_numbers<[1], [0], [0], [1], [0, 0, 1, 1], [], []>} : vector<16x200xbf16>, vector<200x128xbf16>, vector<16x128xf32> -> vector<16x128xf32>
    %7 = arith.addf %3, %6 : vector<16x128xf32>
    %c0_6 = arith.constant 0 : index
    %c0_7 = arith.constant 0 : index
    %8 = vector.load %arg6[%c0_6, %c0_7] : memref<16x128xf32, #tpu.memory_space<vmem>>, vector<16x128xf32>
    tpu.vector_store %arg6[%c0_6, %c0_7], %7 {strides = array<i32>} : memref<16x128xf32, #tpu.memory_space<vmem>>, vector<16x128xf32>,
    %c0_i32_8 = arith.constant 0 : i32
    %9 = arith.cmpi eq, %arg1, %c0_i32_8 : i32
    %10 = arith.extui %9 : i1 to i32
    %c0_i32_9 = arith.constant 0 : i32
    %11 = arith.cmpi ne, %10, %c0_i32_9 : i32
    scf.if %11 {
      %c0_10 = arith.constant 0 : index
      %c0_11 = arith.constant 0 : index
      %12 = vector.load %arg6[%c0_10, %c0_11] : memref<16x128xf32, #tpu.memory_space<vmem>>, vector<16x128xf32>
      %cst_12 = arith.constant 0.000000e+00 : f32
      %13 = vector.broadcast %cst_12 : f32 to vector<16x128xf32>
      %14 = arith.maximumf %12, %13 : vector<16x128xf32>
      %15 = arith.truncf %14 : vector<16x128xf32> to vector<16x128xbf16>
      %c0_13 = arith.constant 0 : index
      %c0_14 = arith.constant 0 : index
      %16 = vector.load %arg5[%c0_13, %c0_14] : memref<16x128xbf16, #tpu.memory_space<vmem>>, vector<16x128xbf16>
      tpu.vector_store %arg5[%c0_13, %c0_14], %15 {strides = array<i32>} : memref<16x128xbf16, #tpu.memory_space<vmem>>, vector<16x128xbf16>,
    } else {
    }
    return
  }
  func.func @transform_0(%arg0: i32, %arg1: i32) -> (i32, i32) {
    %c0_i32 = arith.constant 0 : i32
    %c0_i32_0 = arith.constant 0 : i32
    return %c0_i32, %arg1 : i32, i32
  }
  func.func @transform_1(%arg0: i32, %arg1: i32) -> (i32, i32) {
    %c0_i32 = arith.constant 0 : i32
    return %arg1, %arg0 : i32, i32
  }
  func.func @transform_2(%arg0: i32, %arg1: i32) -> (i32, i32) {
    %c0_i32 = arith.constant 0 : i32
    %c0_i32_0 = arith.constant 0 : i32
    %c0_i32_1 = arith.constant 0 : i32
    return %c0_i32, %c0_i32_0 : i32, i32
  }
  func.func @transform_3(%arg0: i32, %arg1: i32) -> (i32, i32) {
    %c0_i32 = arith.constant 0 : i32
    %c0_i32_0 = arith.constant 0 : i32
    return %c0_i32, %arg0 : i32, i32
  }
}

module attributes {stable_mosaic.version = 11 : i64} {
  func.func @_gemm_bias_act_kernel(%arg0: i32, %arg1: i32, %arg2: memref<16x96xbf16, #tpu.memory_space<vmem>>, %arg3: memref<96x128xbf16, #tpu.memory_space<vmem>>, %arg4: memref<16x1xf32, #tpu.memory_space<vmem>>, %arg5: memref<16x128xbf16, #tpu.memory_space<vmem>>, %arg6: memref<16x128xf32, #tpu.memory_space<vmem>>) attributes {dimension_semantics = [#tpu.dimension_semantics<parallel>, #tpu.dimension_semantics<arbitrary>], iteration_bounds = array<i64: 1, 1>, scalar_prefetch = 0 : i64, scratch_operands = 1 : i64, tpu.core_type = #tpu.core_type<tc>, window_params = [{transform_indices = @transform_0, window_bounds = array<i64: 16, 96>}, {transform_indices = @transform_1, window_bounds = array<i64: 96, 128>}, {pipeline_mode = #tpu.pipeline_mode<synchronous>, transform_indices = @transform_2, window_bounds = array<i64: 16, 1>}, {transform_indices = @transform_3, window_bounds = array<i64: 16, 128>}]} {
    %c0_i32 = arith.constant 0 : i32
    %0 = arith.cmpi eq, %arg1, %c0_i32 : i32
    %1 = arith.extui %0 : i1 to i32
    %c0_i32_0 = arith.constant 0 : i32
    %2 = arith.cmpi ne, %1, %c0_i32_0 : i32
    scf.if %2 {
      %cst_10 = arith.constant 0.000000e+00 : f32
      %12 = vector.broadcast %cst_10 : f32 to vector<16x128xf32>
      %c0_11 = arith.constant 0 : index
      %c0_12 = arith.constant 0 : index
      %13 = vector.load %arg4[%c0_11, %c0_12] : memref<16x1xf32, #tpu.memory_space<vmem>>, vector<16x1xf32>
      %14 = vector.broadcast %13 : vector<16x1xf32> to vector<16x128xf32>
      %15 = arith.addf %12, %14 : vector<16x128xf32>
      %c0_13 = arith.constant 0 : index
      %c0_14 = arith.constant 0 : index
      %16 = vector.load %arg6[%c0_13, %c0_14] : memref<16x128xf32, #tpu.memory_space<vmem>>, vector<16x128xf32>
      tpu.vector_store %arg6[%c0_13, %c0_14], %15 {strides = array<i32>} : memref<16x128xf32, #tpu.memory_space<vmem>>, vector<16x128xf32>,
    } else {
    }
    %c0 = arith.constant 0 : index
    %c0_1 = arith.constant 0 : index
    %3 = vector.load %arg6[%c0, %c0_1] : memref<16x128xf32, #tpu.memory_space<vmem>>, vector<16x128xf32>
    %c0_2 = arith.constant 0 : index
    %c0_3 = arith.constant 0 : index
    %4 = vector.load %arg2[%c0_2, %c0_3] : memref<16x96xbf16, #tpu.memory_space<vmem>>, vector<16x96xbf16>
    %c0_4 = arith.constant 0 : index
    %c0_5 = arith.constant 0 : index
    %5 = vector.load %arg3[%c0_4, %c0_5] : memref<96x128xbf16, #tpu.memory_space<vmem>>, vector<96x128xbf16>
    %cst = arith.constant dense<0.000000e+00> : vector<16x128xf32>
    %6 = tpu.matmul %4, %5, %cst {dimension_numbers = #tpu.dot_dimension_numbers<[1], [0], [0], [1], [0, 0, 1, 1], [], []>} : vector<16x96xbf16>, vector<96x128xbf16>, vector<16x128xf32> -> vector<16x128xf32>
    %7 = arith.addf %3, %6 : vector<16x128xf32>
    %c0_6 = arith.constant 0 : index
    %c0_7 = arith.constant 0 : index
    %8 = vector.load %arg6[%c0_6, %c0_7] : memref<16x128xf32, #tpu.memory_space<vmem>>, vector<16x128xf32>
    tpu.vector_store %arg6[%c0_6, %c0_7], %7 {strides = array<i32>} : memref<16x128xf32, #tpu.memory_space<vmem>>, vector<16x128xf32>,
    %c0_i32_8 = arith.constant 0 : i32
    %9 = arith.cmpi eq, %arg1, %c0_i32_8 : i32
    %10 = arith.extui %9 : i1 to i32
    %c0_i32_9 = arith.constant 0 : i32
    %11 = arith.cmpi ne, %10, %c0_i32_9 : i32
    scf.if %11 {
      %c0_10 = arith.constant 0 : index
      %c0_11 = arith.constant 0 : index
      %12 = vector.load %arg6[%c0_10, %c0_11] : memref<16x128xf32, #tpu.memory_space<vmem>>, vector<16x128xf32>
      %cst_12 = arith.constant 0.000000e+00 : f32
      %13 = vector.broadcast %cst_12 : f32 to vector<16x128xf32>
      %14 = arith.maximumf %12, %13 : vector<16x128xf32>
      %15 = arith.truncf %14 : vector<16x128xf32> to vector<16x128xbf16>
      %c0_13 = arith.constant 0 : index
      %c0_14 = arith.constant 0 : index
      %16 = vector.load %arg5[%c0_13, %c0_14] : memref<16x128xbf16, #tpu.memory_space<vmem>>, vector<16x128xbf16>
      tpu.vector_store %arg5[%c0_13, %c0_14], %15 {strides = array<i32>} : memref<16x128xbf16, #tpu.memory_space<vmem>>, vector<16x128xbf16>,
    } else {
    }
    return
  }
  func.func @transform_0(%arg0: i32, %arg1: i32) -> (i32, i32) {
    %c0_i32 = arith.constant 0 : i32
    %c0_i32_0 = arith.constant 0 : i32
    return %c0_i32, %arg1 : i32, i32
  }
  func.func @transform_1(%arg0: i32, %arg1: i32) -> (i32, i32) {
    %c0_i32 = arith.constant 0 : i32
    return %arg1, %arg0 : i32, i32
  }
  func.func @transform_2(%arg0: i32, %arg1: i32) -> (i32, i32) {
    %c0_i32 = arith.constant 0 : i32
    %c0_i32_0 = arith.constant 0 : i32
    %c0_i32_1 = arith.constant 0 : i32
    return %c0_i32, %c0_i32_0 : i32, i32
  }
  func.func @transform_3(%arg0: i32, %arg1: i32) -> (i32, i32) {
    %c0_i32 = arith.constant 0 : i32
    %c0_i32_0 = arith.constant 0 : i32
    return %c0_i32, %arg0 : i32, i32
  }
}

module attributes {stable_mosaic.version = 11 : i64} {
  func.func @_gemm_bias_act_kernel(%arg0: i32, %arg1: i32, %arg2: memref<16x144xbf16, #tpu.memory_space<vmem>>, %arg3: memref<144x128xbf16, #tpu.memory_space<vmem>>, %arg4: memref<16x1xf32, #tpu.memory_space<vmem>>, %arg5: memref<16x128xbf16, #tpu.memory_space<vmem>>, %arg6: memref<16x128xf32, #tpu.memory_space<vmem>>) attributes {dimension_semantics = [#tpu.dimension_semantics<parallel>, #tpu.dimension_semantics<arbitrary>], iteration_bounds = array<i64: 1, 1>, scalar_prefetch = 0 : i64, scratch_operands = 1 : i64, tpu.core_type = #tpu.core_type<tc>, window_params = [{transform_indices = @transform_0, window_bounds = array<i64: 16, 144>}, {transform_indices = @transform_1, window_bounds = array<i64: 144, 128>}, {pipeline_mode = #tpu.pipeline_mode<synchronous>, transform_indices = @transform_2, window_bounds = array<i64: 16, 1>}, {transform_indices = @transform_3, window_bounds = array<i64: 16, 128>}]} {
    %c0_i32 = arith.constant 0 : i32
    %0 = arith.cmpi eq, %arg1, %c0_i32 : i32
    %1 = arith.extui %0 : i1 to i32
    %c0_i32_0 = arith.constant 0 : i32
    %2 = arith.cmpi ne, %1, %c0_i32_0 : i32
    scf.if %2 {
      %cst_10 = arith.constant 0.000000e+00 : f32
      %12 = vector.broadcast %cst_10 : f32 to vector<16x128xf32>
      %c0_11 = arith.constant 0 : index
      %c0_12 = arith.constant 0 : index
      %13 = vector.load %arg4[%c0_11, %c0_12] : memref<16x1xf32, #tpu.memory_space<vmem>>, vector<16x1xf32>
      %14 = vector.broadcast %13 : vector<16x1xf32> to vector<16x128xf32>
      %15 = arith.addf %12, %14 : vector<16x128xf32>
      %c0_13 = arith.constant 0 : index
      %c0_14 = arith.constant 0 : index
      %16 = vector.load %arg6[%c0_13, %c0_14] : memref<16x128xf32, #tpu.memory_space<vmem>>, vector<16x128xf32>
      tpu.vector_store %arg6[%c0_13, %c0_14], %15 {strides = array<i32>} : memref<16x128xf32, #tpu.memory_space<vmem>>, vector<16x128xf32>,
    } else {
    }
    %c0 = arith.constant 0 : index
    %c0_1 = arith.constant 0 : index
    %3 = vector.load %arg6[%c0, %c0_1] : memref<16x128xf32, #tpu.memory_space<vmem>>, vector<16x128xf32>
    %c0_2 = arith.constant 0 : index
    %c0_3 = arith.constant 0 : index
    %4 = vector.load %arg2[%c0_2, %c0_3] : memref<16x144xbf16, #tpu.memory_space<vmem>>, vector<16x144xbf16>
    %c0_4 = arith.constant 0 : index
    %c0_5 = arith.constant 0 : index
    %5 = vector.load %arg3[%c0_4, %c0_5] : memref<144x128xbf16, #tpu.memory_space<vmem>>, vector<144x128xbf16>
    %cst = arith.constant dense<0.000000e+00> : vector<16x128xf32>
    %6 = tpu.matmul %4, %5, %cst {dimension_numbers = #tpu.dot_dimension_numbers<[1], [0], [0], [1], [0, 0, 1, 1], [], []>} : vector<16x144xbf16>, vector<144x128xbf16>, vector<16x128xf32> -> vector<16x128xf32>
    %7 = arith.addf %3, %6 : vector<16x128xf32>
    %c0_6 = arith.constant 0 : index
    %c0_7 = arith.constant 0 : index
    %8 = vector.load %arg6[%c0_6, %c0_7] : memref<16x128xf32, #tpu.memory_space<vmem>>, vector<16x128xf32>
    tpu.vector_store %arg6[%c0_6, %c0_7], %7 {strides = array<i32>} : memref<16x128xf32, #tpu.memory_space<vmem>>, vector<16x128xf32>,
    %c0_i32_8 = arith.constant 0 : i32
    %9 = arith.cmpi eq, %arg1, %c0_i32_8 : i32
    %10 = arith.extui %9 : i1 to i32
    %c0_i32_9 = arith.constant 0 : i32
    %11 = arith.cmpi ne, %10, %c0_i32_9 : i32
    scf.if %11 {
      %c0_10 = arith.constant 0 : index
      %c0_11 = arith.constant 0 : index
      %12 = vector.load %arg6[%c0_10, %c0_11] : memref<16x128xf32, #tpu.memory_space<vmem>>, vector<16x128xf32>
      %cst_12 = arith.constant 0.000000e+00 : f32
      %13 = vector.broadcast %cst_12 : f32 to vector<16x128xf32>
      %14 = arith.maximumf %12, %13 : vector<16x128xf32>
      %15 = arith.truncf %14 : vector<16x128xf32> to vector<16x128xbf16>
      %c0_13 = arith.constant 0 : index
      %c0_14 = arith.constant 0 : index
      %16 = vector.load %arg5[%c0_13, %c0_14] : memref<16x128xbf16, #tpu.memory_space<vmem>>, vector<16x128xbf16>
      tpu.vector_store %arg5[%c0_13, %c0_14], %15 {strides = array<i32>} : memref<16x128xbf16, #tpu.memory_space<vmem>>, vector<16x128xbf16>,
    } else {
    }
    return
  }
  func.func @transform_0(%arg0: i32, %arg1: i32) -> (i32, i32) {
    %c0_i32 = arith.constant 0 : i32
    %c0_i32_0 = arith.constant 0 : i32
    return %c0_i32, %arg1 : i32, i32
  }
  func.func @transform_1(%arg0: i32, %arg1: i32) -> (i32, i32) {
    %c0_i32 = arith.constant 0 : i32
    return %arg1, %arg0 : i32, i32
  }
  func.func @transform_2(%arg0: i32, %arg1: i32) -> (i32, i32) {
    %c0_i32 = arith.constant 0 : i32
    %c0_i32_0 = arith.constant 0 : i32
    %c0_i32_1 = arith.constant 0 : i32
    return %c0_i32, %c0_i32_0 : i32, i32
  }
  func.func @transform_3(%arg0: i32, %arg1: i32) -> (i32, i32) {
    %c0_i32 = arith.constant 0 : i32
    %c0_i32_0 = arith.constant 0 : i32
    return %c0_i32, %arg0 : i32, i32
  }
}

module attributes {stable_mosaic.version = 11 : i64} {
  func.func @_gemm_bias_act_kernel(%arg0: i32, %arg1: i32, %arg2: memref<16x64xbf16, #tpu.memory_space<vmem>>, %arg3: memref<64x128xbf16, #tpu.memory_space<vmem>>, %arg4: memref<16x1xf32, #tpu.memory_space<vmem>>, %arg5: memref<16x128xbf16, #tpu.memory_space<vmem>>, %arg6: memref<16x128xf32, #tpu.memory_space<vmem>>) attributes {dimension_semantics = [#tpu.dimension_semantics<parallel>, #tpu.dimension_semantics<arbitrary>], iteration_bounds = array<i64: 1, 1>, scalar_prefetch = 0 : i64, scratch_operands = 1 : i64, tpu.core_type = #tpu.core_type<tc>, window_params = [{transform_indices = @transform_0, window_bounds = array<i64: 16, 64>}, {transform_indices = @transform_1, window_bounds = array<i64: 64, 128>}, {pipeline_mode = #tpu.pipeline_mode<synchronous>, transform_indices = @transform_2, window_bounds = array<i64: 16, 1>}, {transform_indices = @transform_3, window_bounds = array<i64: 16, 128>}]} {
    %c0_i32 = arith.constant 0 : i32
    %0 = arith.cmpi eq, %arg1, %c0_i32 : i32
    %1 = arith.extui %0 : i1 to i32
    %c0_i32_0 = arith.constant 0 : i32
    %2 = arith.cmpi ne, %1, %c0_i32_0 : i32
    scf.if %2 {
      %cst_10 = arith.constant 0.000000e+00 : f32
      %12 = vector.broadcast %cst_10 : f32 to vector<16x128xf32>
      %c0_11 = arith.constant 0 : index
      %c0_12 = arith.constant 0 : index
      %13 = vector.load %arg4[%c0_11, %c0_12] : memref<16x1xf32, #tpu.memory_space<vmem>>, vector<16x1xf32>
      %14 = vector.broadcast %13 : vector<16x1xf32> to vector<16x128xf32>
      %15 = arith.addf %12, %14 : vector<16x128xf32>
      %c0_13 = arith.constant 0 : index
      %c0_14 = arith.constant 0 : index
      %16 = vector.load %arg6[%c0_13, %c0_14] : memref<16x128xf32, #tpu.memory_space<vmem>>, vector<16x128xf32>
      tpu.vector_store %arg6[%c0_13, %c0_14], %15 {strides = array<i32>} : memref<16x128xf32, #tpu.memory_space<vmem>>, vector<16x128xf32>,
    } else {
    }
    %c0 = arith.constant 0 : index
    %c0_1 = arith.constant 0 : index
    %3 = vector.load %arg6[%c0, %c0_1] : memref<16x128xf32, #tpu.memory_space<vmem>>, vector<16x128xf32>
    %c0_2 = arith.constant 0 : index
    %c0_3 = arith.constant 0 : index
    %4 = vector.load %arg2[%c0_2, %c0_3] : memref<16x64xbf16, #tpu.memory_space<vmem>>, vector<16x64xbf16>
    %c0_4 = arith.constant 0 : index
    %c0_5 = arith.constant 0 : index
    %5 = vector.load %arg3[%c0_4, %c0_5] : memref<64x128xbf16, #tpu.memory_space<vmem>>, vector<64x128xbf16>
    %cst = arith.constant dense<0.000000e+00> : vector<16x128xf32>
    %6 = tpu.matmul %4, %5, %cst {dimension_numbers = #tpu.dot_dimension_numbers<[1], [0], [0], [1], [0, 0, 1, 1], [], []>} : vector<16x64xbf16>, vector<64x128xbf16>, vector<16x128xf32> -> vector<16x128xf32>
    %7 = arith.addf %3, %6 : vector<16x128xf32>
    %c0_6 = arith.constant 0 : index
    %c0_7 = arith.constant 0 : index
    %8 = vector.load %arg6[%c0_6, %c0_7] : memref<16x128xf32, #tpu.memory_space<vmem>>, vector<16x128xf32>
    tpu.vector_store %arg6[%c0_6, %c0_7], %7 {strides = array<i32>} : memref<16x128xf32, #tpu.memory_space<vmem>>, vector<16x128xf32>,
    %c0_i32_8 = arith.constant 0 : i32
    %9 = arith.cmpi eq, %arg1, %c0_i32_8 : i32
    %10 = arith.extui %9 : i1 to i32
    %c0_i32_9 = arith.constant 0 : i32
    %11 = arith.cmpi ne, %10, %c0_i32_9 : i32
    scf.if %11 {
      %c0_10 = arith.constant 0 : index
      %c0_11 = arith.constant 0 : index
      %12 = vector.load %arg6[%c0_10, %c0_11] : memref<16x128xf32, #tpu.memory_space<vmem>>, vector<16x128xf32>
      %cst_12 = arith.constant 0.000000e+00 : f32
      %13 = vector.broadcast %cst_12 : f32 to vector<16x128xf32>
      %14 = arith.maximumf %12, %13 : vector<16x128xf32>
      %15 = arith.truncf %14 : vector<16x128xf32> to vector<16x128xbf16>
      %c0_13 = arith.constant 0 : index
      %c0_14 = arith.constant 0 : index
      %16 = vector.load %arg5[%c0_13, %c0_14] : memref<16x128xbf16, #tpu.memory_space<vmem>>, vector<16x128xbf16>
      tpu.vector_store %arg5[%c0_13, %c0_14], %15 {strides = array<i32>} : memref<16x128xbf16, #tpu.memory_space<vmem>>, vector<16x128xbf16>,
    } else {
    }
    return
  }
  func.func @transform_0(%arg0: i32, %arg1: i32) -> (i32, i32) {
    %c0_i32 = arith.constant 0 : i32
    %c0_i32_0 = arith.constant 0 : i32
    return %c0_i32, %arg1 : i32, i32
  }
  func.func @transform_1(%arg0: i32, %arg1: i32) -> (i32, i32) {
    %c0_i32 = arith.constant 0 : i32
    return %arg1, %arg0 : i32, i32
  }
  func.func @transform_2(%arg0: i32, %arg1: i32) -> (i32, i32) {
    %c0_i32 = arith.constant 0 : i32
    %c0_i32_0 = arith.constant 0 : i32
    %c0_i32_1 = arith.constant 0 : i32
    return %c0_i32, %c0_i32_0 : i32, i32
  }
  func.func @transform_3(%arg0: i32, %arg1: i32) -> (i32, i32) {
    %c0_i32 = arith.constant 0 : i32
    %c0_i32_0 = arith.constant 0 : i32
    return %c0_i32, %arg0 : i32, i32
  }
}

module attributes {stable_mosaic.version = 11 : i64} {
  func.func @_gemm_bias_act_kernel(%arg0: i32, %arg1: i32, %arg2: memref<16x48xbf16, #tpu.memory_space<vmem>>, %arg3: memref<48x128xbf16, #tpu.memory_space<vmem>>, %arg4: memref<16x1xf32, #tpu.memory_space<vmem>>, %arg5: memref<16x128xbf16, #tpu.memory_space<vmem>>, %arg6: memref<16x128xf32, #tpu.memory_space<vmem>>) attributes {dimension_semantics = [#tpu.dimension_semantics<parallel>, #tpu.dimension_semantics<arbitrary>], iteration_bounds = array<i64: 1, 1>, scalar_prefetch = 0 : i64, scratch_operands = 1 : i64, tpu.core_type = #tpu.core_type<tc>, window_params = [{transform_indices = @transform_0, window_bounds = array<i64: 16, 48>}, {transform_indices = @transform_1, window_bounds = array<i64: 48, 128>}, {pipeline_mode = #tpu.pipeline_mode<synchronous>, transform_indices = @transform_2, window_bounds = array<i64: 16, 1>}, {transform_indices = @transform_3, window_bounds = array<i64: 16, 128>}]} {
    %c0_i32 = arith.constant 0 : i32
    %0 = arith.cmpi eq, %arg1, %c0_i32 : i32
    %1 = arith.extui %0 : i1 to i32
    %c0_i32_0 = arith.constant 0 : i32
    %2 = arith.cmpi ne, %1, %c0_i32_0 : i32
    scf.if %2 {
      %cst_10 = arith.constant 0.000000e+00 : f32
      %12 = vector.broadcast %cst_10 : f32 to vector<16x128xf32>
      %c0_11 = arith.constant 0 : index
      %c0_12 = arith.constant 0 : index
      %13 = vector.load %arg4[%c0_11, %c0_12] : memref<16x1xf32, #tpu.memory_space<vmem>>, vector<16x1xf32>
      %14 = vector.broadcast %13 : vector<16x1xf32> to vector<16x128xf32>
      %15 = arith.addf %12, %14 : vector<16x128xf32>
      %c0_13 = arith.constant 0 : index
      %c0_14 = arith.constant 0 : index
      %16 = vector.load %arg6[%c0_13, %c0_14] : memref<16x128xf32, #tpu.memory_space<vmem>>, vector<16x128xf32>
      tpu.vector_store %arg6[%c0_13, %c0_14], %15 {strides = array<i32>} : memref<16x128xf32, #tpu.memory_space<vmem>>, vector<16x128xf32>,
    } else {
    }
    %c0 = arith.constant 0 : index
    %c0_1 = arith.constant 0 : index
    %3 = vector.load %arg6[%c0, %c0_1] : memref<16x128xf32, #tpu.memory_space<vmem>>, vector<16x128xf32>
    %c0_2 = arith.constant 0 : index
    %c0_3 = arith.constant 0 : index
    %4 = vector.load %arg2[%c0_2, %c0_3] : memref<16x48xbf16, #tpu.memory_space<vmem>>, vector<16x48xbf16>
    %c0_4 = arith.constant 0 : index
    %c0_5 = arith.constant 0 : index
    %5 = vector.load %arg3[%c0_4, %c0_5] : memref<48x128xbf16, #tpu.memory_space<vmem>>, vector<48x128xbf16>
    %cst = arith.constant dense<0.000000e+00> : vector<16x128xf32>
    %6 = tpu.matmul %4, %5, %cst {dimension_numbers = #tpu.dot_dimension_numbers<[1], [0], [0], [1], [0, 0, 1, 1], [], []>} : vector<16x48xbf16>, vector<48x128xbf16>, vector<16x128xf32> -> vector<16x128xf32>
    %7 = arith.addf %3, %6 : vector<16x128xf32>
    %c0_6 = arith.constant 0 : index
    %c0_7 = arith.constant 0 : index
    %8 = vector.load %arg6[%c0_6, %c0_7] : memref<16x128xf32, #tpu.memory_space<vmem>>, vector<16x128xf32>
    tpu.vector_store %arg6[%c0_6, %c0_7], %7 {strides = array<i32>} : memref<16x128xf32, #tpu.memory_space<vmem>>, vector<16x128xf32>,
    %c0_i32_8 = arith.constant 0 : i32
    %9 = arith.cmpi eq, %arg1, %c0_i32_8 : i32
    %10 = arith.extui %9 : i1 to i32
    %c0_i32_9 = arith.constant 0 : i32
    %11 = arith.cmpi ne, %10, %c0_i32_9 : i32
    scf.if %11 {
      %c0_10 = arith.constant 0 : index
      %c0_11 = arith.constant 0 : index
      %12 = vector.load %arg6[%c0_10, %c0_11] : memref<16x128xf32, #tpu.memory_space<vmem>>, vector<16x128xf32>
      %cst_12 = arith.constant 0.000000e+00 : f32
      %13 = vector.broadcast %cst_12 : f32 to vector<16x128xf32>
      %14 = arith.maximumf %12, %13 : vector<16x128xf32>
      %15 = arith.truncf %14 : vector<16x128xf32> to vector<16x128xbf16>
      %c0_13 = arith.constant 0 : index
      %c0_14 = arith.constant 0 : index
      %16 = vector.load %arg5[%c0_13, %c0_14] : memref<16x128xbf16, #tpu.memory_space<vmem>>, vector<16x128xbf16>
      tpu.vector_store %arg5[%c0_13, %c0_14], %15 {strides = array<i32>} : memref<16x128xbf16, #tpu.memory_space<vmem>>, vector<16x128xbf16>,
    } else {
    }
    return
  }
  func.func @transform_0(%arg0: i32, %arg1: i32) -> (i32, i32) {
    %c0_i32 = arith.constant 0 : i32
    %c0_i32_0 = arith.constant 0 : i32
    return %c0_i32, %arg1 : i32, i32
  }
  func.func @transform_1(%arg0: i32, %arg1: i32) -> (i32, i32) {
    %c0_i32 = arith.constant 0 : i32
    return %arg1, %arg0 : i32, i32
  }
  func.func @transform_2(%arg0: i32, %arg1: i32) -> (i32, i32) {
    %c0_i32 = arith.constant 0 : i32
    %c0_i32_0 = arith.constant 0 : i32
    %c0_i32_1 = arith.constant 0 : i32
    return %c0_i32, %c0_i32_0 : i32, i32
  }
  func.func @transform_3(%arg0: i32, %arg1: i32) -> (i32, i32) {
    %c0_i32 = arith.constant 0 : i32
    %c0_i32_0 = arith.constant 0 : i32
    return %c0_i32, %arg0 : i32, i32
  }
}

module attributes {stable_mosaic.version = 11 : i64} {
  func.func @_gemm_bias_act_kernel(%arg0: i32, %arg1: i32, %arg2: memref<16x72xbf16, #tpu.memory_space<vmem>>, %arg3: memref<72x128xbf16, #tpu.memory_space<vmem>>, %arg4: memref<16x1xf32, #tpu.memory_space<vmem>>, %arg5: memref<16x128xbf16, #tpu.memory_space<vmem>>, %arg6: memref<16x128xf32, #tpu.memory_space<vmem>>) attributes {dimension_semantics = [#tpu.dimension_semantics<parallel>, #tpu.dimension_semantics<arbitrary>], iteration_bounds = array<i64: 1, 1>, scalar_prefetch = 0 : i64, scratch_operands = 1 : i64, tpu.core_type = #tpu.core_type<tc>, window_params = [{transform_indices = @transform_0, window_bounds = array<i64: 16, 72>}, {transform_indices = @transform_1, window_bounds = array<i64: 72, 128>}, {pipeline_mode = #tpu.pipeline_mode<synchronous>, transform_indices = @transform_2, window_bounds = array<i64: 16, 1>}, {transform_indices = @transform_3, window_bounds = array<i64: 16, 128>}]} {
    %c0_i32 = arith.constant 0 : i32
    %0 = arith.cmpi eq, %arg1, %c0_i32 : i32
    %1 = arith.extui %0 : i1 to i32
    %c0_i32_0 = arith.constant 0 : i32
    %2 = arith.cmpi ne, %1, %c0_i32_0 : i32
    scf.if %2 {
      %cst_10 = arith.constant 0.000000e+00 : f32
      %12 = vector.broadcast %cst_10 : f32 to vector<16x128xf32>
      %c0_11 = arith.constant 0 : index
      %c0_12 = arith.constant 0 : index
      %13 = vector.load %arg4[%c0_11, %c0_12] : memref<16x1xf32, #tpu.memory_space<vmem>>, vector<16x1xf32>
      %14 = vector.broadcast %13 : vector<16x1xf32> to vector<16x128xf32>
      %15 = arith.addf %12, %14 : vector<16x128xf32>
      %c0_13 = arith.constant 0 : index
      %c0_14 = arith.constant 0 : index
      %16 = vector.load %arg6[%c0_13, %c0_14] : memref<16x128xf32, #tpu.memory_space<vmem>>, vector<16x128xf32>
      tpu.vector_store %arg6[%c0_13, %c0_14], %15 {strides = array<i32>} : memref<16x128xf32, #tpu.memory_space<vmem>>, vector<16x128xf32>,
    } else {
    }
    %c0 = arith.constant 0 : index
    %c0_1 = arith.constant 0 : index
    %3 = vector.load %arg6[%c0, %c0_1] : memref<16x128xf32, #tpu.memory_space<vmem>>, vector<16x128xf32>
    %c0_2 = arith.constant 0 : index
    %c0_3 = arith.constant 0 : index
    %4 = vector.load %arg2[%c0_2, %c0_3] : memref<16x72xbf16, #tpu.memory_space<vmem>>, vector<16x72xbf16>
    %c0_4 = arith.constant 0 : index
    %c0_5 = arith.constant 0 : index
    %5 = vector.load %arg3[%c0_4, %c0_5] : memref<72x128xbf16, #tpu.memory_space<vmem>>, vector<72x128xbf16>
    %cst = arith.constant dense<0.000000e+00> : vector<16x128xf32>
    %6 = tpu.matmul %4, %5, %cst {dimension_numbers = #tpu.dot_dimension_numbers<[1], [0], [0], [1], [0, 0, 1, 1], [], []>} : vector<16x72xbf16>, vector<72x128xbf16>, vector<16x128xf32> -> vector<16x128xf32>
    %7 = arith.addf %3, %6 : vector<16x128xf32>
    %c0_6 = arith.constant 0 : index
    %c0_7 = arith.constant 0 : index
    %8 = vector.load %arg6[%c0_6, %c0_7] : memref<16x128xf32, #tpu.memory_space<vmem>>, vector<16x128xf32>
    tpu.vector_store %arg6[%c0_6, %c0_7], %7 {strides = array<i32>} : memref<16x128xf32, #tpu.memory_space<vmem>>, vector<16x128xf32>,
    %c0_i32_8 = arith.constant 0 : i32
    %9 = arith.cmpi eq, %arg1, %c0_i32_8 : i32
    %10 = arith.extui %9 : i1 to i32
    %c0_i32_9 = arith.constant 0 : i32
    %11 = arith.cmpi ne, %10, %c0_i32_9 : i32
    scf.if %11 {
      %c0_10 = arith.constant 0 : index
      %c0_11 = arith.constant 0 : index
      %12 = vector.load %arg6[%c0_10, %c0_11] : memref<16x128xf32, #tpu.memory_space<vmem>>, vector<16x128xf32>
      %cst_12 = arith.constant 0.000000e+00 : f32
      %13 = vector.broadcast %cst_12 : f32 to vector<16x128xf32>
      %14 = arith.maximumf %12, %13 : vector<16x128xf32>
      %15 = arith.truncf %14 : vector<16x128xf32> to vector<16x128xbf16>
      %c0_13 = arith.constant 0 : index
      %c0_14 = arith.constant 0 : index
      %16 = vector.load %arg5[%c0_13, %c0_14] : memref<16x128xbf16, #tpu.memory_space<vmem>>, vector<16x128xbf16>
      tpu.vector_store %arg5[%c0_13, %c0_14], %15 {strides = array<i32>} : memref<16x128xbf16, #tpu.memory_space<vmem>>, vector<16x128xbf16>,
    } else {
    }
    return
  }
  func.func @transform_0(%arg0: i32, %arg1: i32) -> (i32, i32) {
    %c0_i32 = arith.constant 0 : i32
    %c0_i32_0 = arith.constant 0 : i32
    return %c0_i32, %arg1 : i32, i32
  }
  func.func @transform_1(%arg0: i32, %arg1: i32) -> (i32, i32) {
    %c0_i32 = arith.constant 0 : i32
    return %arg1, %arg0 : i32, i32
  }
  func.func @transform_2(%arg0: i32, %arg1: i32) -> (i32, i32) {
    %c0_i32 = arith.constant 0 : i32
    %c0_i32_0 = arith.constant 0 : i32
    %c0_i32_1 = arith.constant 0 : i32
    return %c0_i32, %c0_i32_0 : i32, i32
  }
  func.func @transform_3(%arg0: i32, %arg1: i32) -> (i32, i32) {
    %c0_i32 = arith.constant 0 : i32
    %c0_i32_0 = arith.constant 0 : i32
    return %c0_i32, %arg0 : i32, i32
  }
}

module attributes {stable_mosaic.version = 11 : i64} {
  func.func @_gemm_bias_act_kernel(%arg0: i32, %arg1: i32, %arg2: memref<16x32xbf16, #tpu.memory_space<vmem>>, %arg3: memref<32x128xbf16, #tpu.memory_space<vmem>>, %arg4: memref<16x1xf32, #tpu.memory_space<vmem>>, %arg5: memref<16x128xbf16, #tpu.memory_space<vmem>>, %arg6: memref<16x128xf32, #tpu.memory_space<vmem>>) attributes {dimension_semantics = [#tpu.dimension_semantics<parallel>, #tpu.dimension_semantics<arbitrary>], iteration_bounds = array<i64: 1, 1>, scalar_prefetch = 0 : i64, scratch_operands = 1 : i64, tpu.core_type = #tpu.core_type<tc>, window_params = [{transform_indices = @transform_0, window_bounds = array<i64: 16, 32>}, {transform_indices = @transform_1, window_bounds = array<i64: 32, 128>}, {pipeline_mode = #tpu.pipeline_mode<synchronous>, transform_indices = @transform_2, window_bounds = array<i64: 16, 1>}, {transform_indices = @transform_3, window_bounds = array<i64: 16, 128>}]} {
    %c0_i32 = arith.constant 0 : i32
    %0 = arith.cmpi eq, %arg1, %c0_i32 : i32
    %1 = arith.extui %0 : i1 to i32
    %c0_i32_0 = arith.constant 0 : i32
    %2 = arith.cmpi ne, %1, %c0_i32_0 : i32
    scf.if %2 {
      %cst_10 = arith.constant 0.000000e+00 : f32
      %12 = vector.broadcast %cst_10 : f32 to vector<16x128xf32>
      %c0_11 = arith.constant 0 : index
      %c0_12 = arith.constant 0 : index
      %13 = vector.load %arg4[%c0_11, %c0_12] : memref<16x1xf32, #tpu.memory_space<vmem>>, vector<16x1xf32>
      %14 = vector.broadcast %13 : vector<16x1xf32> to vector<16x128xf32>
      %15 = arith.addf %12, %14 : vector<16x128xf32>
      %c0_13 = arith.constant 0 : index
      %c0_14 = arith.constant 0 : index
      %16 = vector.load %arg6[%c0_13, %c0_14] : memref<16x128xf32, #tpu.memory_space<vmem>>, vector<16x128xf32>
      tpu.vector_store %arg6[%c0_13, %c0_14], %15 {strides = array<i32>} : memref<16x128xf32, #tpu.memory_space<vmem>>, vector<16x128xf32>,
    } else {
    }
    %c0 = arith.constant 0 : index
    %c0_1 = arith.constant 0 : index
    %3 = vector.load %arg6[%c0, %c0_1] : memref<16x128xf32, #tpu.memory_space<vmem>>, vector<16x128xf32>
    %c0_2 = arith.constant 0 : index
    %c0_3 = arith.constant 0 : index
    %4 = vector.load %arg2[%c0_2, %c0_3] : memref<16x32xbf16, #tpu.memory_space<vmem>>, vector<16x32xbf16>
    %c0_4 = arith.constant 0 : index
    %c0_5 = arith.constant 0 : index
    %5 = vector.load %arg3[%c0_4, %c0_5] : memref<32x128xbf16, #tpu.memory_space<vmem>>, vector<32x128xbf16>
    %cst = arith.constant dense<0.000000e+00> : vector<16x128xf32>
    %6 = tpu.matmul %4, %5, %cst {dimension_numbers = #tpu.dot_dimension_numbers<[1], [0], [0], [1], [0, 0, 1, 1], [], []>} : vector<16x32xbf16>, vector<32x128xbf16>, vector<16x128xf32> -> vector<16x128xf32>
    %7 = arith.addf %3, %6 : vector<16x128xf32>
    %c0_6 = arith.constant 0 : index
    %c0_7 = arith.constant 0 : index
    %8 = vector.load %arg6[%c0_6, %c0_7] : memref<16x128xf32, #tpu.memory_space<vmem>>, vector<16x128xf32>
    tpu.vector_store %arg6[%c0_6, %c0_7], %7 {strides = array<i32>} : memref<16x128xf32, #tpu.memory_space<vmem>>, vector<16x128xf32>,
    %c0_i32_8 = arith.constant 0 : i32
    %9 = arith.cmpi eq, %arg1, %c0_i32_8 : i32
    %10 = arith.extui %9 : i1 to i32
    %c0_i32_9 = arith.constant 0 : i32
    %11 = arith.cmpi ne, %10, %c0_i32_9 : i32
    scf.if %11 {
      %c0_10 = arith.constant 0 : index
      %c0_11 = arith.constant 0 : index
      %12 = vector.load %arg6[%c0_10, %c0_11] : memref<16x128xf32, #tpu.memory_space<vmem>>, vector<16x128xf32>
      %cst_12 = arith.constant 0.000000e+00 : f32
      %13 = vector.broadcast %cst_12 : f32 to vector<16x128xf32>
      %14 = arith.maximumf %12, %13 : vector<16x128xf32>
      %15 = arith.truncf %14 : vector<16x128xf32> to vector<16x128xbf16>
      %c0_13 = arith.constant 0 : index
      %c0_14 = arith.constant 0 : index
      %16 = vector.load %arg5[%c0_13, %c0_14] : memref<16x128xbf16, #tpu.memory_space<vmem>>, vector<16x128xbf16>
      tpu.vector_store %arg5[%c0_13, %c0_14], %15 {strides = array<i32>} : memref<16x128xbf16, #tpu.memory_space<vmem>>, vector<16x128xbf16>,
    } else {
    }
    return
  }
  func.func @transform_0(%arg0: i32, %arg1: i32) -> (i32, i32) {
    %c0_i32 = arith.constant 0 : i32
    %c0_i32_0 = arith.constant 0 : i32
    return %c0_i32, %arg1 : i32, i32
  }
  func.func @transform_1(%arg0: i32, %arg1: i32) -> (i32, i32) {
    %c0_i32 = arith.constant 0 : i32
    return %arg1, %arg0 : i32, i32
  }
  func.func @transform_2(%arg0: i32, %arg1: i32) -> (i32, i32) {
    %c0_i32 = arith.constant 0 : i32
    %c0_i32_0 = arith.constant 0 : i32
    %c0_i32_1 = arith.constant 0 : i32
    return %c0_i32, %c0_i32_0 : i32, i32
  }
  func.func @transform_3(%arg0: i32, %arg1: i32) -> (i32, i32) {
    %c0_i32 = arith.constant 0 : i32
    %c0_i32_0 = arith.constant 0 : i32
    return %c0_i32, %arg0 : i32, i32
  }
}

module attributes {stable_mosaic.version = 11 : i64} {
  func.func @_gemm_bias_act_kernel(%arg0: i32, %arg1: i32, %arg2: memref<16x16xbf16, #tpu.memory_space<vmem>>, %arg3: memref<16x256xbf16, #tpu.memory_space<vmem>>, %arg4: memref<16x1xf32, #tpu.memory_space<vmem>>, %arg5: memref<16x256xbf16, #tpu.memory_space<vmem>>, %arg6: memref<16x256xf32, #tpu.memory_space<vmem>>) attributes {dimension_semantics = [#tpu.dimension_semantics<parallel>, #tpu.dimension_semantics<arbitrary>], iteration_bounds = array<i64: 2, 1>, scalar_prefetch = 0 : i64, scratch_operands = 1 : i64, tpu.core_type = #tpu.core_type<tc>, window_params = [{transform_indices = @transform_0, window_bounds = array<i64: 16, 16>}, {transform_indices = @transform_1, window_bounds = array<i64: 16, 256>}, {pipeline_mode = #tpu.pipeline_mode<synchronous>, transform_indices = @transform_2, window_bounds = array<i64: 16, 1>}, {transform_indices = @transform_3, window_bounds = array<i64: 16, 256>}]} {
    %c0_i32 = arith.constant 0 : i32
    %0 = arith.cmpi eq, %arg1, %c0_i32 : i32
    %1 = arith.extui %0 : i1 to i32
    %c0_i32_0 = arith.constant 0 : i32
    %2 = arith.cmpi ne, %1, %c0_i32_0 : i32
    scf.if %2 {
      %cst_10 = arith.constant 0.000000e+00 : f32
      %12 = vector.broadcast %cst_10 : f32 to vector<16x256xf32>
      %c0_11 = arith.constant 0 : index
      %c0_12 = arith.constant 0 : index
      %13 = vector.load %arg4[%c0_11, %c0_12] : memref<16x1xf32, #tpu.memory_space<vmem>>, vector<16x1xf32>
      %14 = vector.broadcast %13 : vector<16x1xf32> to vector<16x256xf32>
      %15 = arith.addf %12, %14 : vector<16x256xf32>
      %c0_13 = arith.constant 0 : index
      %c0_14 = arith.constant 0 : index
      %16 = vector.load %arg6[%c0_13, %c0_14] : memref<16x256xf32, #tpu.memory_space<vmem>>, vector<16x256xf32>
      tpu.vector_store %arg6[%c0_13, %c0_14], %15 {strides = array<i32>} : memref<16x256xf32, #tpu.memory_space<vmem>>, vector<16x256xf32>,
    } else {
    }
    %c0 = arith.constant 0 : index
    %c0_1 = arith.constant 0 : index
    %3 = vector.load %arg6[%c0, %c0_1] : memref<16x256xf32, #tpu.memory_space<vmem>>, vector<16x256xf32>
    %c0_2 = arith.constant 0 : index
    %c0_3 = arith.constant 0 : index
    %4 = vector.load %arg2[%c0_2, %c0_3] : memref<16x16xbf16, #tpu.memory_space<vmem>>, vector<16x16xbf16>
    %c0_4 = arith.constant 0 : index
    %c0_5 = arith.constant 0 : index
    %5 = vector.load %arg3[%c0_4, %c0_5] : memref<16x256xbf16, #tpu.memory_space<vmem>>, vector<16x256xbf16>
    %cst = arith.constant dense<0.000000e+00> : vector<16x256xf32>
    %6 = tpu.matmul %4, %5, %cst {dimension_numbers = #tpu.dot_dimension_numbers<[1], [0], [0], [1], [0, 0, 1, 1], [], []>} : vector<16x16xbf16>, vector<16x256xbf16>, vector<16x256xf32> -> vector<16x256xf32>
    %7 = arith.addf %3, %6 : vector<16x256xf32>
    %c0_6 = arith.constant 0 : index
    %c0_7 = arith.constant 0 : index
    %8 = vector.load %arg6[%c0_6, %c0_7] : memref<16x256xf32, #tpu.memory_space<vmem>>, vector<16x256xf32>
    tpu.vector_store %arg6[%c0_6, %c0_7], %7 {strides = array<i32>} : memref<16x256xf32, #tpu.memory_space<vmem>>, vector<16x256xf32>,
    %c0_i32_8 = arith.constant 0 : i32
    %9 = arith.cmpi eq, %arg1, %c0_i32_8 : i32
    %10 = arith.extui %9 : i1 to i32
    %c0_i32_9 = arith.constant 0 : i32
    %11 = arith.cmpi ne, %10, %c0_i32_9 : i32
    scf.if %11 {
      %c0_10 = arith.constant 0 : index
      %c0_11 = arith.constant 0 : index
      %12 = vector.load %arg6[%c0_10, %c0_11] : memref<16x256xf32, #tpu.memory_space<vmem>>, vector<16x256xf32>
      %cst_12 = arith.constant 0.000000e+00 : f32
      %13 = vector.broadcast %cst_12 : f32 to vector<16x256xf32>
      %14 = arith.maximumf %12, %13 : vector<16x256xf32>
      %15 = arith.truncf %14 : vector<16x256xf32> to vector<16x256xbf16>
      %c0_13 = arith.constant 0 : index
      %c0_14 = arith.constant 0 : index
      %16 = vector.load %arg5[%c0_13, %c0_14] : memref<16x256xbf16, #tpu.memory_space<vmem>>, vector<16x256xbf16>
      tpu.vector_store %arg5[%c0_13, %c0_14], %15 {strides = array<i32>} : memref<16x256xbf16, #tpu.memory_space<vmem>>, vector<16x256xbf16>,
    } else {
    }
    return
  }
  func.func @transform_0(%arg0: i32, %arg1: i32) -> (i32, i32) {
    %c0_i32 = arith.constant 0 : i32
    %c0_i32_0 = arith.constant 0 : i32
    return %c0_i32, %arg1 : i32, i32
  }
  func.func @transform_1(%arg0: i32, %arg1: i32) -> (i32, i32) {
    %c0_i32 = arith.constant 0 : i32
    return %arg1, %arg0 : i32, i32
  }
  func.func @transform_2(%arg0: i32, %arg1: i32) -> (i32, i32) {
    %c0_i32 = arith.constant 0 : i32
    %c0_i32_0 = arith.constant 0 : i32
    %c0_i32_1 = arith.constant 0 : i32
    return %c0_i32, %c0_i32_0 : i32, i32
  }
  func.func @transform_3(%arg0: i32, %arg1: i32) -> (i32, i32) {
    %c0_i32 = arith.constant 0 : i32
    %c0_i32_0 = arith.constant 0 : i32
    return %c0_i32, %arg0 : i32, i32
  }
}

module attributes {stable_mosaic.version = 11 : i64} {
  func.func @_gemm_bias_act_kernel(%arg0: i32, %arg1: i32, %arg2: memref<16x8xbf16, #tpu.memory_space<vmem>>, %arg3: memref<8x256xbf16, #tpu.memory_space<vmem>>, %arg4: memref<16x1xf32, #tpu.memory_space<vmem>>, %arg5: memref<16x256xbf16, #tpu.memory_space<vmem>>, %arg6: memref<16x256xf32, #tpu.memory_space<vmem>>) attributes {dimension_semantics = [#tpu.dimension_semantics<parallel>, #tpu.dimension_semantics<arbitrary>], iteration_bounds = array<i64: 2, 1>, scalar_prefetch = 0 : i64, scratch_operands = 1 : i64, tpu.core_type = #tpu.core_type<tc>, window_params = [{transform_indices = @transform_0, window_bounds = array<i64: 16, 8>}, {transform_indices = @transform_1, window_bounds = array<i64: 8, 256>}, {pipeline_mode = #tpu.pipeline_mode<synchronous>, transform_indices = @transform_2, window_bounds = array<i64: 16, 1>}, {transform_indices = @transform_3, window_bounds = array<i64: 16, 256>}]} {
    %c0_i32 = arith.constant 0 : i32
    %0 = arith.cmpi eq, %arg1, %c0_i32 : i32
    %1 = arith.extui %0 : i1 to i32
    %c0_i32_0 = arith.constant 0 : i32
    %2 = arith.cmpi ne, %1, %c0_i32_0 : i32
    scf.if %2 {
      %cst_10 = arith.constant 0.000000e+00 : f32
      %12 = vector.broadcast %cst_10 : f32 to vector<16x256xf32>
      %c0_11 = arith.constant 0 : index
      %c0_12 = arith.constant 0 : index
      %13 = vector.load %arg4[%c0_11, %c0_12] : memref<16x1xf32, #tpu.memory_space<vmem>>, vector<16x1xf32>
      %14 = vector.broadcast %13 : vector<16x1xf32> to vector<16x256xf32>
      %15 = arith.addf %12, %14 : vector<16x256xf32>
      %c0_13 = arith.constant 0 : index
      %c0_14 = arith.constant 0 : index
      %16 = vector.load %arg6[%c0_13, %c0_14] : memref<16x256xf32, #tpu.memory_space<vmem>>, vector<16x256xf32>
      tpu.vector_store %arg6[%c0_13, %c0_14], %15 {strides = array<i32>} : memref<16x256xf32, #tpu.memory_space<vmem>>, vector<16x256xf32>,
    } else {
    }
    %c0 = arith.constant 0 : index
    %c0_1 = arith.constant 0 : index
    %3 = vector.load %arg6[%c0, %c0_1] : memref<16x256xf32, #tpu.memory_space<vmem>>, vector<16x256xf32>
    %c0_2 = arith.constant 0 : index
    %c0_3 = arith.constant 0 : index
    %4 = vector.load %arg2[%c0_2, %c0_3] : memref<16x8xbf16, #tpu.memory_space<vmem>>, vector<16x8xbf16>
    %c0_4 = arith.constant 0 : index
    %c0_5 = arith.constant 0 : index
    %5 = vector.load %arg3[%c0_4, %c0_5] : memref<8x256xbf16, #tpu.memory_space<vmem>>, vector<8x256xbf16>
    %cst = arith.constant dense<0.000000e+00> : vector<16x256xf32>
    %6 = tpu.matmul %4, %5, %cst {dimension_numbers = #tpu.dot_dimension_numbers<[1], [0], [0], [1], [0, 0, 1, 1], [], []>} : vector<16x8xbf16>, vector<8x256xbf16>, vector<16x256xf32> -> vector<16x256xf32>
    %7 = arith.addf %3, %6 : vector<16x256xf32>
    %c0_6 = arith.constant 0 : index
    %c0_7 = arith.constant 0 : index
    %8 = vector.load %arg6[%c0_6, %c0_7] : memref<16x256xf32, #tpu.memory_space<vmem>>, vector<16x256xf32>
    tpu.vector_store %arg6[%c0_6, %c0_7], %7 {strides = array<i32>} : memref<16x256xf32, #tpu.memory_space<vmem>>, vector<16x256xf32>,
    %c0_i32_8 = arith.constant 0 : i32
    %9 = arith.cmpi eq, %arg1, %c0_i32_8 : i32
    %10 = arith.extui %9 : i1 to i32
    %c0_i32_9 = arith.constant 0 : i32
    %11 = arith.cmpi ne, %10, %c0_i32_9 : i32
    scf.if %11 {
      %c0_10 = arith.constant 0 : index
      %c0_11 = arith.constant 0 : index
      %12 = vector.load %arg6[%c0_10, %c0_11] : memref<16x256xf32, #tpu.memory_space<vmem>>, vector<16x256xf32>
      %cst_12 = arith.constant 0.000000e+00 : f32
      %13 = vector.broadcast %cst_12 : f32 to vector<16x256xf32>
      %14 = arith.maximumf %12, %13 : vector<16x256xf32>
      %15 = arith.truncf %14 : vector<16x256xf32> to vector<16x256xbf16>
      %c0_13 = arith.constant 0 : index
      %c0_14 = arith.constant 0 : index
      %16 = vector.load %arg5[%c0_13, %c0_14] : memref<16x256xbf16, #tpu.memory_space<vmem>>, vector<16x256xbf16>
      tpu.vector_store %arg5[%c0_13, %c0_14], %15 {strides = array<i32>} : memref<16x256xbf16, #tpu.memory_space<vmem>>, vector<16x256xbf16>,
    } else {
    }
    return
  }
  func.func @transform_0(%arg0: i32, %arg1: i32) -> (i32, i32) {
    %c0_i32 = arith.constant 0 : i32
    %c0_i32_0 = arith.constant 0 : i32
    return %c0_i32, %arg1 : i32, i32
  }
  func.func @transform_1(%arg0: i32, %arg1: i32) -> (i32, i32) {
    %c0_i32 = arith.constant 0 : i32
    return %arg1, %arg0 : i32, i32
  }
  func.func @transform_2(%arg0: i32, %arg1: i32) -> (i32, i32) {
    %c0_i32 = arith.constant 0 : i32
    %c0_i32_0 = arith.constant 0 : i32
    %c0_i32_1 = arith.constant 0 : i32
    return %c0_i32, %c0_i32_0 : i32, i32
  }
  func.func @transform_3(%arg0: i32, %arg1: i32) -> (i32, i32) {
    %c0_i32 = arith.constant 0 : i32
    %c0_i32_0 = arith.constant 0 : i32
    return %c0_i32, %arg0 : i32, i32
  }
}

module attributes {stable_mosaic.version = 11 : i64} {
  func.func @_gemm_bias_act_kernel(%arg0: i32, %arg1: i32, %arg2: memref<16x32xbf16, #tpu.memory_space<vmem>>, %arg3: memref<32x256xbf16, #tpu.memory_space<vmem>>, %arg4: memref<16x1xf32, #tpu.memory_space<vmem>>, %arg5: memref<16x256xbf16, #tpu.memory_space<vmem>>, %arg6: memref<16x256xf32, #tpu.memory_space<vmem>>) attributes {dimension_semantics = [#tpu.dimension_semantics<parallel>, #tpu.dimension_semantics<arbitrary>], iteration_bounds = array<i64: 2, 1>, scalar_prefetch = 0 : i64, scratch_operands = 1 : i64, tpu.core_type = #tpu.core_type<tc>, window_params = [{transform_indices = @transform_0, window_bounds = array<i64: 16, 32>}, {transform_indices = @transform_1, window_bounds = array<i64: 32, 256>}, {pipeline_mode = #tpu.pipeline_mode<synchronous>, transform_indices = @transform_2, window_bounds = array<i64: 16, 1>}, {transform_indices = @transform_3, window_bounds = array<i64: 16, 256>}]} {
    %c0_i32 = arith.constant 0 : i32
    %0 = arith.cmpi eq, %arg1, %c0_i32 : i32
    %1 = arith.extui %0 : i1 to i32
    %c0_i32_0 = arith.constant 0 : i32
    %2 = arith.cmpi ne, %1, %c0_i32_0 : i32
    scf.if %2 {
      %cst_10 = arith.constant 0.000000e+00 : f32
      %12 = vector.broadcast %cst_10 : f32 to vector<16x256xf32>
      %c0_11 = arith.constant 0 : index
      %c0_12 = arith.constant 0 : index
      %13 = vector.load %arg4[%c0_11, %c0_12] : memref<16x1xf32, #tpu.memory_space<vmem>>, vector<16x1xf32>
      %14 = vector.broadcast %13 : vector<16x1xf32> to vector<16x256xf32>
      %15 = arith.addf %12, %14 : vector<16x256xf32>
      %c0_13 = arith.constant 0 : index
      %c0_14 = arith.constant 0 : index
      %16 = vector.load %arg6[%c0_13, %c0_14] : memref<16x256xf32, #tpu.memory_space<vmem>>, vector<16x256xf32>
      tpu.vector_store %arg6[%c0_13, %c0_14], %15 {strides = array<i32>} : memref<16x256xf32, #tpu.memory_space<vmem>>, vector<16x256xf32>,
    } else {
    }
    %c0 = arith.constant 0 : index
    %c0_1 = arith.constant 0 : index
    %3 = vector.load %arg6[%c0, %c0_1] : memref<16x256xf32, #tpu.memory_space<vmem>>, vector<16x256xf32>
    %c0_2 = arith.constant 0 : index
    %c0_3 = arith.constant 0 : index
    %4 = vector.load %arg2[%c0_2, %c0_3] : memref<16x32xbf16, #tpu.memory_space<vmem>>, vector<16x32xbf16>
    %c0_4 = arith.constant 0 : index
    %c0_5 = arith.constant 0 : index
    %5 = vector.load %arg3[%c0_4, %c0_5] : memref<32x256xbf16, #tpu.memory_space<vmem>>, vector<32x256xbf16>
    %cst = arith.constant dense<0.000000e+00> : vector<16x256xf32>
    %6 = tpu.matmul %4, %5, %cst {dimension_numbers = #tpu.dot_dimension_numbers<[1], [0], [0], [1], [0, 0, 1, 1], [], []>} : vector<16x32xbf16>, vector<32x256xbf16>, vector<16x256xf32> -> vector<16x256xf32>
    %7 = arith.addf %3, %6 : vector<16x256xf32>
    %c0_6 = arith.constant 0 : index
    %c0_7 = arith.constant 0 : index
    %8 = vector.load %arg6[%c0_6, %c0_7] : memref<16x256xf32, #tpu.memory_space<vmem>>, vector<16x256xf32>
    tpu.vector_store %arg6[%c0_6, %c0_7], %7 {strides = array<i32>} : memref<16x256xf32, #tpu.memory_space<vmem>>, vector<16x256xf32>,
    %c0_i32_8 = arith.constant 0 : i32
    %9 = arith.cmpi eq, %arg1, %c0_i32_8 : i32
    %10 = arith.extui %9 : i1 to i32
    %c0_i32_9 = arith.constant 0 : i32
    %11 = arith.cmpi ne, %10, %c0_i32_9 : i32
    scf.if %11 {
      %c0_10 = arith.constant 0 : index
      %c0_11 = arith.constant 0 : index
      %12 = vector.load %arg6[%c0_10, %c0_11] : memref<16x256xf32, #tpu.memory_space<vmem>>, vector<16x256xf32>
      %cst_12 = arith.constant 0.000000e+00 : f32
      %13 = vector.broadcast %cst_12 : f32 to vector<16x256xf32>
      %14 = arith.maximumf %12, %13 : vector<16x256xf32>
      %15 = arith.truncf %14 : vector<16x256xf32> to vector<16x256xbf16>
      %c0_13 = arith.constant 0 : index
      %c0_14 = arith.constant 0 : index
      %16 = vector.load %arg5[%c0_13, %c0_14] : memref<16x256xbf16, #tpu.memory_space<vmem>>, vector<16x256xbf16>
      tpu.vector_store %arg5[%c0_13, %c0_14], %15 {strides = array<i32>} : memref<16x256xbf16, #tpu.memory_space<vmem>>, vector<16x256xbf16>,
    } else {
    }
    return
  }
  func.func @transform_0(%arg0: i32, %arg1: i32) -> (i32, i32) {
    %c0_i32 = arith.constant 0 : i32
    %c0_i32_0 = arith.constant 0 : i32
    return %c0_i32, %arg1 : i32, i32
  }
  func.func @transform_1(%arg0: i32, %arg1: i32) -> (i32, i32) {
    %c0_i32 = arith.constant 0 : i32
    return %arg1, %arg0 : i32, i32
  }
  func.func @transform_2(%arg0: i32, %arg1: i32) -> (i32, i32) {
    %c0_i32 = arith.constant 0 : i32
    %c0_i32_0 = arith.constant 0 : i32
    %c0_i32_1 = arith.constant 0 : i32
    return %c0_i32, %c0_i32_0 : i32, i32
  }
  func.func @transform_3(%arg0: i32, %arg1: i32) -> (i32, i32) {
    %c0_i32 = arith.constant 0 : i32
    %c0_i32_0 = arith.constant 0 : i32
    return %c0_i32, %arg0 : i32, i32
  }
}

module attributes {stable_mosaic.version = 11 : i64} {
  func.func @_gemm_bias_act_kernel(%arg0: i32, %arg1: i32, %arg2: memref<16x8xbf16, #tpu.memory_space<vmem>>, %arg3: memref<8x1024xbf16, #tpu.memory_space<vmem>>, %arg4: memref<16x1xf32, #tpu.memory_space<vmem>>, %arg5: memref<16x1024xbf16, #tpu.memory_space<vmem>>, %arg6: memref<16x1024xf32, #tpu.memory_space<vmem>>) attributes {dimension_semantics = [#tpu.dimension_semantics<parallel>, #tpu.dimension_semantics<arbitrary>], iteration_bounds = array<i64: 2, 1>, scalar_prefetch = 0 : i64, scratch_operands = 1 : i64, tpu.core_type = #tpu.core_type<tc>, window_params = [{transform_indices = @transform_0, window_bounds = array<i64: 16, 8>}, {transform_indices = @transform_1, window_bounds = array<i64: 8, 1024>}, {pipeline_mode = #tpu.pipeline_mode<synchronous>, transform_indices = @transform_2, window_bounds = array<i64: 16, 1>}, {transform_indices = @transform_3, window_bounds = array<i64: 16, 1024>}]} {
    %c0_i32 = arith.constant 0 : i32
    %0 = arith.cmpi eq, %arg1, %c0_i32 : i32
    %1 = arith.extui %0 : i1 to i32
    %c0_i32_0 = arith.constant 0 : i32
    %2 = arith.cmpi ne, %1, %c0_i32_0 : i32
    scf.if %2 {
      %cst_10 = arith.constant 0.000000e+00 : f32
      %12 = vector.broadcast %cst_10 : f32 to vector<16x1024xf32>
      %c0_11 = arith.constant 0 : index
      %c0_12 = arith.constant 0 : index
      %13 = vector.load %arg4[%c0_11, %c0_12] : memref<16x1xf32, #tpu.memory_space<vmem>>, vector<16x1xf32>
      %14 = vector.broadcast %13 : vector<16x1xf32> to vector<16x1024xf32>
      %15 = arith.addf %12, %14 : vector<16x1024xf32>
      %c0_13 = arith.constant 0 : index
      %c0_14 = arith.constant 0 : index
      %16 = vector.load %arg6[%c0_13, %c0_14] : memref<16x1024xf32, #tpu.memory_space<vmem>>, vector<16x1024xf32>
      tpu.vector_store %arg6[%c0_13, %c0_14], %15 {strides = array<i32>} : memref<16x1024xf32, #tpu.memory_space<vmem>>, vector<16x1024xf32>,
    } else {
    }
    %c0 = arith.constant 0 : index
    %c0_1 = arith.constant 0 : index
    %3 = vector.load %arg6[%c0, %c0_1] : memref<16x1024xf32, #tpu.memory_space<vmem>>, vector<16x1024xf32>
    %c0_2 = arith.constant 0 : index
    %c0_3 = arith.constant 0 : index
    %4 = vector.load %arg2[%c0_2, %c0_3] : memref<16x8xbf16, #tpu.memory_space<vmem>>, vector<16x8xbf16>
    %c0_4 = arith.constant 0 : index
    %c0_5 = arith.constant 0 : index
    %5 = vector.load %arg3[%c0_4, %c0_5] : memref<8x1024xbf16, #tpu.memory_space<vmem>>, vector<8x1024xbf16>
    %cst = arith.constant dense<0.000000e+00> : vector<16x1024xf32>
    %6 = tpu.matmul %4, %5, %cst {dimension_numbers = #tpu.dot_dimension_numbers<[1], [0], [0], [1], [0, 0, 1, 1], [], []>} : vector<16x8xbf16>, vector<8x1024xbf16>, vector<16x1024xf32> -> vector<16x1024xf32>
    %7 = arith.addf %3, %6 : vector<16x1024xf32>
    %c0_6 = arith.constant 0 : index
    %c0_7 = arith.constant 0 : index
    %8 = vector.load %arg6[%c0_6, %c0_7] : memref<16x1024xf32, #tpu.memory_space<vmem>>, vector<16x1024xf32>
    tpu.vector_store %arg6[%c0_6, %c0_7], %7 {strides = array<i32>} : memref<16x1024xf32, #tpu.memory_space<vmem>>, vector<16x1024xf32>,
    %c0_i32_8 = arith.constant 0 : i32
    %9 = arith.cmpi eq, %arg1, %c0_i32_8 : i32
    %10 = arith.extui %9 : i1 to i32
    %c0_i32_9 = arith.constant 0 : i32
    %11 = arith.cmpi ne, %10, %c0_i32_9 : i32
    scf.if %11 {
      %c0_10 = arith.constant 0 : index
      %c0_11 = arith.constant 0 : index
      %12 = vector.load %arg6[%c0_10, %c0_11] : memref<16x1024xf32, #tpu.memory_space<vmem>>, vector<16x1024xf32>
      %cst_12 = arith.constant 5.000000e-01 : f32
      %13 = vector.broadcast %cst_12 : f32 to vector<16x1024xf32>
      %14 = arith.mulf %13, %12 : vector<16x1024xf32>
      %15 = math.tanh %14 : vector<16x1024xf32>
      %cst_13 = arith.constant 5.000000e-01 : f32
      %16 = vector.broadcast %cst_13 : f32 to vector<16x1024xf32>
      %17 = arith.mulf %16, %15 : vector<16x1024xf32>
      %cst_14 = arith.constant 5.000000e-01 : f32
      %18 = vector.broadcast %cst_14 : f32 to vector<16x1024xf32>
      %19 = arith.addf %17, %18 : vector<16x1024xf32>
      %20 = arith.truncf %19 : vector<16x1024xf32> to vector<16x1024xbf16>
      %c0_15 = arith.constant 0 : index
      %c0_16 = arith.constant 0 : index
      %21 = vector.load %arg5[%c0_15, %c0_16] : memref<16x1024xbf16, #tpu.memory_space<vmem>>, vector<16x1024xbf16>
      tpu.vector_store %arg5[%c0_15, %c0_16], %20 {strides = array<i32>} : memref<16x1024xbf16, #tpu.memory_space<vmem>>, vector<16x1024xbf16>,
    } else {
    }
    return
  }
  func.func @transform_0(%arg0: i32, %arg1: i32) -> (i32, i32) {
    %c0_i32 = arith.constant 0 : i32
    %c0_i32_0 = arith.constant 0 : i32
    return %c0_i32, %arg1 : i32, i32
  }
  func.func @transform_1(%arg0: i32, %arg1: i32) -> (i32, i32) {
    %c0_i32 = arith.constant 0 : i32
    return %arg1, %arg0 : i32, i32
  }
  func.func @transform_2(%arg0: i32, %arg1: i32) -> (i32, i32) {
    %c0_i32 = arith.constant 0 : i32
    %c0_i32_0 = arith.constant 0 : i32
    %c0_i32_1 = arith.constant 0 : i32
    return %c0_i32, %c0_i32_0 : i32, i32
  }
  func.func @transform_3(%arg0: i32, %arg1: i32) -> (i32, i32) {
    %c0_i32 = arith.constant 0 : i32
    %c0_i32_0 = arith.constant 0 : i32
    return %c0_i32, %arg0 : i32, i32
  }
}

module attributes {stable_mosaic.version = 11 : i64} {
  func.func @_gemm_bias_act_kernel(%arg0: i32, %arg1: i32, %arg2: memref<16x4xbf16, #tpu.memory_space<vmem>>, %arg3: memref<4x1024xbf16, #tpu.memory_space<vmem>>, %arg4: memref<16x1xf32, #tpu.memory_space<vmem>>, %arg5: memref<16x1024xbf16, #tpu.memory_space<vmem>>, %arg6: memref<16x1024xf32, #tpu.memory_space<vmem>>) attributes {dimension_semantics = [#tpu.dimension_semantics<parallel>, #tpu.dimension_semantics<arbitrary>], iteration_bounds = array<i64: 2, 1>, scalar_prefetch = 0 : i64, scratch_operands = 1 : i64, tpu.core_type = #tpu.core_type<tc>, window_params = [{transform_indices = @transform_0, window_bounds = array<i64: 16, 4>}, {transform_indices = @transform_1, window_bounds = array<i64: 4, 1024>}, {pipeline_mode = #tpu.pipeline_mode<synchronous>, transform_indices = @transform_2, window_bounds = array<i64: 16, 1>}, {transform_indices = @transform_3, window_bounds = array<i64: 16, 1024>}]} {
    %c0_i32 = arith.constant 0 : i32
    %0 = arith.cmpi eq, %arg1, %c0_i32 : i32
    %1 = arith.extui %0 : i1 to i32
    %c0_i32_0 = arith.constant 0 : i32
    %2 = arith.cmpi ne, %1, %c0_i32_0 : i32
    scf.if %2 {
      %cst_10 = arith.constant 0.000000e+00 : f32
      %12 = vector.broadcast %cst_10 : f32 to vector<16x1024xf32>
      %c0_11 = arith.constant 0 : index
      %c0_12 = arith.constant 0 : index
      %13 = vector.load %arg4[%c0_11, %c0_12] : memref<16x1xf32, #tpu.memory_space<vmem>>, vector<16x1xf32>
      %14 = vector.broadcast %13 : vector<16x1xf32> to vector<16x1024xf32>
      %15 = arith.addf %12, %14 : vector<16x1024xf32>
      %c0_13 = arith.constant 0 : index
      %c0_14 = arith.constant 0 : index
      %16 = vector.load %arg6[%c0_13, %c0_14] : memref<16x1024xf32, #tpu.memory_space<vmem>>, vector<16x1024xf32>
      tpu.vector_store %arg6[%c0_13, %c0_14], %15 {strides = array<i32>} : memref<16x1024xf32, #tpu.memory_space<vmem>>, vector<16x1024xf32>,
    } else {
    }
    %c0 = arith.constant 0 : index
    %c0_1 = arith.constant 0 : index
    %3 = vector.load %arg6[%c0, %c0_1] : memref<16x1024xf32, #tpu.memory_space<vmem>>, vector<16x1024xf32>
    %c0_2 = arith.constant 0 : index
    %c0_3 = arith.constant 0 : index
    %4 = vector.load %arg2[%c0_2, %c0_3] : memref<16x4xbf16, #tpu.memory_space<vmem>>, vector<16x4xbf16>
    %c0_4 = arith.constant 0 : index
    %c0_5 = arith.constant 0 : index
    %5 = vector.load %arg3[%c0_4, %c0_5] : memref<4x1024xbf16, #tpu.memory_space<vmem>>, vector<4x1024xbf16>
    %cst = arith.constant dense<0.000000e+00> : vector<16x1024xf32>
    %6 = tpu.matmul %4, %5, %cst {dimension_numbers = #tpu.dot_dimension_numbers<[1], [0], [0], [1], [0, 0, 1, 1], [], []>} : vector<16x4xbf16>, vector<4x1024xbf16>, vector<16x1024xf32> -> vector<16x1024xf32>
    %7 = arith.addf %3, %6 : vector<16x1024xf32>
    %c0_6 = arith.constant 0 : index
    %c0_7 = arith.constant 0 : index
    %8 = vector.load %arg6[%c0_6, %c0_7] : memref<16x1024xf32, #tpu.memory_space<vmem>>, vector<16x1024xf32>
    tpu.vector_store %arg6[%c0_6, %c0_7], %7 {strides = array<i32>} : memref<16x1024xf32, #tpu.memory_space<vmem>>, vector<16x1024xf32>,
    %c0_i32_8 = arith.constant 0 : i32
    %9 = arith.cmpi eq, %arg1, %c0_i32_8 : i32
    %10 = arith.extui %9 : i1 to i32
    %c0_i32_9 = arith.constant 0 : i32
    %11 = arith.cmpi ne, %10, %c0_i32_9 : i32
    scf.if %11 {
      %c0_10 = arith.constant 0 : index
      %c0_11 = arith.constant 0 : index
      %12 = vector.load %arg6[%c0_10, %c0_11] : memref<16x1024xf32, #tpu.memory_space<vmem>>, vector<16x1024xf32>
      %cst_12 = arith.constant 5.000000e-01 : f32
      %13 = vector.broadcast %cst_12 : f32 to vector<16x1024xf32>
      %14 = arith.mulf %13, %12 : vector<16x1024xf32>
      %15 = math.tanh %14 : vector<16x1024xf32>
      %cst_13 = arith.constant 5.000000e-01 : f32
      %16 = vector.broadcast %cst_13 : f32 to vector<16x1024xf32>
      %17 = arith.mulf %16, %15 : vector<16x1024xf32>
      %cst_14 = arith.constant 5.000000e-01 : f32
      %18 = vector.broadcast %cst_14 : f32 to vector<16x1024xf32>
      %19 = arith.addf %17, %18 : vector<16x1024xf32>
      %20 = arith.truncf %19 : vector<16x1024xf32> to vector<16x1024xbf16>
      %c0_15 = arith.constant 0 : index
      %c0_16 = arith.constant 0 : index
      %21 = vector.load %arg5[%c0_15, %c0_16] : memref<16x1024xbf16, #tpu.memory_space<vmem>>, vector<16x1024xbf16>
      tpu.vector_store %arg5[%c0_15, %c0_16], %20 {strides = array<i32>} : memref<16x1024xbf16, #tpu.memory_space<vmem>>, vector<16x1024xbf16>,
    } else {
    }
    return
  }
  func.func @transform_0(%arg0: i32, %arg1: i32) -> (i32, i32) {
    %c0_i32 = arith.constant 0 : i32
    %c0_i32_0 = arith.constant 0 : i32
    return %c0_i32, %arg1 : i32, i32
  }
  func.func @transform_1(%arg0: i32, %arg1: i32) -> (i32, i32) {
    %c0_i32 = arith.constant 0 : i32
    return %arg1, %arg0 : i32, i32
  }
  func.func @transform_2(%arg0: i32, %arg1: i32) -> (i32, i32) {
    %c0_i32 = arith.constant 0 : i32
    %c0_i32_0 = arith.constant 0 : i32
    %c0_i32_1 = arith.constant 0 : i32
    return %c0_i32, %c0_i32_0 : i32, i32
  }
  func.func @transform_3(%arg0: i32, %arg1: i32) -> (i32, i32) {
    %c0_i32 = arith.constant 0 : i32
    %c0_i32_0 = arith.constant 0 : i32
    return %c0_i32, %arg0 : i32, i32
  }
}

module attributes {stable_mosaic.version = 11 : i64} {
  func.func @_gemm_bias_act_kernel(%arg0: i32, %arg1: i32, %arg2: memref<16x16xbf16, #tpu.memory_space<vmem>>, %arg3: memref<16x1024xbf16, #tpu.memory_space<vmem>>, %arg4: memref<16x1xf32, #tpu.memory_space<vmem>>, %arg5: memref<16x1024xbf16, #tpu.memory_space<vmem>>, %arg6: memref<16x1024xf32, #tpu.memory_space<vmem>>) attributes {dimension_semantics = [#tpu.dimension_semantics<parallel>, #tpu.dimension_semantics<arbitrary>], iteration_bounds = array<i64: 2, 1>, scalar_prefetch = 0 : i64, scratch_operands = 1 : i64, tpu.core_type = #tpu.core_type<tc>, window_params = [{transform_indices = @transform_0, window_bounds = array<i64: 16, 16>}, {transform_indices = @transform_1, window_bounds = array<i64: 16, 1024>}, {pipeline_mode = #tpu.pipeline_mode<synchronous>, transform_indices = @transform_2, window_bounds = array<i64: 16, 1>}, {transform_indices = @transform_3, window_bounds = array<i64: 16, 1024>}]} {
    %c0_i32 = arith.constant 0 : i32
    %0 = arith.cmpi eq, %arg1, %c0_i32 : i32
    %1 = arith.extui %0 : i1 to i32
    %c0_i32_0 = arith.constant 0 : i32
    %2 = arith.cmpi ne, %1, %c0_i32_0 : i32
    scf.if %2 {
      %cst_10 = arith.constant 0.000000e+00 : f32
      %12 = vector.broadcast %cst_10 : f32 to vector<16x1024xf32>
      %c0_11 = arith.constant 0 : index
      %c0_12 = arith.constant 0 : index
      %13 = vector.load %arg4[%c0_11, %c0_12] : memref<16x1xf32, #tpu.memory_space<vmem>>, vector<16x1xf32>
      %14 = vector.broadcast %13 : vector<16x1xf32> to vector<16x1024xf32>
      %15 = arith.addf %12, %14 : vector<16x1024xf32>
      %c0_13 = arith.constant 0 : index
      %c0_14 = arith.constant 0 : index
      %16 = vector.load %arg6[%c0_13, %c0_14] : memref<16x1024xf32, #tpu.memory_space<vmem>>, vector<16x1024xf32>
      tpu.vector_store %arg6[%c0_13, %c0_14], %15 {strides = array<i32>} : memref<16x1024xf32, #tpu.memory_space<vmem>>, vector<16x1024xf32>,
    } else {
    }
    %c0 = arith.constant 0 : index
    %c0_1 = arith.constant 0 : index
    %3 = vector.load %arg6[%c0, %c0_1] : memref<16x1024xf32, #tpu.memory_space<vmem>>, vector<16x1024xf32>
    %c0_2 = arith.constant 0 : index
    %c0_3 = arith.constant 0 : index
    %4 = vector.load %arg2[%c0_2, %c0_3] : memref<16x16xbf16, #tpu.memory_space<vmem>>, vector<16x16xbf16>
    %c0_4 = arith.constant 0 : index
    %c0_5 = arith.constant 0 : index
    %5 = vector.load %arg3[%c0_4, %c0_5] : memref<16x1024xbf16, #tpu.memory_space<vmem>>, vector<16x1024xbf16>
    %cst = arith.constant dense<0.000000e+00> : vector<16x1024xf32>
    %6 = tpu.matmul %4, %5, %cst {dimension_numbers = #tpu.dot_dimension_numbers<[1], [0], [0], [1], [0, 0, 1, 1], [], []>} : vector<16x16xbf16>, vector<16x1024xbf16>, vector<16x1024xf32> -> vector<16x1024xf32>
    %7 = arith.addf %3, %6 : vector<16x1024xf32>
    %c0_6 = arith.constant 0 : index
    %c0_7 = arith.constant 0 : index
    %8 = vector.load %arg6[%c0_6, %c0_7] : memref<16x1024xf32, #tpu.memory_space<vmem>>, vector<16x1024xf32>
    tpu.vector_store %arg6[%c0_6, %c0_7], %7 {strides = array<i32>} : memref<16x1024xf32, #tpu.memory_space<vmem>>, vector<16x1024xf32>,
    %c0_i32_8 = arith.constant 0 : i32
    %9 = arith.cmpi eq, %arg1, %c0_i32_8 : i32
    %10 = arith.extui %9 : i1 to i32
    %c0_i32_9 = arith.constant 0 : i32
    %11 = arith.cmpi ne, %10, %c0_i32_9 : i32
    scf.if %11 {
      %c0_10 = arith.constant 0 : index
      %c0_11 = arith.constant 0 : index
      %12 = vector.load %arg6[%c0_10, %c0_11] : memref<16x1024xf32, #tpu.memory_space<vmem>>, vector<16x1024xf32>
      %cst_12 = arith.constant 5.000000e-01 : f32
      %13 = vector.broadcast %cst_12 : f32 to vector<16x1024xf32>
      %14 = arith.mulf %13, %12 : vector<16x1024xf32>
      %15 = math.tanh %14 : vector<16x1024xf32>
      %cst_13 = arith.constant 5.000000e-01 : f32
      %16 = vector.broadcast %cst_13 : f32 to vector<16x1024xf32>
      %17 = arith.mulf %16, %15 : vector<16x1024xf32>
      %cst_14 = arith.constant 5.000000e-01 : f32
      %18 = vector.broadcast %cst_14 : f32 to vector<16x1024xf32>
      %19 = arith.addf %17, %18 : vector<16x1024xf32>
      %20 = arith.truncf %19 : vector<16x1024xf32> to vector<16x1024xbf16>
      %c0_15 = arith.constant 0 : index
      %c0_16 = arith.constant 0 : index
      %21 = vector.load %arg5[%c0_15, %c0_16] : memref<16x1024xbf16, #tpu.memory_space<vmem>>, vector<16x1024xbf16>
      tpu.vector_store %arg5[%c0_15, %c0_16], %20 {strides = array<i32>} : memref<16x1024xbf16, #tpu.memory_space<vmem>>, vector<16x1024xbf16>,
    } else {
    }
    return
  }
  func.func @transform_0(%arg0: i32, %arg1: i32) -> (i32, i32) {
    %c0_i32 = arith.constant 0 : i32
    %c0_i32_0 = arith.constant 0 : i32
    return %c0_i32, %arg1 : i32, i32
  }
  func.func @transform_1(%arg0: i32, %arg1: i32) -> (i32, i32) {
    %c0_i32 = arith.constant 0 : i32
    return %arg1, %arg0 : i32, i32
  }
  func.func @transform_2(%arg0: i32, %arg1: i32) -> (i32, i32) {
    %c0_i32 = arith.constant 0 : i32
    %c0_i32_0 = arith.constant 0 : i32
    %c0_i32_1 = arith.constant 0 : i32
    return %c0_i32, %c0_i32_0 : i32, i32
  }
  func.func @transform_3(%arg0: i32, %arg1: i32) -> (i32, i32) {
    %c0_i32 = arith.constant 0 : i32
    %c0_i32_0 = arith.constant 0 : i32
    return %c0_i32, %arg0 : i32, i32
  }
}

</mosaic_0001>

<llo_original>
// kernel: celeba_vae_forward.20
$region0: #{celeba_vae_forward.20}
  #allocation0 [shape = 'u32[]', space=smem, size = 0x4, offset = 0x4, fixed_abs, tag = 'smem constant byte address 0x4 - core index']
  #allocation1 [shape = 'u32[72,128]{1,0:T(1,128)}', space=vmem, size = 0x9000, scoped, tag = 'internal scratch']
  #allocation2 [shape = 'f32[16,1024]{1,0:T(8,128)}', space=vmem, size = 0x10000, scoped, tag = 'scratch operand']
  %s0 = inlined_call_operand.vmem [shape: bf16[16,27], index: 0, kind: input, shape index: {}]
  %s1 = inlined_call_operand.vmem [shape: bf16[27,2048], index: 1, kind: input, shape index: {}]
  %s2 = inlined_call_operand.vmem [shape: f32[16,1], index: 2, kind: input, shape index: {}]
  %s3 = inlined_call_operand.vmem [shape: bf16[16,2048], index: 3, kind: output, shape index: {}]
  %s4 = sld [smem:[#allocation0]]
  $region95: #{celeba_vae_forward.20} parent=0
    _
  %s6 = ssub.s32 1, %s4
  %s7 = scalar_select 0, %s6, %s4
  $region1: #{celeba_vae_forward.20} parent=0
    #allocation3 [shape = 'u8[131072]{0}', space=vmem, size = 0x20000, scoped, tag = 'input window, operand 1']
    #allocation4 [shape = 'u8[65536]{0}', space=vmem, size = 0x10000, scoped, tag = 'output window, operand 0']
    loop: start=0, step=1, limit=4
    $region2: #{celeba_vae_forward.20} parent=1 // loop_pre_header
      _
    $region3: #{celeba_vae_forward.20} parent=1 // loop_header
      %s9 = sphi 0, %s13
      %p10 = scmp.ge.s32.totalorder %s9, 4
      %s16 = sphi 0, %s28
      %s17 = sphi 0, %s24
      %s18 = sphi 0, %s16
      %s19 = sphi 0, %s17
      %s20 = sphi 0, %s18
      %s21 = sphi 0, %s19
      %s31 = sphi 0, %s33
      %s34 = sphi 0, %s31
      %s35 = sphi 0, %s34
      %s51 = sphi 0, %s35
      %s59 = sphi 0, %s61
      %s62 = sphi 0, %s59
      %s63 = sphi 0, %s62
      %s79 = sphi 0, %s63
      %s83 = sphi 0, %s83
      %s85 = sphi 0, %s83
      %s86 = sphi 0, %s85
      %s100 = sphi 0, %s86
      %s106 = sphi 0, %s108
      %s109 = sphi 0, %s106
      %s110 = sphi 0, %s109
      %s126 = sphi 0, %s110
    $region4: #{celeba_vae_forward.20} parent=1 // loop_header_branch
      %12 = sbr.rel (%p10) target = $region8
    $region5: #{celeba_vae_forward.20} parent=1 // loop_body
      %s14 = ssub.s32 %s9, 1
      %s15 = ssub.s32 %s9, 2
      %s22 = sadd.s32 1, %s17
      %p23 = scmp.ge.s32.totalorder %s22, 1
      %s24 = scalar_select %p23, 0, %s22
      %s25 = sadd.s32 1, %s16
      %s26 = scalar_select %p23, %s25, %s16
      %p27 = scmp.ge.s32.totalorder %s26, 2
      %s28 = scalar_select %p27, 0, %s26
      %s29 = ssub.s32 %s17, %s24
      %p30 = scmp.eq.s32.totalorder %s29, 0
      %s32 = sadd.s32 %s31, 1
      %s33 = scalar_select %p30, %s31, %s32
      %p36 = pneg %p30
      %p37 = scmp.eq.s32.totalorder %s9, 1
      %p38 = por %p36, %p37
      %p39 = scmp.ne.s32.totalorder %s31, %s34
      %p40 = scmp.eq.s32.totalorder %s9, 0
      %p41 = por %p39, %p40
      %p42 = scmp.ne.s32.totalorder %s31, %s34
      %p43 = scmp.eq.s32.totalorder %s14, 1
      %p44 = por %p42, %p43
      %p45 = scmp.ne.s32.totalorder %s34, %s35
      %p46 = scmp.eq.s32.totalorder %s14, 0
      %p47 = por %p45, %p46
      %p48 = scmp.ne.s32.totalorder %s34, %s35
      %p49 = scmp.eq.s32.totalorder %s15, 1
      %p50 = por %p48, %p49
      %p52 = scmp.ne.s32.totalorder %s35, %s51
      %p53 = scmp.eq.s32.totalorder %s15, 0
      %p54 = por %p52, %p53
      %s55 = ssub.s32 %s17, %s24
      %s56 = ssub.s32 %s16, %s28
      %s57 = sor.u32 %s55, %s56
      %p58 = scmp.eq.s32.totalorder %s57, 0
      %s60 = sadd.s32 %s59, 1
      %s61 = scalar_select %p58, %s59, %s60
      %p64 = pneg %p58
      %p65 = scmp.eq.s32.totalorder %s9, 1
      %p66 = por %p64, %p65
      %p67 = scmp.ne.s32.totalorder %s59, %s62
      %p68 = scmp.eq.s32.totalorder %s9, 0
      %p69 = por %p67, %p68
      %p70 = scmp.ne.s32.totalorder %s59, %s62
      %p71 = scmp.eq.s32.totalorder %s14, 1
      %p72 = por %p70, %p71
      %p73 = scmp.ne.s32.totalorder %s62, %s63
      %p74 = scmp.eq.s32.totalorder %s14, 0
      %p75 = por %p73, %p74
      %p76 = scmp.ne.s32.totalorder %s62, %s63
      %p77 = scmp.eq.s32.totalorder %s15, 1
      %p78 = por %p76, %p77
      %p80 = scmp.ne.s32.totalorder %s63, %s79
      %p81 = scmp.eq.s32.totalorder %s15, 0
      %p82 = por %p80, %p81
      %s84 = sadd.s32 %s83, 1
      %p87 = scmp.eq.s32.totalorder %s9, 1
      %p88 = scmp.ne.s32.totalorder %s83, %s85
      %p89 = scmp.eq.s32.totalorder %s9, 0
      %p90 = por %p88, %p89
      %p91 = scmp.ne.s32.totalorder %s83, %s85
      %p92 = scmp.eq.s32.totalorder %s14, 1
      %p93 = por %p91, %p92
      %p94 = scmp.ne.s32.totalorder %s85, %s86
      %p95 = scmp.eq.s32.totalorder %s14, 0
      %p96 = por %p94, %p95
      %p97 = scmp.ne.s32.totalorder %s85, %s86
      %p98 = scmp.eq.s32.totalorder %s15, 1
      %p99 = por %p97, %p98
      %p101 = scmp.ne.s32.totalorder %s86, %s100
      %p102 = scmp.eq.s32.totalorder %s15, 0
      %p103 = por %p101, %p102
      %s104 = ssub.s32 %s16, %s28
      %p105 = scmp.eq.s32.totalorder %s104, 0
      %s107 = sadd.s32 %s106, 1
      %s108 = scalar_select %p105, %s106, %s107
      %p111 = pneg %p105
      %p112 = scmp.eq.s32.totalorder %s9, 1
      %p113 = por %p111, %p112
      %p114 = scmp.ne.s32.totalorder %s106, %s109
      %p115 = scmp.eq.s32.totalorder %s9, 0
      %p116 = por %p114, %p115
      %p117 = scmp.ne.s32.totalorder %s106, %s109
      %p118 = scmp.eq.s32.totalorder %s14, 1
      %p119 = por %p117, %p118
      %p120 = scmp.ne.s32.totalorder %s109, %s110
      %p121 = scmp.eq.s32.totalorder %s14, 0
      %p122 = por %p120, %p121
      %p123 = scmp.ne.s32.totalorder %s109, %s110
      %p124 = scmp.eq.s32.totalorder %s15, 1
      %p125 = por %p123, %p124
      %p127 = scmp.ne.s32.totalorder %s110, %s126
      %p128 = scmp.eq.s32.totalorder %s15, 0
      %p129 = por %p127, %p128
      %p130 = scmp.le.s32.totalorder 1, %s9
      %p131 = scmp.lt.s32.totalorder %s9, 3
      %p132 = pnand %p130, %p131
      %p133 = pneg %p132
      // Predicated region
      $region9: #{celeba_vae_forward.20} parent=5 // pred_check
        _
      $region10: #{celeba_vae_forward.20} parent=5 // pred_check_branch
        %135 = sbr.rel (%p132) target = $region12
      $region11: #{celeba_vae_forward.20} parent=5 // pred_region
        %s136 = ssub.s32 %s9, 1
        // Predicated region
        $region13: #{celeba_vae_forward.20} parent=11 // pred_check
          %p137 = pneg %p47
        $region14: #{celeba_vae_forward.20} parent=11 // pred_check_branch
          %139 = sbr.rel (%p137) target = $region16
        $region15: #{celeba_vae_forward.20} parent=11 // pred_region
          %p140 = scmp.lt.s32.totalorder %s19, 0
          %s141 = scalar_select %p140, %s19, 0
          %s142 = smul.addr %s141, 4
          %s143 = scalar_lea.vmem %s0, %s142
        $region16: #{celeba_vae_forward.20} parent=11 // pred_fallthru
          _
        // Predicated region
        $region17: #{celeba_vae_forward.20} parent=11 // pred_check
          %p144 = pneg %p96
        $region18: #{celeba_vae_forward.20} parent=11 // pred_check_branch
          %146 = sbr.rel (%p144) target = $region20
        $region19: #{celeba_vae_forward.20} parent=11 // pred_region
          _
        $region20: #{celeba_vae_forward.20} parent=11 // pred_fallthru
          _
      $region12: #{celeba_vae_forward.20} parent=5 // pred_fallthru
        _
      %p147 = scmp.lt.s32.totalorder %s9, 2
      // Predicated region
      $region21: #{celeba_vae_forward.20} parent=5 // pred_check
        %p148 = pneg %p147
      $region22: #{celeba_vae_forward.20} parent=5 // pred_check_branch
        %150 = sbr.rel (%p148) target = $region24
      $region23: #{celeba_vae_forward.20} parent=5 // pred_region
        // Predicated region
        $region25: #{celeba_vae_forward.20} parent=23 // pred_check
          %p151 = pneg %p69
        $region26: #{celeba_vae_forward.20} parent=23 // pred_check_branch
          %153 = sbr.rel (%p151) target = $region28
        $region27: #{celeba_vae_forward.20} parent=23 // pred_region
          %s154 = sand.u32 %s59, 1
          %s155 = sand.u32 %s59, 1
          %s156 = smul.addr %s155, 128
          %s157 = scalar_lea.vmem [#allocation3], %s156
          %s158 = smul.u32 4, %s17
          %s159 = smul.u32 8, %s16
          %s160 = smul.addr %s158, 16
          %s161 = sadd.s32 %s159, %s160
          %s162 = smul.addr %s161, 4
          %s163 = scalar_lea.vmem %s1, %s162
          // Predicated region
          $region29: #{celeba_vae_forward.20} parent=27 // pred_check
            _
          $region30: #{celeba_vae_forward.20} parent=27 // pred_check_branch
            %165 = sbr.rel (0) target = $region32
          $region31: #{celeba_vae_forward.20} parent=27 // pred_region
            // Predicated region
            $region33: #{celeba_vae_forward.20} parent=31 // pred_check
              _
            $region34: #{celeba_vae_forward.20} parent=31 // pred_check_branch
              %167 = sbr.rel (0) target = $region36
            $region35: #{celeba_vae_forward.20} parent=31 // pred_region
              loop: start=0, step=1, limit=1
              $region37: #{celeba_vae_forward.20} parent=35 // loop_pre_header
                _
              $region38: #{celeba_vae_forward.20} parent=35 // loop_header
                %s169 = sphi 0, %s173
                %p170 = scmp.ge.s32.totalorder %s169, 1
                %s174 = sphi %s163, %s163
                %s175 = sphi %s157, %s157
              $region39: #{celeba_vae_forward.20} parent=35 // loop_header_branch
                %172 = sbr.rel (%p170) target = $region43
              $region40: #{celeba_vae_forward.20} parent=35 // loop_body
                %v176 = vld [vmem:[%s174] sm:$0xff]
                %177 = vst [vmem:[%s175] sm:$0xff] %v176
                %v178 = vld [vmem:[%s174 + $0x8] sm:$0xff]
                %179 = vst [vmem:[%s175 + $0x8] sm:$0xff] %v178
                %v180 = vld [vmem:[%s174 + $0x10] sm:$0xff]
                %181 = vst [vmem:[%s175 + $0x10] sm:$0xff] %v180
                %v182 = vld [vmem:[%s174 + $0x18] sm:$0xff]
                %183 = vst [vmem:[%s175 + $0x18] sm:$0xff] %v182
                %v184 = vld [vmem:[%s174 + $0x40] sm:$0xff]
                %185 = vst [vmem:[%s175 + $0x20] sm:$0xff] %v184
                %v186 = vld [vmem:[%s174 + $0x48] sm:$0xff]
                %187 = vst [vmem:[%s175 + $0x28] sm:$0xff] %v186
                %v188 = vld [vmem:[%s174 + $0x50] sm:$0xff]
                %189 = vst [vmem:[%s175 + $0x30] sm:$0xff] %v188
                %v190 = vld [vmem:[%s174 + $0x58] sm:$0xff]
                %191 = vst [vmem:[%s175 + $0x38] sm:$0xff] %v190
                %v192 = vld [vmem:[%s174 + $0x80] sm:$0xff]
                %193 = vst [vmem:[%s175 + $0x40] sm:$0xff] %v192
                %v194 = vld [vmem:[%s174 + $0x88] sm:$0xff]
                %195 = vst [vmem:[%s175 + $0x48] sm:$0xff] %v194
                %v196 = vld [vmem:[%s174 + $0x90] sm:$0xff]
                %197 = vst [vmem:[%s175 + $0x50] sm:$0xff] %v196
                %v198 = vld [vmem:[%s174 + $0x98] sm:$0xff]
                %199 = vst [vmem:[%s175 + $0x58] sm:$0xff] %v198
                %v200 = vld [vmem:[%s174 + $0xc0] sm:$0xff]
                %201 = vst [vmem:[%s175 + $0x60] sm:$0xff] %v200
                %v202 = vld [vmem:[%s174 + $0xc8] sm:$0xff]
                %203 = vst [vmem:[%s175 + $0x68] sm:$0xff] %v202
                %v204 = vld [vmem:[%s174 + $0xd0] sm:$0xff]
                %205 = vst [vmem:[%s175 + $0x70] sm:$0xff] %v204
                %v206 = vld [vmem:[%s174 + $0xd8] sm:$0xff]
                %207 = vst [vmem:[%s175 + $0x78] sm:$0xff] %v206
              $region41: #{celeba_vae_forward.20} parent=35 // loop_footer
                %s173 = sadd.s32 1, %s169
              $region42: #{celeba_vae_forward.20} parent=35 // loop_footer_branch
                %168 = sbr.rel target = $region38
              $region43: #{celeba_vae_forward.20} parent=35 // loop_exit
                _
            $region36: #{celeba_vae_forward.20} parent=31 // pred_fallthru
              _
            // Predicated region
            $region44: #{celeba_vae_forward.20} parent=31 // pred_check
              _
            $region45: #{celeba_vae_forward.20} parent=31 // pred_check_branch
              %209 = sbr.rel target = $region47
            $region46: #{celeba_vae_forward.20} parent=31 // pred_region
              _
            $region47: #{celeba_vae_forward.20} parent=31 // pred_fallthru
              _
          $region32: #{celeba_vae_forward.20} parent=27 // pred_fallthru
            _
          %210 = vnop
        $region28: #{celeba_vae_forward.20} parent=23 // pred_fallthru
          _
      $region24: #{celeba_vae_forward.20} parent=5 // pred_fallthru
        _
      %p211 = scmp.le.s32.totalorder 1, %s9
      %p212 = scmp.lt.s32.totalorder %s9, 3
      %p213 = pnand %p211, %p212
      %p214 = pneg %p213
      // Predicated region
      $region48: #{celeba_vae_forward.20} parent=5 // pred_check
        _
      $region49: #{celeba_vae_forward.20} parent=5 // pred_check_branch
        %216 = sbr.rel (%p213) target = $region51
      $region50: #{celeba_vae_forward.20} parent=5 // pred_region
        %s217 = ssub.s32 %s9, 1
        %s218 = sand.u32 %s62, 1
        %s219 = sand.u32 %s62, 1
        %s220 = smul.addr %s219, 128
        %s221 = scalar_lea.vmem [#allocation3], %s220
        // Predicated region
        $region52: #{celeba_vae_forward.20} parent=50 // pred_check
          %p222 = pneg %p75
        $region53: #{celeba_vae_forward.20} parent=50 // pred_check_branch
          %224 = sbr.rel (%p222) target = $region55
        $region54: #{celeba_vae_forward.20} parent=50 // pred_region
          _
        $region55: #{celeba_vae_forward.20} parent=50 // pred_fallthru
          _
        %p225 = scmp.lt.s32.totalorder %s19, 0
        %s226 = scalar_select %p225, %s19, 0
        %s227 = smul.addr %s226, 4
        %s228 = scalar_lea.vmem %s0, %s227
        %p229 = pneg %p47
        %p230 = pneg %p44
        %s231 = sand.u32 %s62, 1
        %s232 = sand.u32 %s62, 1
        %s233 = smul.addr %s232, 128
        %s234 = scalar_lea.vmem [#allocation3], %s233
        %p235 = pneg %p75
        %p236 = pneg %p72
        %p237 = pneg %p96
        %p238 = pneg %p93
        %p239 = pneg %p122
        %p240 = pneg %p119
        %s241 = sand.u32 %s109, 1
        %s242 = sand.u32 %s109, 1
        %s243 = smul.addr %s242, 64
        %s244 = scalar_lea.vmem [#allocation4], %s243
        %p245 = scmp.lt.s32.totalorder %s19, 0
        %s246 = scalar_select %p245, %s19, 0
        %s247 = smul.addr %s246, 4
        %s248 = scalar_lea.vmem %s0, %s247
        %s249 = smul.u32 4, %s19
        %s250 = smul.u32 8, %s18
        %s251 = smul.u32 8, %s18
        %p253 = scmp.eq.s32.totalorder %s19, 0
        // Predicated region
        $region56: #{celeba_vae_forward.20} parent=50 // pred_check
          %p254 = pneg %p253
        $region57: #{celeba_vae_forward.20} parent=50 // pred_check_branch
          %256 = sbr.rel (%p254) target = $region59
        $region58: #{celeba_vae_forward.20} parent=50 // pred_region
          %v257 = vld [vmem:[%s2] sm:$0xff]
          %v258 = vld [vmem:[%s2 + $0x8] sm:$0xff]
          %260 = vset.pattern.permute.xlu0 0
          %261 = vperm.xlu0 %260, %v257
          %v262 = vpop.permute.xlu0 %261
          %265 = vset.pattern.permute.xlu0 0
          %266 = vperm.xlu0 %265, %v258
          %v267 = vpop.permute.xlu0 %266
          %v269 = vadd.f32 %v262, 0.0
          %v270 = vadd.f32 %v267, 0.0
          %271 = vst [vmem:[#allocation2] sm:$0xff] %v269
          %272 = vst [vmem:[#allocation2 + $0x8] sm:$0xff] %v269
          %273 = vst [vmem:[#allocation2 + $0x10] sm:$0xff] %v269
          %274 = vst [vmem:[#allocation2 + $0x18] sm:$0xff] %v269
          %275 = vst [vmem:[#allocation2 + $0x20] sm:$0xff] %v269
          %276 = vst [vmem:[#allocation2 + $0x28] sm:$0xff] %v269
          %277 = vst [vmem:[#allocation2 + $0x30] sm:$0xff] %v269
          %278 = vst [vmem:[#allocation2 + $0x38] sm:$0xff] %v269
          %279 = vst [vmem:[#allocation2 + $0x40] sm:$0xff] %v270
          %280 = vst [vmem:[#allocation2 + $0x48] sm:$0xff] %v270
          %281 = vst [vmem:[#allocation2 + $0x50] sm:$0xff] %v270
          %282 = vst [vmem:[#allocation2 + $0x58] sm:$0xff] %v270
          %283 = vst [vmem:[#allocation2 + $0x60] sm:$0xff] %v270
          %284 = vst [vmem:[#allocation2 + $0x68] sm:$0xff] %v270
          %285 = vst [vmem:[#allocation2 + $0x70] sm:$0xff] %v270
          %286 = vst [vmem:[#allocation2 + $0x78] sm:$0xff] %v270
        $region59: #{celeba_vae_forward.20} parent=50 // pred_fallthru
          _
        %v287 = vld [vmem:[#allocation2] sm:$0xff]
        %v288 = vld [vmem:[#allocation2 + $0x8] sm:$0xff]
        %v289 = vld [vmem:[#allocation2 + $0x10] sm:$0xff]
        %v290 = vld [vmem:[#allocation2 + $0x18] sm:$0xff]
        %v291 = vld [vmem:[#allocation2 + $0x20] sm:$0xff]
        %v292 = vld [vmem:[#allocation2 + $0x28] sm:$0xff]
        %v293 = vld [vmem:[#allocation2 + $0x30] sm:$0xff]
        %v294 = vld [vmem:[#allocation2 + $0x38] sm:$0xff]
        %v295 = vld [vmem:[#allocation2 + $0x40] sm:$0xff]
        %v296 = vld [vmem:[#allocation2 + $0x48] sm:$0xff]
        %v297 = vld [vmem:[#allocation2 + $0x50] sm:$0xff]
        %v298 = vld [vmem:[#allocation2 + $0x58] sm:$0xff]
        %v299 = vld [vmem:[#allocation2 + $0x60] sm:$0xff]
        %v300 = vld [vmem:[#allocation2 + $0x68] sm:$0xff]
        %v301 = vld [vmem:[#allocation2 + $0x70] sm:$0xff]
        %v302 = vld [vmem:[#allocation2 + $0x78] sm:$0xff]
        %v303 = vld [vmem:[%s248] sm:$0xf]
        %v304 = vld [vmem:[%s248 + $0x4] sm:$0xf]
        %v305 = vld [vmem:[%s221] sm:$0xff]
        %v306 = vld [vmem:[%s221 + $0x8] sm:$0xff]
        %v307 = vld [vmem:[%s221 + $0x10] sm:$0xff]
        %v308 = vld [vmem:[%s221 + $0x18] sm:$0xff]
        %v309 = vld [vmem:[%s221 + $0x20] sm:$0xff]
        %v310 = vld [vmem:[%s221 + $0x28] sm:$0xff]
        %v311 = vld [vmem:[%s221 + $0x30] sm:$0xff]
        %v312 = vld [vmem:[%s221 + $0x38] sm:$0xff]
        %v313 = vld [vmem:[%s221 + $0x40] sm:$0xff]
        %v314 = vld [vmem:[%s221 + $0x48] sm:$0xff]
        %v315 = vld [vmem:[%s221 + $0x50] sm:$0xff]
        %v316 = vld [vmem:[%s221 + $0x58] sm:$0xff]
        %v317 = vld [vmem:[%s221 + $0x60] sm:$0x33]
        %v318 = vld [vmem:[%s221 + $0x68] sm:$0x33]
        %v319 = vld [vmem:[%s221 + $0x70] sm:$0x33]
        %v320 = vld [vmem:[%s221 + $0x78] sm:$0x33]
        %v323 = vunpack.c.l.b16 %v303
        %v324 = vunpack.c.l.b16 %v304
        %v325 = vpack.c.b16 %v324, %v323
        %v342 = vunpack.c.l.b16 %v305
        %v343 = vunpack.c.h.b16 %v305
        %v344 = vunpack.c.l.b16 %v306
        %v345 = vunpack.c.h.b16 %v306
        %v346 = vunpack.c.l.b16 %v307
        %v347 = vunpack.c.h.b16 %v307
        %v348 = vunpack.c.l.b16 %v308
        %v349 = vunpack.c.h.b16 %v308
        %v350 = vunpack.c.l.b16 %v309
        %v351 = vunpack.c.h.b16 %v309
        %v352 = vunpack.c.l.b16 %v310
        %v353 = vunpack.c.h.b16 %v310
        %v354 = vunpack.c.l.b16 %v311
        %v355 = vunpack.c.h.b16 %v311
        %v356 = vunpack.c.l.b16 %v312
        %v357 = vunpack.c.h.b16 %v312
        %v358 = vunpack.c.l.b16 %v313
        %v359 = vunpack.c.h.b16 %v313
        %v360 = vunpack.c.l.b16 %v314
        %v361 = vunpack.c.h.b16 %v314
        %v362 = vunpack.c.l.b16 %v315
        %v363 = vunpack.c.h.b16 %v315
        %v364 = vunpack.c.l.b16 %v316
        %v365 = vunpack.c.h.b16 %v316
        %v366 = vunpack.c.l.b16 %v317
        %v367 = vunpack.c.h.b16 %v317
        %v368 = vunpack.c.l.b16 %v318
        %v369 = vunpack.c.h.b16 %v318
        %v370 = vunpack.c.l.b16 %v319
        %v371 = vunpack.c.h.b16 %v319
        %v372 = vunpack.c.l.b16 %v320
        %v373 = vunpack.c.h.b16 %v320
        %v374 = vpack.c.b16 %v350, %v342
        %v375 = vpack.c.b16 %v351, %v343
        %v376 = vpack.c.b16 %v352, %v344
        %v377 = vpack.c.b16 %v353, %v345
        %v378 = vpack.c.b16 %v354, %v346
        %v379 = vpack.c.b16 %v355, %v347
        %v380 = vpack.c.b16 %v356, %v348
        %v381 = vpack.c.b16 %v357, %v349
        %v382 = vpack.c.b16 %v366, %v358
        %v383 = vpack.c.b16 %v367, %v359
        %v384 = vpack.c.b16 %v368, %v360
        %v385 = vpack.c.b16 %v369, %v361
        %v386 = vpack.c.b16 %v370, %v362
        %v387 = vpack.c.b16 %v371, %v363
        %v388 = vpack.c.b16 %v372, %v364
        %v389 = vpack.c.b16 %v373, %v365
        %vm398 = vcmask 220160
        %v400 = vsel %vm398, %v325, 0
        %vm402 = vcmask 1044480
        %vm403 = vcmask 1045504
        %v404 = vsel %vm402, 4294967295, 65535
        %v405 = vsel %vm403, %v404, 0
        %v407 = vand.u32 %v382, %v405
        %v410 = vand.u32 %v383, %v405
        %v413 = vand.u32 %v384, %v405
        %v416 = vand.u32 %v385, %v405
        %v419 = vand.u32 %v386, %v405
        %v422 = vand.u32 %v387, %v405
        %v425 = vand.u32 %v388, %v405
        %v428 = vand.u32 %v389, %v405
        %430 = vmatpush.bf16.msra.mxu0 0
        %431 = vmatpush.bf16.msra.mxu0 0
        %432 = vmatpush.bf16.msra.mxu0 0
        %433 = vmatpush.bf16.msra.mxu0 0
        %434 = vmatpush.bf16.msra.mxu0 0
        %435 = vmatpush.bf16.msra.mxu0 0
        %436 = vmatpush.bf16.msra.mxu0 %v407
        %437 = vmatpush.bf16.msra.mxu0 %v374
        %438 = vmatmul.bf16.gmra.mxu0 %v400
        %v439 = vpop.f32.mrf.mxu0
        %v440 = vadd.f32 0.0, %v439
        %v441 = vpop.f32.mrf.mxu0
        %v442 = vadd.f32 0.0, %v441
        %443 = vdwg.mxu0
        %444 = vmatpush.bf16.msra.mxu0 0
        %445 = vmatpush.bf16.msra.mxu0 0
        %446 = vmatpush.bf16.msra.mxu0 0
        %447 = vmatpush.bf16.msra.mxu0 0
        %448 = vmatpush.bf16.msra.mxu0 0
        %449 = vmatpush.bf16.msra.mxu0 0
        %450 = vmatpush.bf16.msra.mxu0 %v410
        %451 = vmatpush.bf16.msra.mxu0 %v375
        %452 = vmatmul.bf16.gmra.mxu0 %v400
        %v453 = vpop.f32.mrf.mxu0
        %v454 = vadd.f32 0.0, %v453
        %v455 = vpop.f32.mrf.mxu0
        %v456 = vadd.f32 0.0, %v455
        %457 = vdwg.mxu0
        %458 = vmatpush.bf16.msra.mxu0 0
        %459 = vmatpush.bf16.msra.mxu0 0
        %460 = vmatpush.bf16.msra.mxu0 0
        %461 = vmatpush.bf16.msra.mxu0 0
        %462 = vmatpush.bf16.msra.mxu0 0
        %463 = vmatpush.bf16.msra.mxu0 0
        %464 = vmatpush.bf16.msra.mxu0 %v413
        %465 = vmatpush.bf16.msra.mxu0 %v376
        %466 = vmatmul.bf16.gmra.mxu0 %v400
        %v467 = vpop.f32.mrf.mxu0
        %v468 = vadd.f32 0.0, %v467
        %v469 = vpop.f32.mrf.mxu0
        %v470 = vadd.f32 0.0, %v469
        %471 = vdwg.mxu0
        %472 = vmatpush.bf16.msra.mxu0 0
        %473 = vmatpush.bf16.msra.mxu0 0
        %474 = vmatpush.bf16.msra.mxu0 0
        %475 = vmatpush.bf16.msra.mxu0 0
        %476 = vmatpush.bf16.msra.mxu0 0
        %477 = vmatpush.bf16.msra.mxu0 0
        %478 = vmatpush.bf16.msra.mxu0 %v416
        %479 = vmatpush.bf16.msra.mxu0 %v377
        %480 = vmatmul.bf16.gmra.mxu0 %v400
        %v481 = vpop.f32.mrf.mxu0
        %v482 = vadd.f32 0.0, %v481
        %v483 = vpop.f32.mrf.mxu0
        %v484 = vadd.f32 0.0, %v483
        %485 = vdwg.mxu0
        %486 = vmatpush.bf16.msra.mxu0 0
        %487 = vmatpush.bf16.msra.mxu0 0
        %488 = vmatpush.bf16.msra.mxu0 0
        %489 = vmatpush.bf16.msra.mxu0 0
        %490 = vmatpush.bf16.msra.mxu0 0
        %491 = vmatpush.bf16.msra.mxu0 0
        %492 = vmatpush.bf16.msra.mxu0 %v419
        %493 = vmatpush.bf16.msra.mxu0 %v378
        %494 = vmatmul.bf16.gmra.mxu0 %v400
        %v495 = vpop.f32.mrf.mxu0
        %v496 = vadd.f32 0.0, %v495
        %v497 = vpop.f32.mrf.mxu0
        %v498 = vadd.f32 0.0, %v497
        %499 = vdwg.mxu0
        %500 = vmatpush.bf16.msra.mxu0 0
        %501 = vmatpush.bf16.msra.mxu0 0
        %502 = vmatpush.bf16.msra.mxu0 0
        %503 = vmatpush.bf16.msra.mxu0 0
        %504 = vmatpush.bf16.msra.mxu0 0
        %505 = vmatpush.bf16.msra.mxu0 0
        %506 = vmatpush.bf16.msra.mxu0 %v422
        %507 = vmatpush.bf16.msra.mxu0 %v379
        %508 = vmatmul.bf16.gmra.mxu0 %v400
        %v509 = vpop.f32.mrf.mxu0
        %v510 = vadd.f32 0.0, %v509
        %v511 = vpop.f32.mrf.mxu0
        %v512 = vadd.f32 0.0, %v511
        %513 = vdwg.mxu0
        %514 = vmatpush.bf16.msra.mxu0 0
        %515 = vmatpush.bf16.msra.mxu0 0
        %516 = vmatpush.bf16.msra.mxu0 0
        %517 = vmatpush.bf16.msra.mxu0 0
        %518 = vmatpush.bf16.msra.mxu0 0
        %519 = vmatpush.bf16.msra.mxu0 0
        %520 = vmatpush.bf16.msra.mxu0 %v425
        %521 = vmatpush.bf16.msra.mxu0 %v380
        %522 = vmatmul.bf16.gmra.mxu0 %v400
        %v523 = vpop.f32.mrf.mxu0
        %v524 = vadd.f32 0.0, %v523
        %v525 = vpop.f32.mrf.mxu0
        %v526 = vadd.f32 0.0, %v525
        %527 = vdwg.mxu0
        %528 = vmatpush.bf16.msra.mxu0 0
        %529 = vmatpush.bf16.msra.mxu0 0
        %530 = vmatpush.bf16.msra.mxu0 0
        %531 = vmatpush.bf16.msra.mxu0 0
        %532 = vmatpush.bf16.msra.mxu0 0
        %533 = vmatpush.bf16.msra.mxu0 0
        %534 = vmatpush.bf16.msra.mxu0 %v428
        %535 = vmatpush.bf16.msra.mxu0 %v381
        %536 = vmatmul.bf16.gmra.mxu0 %v400
        %v537 = vpop.f32.mrf.mxu0
        %v538 = vadd.f32 0.0, %v537
        %v539 = vpop.f32.mrf.mxu0
        %v540 = vadd.f32 0.0, %v539
        %541 = vdwg.mxu0
        %v542 = vadd.f32 %v287, %v440
        %v543 = vadd.f32 %v288, %v454
        %v544 = vadd.f32 %v289, %v468
        %v545 = vadd.f32 %v290, %v482
        %v546 = vadd.f32 %v291, %v496
        %v547 = vadd.f32 %v292, %v510
        %v548 = vadd.f32 %v293, %v524
        %v549 = vadd.f32 %v294, %v538
        %v550 = vadd.f32 %v295, %v442
        %v551 = vadd.f32 %v296, %v456
        %v552 = vadd.f32 %v297, %v470
        %v553 = vadd.f32 %v298, %v484
        %v554 = vadd.f32 %v299, %v498
        %v555 = vadd.f32 %v300, %v512
        %v556 = vadd.f32 %v301, %v526
        %v557 = vadd.f32 %v302, %v540
        %558 = vst [vmem:[#allocation2] sm:$0xff] %v542
        %559 = vst [vmem:[#allocation2 + $0x8] sm:$0xff] %v543
        %560 = vst [vmem:[#allocation2 + $0x10] sm:$0xff] %v544
        %561 = vst [vmem:[#allocation2 + $0x18] sm:$0xff] %v545
        %562 = vst [vmem:[#allocation2 + $0x20] sm:$0xff] %v546
        %563 = vst [vmem:[#allocation2 + $0x28] sm:$0xff] %v547
        %564 = vst [vmem:[#allocation2 + $0x30] sm:$0xff] %v548
        %565 = vst [vmem:[#allocation2 + $0x38] sm:$0xff] %v549
        %566 = vst [vmem:[#allocation2 + $0x40] sm:$0xff] %v550
        %567 = vst [vmem:[#allocation2 + $0x48] sm:$0xff] %v551
        %568 = vst [vmem:[#allocation2 + $0x50] sm:$0xff] %v552
        %569 = vst [vmem:[#allocation2 + $0x58] sm:$0xff] %v553
        %570 = vst [vmem:[#allocation2 + $0x60] sm:$0xff] %v554
        %571 = vst [vmem:[#allocation2 + $0x68] sm:$0xff] %v555
        %572 = vst [vmem:[#allocation2 + $0x70] sm:$0xff] %v556
        %573 = vst [vmem:[#allocation2 + $0x78] sm:$0xff] %v557
        // Predicated region
        $region60: #{celeba_vae_forward.20} parent=50 // pred_check
          %p574 = pneg %p253
        $region61: #{celeba_vae_forward.20} parent=50 // pred_check_branch
          %576 = sbr.rel (%p574) target = $region63
        $region62: #{celeba_vae_forward.20} parent=50 // pred_region
          %v577 = vld [vmem:[#allocation2] sm:$0xff]
          %v578 = vld [vmem:[#allocation2 + $0x8] sm:$0xff]
          %v579 = vld [vmem:[#allocation2 + $0x10] sm:$0xff]
          %v580 = vld [vmem:[#allocation2 + $0x18] sm:$0xff]
          %v581 = vld [vmem:[#allocation2 + $0x20] sm:$0xff]
          %v582 = vld [vmem:[#allocation2 + $0x28] sm:$0xff]
          %v583 = vld [vmem:[#allocation2 + $0x30] sm:$0xff]
          %v584 = vld [vmem:[#allocation2 + $0x38] sm:$0xff]
          %v585 = vld [vmem:[#allocation2 + $0x40] sm:$0xff]
          %v586 = vld [vmem:[#allocation2 + $0x48] sm:$0xff]
          %v587 = vld [vmem:[#allocation2 + $0x50] sm:$0xff]
          %v588 = vld [vmem:[#allocation2 + $0x58] sm:$0xff]
          %v589 = vld [vmem:[#allocation2 + $0x60] sm:$0xff]
          %v590 = vld [vmem:[#allocation2 + $0x68] sm:$0xff]
          %v591 = vld [vmem:[#allocation2 + $0x70] sm:$0xff]
          %v592 = vld [vmem:[#allocation2 + $0x78] sm:$0xff]
          %v593 = vmax.f32 %v577, 0.0
          %v594 = vmax.f32 %v578, 0.0
          %v595 = vmax.f32 %v579, 0.0
          %v596 = vmax.f32 %v580, 0.0
          %v597 = vmax.f32 %v581, 0.0
          %v598 = vmax.f32 %v582, 0.0
          %v599 = vmax.f32 %v583, 0.0
          %v600 = vmax.f32 %v584, 0.0
          %v601 = vmax.f32 %v585, 0.0
          %v602 = vmax.f32 %v586, 0.0
          %v603 = vmax.f32 %v587, 0.0
          %v604 = vmax.f32 %v588, 0.0
          %v605 = vmax.f32 %v589, 0.0
          %v606 = vmax.f32 %v590, 0.0
          %v607 = vmax.f32 %v591, 0.0
          %v608 = vmax.f32 %v592, 0.0
          %v609 = vpack.c.bf16 %v594, %v593
          %v610 = vpack.c.bf16 %v596, %v595
          %v611 = vpack.c.bf16 %v598, %v597
          %v612 = vpack.c.bf16 %v600, %v599
          %v613 = vpack.c.bf16 %v602, %v601
          %v614 = vpack.c.bf16 %v604, %v603
          %v615 = vpack.c.bf16 %v606, %v605
          %v616 = vpack.c.bf16 %v608, %v607
          %617 = vst [vmem:[%s244] sm:$0xff] %v609
          %618 = vst [vmem:[%s244 + $0x8] sm:$0xff] %v610
          %619 = vst [vmem:[%s244 + $0x10] sm:$0xff] %v611
          %620 = vst [vmem:[%s244 + $0x18] sm:$0xff] %v612
          %621 = vst [vmem:[%s244 + $0x20] sm:$0xff] %v613
          %622 = vst [vmem:[%s244 + $0x28] sm:$0xff] %v614
          %623 = vst [vmem:[%s244 + $0x30] sm:$0xff] %v615
          %624 = vst [vmem:[%s244 + $0x38] sm:$0xff] %v616
        $region63: #{celeba_vae_forward.20} parent=50 // pred_fallthru
          _
        %s625 = sand.u32 %s109, 1
        %s626 = sand.u32 %s109, 1
        %s627 = smul.addr %s626, 64
        %s628 = scalar_lea.vmem [#allocation4], %s627
        // Predicated region
        $region64: #{celeba_vae_forward.20} parent=50 // pred_check
          %p629 = pneg %p119
        $region65: #{celeba_vae_forward.20} parent=50 // pred_check_branch
          %631 = sbr.rel (%p629) target = $region67
        $region66: #{celeba_vae_forward.20} parent=50 // pred_region
          %s632 = smul.u32 8, %s18
          %s633 = smul.addr %s632, 4
          %s634 = scalar_lea.vmem %s3, %s633
          // Predicated region
          $region68: #{celeba_vae_forward.20} parent=66 // pred_check
            _
          $region69: #{celeba_vae_forward.20} parent=66 // pred_check_branch
            %636 = sbr.rel (0) target = $region71
          $region70: #{celeba_vae_forward.20} parent=66 // pred_region
            // Predicated region
            $region72: #{celeba_vae_forward.20} parent=70 // pred_check
              _
            $region73: #{celeba_vae_forward.20} parent=70 // pred_check_branch
              %638 = sbr.rel (0) target = $region75
            $region74: #{celeba_vae_forward.20} parent=70 // pred_region
              loop: start=0, step=1, limit=1
              $region76: #{celeba_vae_forward.20} parent=74 // loop_pre_header
                _
              $region77: #{celeba_vae_forward.20} parent=74 // loop_header
                %s640 = sphi 0, %s644
                %p641 = scmp.ge.s32.totalorder %s640, 1
                %s645 = sphi %s628, %s628
                %s646 = sphi %s634, %s634
              $region78: #{celeba_vae_forward.20} parent=74 // loop_header_branch
                %643 = sbr.rel (%p641) target = $region82
              $region79: #{celeba_vae_forward.20} parent=74 // loop_body
                %v647 = vld [vmem:[%s645] sm:$0xff]
                %648 = vst [vmem:[%s646] sm:$0xff] %v647
                %v649 = vld [vmem:[%s645 + $0x8] sm:$0xff]
                %650 = vst [vmem:[%s646 + $0x8] sm:$0xff] %v649
                %v651 = vld [vmem:[%s645 + $0x10] sm:$0xff]
                %652 = vst [vmem:[%s646 + $0x10] sm:$0xff] %v651
                %v653 = vld [vmem:[%s645 + $0x18] sm:$0xff]
                %654 = vst [vmem:[%s646 + $0x18] sm:$0xff] %v653
                %v655 = vld [vmem:[%s645 + $0x20] sm:$0xff]
                %656 = vst [vmem:[%s646 + $0x40] sm:$0xff] %v655
                %v657 = vld [vmem:[%s645 + $0x28] sm:$0xff]
                %658 = vst [vmem:[%s646 + $0x48] sm:$0xff] %v657
                %v659 = vld [vmem:[%s645 + $0x30] sm:$0xff]
                %660 = vst [vmem:[%s646 + $0x50] sm:$0xff] %v659
                %v661 = vld [vmem:[%s645 + $0x38] sm:$0xff]
                %662 = vst [vmem:[%s646 + $0x58] sm:$0xff] %v661
              $region80: #{celeba_vae_forward.20} parent=74 // loop_footer
                %s644 = sadd.s32 1, %s640
              $region81: #{celeba_vae_forward.20} parent=74 // loop_footer_branch
                %639 = sbr.rel target = $region77
              $region82: #{celeba_vae_forward.20} parent=74 // loop_exit
                _
            $region75: #{celeba_vae_forward.20} parent=70 // pred_fallthru
              _
            // Predicated region
            $region83: #{celeba_vae_forward.20} parent=70 // pred_check
              _
            $region84: #{celeba_vae_forward.20} parent=70 // pred_check_branch
              %664 = sbr.rel target = $region86
            $region85: #{celeba_vae_forward.20} parent=70 // pred_region
              _
            $region86: #{celeba_vae_forward.20} parent=70 // pred_fallthru
              _
          $region71: #{celeba_vae_forward.20} parent=66 // pred_fallthru
            _
          %665 = vnop
        $region67: #{celeba_vae_forward.20} parent=50 // pred_fallthru
          _
      $region51: #{celeba_vae_forward.20} parent=5 // pred_fallthru
        _
      %p666 = scmp.le.s32.totalorder 2, %s9
      // Predicated region
      $region87: #{celeba_vae_forward.20} parent=5 // pred_check
        %p667 = pneg %p666
      $region88: #{celeba_vae_forward.20} parent=5 // pred_check_branch
        %669 = sbr.rel (%p667) target = $region90
      $region89: #{celeba_vae_forward.20} parent=5 // pred_region
        %s670 = ssub.s32 %s9, 2
        // Predicated region
        $region91: #{celeba_vae_forward.20} parent=89 // pred_check
          %p671 = pneg %p125
        $region92: #{celeba_vae_forward.20} parent=89 // pred_check_branch
          %673 = sbr.rel (%p671) target = $region94
        $region93: #{celeba_vae_forward.20} parent=89 // pred_region
          %s674 = sand.u32 %s110, 1
          %s675 = sand.u32 %s110, 1
          %s676 = smul.addr %s675, 64
          %s677 = scalar_lea.vmem [#allocation4], %s676
        $region94: #{celeba_vae_forward.20} parent=89 // pred_fallthru
          _
      $region90: #{celeba_vae_forward.20} parent=5 // pred_fallthru
        _
    $region6: #{celeba_vae_forward.20} parent=1 // loop_footer
      %s13 = sadd.s32 1, %s9
    $region7: #{celeba_vae_forward.20} parent=1 // loop_footer_branch
      %8 = sbr.rel target = $region3
    $region8: #{celeba_vae_forward.20} parent=1 // loop_exit
      _

// kernel: celeba_vae_forward.21
$region0: #{celeba_vae_forward.21}
  #allocation0 [shape = 'u32[]', space=smem, size = 0x4, offset = 0x4, fixed_abs, tag = 'smem constant byte address 0x4 - core index']
  #allocation1 [shape = 'u32[72,128]{1,0:T(1,128)}', space=vmem, size = 0x9000, scoped, tag = 'internal scratch']
  #allocation2 [shape = 'f32[16,256]{1,0:T(8,128)}', space=vmem, size = 0x4000, scoped, tag = 'scratch operand']
  %s0 = inlined_call_operand.vmem [shape: bf16[16,144], index: 0, kind: input, shape index: {}]
  %s1 = inlined_call_operand.vmem [shape: bf16[144,512], index: 1, kind: input, shape index: {}]
  %s2 = inlined_call_operand.vmem [shape: f32[16,1], index: 2, kind: input, shape index: {}]
  %s3 = inlined_call_operand.vmem [shape: bf16[16,512], index: 3, kind: output, shape index: {}]
  %s4 = sld [smem:[#allocation0]]
  $region125: #{celeba_vae_forward.21} parent=0
    _
  %s6 = ssub.s32 1, %s4
  %s7 = scalar_select 0, %s6, %s4
  $region1: #{celeba_vae_forward.21} parent=0
    #allocation3 [shape = 'u8[147456]{0}', space=vmem, size = 0x24000, scoped, tag = 'input window, operand 1']
    #allocation4 [shape = 'u8[16384]{0}', space=vmem, size = 0x4000, scoped, tag = 'output window, operand 0']
    loop: start=0, step=1, limit=4
    $region2: #{celeba_vae_forward.21} parent=1 // loop_pre_header
      _
    $region3: #{celeba_vae_forward.21} parent=1 // loop_header
      %s9 = sphi 0, %s13
      %p10 = scmp.ge.s32.totalorder %s9, 4
      %s16 = sphi 0, %s28
      %s17 = sphi 0, %s24
      %s18 = sphi 0, %s16
      %s19 = sphi 0, %s17
      %s20 = sphi 0, %s18
      %s21 = sphi 0, %s19
      %s31 = sphi 0, %s33
      %s34 = sphi 0, %s31
      %s35 = sphi 0, %s34
      %s51 = sphi 0, %s35
      %s59 = sphi 0, %s61
      %s62 = sphi 0, %s59
      %s63 = sphi 0, %s62
      %s79 = sphi 0, %s63
      %s83 = sphi 0, %s83
      %s85 = sphi 0, %s83
      %s86 = sphi 0, %s85
      %s100 = sphi 0, %s86
      %s106 = sphi 0, %s108
      %s109 = sphi 0, %s106
      %s110 = sphi 0, %s109
      %s126 = sphi 0, %s110
    $region4: #{celeba_vae_forward.21} parent=1 // loop_header_branch
      %12 = sbr.rel (%p10) target = $region8
    $region5: #{celeba_vae_forward.21} parent=1 // loop_body
      %s14 = ssub.s32 %s9, 1
      %s15 = ssub.s32 %s9, 2
      %s22 = sadd.s32 1, %s17
      %p23 = scmp.ge.s32.totalorder %s22, 1
      %s24 = scalar_select %p23, 0, %s22
      %s25 = sadd.s32 1, %s16
      %s26 = scalar_select %p23, %s25, %s16
      %p27 = scmp.ge.s32.totalorder %s26, 2
      %s28 = scalar_select %p27, 0, %s26
      %s29 = ssub.s32 %s17, %s24
      %p30 = scmp.eq.s32.totalorder %s29, 0
      %s32 = sadd.s32 %s31, 1
      %s33 = scalar_select %p30, %s31, %s32
      %p36 = pneg %p30
      %p37 = scmp.eq.s32.totalorder %s9, 1
      %p38 = por %p36, %p37
      %p39 = scmp.ne.s32.totalorder %s31, %s34
      %p40 = scmp.eq.s32.totalorder %s9, 0
      %p41 = por %p39, %p40
      %p42 = scmp.ne.s32.totalorder %s31, %s34
      %p43 = scmp.eq.s32.totalorder %s14, 1
      %p44 = por %p42, %p43
      %p45 = scmp.ne.s32.totalorder %s34, %s35
      %p46 = scmp.eq.s32.totalorder %s14, 0
      %p47 = por %p45, %p46
      %p48 = scmp.ne.s32.totalorder %s34, %s35
      %p49 = scmp.eq.s32.totalorder %s15, 1
      %p50 = por %p48, %p49
      %p52 = scmp.ne.s32.totalorder %s35, %s51
      %p53 = scmp.eq.s32.totalorder %s15, 0
      %p54 = por %p52, %p53
      %s55 = ssub.s32 %s17, %s24
      %s56 = ssub.s32 %s16, %s28
      %s57 = sor.u32 %s55, %s56
      %p58 = scmp.eq.s32.totalorder %s57, 0
      %s60 = sadd.s32 %s59, 1
      %s61 = scalar_select %p58, %s59, %s60
      %p64 = pneg %p58
      %p65 = scmp.eq.s32.totalorder %s9, 1
      %p66 = por %p64, %p65
      %p67 = scmp.ne.s32.totalorder %s59, %s62
      %p68 = scmp.eq.s32.totalorder %s9, 0
      %p69 = por %p67, %p68
      %p70 = scmp.ne.s32.totalorder %s59, %s62
      %p71 = scmp.eq.s32.totalorder %s14, 1
      %p72 = por %p70, %p71
      %p73 = scmp.ne.s32.totalorder %s62, %s63
      %p74 = scmp.eq.s32.totalorder %s14, 0
      %p75 = por %p73, %p74
      %p76 = scmp.ne.s32.totalorder %s62, %s63
      %p77 = scmp.eq.s32.totalorder %s15, 1
      %p78 = por %p76, %p77
      %p80 = scmp.ne.s32.totalorder %s63, %s79
      %p81 = scmp.eq.s32.totalorder %s15, 0
      %p82 = por %p80, %p81
      %s84 = sadd.s32 %s83, 1
      %p87 = scmp.eq.s32.totalorder %s9, 1
      %p88 = scmp.ne.s32.totalorder %s83, %s85
      %p89 = scmp.eq.s32.totalorder %s9, 0
      %p90 = por %p88, %p89
      %p91 = scmp.ne.s32.totalorder %s83, %s85
      %p92 = scmp.eq.s32.totalorder %s14, 1
      %p93 = por %p91, %p92
      %p94 = scmp.ne.s32.totalorder %s85, %s86
      %p95 = scmp.eq.s32.totalorder %s14, 0
      %p96 = por %p94, %p95
      %p97 = scmp.ne.s32.totalorder %s85, %s86
      %p98 = scmp.eq.s32.totalorder %s15, 1
      %p99 = por %p97, %p98
      %p101 = scmp.ne.s32.totalorder %s86, %s100
      %p102 = scmp.eq.s32.totalorder %s15, 0
      %p103 = por %p101, %p102
      %s104 = ssub.s32 %s16, %s28
      %p105 = scmp.eq.s32.totalorder %s104, 0
      %s107 = sadd.s32 %s106, 1
      %s108 = scalar_select %p105, %s106, %s107
      %p111 = pneg %p105
      %p112 = scmp.eq.s32.totalorder %s9, 1
      %p113 = por %p111, %p112
      %p114 = scmp.ne.s32.totalorder %s106, %s109
      %p115 = scmp.eq.s32.totalorder %s9, 0
      %p116 = por %p114, %p115
      %p117 = scmp.ne.s32.totalorder %s106, %s109
      %p118 = scmp.eq.s32.totalorder %s14, 1
      %p119 = por %p117, %p118
      %p120 = scmp.ne.s32.totalorder %s109, %s110
      %p121 = scmp.eq.s32.totalorder %s14, 0
      %p122 = por %p120, %p121
      %p123 = scmp.ne.s32.totalorder %s109, %s110
      %p124 = scmp.eq.s32.totalorder %s15, 1
      %p125 = por %p123, %p124
      %p127 = scmp.ne.s32.totalorder %s110, %s126
      %p128 = scmp.eq.s32.totalorder %s15, 0
      %p129 = por %p127, %p128
      %p130 = scmp.le.s32.totalorder 1, %s9
      %p131 = scmp.lt.s32.totalorder %s9, 3
      %p132 = pnand %p130, %p131
      %p133 = pneg %p132
      // Predicated region
      $region9: #{celeba_vae_forward.21} parent=5 // pred_check
        _
      $region10: #{celeba_vae_forward.21} parent=5 // pred_check_branch
        %135 = sbr.rel (%p132) target = $region12
      $region11: #{celeba_vae_forward.21} parent=5 // pred_region
        %s136 = ssub.s32 %s9, 1
        // Predicated region
        $region13: #{celeba_vae_forward.21} parent=11 // pred_check
          %p137 = pneg %p47
        $region14: #{celeba_vae_forward.21} parent=11 // pred_check_branch
          %139 = sbr.rel (%p137) target = $region16
        $region15: #{celeba_vae_forward.21} parent=11 // pred_region
          %s140 = smul.u32 2, %s19
          %p141 = scmp.lt.s32.totalorder %s140, 1
          %s142 = scalar_select %p141, %s140, 1
          %s143 = smul.addr %s142, 4
          %s144 = scalar_lea.vmem %s0, %s143
          %s145 = smul.u32 2, %s19
        $region16: #{celeba_vae_forward.21} parent=11 // pred_fallthru
          _
        // Predicated region
        $region17: #{celeba_vae_forward.21} parent=11 // pred_check
          %p146 = pneg %p96
        $region18: #{celeba_vae_forward.21} parent=11 // pred_check_branch
          %148 = sbr.rel (%p146) target = $region20
        $region19: #{celeba_vae_forward.21} parent=11 // pred_region
          _
        $region20: #{celeba_vae_forward.21} parent=11 // pred_fallthru
          _
      $region12: #{celeba_vae_forward.21} parent=5 // pred_fallthru
        _
      %p149 = scmp.lt.s32.totalorder %s9, 2
      // Predicated region
      $region21: #{celeba_vae_forward.21} parent=5 // pred_check
        %p150 = pneg %p149
      $region22: #{celeba_vae_forward.21} parent=5 // pred_check_branch
        %152 = sbr.rel (%p150) target = $region24
      $region23: #{celeba_vae_forward.21} parent=5 // pred_region
        // Predicated region
        $region25: #{celeba_vae_forward.21} parent=23 // pred_check
          %p153 = pneg %p69
        $region26: #{celeba_vae_forward.21} parent=23 // pred_check_branch
          %155 = sbr.rel (%p153) target = $region28
        $region27: #{celeba_vae_forward.21} parent=23 // pred_region
          %s156 = sand.u32 %s59, 1
          %s157 = sand.u32 %s59, 1
          %s158 = smul.addr %s157, 144
          %s159 = scalar_lea.vmem [#allocation3], %s158
          %s160 = smul.u32 18, %s17
          %s161 = smul.u32 2, %s16
          %s162 = smul.addr %s160, 4
          %s163 = sadd.s32 %s161, %s162
          %s164 = smul.addr %s163, 4
          %s165 = scalar_lea.vmem %s1, %s164
          // Predicated region
          $region29: #{celeba_vae_forward.21} parent=27 // pred_check
            _
          $region30: #{celeba_vae_forward.21} parent=27 // pred_check_branch
            %167 = sbr.rel (0) target = $region32
          $region31: #{celeba_vae_forward.21} parent=27 // pred_region
            // Predicated region
            $region33: #{celeba_vae_forward.21} parent=31 // pred_check
              _
            $region34: #{celeba_vae_forward.21} parent=31 // pred_check_branch
              %169 = sbr.rel (0) target = $region36
            $region35: #{celeba_vae_forward.21} parent=31 // pred_region
              // Predicated region
              $region48: #{celeba_vae_forward.21} parent=35 // pred_check
                _
              $region49: #{celeba_vae_forward.21} parent=35 // pred_check_branch
                %219 = sbr.rel (0) target = $region51
              $region50: #{celeba_vae_forward.21} parent=35 // pred_region
                loop: start=0, step=1, limit=1
                $region52: #{celeba_vae_forward.21} parent=50 // loop_pre_header
                  _
                $region53: #{celeba_vae_forward.21} parent=50 // loop_header
                  %s221 = sphi 0, %s225
                  %p222 = scmp.ge.s32.totalorder %s221, 1
                  %s226 = sphi %s165, %s165
                  %s227 = sphi %s159, %s159
                $region54: #{celeba_vae_forward.21} parent=50 // loop_header_branch
                  %224 = sbr.rel (%p222) target = $region58
                $region55: #{celeba_vae_forward.21} parent=50 // loop_body
                  %v228 = vld [vmem:[%s226] sm:$0xff]
                  %229 = vst [vmem:[%s227] sm:$0xff] %v228
                  %v230 = vld [vmem:[%s226 + $0x10] sm:$0xff]
                  %231 = vst [vmem:[%s227 + $0x8] sm:$0xff] %v230
                  %v232 = vld [vmem:[%s226 + $0x20] sm:$0xff]
                  %233 = vst [vmem:[%s227 + $0x10] sm:$0xff] %v232
                  %v234 = vld [vmem:[%s226 + $0x30] sm:$0xff]
                  %235 = vst [vmem:[%s227 + $0x18] sm:$0xff] %v234
                  %v236 = vld [vmem:[%s226 + $0x40] sm:$0xff]
                  %237 = vst [vmem:[%s227 + $0x20] sm:$0xff] %v236
                  %v238 = vld [vmem:[%s226 + $0x50] sm:$0xff]
                  %239 = vst [vmem:[%s227 + $0x28] sm:$0xff] %v238
                  %v240 = vld [vmem:[%s226 + $0x60] sm:$0xff]
                  %241 = vst [vmem:[%s227 + $0x30] sm:$0xff] %v240
                  %v242 = vld [vmem:[%s226 + $0x70] sm:$0xff]
                  %243 = vst [vmem:[%s227 + $0x38] sm:$0xff] %v242
                  %v244 = vld [vmem:[%s226 + $0x80] sm:$0xff]
                  %245 = vst [vmem:[%s227 + $0x40] sm:$0xff] %v244
                  %v246 = vld [vmem:[%s226 + $0x90] sm:$0xff]
                  %247 = vst [vmem:[%s227 + $0x48] sm:$0xff] %v246
                  %v248 = vld [vmem:[%s226 + $0xa0] sm:$0xff]
                  %249 = vst [vmem:[%s227 + $0x50] sm:$0xff] %v248
                  %v250 = vld [vmem:[%s226 + $0xb0] sm:$0xff]
                  %251 = vst [vmem:[%s227 + $0x58] sm:$0xff] %v250
                  %v252 = vld [vmem:[%s226 + $0xc0] sm:$0xff]
                  %253 = vst [vmem:[%s227 + $0x60] sm:$0xff] %v252
                  %v254 = vld [vmem:[%s226 + $0xd0] sm:$0xff]
                  %255 = vst [vmem:[%s227 + $0x68] sm:$0xff] %v254
                  %v256 = vld [vmem:[%s226 + $0xe0] sm:$0xff]
                  %257 = vst [vmem:[%s227 + $0x70] sm:$0xff] %v256
                  %v258 = vld [vmem:[%s226 + $0xf0] sm:$0xff]
                  %259 = vst [vmem:[%s227 + $0x78] sm:$0xff] %v258
                  %v260 = vld [vmem:[%s226 + $0x100] sm:$0xff]
                  %261 = vst [vmem:[%s227 + $0x80] sm:$0xff] %v260
                  %v262 = vld [vmem:[%s226 + $0x110] sm:$0xff]
                  %263 = vst [vmem:[%s227 + $0x88] sm:$0xff] %v262
                $region56: #{celeba_vae_forward.21} parent=50 // loop_footer
                  %s225 = sadd.s32 1, %s221
                $region57: #{celeba_vae_forward.21} parent=50 // loop_footer_branch
                  %220 = sbr.rel target = $region53
                $region58: #{celeba_vae_forward.21} parent=50 // loop_exit
                  _
              $region51: #{celeba_vae_forward.21} parent=35 // pred_fallthru
                _
              // Predicated region
              $region59: #{celeba_vae_forward.21} parent=35 // pred_check
                _
              $region60: #{celeba_vae_forward.21} parent=35 // pred_check_branch
                %265 = sbr.rel target = $region62
              $region61: #{celeba_vae_forward.21} parent=35 // pred_region
                _
              $region62: #{celeba_vae_forward.21} parent=35 // pred_fallthru
                _
            $region36: #{celeba_vae_forward.21} parent=31 // pred_fallthru
              _
            // Predicated region
            $region37: #{celeba_vae_forward.21} parent=31 // pred_check
              _
            $region38: #{celeba_vae_forward.21} parent=31 // pred_check_branch
              %171 = sbr.rel target = $region40
            $region39: #{celeba_vae_forward.21} parent=31 // pred_region
              %s173 = ssub.s32 256, 1
              loop: start=0, step=1, limit=1
              $region41: #{celeba_vae_forward.21} parent=39 // loop_pre_header
                _
              $region42: #{celeba_vae_forward.21} parent=39 // loop_header
                %s175 = sphi 0, %s179
                %p176 = scmp.ge.s32.totalorder %s175, 1
                %s180 = sphi %s165, %s165
                %s181 = sphi %s159, %s159
              $region43: #{celeba_vae_forward.21} parent=39 // loop_header_branch
                %178 = sbr.rel (%p176) target = $region47
              $region44: #{celeba_vae_forward.21} parent=39 // loop_body
                %v182 = vld [vmem:[%s180] sm:%s173]
                %183 = vst [vmem:[%s181] sm:%s173] %v182
                %v184 = vld [vmem:[%s180 + $0x10] sm:%s173]
                %185 = vst [vmem:[%s181 + $0x8] sm:%s173] %v184
                %v186 = vld [vmem:[%s180 + $0x20] sm:%s173]
                %187 = vst [vmem:[%s181 + $0x10] sm:%s173] %v186
                %v188 = vld [vmem:[%s180 + $0x30] sm:%s173]
                %189 = vst [vmem:[%s181 + $0x18] sm:%s173] %v188
                %v190 = vld [vmem:[%s180 + $0x40] sm:%s173]
                %191 = vst [vmem:[%s181 + $0x20] sm:%s173] %v190
                %v192 = vld [vmem:[%s180 + $0x50] sm:%s173]
                %193 = vst [vmem:[%s181 + $0x28] sm:%s173] %v192
                %v194 = vld [vmem:[%s180 + $0x60] sm:%s173]
                %195 = vst [vmem:[%s181 + $0x30] sm:%s173] %v194
                %v196 = vld [vmem:[%s180 + $0x70] sm:%s173]
                %197 = vst [vmem:[%s181 + $0x38] sm:%s173] %v196
                %v198 = vld [vmem:[%s180 + $0x80] sm:%s173]
                %199 = vst [vmem:[%s181 + $0x40] sm:%s173] %v198
                %v200 = vld [vmem:[%s180 + $0x90] sm:%s173]
                %201 = vst [vmem:[%s181 + $0x48] sm:%s173] %v200
                %v202 = vld [vmem:[%s180 + $0xa0] sm:%s173]
                %203 = vst [vmem:[%s181 + $0x50] sm:%s173] %v202
                %v204 = vld [vmem:[%s180 + $0xb0] sm:%s173]
                %205 = vst [vmem:[%s181 + $0x58] sm:%s173] %v204
                %v206 = vld [vmem:[%s180 + $0xc0] sm:%s173]
                %207 = vst [vmem:[%s181 + $0x60] sm:%s173] %v206
                %v208 = vld [vmem:[%s180 + $0xd0] sm:%s173]
                %209 = vst [vmem:[%s181 + $0x68] sm:%s173] %v208
                %v210 = vld [vmem:[%s180 + $0xe0] sm:%s173]
                %211 = vst [vmem:[%s181 + $0x70] sm:%s173] %v210
                %v212 = vld [vmem:[%s180 + $0xf0] sm:%s173]
                %213 = vst [vmem:[%s181 + $0x78] sm:%s173] %v212
                %v214 = vld [vmem:[%s180 + $0x100] sm:%s173]
                %215 = vst [vmem:[%s181 + $0x80] sm:%s173] %v214
                %v216 = vld [vmem:[%s180 + $0x110] sm:%s173]
                %217 = vst [vmem:[%s181 + $0x88] sm:%s173] %v216
              $region45: #{celeba_vae_forward.21} parent=39 // loop_footer
                %s179 = sadd.s32 1, %s175
              $region46: #{celeba_vae_forward.21} parent=39 // loop_footer_branch
                %174 = sbr.rel target = $region42
              $region47: #{celeba_vae_forward.21} parent=39 // loop_exit
                _
            $region40: #{celeba_vae_forward.21} parent=31 // pred_fallthru
              _
          $region32: #{celeba_vae_forward.21} parent=27 // pred_fallthru
            _
          %266 = vnop
        $region28: #{celeba_vae_forward.21} parent=23 // pred_fallthru
          _
      $region24: #{celeba_vae_forward.21} parent=5 // pred_fallthru
        _
      %p267 = scmp.le.s32.totalorder 1, %s9
      %p268 = scmp.lt.s32.totalorder %s9, 3
      %p269 = pnand %p267, %p268
      %p270 = pneg %p269
      // Predicated region
      $region63: #{celeba_vae_forward.21} parent=5 // pred_check
        _
      $region64: #{celeba_vae_forward.21} parent=5 // pred_check_branch
        %272 = sbr.rel (%p269) target = $region66
      $region65: #{celeba_vae_forward.21} parent=5 // pred_region
        %s273 = ssub.s32 %s9, 1
        %s274 = sand.u32 %s62, 1
        %s275 = sand.u32 %s62, 1
        %s276 = smul.addr %s275, 144
        %s277 = scalar_lea.vmem [#allocation3], %s276
        // Predicated region
        $region67: #{celeba_vae_forward.21} parent=65 // pred_check
          %p278 = pneg %p75
        $region68: #{celeba_vae_forward.21} parent=65 // pred_check_branch
          %280 = sbr.rel (%p278) target = $region70
        $region69: #{celeba_vae_forward.21} parent=65 // pred_region
          _
        $region70: #{celeba_vae_forward.21} parent=65 // pred_fallthru
          _
        %s281 = smul.u32 2, %s19
        %p282 = scmp.lt.s32.totalorder %s281, 1
        %s283 = scalar_select %p282, %s281, 1
        %s284 = smul.addr %s283, 4
        %s285 = scalar_lea.vmem %s0, %s284
        %p286 = pneg %p47
        %p287 = pneg %p44
        %s288 = sand.u32 %s62, 1
        %s289 = sand.u32 %s62, 1
        %s290 = smul.addr %s289, 144
        %s291 = scalar_lea.vmem [#allocation3], %s290
        %p292 = pneg %p75
        %p293 = pneg %p72
        %p294 = pneg %p96
        %p295 = pneg %p93
        %p296 = pneg %p122
        %p297 = pneg %p119
        %s298 = sand.u32 %s109, 1
        %s299 = sand.u32 %s109, 1
        %s300 = smul.addr %s299, 16
        %s301 = scalar_lea.vmem [#allocation4], %s300
        %s302 = smul.u32 2, %s19
        %p303 = scmp.lt.s32.totalorder %s302, 1
        %s304 = scalar_select %p303, %s302, 1
        %s305 = smul.addr %s304, 4
        %s306 = scalar_lea.vmem %s0, %s305
        %s307 = smul.u32 2, %s19
        %s308 = smul.u32 18, %s19
        %s309 = smul.u32 2, %s18
        %s310 = smul.u32 2, %s18
        %p312 = scmp.eq.s32.totalorder %s19, 0
        // Predicated region
        $region71: #{celeba_vae_forward.21} parent=65 // pred_check
          %p313 = pneg %p312
        $region72: #{celeba_vae_forward.21} parent=65 // pred_check_branch
          %315 = sbr.rel (%p313) target = $region74
        $region73: #{celeba_vae_forward.21} parent=65 // pred_region
          %v316 = vld [vmem:[%s2] sm:$0xff]
          %v317 = vld [vmem:[%s2 + $0x8] sm:$0xff]
          %319 = vset.pattern.permute.xlu0 0
          %320 = vperm.xlu0 %319, %v316
          %v321 = vpop.permute.xlu0 %320
          %324 = vset.pattern.permute.xlu0 0
          %325 = vperm.xlu0 %324, %v317
          %v326 = vpop.permute.xlu0 %325
          %v328 = vadd.f32 %v321, 0.0
          %v329 = vadd.f32 %v326, 0.0
          %330 = vst [vmem:[#allocation2] sm:$0xff] %v328
          %331 = vst [vmem:[#allocation2 + $0x8] sm:$0xff] %v328
          %332 = vst [vmem:[#allocation2 + $0x10] sm:$0xff] %v329
          %333 = vst [vmem:[#allocation2 + $0x18] sm:$0xff] %v329
        $region74: #{celeba_vae_forward.21} parent=65 // pred_fallthru
          _
        %v334 = vld [vmem:[#allocation2] sm:$0xff]
        %v335 = vld [vmem:[#allocation2 + $0x8] sm:$0xff]
        %v336 = vld [vmem:[#allocation2 + $0x10] sm:$0xff]
        %v337 = vld [vmem:[#allocation2 + $0x18] sm:$0xff]
        %v338 = vld [vmem:[%s306] sm:$0xff]
        %v339 = vld [vmem:[%s306 + $0x8] sm:$0xff]
        %v340 = vld [vmem:[%s277] sm:$0xff]
        %v341 = vld [vmem:[%s277 + $0x8] sm:$0xff]
        %v342 = vld [vmem:[%s277 + $0x10] sm:$0xff]
        %v343 = vld [vmem:[%s277 + $0x18] sm:$0xff]
        %v344 = vld [vmem:[%s277 + $0x20] sm:$0xff]
        %v345 = vld [vmem:[%s277 + $0x28] sm:$0xff]
        %v346 = vld [vmem:[%s277 + $0x30] sm:$0xff]
        %v347 = vld [vmem:[%s277 + $0x38] sm:$0xff]
        %v348 = vld [vmem:[%s277 + $0x40] sm:$0xff]
        %v349 = vld [vmem:[%s277 + $0x48] sm:$0xff]
        %v350 = vld [vmem:[%s277 + $0x50] sm:$0xff]
        %v351 = vld [vmem:[%s277 + $0x58] sm:$0xff]
        %v352 = vld [vmem:[%s277 + $0x60] sm:$0xff]
        %v353 = vld [vmem:[%s277 + $0x68] sm:$0xff]
        %v354 = vld [vmem:[%s277 + $0x70] sm:$0xff]
        %v355 = vld [vmem:[%s277 + $0x78] sm:$0xff]
        %v356 = vld [vmem:[%s277 + $0x80] sm:$0xff]
        %v357 = vld [vmem:[%s277 + $0x88] sm:$0xff]
        %v360 = vunpack.c.l.b16 %v338
        %v361 = vunpack.c.h.b16 %v338
        %v362 = vunpack.c.l.b16 %v339
        %v363 = vunpack.c.h.b16 %v339
        %v364 = vpack.c.b16 %v362, %v360
        %v365 = vpack.c.b16 %v363, %v361
        %v385 = vunpack.c.l.b16 %v340
        %v386 = vunpack.c.h.b16 %v340
        %v387 = vunpack.c.l.b16 %v341
        %v388 = vunpack.c.h.b16 %v341
        %v389 = vunpack.c.l.b16 %v342
        %v390 = vunpack.c.h.b16 %v342
        %v391 = vunpack.c.l.b16 %v343
        %v392 = vunpack.c.h.b16 %v343
        %v393 = vunpack.c.l.b16 %v344
        %v394 = vunpack.c.h.b16 %v344
        %v395 = vunpack.c.l.b16 %v345
        %v396 = vunpack.c.h.b16 %v345
        %v397 = vunpack.c.l.b16 %v346
        %v398 = vunpack.c.h.b16 %v346
        %v399 = vunpack.c.l.b16 %v347
        %v400 = vunpack.c.h.b16 %v347
        %v401 = vunpack.c.l.b16 %v348
        %v402 = vunpack.c.h.b16 %v348
        %v403 = vunpack.c.l.b16 %v349
        %v404 = vunpack.c.h.b16 %v349
        %v405 = vunpack.c.l.b16 %v350
        %v406 = vunpack.c.h.b16 %v350
        %v407 = vunpack.c.l.b16 %v351
        %v408 = vunpack.c.h.b16 %v351
        %v409 = vunpack.c.l.b16 %v352
        %v410 = vunpack.c.h.b16 %v352
        %v411 = vunpack.c.l.b16 %v353
        %v412 = vunpack.c.h.b16 %v353
        %v413 = vunpack.c.l.b16 %v354
        %v414 = vunpack.c.h.b16 %v354
        %v415 = vunpack.c.l.b16 %v355
        %v416 = vunpack.c.h.b16 %v355
        %v417 = vunpack.c.l.b16 %v356
        %v418 = vunpack.c.h.b16 %v356
        %v419 = vunpack.c.l.b16 %v357
        %v420 = vunpack.c.h.b16 %v357
        %v421 = vpack.c.b16 %v387, %v385
        %v422 = vpack.c.b16 %v388, %v386
        %v423 = vpack.c.b16 %v391, %v389
        %v424 = vpack.c.b16 %v392, %v390
        %v425 = vpack.c.b16 %v395, %v393
        %v426 = vpack.c.b16 %v396, %v394
        %v427 = vpack.c.b16 %v399, %v397
        %v428 = vpack.c.b16 %v400, %v398
        %v429 = vpack.c.b16 %v403, %v401
        %v430 = vpack.c.b16 %v404, %v402
        %v431 = vpack.c.b16 %v407, %v405
        %v432 = vpack.c.b16 %v408, %v406
        %v433 = vpack.c.b16 %v411, %v409
        %v434 = vpack.c.b16 %v412, %v410
        %v435 = vpack.c.b16 %v415, %v413
        %v436 = vpack.c.b16 %v416, %v414
        %v437 = vpack.c.b16 %v419, %v417
        %v438 = vpack.c.b16 %v420, %v418
        %vm457 = vcmask 130048
        %v459 = vsel %vm457, %v365, 0
        %461 = vmatpush.bf16.msra.mxu0 %v435
        %462 = vmatpush.bf16.msra.mxu0 %v433
        %463 = vmatpush.bf16.msra.mxu0 %v431
        %464 = vmatpush.bf16.msra.mxu0 %v429
        %465 = vmatpush.bf16.msra.mxu0 %v427
        %466 = vmatpush.bf16.msra.mxu0 %v425
        %467 = vmatpush.bf16.msra.mxu0 %v423
        %468 = vmatpush.bf16.msra.mxu0 %v421
        %469 = vmatmul.bf16.gmra.mxu0 %v364
        %v470 = vpop.f32.mrf.mxu0
        %v471 = vadd.f32 0.0, %v470
        %v472 = vpop.f32.mrf.mxu0
        %v473 = vadd.f32 0.0, %v472
        %474 = vdwg.mxu0
        %475 = vmatpush.bf16.msra.mxu0 0
        %476 = vmatpush.bf16.msra.mxu0 0
        %477 = vmatpush.bf16.msra.mxu0 0
        %478 = vmatpush.bf16.msra.mxu0 0
        %479 = vmatpush.bf16.msra.mxu0 0
        %480 = vmatpush.bf16.msra.mxu0 0
        %481 = vmatpush.bf16.msra.mxu0 0
        %482 = vmatpush.bf16.msra.mxu0 %v437
        %483 = vmatmul.bf16.gmra.mxu0 %v459
        %v484 = vpop.f32.mrf.mxu0
        %v485 = vadd.f32 %v471, %v484
        %v486 = vpop.f32.mrf.mxu0
        %v487 = vadd.f32 %v473, %v486
        %488 = vdwg.mxu0
        %489 = vmatpush.bf16.msra.mxu0 %v436
        %490 = vmatpush.bf16.msra.mxu0 %v434
        %491 = vmatpush.bf16.msra.mxu0 %v432
        %492 = vmatpush.bf16.msra.mxu0 %v430
        %493 = vmatpush.bf16.msra.mxu0 %v428
        %494 = vmatpush.bf16.msra.mxu0 %v426
        %495 = vmatpush.bf16.msra.mxu0 %v424
        %496 = vmatpush.bf16.msra.mxu0 %v422
        %497 = vmatmul.bf16.gmra.mxu0 %v364
        %v498 = vpop.f32.mrf.mxu0
        %v499 = vadd.f32 0.0, %v498
        %v500 = vpop.f32.mrf.mxu0
        %v501 = vadd.f32 0.0, %v500
        %502 = vdwg.mxu0
        %503 = vmatpush.bf16.msra.mxu0 0
        %504 = vmatpush.bf16.msra.mxu0 0
        %505 = vmatpush.bf16.msra.mxu0 0
        %506 = vmatpush.bf16.msra.mxu0 0
        %507 = vmatpush.bf16.msra.mxu0 0
        %508 = vmatpush.bf16.msra.mxu0 0
        %509 = vmatpush.bf16.msra.mxu0 0
        %510 = vmatpush.bf16.msra.mxu0 %v438
        %511 = vmatmul.bf16.gmra.mxu0 %v459
        %v512 = vpop.f32.mrf.mxu0
        %v513 = vadd.f32 %v499, %v512
        %v514 = vpop.f32.mrf.mxu0
        %v515 = vadd.f32 %v501, %v514
        %516 = vdwg.mxu0
        %v517 = vadd.f32 %v334, %v485
        %v518 = vadd.f32 %v335, %v513
        %v519 = vadd.f32 %v336, %v487
        %v520 = vadd.f32 %v337, %v515
        %521 = vst [vmem:[#allocation2] sm:$0xff] %v517
        %522 = vst [vmem:[#allocation2 + $0x8] sm:$0xff] %v518
        %523 = vst [vmem:[#allocation2 + $0x10] sm:$0xff] %v519
        %524 = vst [vmem:[#allocation2 + $0x18] sm:$0xff] %v520
        // Predicated region
        $region75: #{celeba_vae_forward.21} parent=65 // pred_check
          %p525 = pneg %p312
        $region76: #{celeba_vae_forward.21} parent=65 // pred_check_branch
          %527 = sbr.rel (%p525) target = $region78
        $region77: #{celeba_vae_forward.21} parent=65 // pred_region
          %v528 = vld [vmem:[#allocation2] sm:$0xff]
          %v529 = vld [vmem:[#allocation2 + $0x8] sm:$0xff]
          %v530 = vld [vmem:[#allocation2 + $0x10] sm:$0xff]
          %v531 = vld [vmem:[#allocation2 + $0x18] sm:$0xff]
          %v532 = vmax.f32 %v528, 0.0
          %v533 = vmax.f32 %v529, 0.0
          %v534 = vmax.f32 %v530, 0.0
          %v535 = vmax.f32 %v531, 0.0
          %v536 = vpack.c.bf16 %v533, %v532
          %v537 = vpack.c.bf16 %v535, %v534
          %538 = vst [vmem:[%s301] sm:$0xff] %v536
          %539 = vst [vmem:[%s301 + $0x8] sm:$0xff] %v537
        $region78: #{celeba_vae_forward.21} parent=65 // pred_fallthru
          _
        %s540 = sand.u32 %s109, 1
        %s541 = sand.u32 %s109, 1
        %s542 = smul.addr %s541, 16
        %s543 = scalar_lea.vmem [#allocation4], %s542
        // Predicated region
        $region79: #{celeba_vae_forward.21} parent=65 // pred_check
          %p544 = pneg %p119
        $region80: #{celeba_vae_forward.21} parent=65 // pred_check_branch
          %546 = sbr.rel (%p544) target = $region82
        $region81: #{celeba_vae_forward.21} parent=65 // pred_region
          %s547 = smul.u32 2, %s18
          %s548 = smul.addr %s547, 4
          %s549 = scalar_lea.vmem %s3, %s548
          // Predicated region
          $region83: #{celeba_vae_forward.21} parent=81 // pred_check
            _
          $region84: #{celeba_vae_forward.21} parent=81 // pred_check_branch
            %551 = sbr.rel (0) target = $region86
          $region85: #{celeba_vae_forward.21} parent=81 // pred_region
            // Predicated region
            $region87: #{celeba_vae_forward.21} parent=85 // pred_check
              _
            $region88: #{celeba_vae_forward.21} parent=85 // pred_check_branch
              %553 = sbr.rel (0) target = $region90
            $region89: #{celeba_vae_forward.21} parent=85 // pred_region
              // Predicated region
              $region102: #{celeba_vae_forward.21} parent=89 // pred_check
                _
              $region103: #{celeba_vae_forward.21} parent=89 // pred_check_branch
                %571 = sbr.rel (0) target = $region105
              $region104: #{celeba_vae_forward.21} parent=89 // pred_region
                loop: start=0, step=1, limit=1
                $region106: #{celeba_vae_forward.21} parent=104 // loop_pre_header
                  _
                $region107: #{celeba_vae_forward.21} parent=104 // loop_header
                  %s573 = sphi 0, %s577
                  %p574 = scmp.ge.s32.totalorder %s573, 1
                  %s578 = sphi %s543, %s543
                  %s579 = sphi %s549, %s549
                $region108: #{celeba_vae_forward.21} parent=104 // loop_header_branch
                  %576 = sbr.rel (%p574) target = $region112
                $region109: #{celeba_vae_forward.21} parent=104 // loop_body
                  %v580 = vld [vmem:[%s578] sm:$0xff]
                  %581 = vst [vmem:[%s579] sm:$0xff] %v580
                  %v582 = vld [vmem:[%s578 + $0x8] sm:$0xff]
                  %583 = vst [vmem:[%s579 + $0x10] sm:$0xff] %v582
                $region110: #{celeba_vae_forward.21} parent=104 // loop_footer
                  %s577 = sadd.s32 1, %s573
                $region111: #{celeba_vae_forward.21} parent=104 // loop_footer_branch
                  %572 = sbr.rel target = $region107
                $region112: #{celeba_vae_forward.21} parent=104 // loop_exit
                  _
              $region105: #{celeba_vae_forward.21} parent=89 // pred_fallthru
                _
              // Predicated region
              $region113: #{celeba_vae_forward.21} parent=89 // pred_check
                _
              $region114: #{celeba_vae_forward.21} parent=89 // pred_check_branch
                %585 = sbr.rel target = $region116
              $region115: #{celeba_vae_forward.21} parent=89 // pred_region
                _
              $region116: #{celeba_vae_forward.21} parent=89 // pred_fallthru
                _
            $region90: #{celeba_vae_forward.21} parent=85 // pred_fallthru
              _
            // Predicated region
            $region91: #{celeba_vae_forward.21} parent=85 // pred_check
              _
            $region92: #{celeba_vae_forward.21} parent=85 // pred_check_branch
              %555 = sbr.rel target = $region94
            $region93: #{celeba_vae_forward.21} parent=85 // pred_region
              %s557 = ssub.s32 256, 1
              loop: start=0, step=1, limit=1
              $region95: #{celeba_vae_forward.21} parent=93 // loop_pre_header
                _
              $region96: #{celeba_vae_forward.21} parent=93 // loop_header
                %s559 = sphi 0, %s563
                %p560 = scmp.ge.s32.totalorder %s559, 1
                %s564 = sphi %s543, %s543
                %s565 = sphi %s549, %s549
              $region97: #{celeba_vae_forward.21} parent=93 // loop_header_branch
                %562 = sbr.rel (%p560) target = $region101
              $region98: #{celeba_vae_forward.21} parent=93 // loop_body
                %v566 = vld [vmem:[%s564] sm:%s557]
                %567 = vst [vmem:[%s565] sm:%s557] %v566
                %v568 = vld [vmem:[%s564 + $0x8] sm:%s557]
                %569 = vst [vmem:[%s565 + $0x10] sm:%s557] %v568
              $region99: #{celeba_vae_forward.21} parent=93 // loop_footer
                %s563 = sadd.s32 1, %s559
              $region100: #{celeba_vae_forward.21} parent=93 // loop_footer_branch
                %558 = sbr.rel target = $region96
              $region101: #{celeba_vae_forward.21} parent=93 // loop_exit
                _
            $region94: #{celeba_vae_forward.21} parent=85 // pred_fallthru
              _
          $region86: #{celeba_vae_forward.21} parent=81 // pred_fallthru
            _
          %586 = vnop
        $region82: #{celeba_vae_forward.21} parent=65 // pred_fallthru
          _
      $region66: #{celeba_vae_forward.21} parent=5 // pred_fallthru
        _
      %p587 = scmp.le.s32.totalorder 2, %s9
      // Predicated region
      $region117: #{celeba_vae_forward.21} parent=5 // pred_check
        %p588 = pneg %p587
      $region118: #{celeba_vae_forward.21} parent=5 // pred_check_branch
        %590 = sbr.rel (%p588) target = $region120
      $region119: #{celeba_vae_forward.21} parent=5 // pred_region
        %s591 = ssub.s32 %s9, 2
        // Predicated region
        $region121: #{celeba_vae_forward.21} parent=119 // pred_check
          %p592 = pneg %p125
        $region122: #{celeba_vae_forward.21} parent=119 // pred_check_branch
          %594 = sbr.rel (%p592) target = $region124
        $region123: #{celeba_vae_forward.21} parent=119 // pred_region
          %s595 = sand.u32 %s110, 1
          %s596 = sand.u32 %s110, 1
          %s597 = smul.addr %s596, 16
          %s598 = scalar_lea.vmem [#allocation4], %s597
        $region124: #{celeba_vae_forward.21} parent=119 // pred_fallthru
          _
      $region120: #{celeba_vae_forward.21} parent=5 // pred_fallthru
        _
    $region6: #{celeba_vae_forward.21} parent=1 // loop_footer
      %s13 = sadd.s32 1, %s9
    $region7: #{celeba_vae_forward.21} parent=1 // loop_footer_branch
      %8 = sbr.rel target = $region3
    $region8: #{celeba_vae_forward.21} parent=1 // loop_exit
      _

// kernel: celeba_vae_forward.22
$region0: #{celeba_vae_forward.22}
  #allocation0 [shape = 'u32[]', space=smem, size = 0x4, offset = 0x4, fixed_abs, tag = 'smem constant byte address 0x4 - core index']
  #allocation1 [shape = 'u32[72,128]{1,0:T(1,128)}', space=vmem, size = 0x9000, scoped, tag = 'internal scratch']
  #allocation2 [shape = 'f32[16,128]{1,0:T(8,128)}', space=vmem, size = 0x2000, scoped, tag = 'scratch operand']
  %s0 = inlined_call_operand.vmem [shape: bf16[16,200], index: 0, kind: input, shape index: {}]
  %s1 = inlined_call_operand.vmem [shape: bf16[200,128], index: 1, kind: input, shape index: {}]
  %s2 = inlined_call_operand.vmem [shape: f32[16,1], index: 2, kind: input, shape index: {}]
  %s3 = inlined_call_operand.vmem [shape: bf16[16,128], index: 3, kind: output, shape index: {}]
  %s4 = sld [smem:[#allocation0]]
  $region30: #{celeba_vae_forward.22} parent=0
    _
  %s6 = ssub.s32 1, %s4
  %s7 = scalar_select 0, %s6, %s4
  // Predicated region
  $region2: #{celeba_vae_forward.22} parent=0 // pred_check
    _
  $region3: #{celeba_vae_forward.22} parent=0 // pred_check_branch
    %9 = sbr.rel (0) target = $region5
  $region4: #{celeba_vae_forward.22} parent=0 // pred_region
    _
  $region5: #{celeba_vae_forward.22} parent=0 // pred_fallthru
    _
  // Predicated region
  $region6: #{celeba_vae_forward.22} parent=0 // pred_check
    _
  $region7: #{celeba_vae_forward.22} parent=0 // pred_check_branch
    %11 = sbr.rel (0) target = $region9
  $region8: #{celeba_vae_forward.22} parent=0 // pred_region
    _
  $region9: #{celeba_vae_forward.22} parent=0 // pred_fallthru
    _
  // Predicated region
  $region10: #{celeba_vae_forward.22} parent=0 // pred_check
    _
  $region11: #{celeba_vae_forward.22} parent=0 // pred_check_branch
    %13 = sbr.rel (0) target = $region13
  $region12: #{celeba_vae_forward.22} parent=0 // pred_region
    _
  $region13: #{celeba_vae_forward.22} parent=0 // pred_fallthru
    _
  %p15 = scmp.eq.s32.totalorder 0, 0
  // Predicated region
  $region14: #{celeba_vae_forward.22} parent=0 // pred_check
    %p16 = pneg %p15
  $region15: #{celeba_vae_forward.22} parent=0 // pred_check_branch
    %18 = sbr.rel (%p16) target = $region17
  $region16: #{celeba_vae_forward.22} parent=0 // pred_region
    %v19 = vld [vmem:[%s2] sm:$0xff]
    %v20 = vld [vmem:[%s2 + $0x8] sm:$0xff]
    %22 = vset.pattern.permute.xlu0 0
    %23 = vperm.xlu0 %22, %v19
    %v24 = vpop.permute.xlu0 %23
    %27 = vset.pattern.permute.xlu0 0
    %28 = vperm.xlu0 %27, %v20
    %v29 = vpop.permute.xlu0 %28
    %v31 = vadd.f32 %v24, 0.0
    %v32 = vadd.f32 %v29, 0.0
    %33 = vst [vmem:[#allocation2] sm:$0xff] %v31
    %34 = vst [vmem:[#allocation2 + $0x8] sm:$0xff] %v32
  $region17: #{celeba_vae_forward.22} parent=0 // pred_fallthru
    _
  %v35 = vld [vmem:[#allocation2] sm:$0xff]
  %v36 = vld [vmem:[#allocation2 + $0x8] sm:$0xff]
  %v37 = vld [vmem:[%s0] sm:$0xff]
  %v38 = vld [vmem:[%s0 + $0x8] sm:$0xff]
  %v39 = vld [vmem:[%s1] sm:$0xf]
  %v40 = vld [vmem:[%s1 + $0x4] sm:$0xf]
  %v41 = vld [vmem:[%s1 + $0x8] sm:$0xf]
  %v42 = vld [vmem:[%s1 + $0xc] sm:$0xf]
  %v43 = vld [vmem:[%s1 + $0x10] sm:$0xf]
  %v44 = vld [vmem:[%s1 + $0x14] sm:$0xf]
  %v45 = vld [vmem:[%s1 + $0x18] sm:$0xf]
  %v46 = vld [vmem:[%s1 + $0x1c] sm:$0xf]
  %v47 = vld [vmem:[%s1 + $0x20] sm:$0xf]
  %v48 = vld [vmem:[%s1 + $0x24] sm:$0xf]
  %v49 = vld [vmem:[%s1 + $0x28] sm:$0xf]
  %v50 = vld [vmem:[%s1 + $0x2c] sm:$0xf]
  %v51 = vld [vmem:[%s1 + $0x30] sm:$0xf]
  %v52 = vld [vmem:[%s1 + $0x34] sm:$0xf]
  %v53 = vld [vmem:[%s1 + $0x38] sm:$0xf]
  %v54 = vld [vmem:[%s1 + $0x3c] sm:$0xf]
  %v55 = vld [vmem:[%s1 + $0x40] sm:$0xf]
  %v56 = vld [vmem:[%s1 + $0x44] sm:$0xf]
  %v57 = vld [vmem:[%s1 + $0x48] sm:$0xf]
  %v58 = vld [vmem:[%s1 + $0x4c] sm:$0xf]
  %v59 = vld [vmem:[%s1 + $0x50] sm:$0xf]
  %v60 = vld [vmem:[%s1 + $0x54] sm:$0xf]
  %v61 = vld [vmem:[%s1 + $0x58] sm:$0xf]
  %v62 = vld [vmem:[%s1 + $0x5c] sm:$0xf]
  %v63 = vld [vmem:[%s1 + $0x60] sm:$0xf]
  %v66 = vunpack.c.l.b16 %v37
  %v67 = vunpack.c.h.b16 %v37
  %v68 = vunpack.c.l.b16 %v38
  %v69 = vunpack.c.h.b16 %v38
  %v70 = vpack.c.b16 %v68, %v66
  %v71 = vpack.c.b16 %v69, %v67
  %v98 = vunpack.c.l.b16 %v39
  %v99 = vunpack.c.l.b16 %v40
  %v100 = vunpack.c.l.b16 %v41
  %v101 = vunpack.c.l.b16 %v42
  %v102 = vunpack.c.l.b16 %v43
  %v103 = vunpack.c.l.b16 %v44
  %v104 = vunpack.c.l.b16 %v45
  %v105 = vunpack.c.l.b16 %v46
  %v106 = vunpack.c.l.b16 %v47
  %v107 = vunpack.c.l.b16 %v48
  %v108 = vunpack.c.l.b16 %v49
  %v109 = vunpack.c.l.b16 %v50
  %v110 = vunpack.c.l.b16 %v51
  %v111 = vunpack.c.l.b16 %v52
  %v112 = vunpack.c.l.b16 %v53
  %v113 = vunpack.c.l.b16 %v54
  %v114 = vunpack.c.l.b16 %v55
  %v115 = vunpack.c.l.b16 %v56
  %v116 = vunpack.c.l.b16 %v57
  %v117 = vunpack.c.l.b16 %v58
  %v118 = vunpack.c.l.b16 %v59
  %v119 = vunpack.c.l.b16 %v60
  %v120 = vunpack.c.l.b16 %v61
  %v121 = vunpack.c.l.b16 %v62
  %v122 = vunpack.c.l.b16 %v63
  %v123 = vpack.c.b16 %v99, %v98
  %v124 = vpack.c.b16 %v101, %v100
  %v125 = vpack.c.b16 %v103, %v102
  %v126 = vpack.c.b16 %v105, %v104
  %v127 = vpack.c.b16 %v107, %v106
  %v128 = vpack.c.b16 %v109, %v108
  %v129 = vpack.c.b16 %v111, %v110
  %v130 = vpack.c.b16 %v113, %v112
  %v131 = vpack.c.b16 %v115, %v114
  %v132 = vpack.c.b16 %v117, %v116
  %v133 = vpack.c.b16 %v119, %v118
  %v134 = vpack.c.b16 %v121, %v120
  %v135 = vpack.c.b16 %v122, %v122
  %vm148 = vcmask 588800
  %v150 = vsel %vm148, %v71, 0
  %vm152 = vcmask 1043456
  %v154 = vsel %vm152, %v135, 0
  %156 = vmatpush.bf16.msra.mxu0 %v130
  %157 = vmatpush.bf16.msra.mxu0 %v129
  %158 = vmatpush.bf16.msra.mxu0 %v128
  %159 = vmatpush.bf16.msra.mxu0 %v127
  %160 = vmatpush.bf16.msra.mxu0 %v126
  %161 = vmatpush.bf16.msra.mxu0 %v125
  %162 = vmatpush.bf16.msra.mxu0 %v124
  %163 = vmatpush.bf16.msra.mxu0 %v123
  %164 = vmatmul.bf16.gmra.mxu0 %v70
  %v165 = vpop.f32.mrf.mxu0
  %v166 = vadd.f32 0.0, %v165
  %v167 = vpop.f32.mrf.mxu0
  %v168 = vadd.f32 0.0, %v167
  %169 = vdwg.mxu0
  %170 = vmatpush.bf16.msra.mxu0 0
  %171 = vmatpush.bf16.msra.mxu0 0
  %172 = vmatpush.bf16.msra.mxu0 0
  %173 = vmatpush.bf16.msra.mxu0 %v154
  %174 = vmatpush.bf16.msra.mxu0 %v134
  %175 = vmatpush.bf16.msra.mxu0 %v133
  %176 = vmatpush.bf16.msra.mxu0 %v132
  %177 = vmatpush.bf16.msra.mxu0 %v131
  %178 = vmatmul.bf16.gmra.mxu0 %v150
  %v179 = vpop.f32.mrf.mxu0
  %v180 = vadd.f32 %v166, %v179
  %v181 = vpop.f32.mrf.mxu0
  %v182 = vadd.f32 %v168, %v181
  %183 = vdwg.mxu0
  %v184 = vadd.f32 %v35, %v180
  %v185 = vadd.f32 %v36, %v182
  %186 = vst [vmem:[#allocation2] sm:$0xff] %v184
  %187 = vst [vmem:[#allocation2 + $0x8] sm:$0xff] %v185
  // Predicated region
  $region18: #{celeba_vae_forward.22} parent=0 // pred_check
    %p188 = pneg %p15
  $region19: #{celeba_vae_forward.22} parent=0 // pred_check_branch
    %190 = sbr.rel (%p188) target = $region21
  $region20: #{celeba_vae_forward.22} parent=0 // pred_region
    %v191 = vld [vmem:[#allocation2] sm:$0xff]
    %v192 = vld [vmem:[#allocation2 + $0x8] sm:$0xff]
    %v193 = vmax.f32 %v191, 0.0
    %v194 = vmax.f32 %v192, 0.0
    %v195 = vpack.c.bf16 %v193, %v193
    %v196 = vpack.c.bf16 %v194, %v194
    %197 = vst [vmem:[%s3] sm:$0xf] %v195
    %198 = vst [vmem:[%s3 + $0x4] sm:$0xf] %v196
  $region21: #{celeba_vae_forward.22} parent=0 // pred_fallthru
    _
  // Predicated region
  $region22: #{celeba_vae_forward.22} parent=0 // pred_check
    _
  $region23: #{celeba_vae_forward.22} parent=0 // pred_check_branch
    %200 = sbr.rel (0) target = $region25
  $region24: #{celeba_vae_forward.22} parent=0 // pred_region
    _
  $region25: #{celeba_vae_forward.22} parent=0 // pred_fallthru
    _
  // Predicated region
  $region26: #{celeba_vae_forward.22} parent=0 // pred_check
    _
  $region27: #{celeba_vae_forward.22} parent=0 // pred_check_branch
    %202 = sbr.rel (0) target = $region29
  $region28: #{celeba_vae_forward.22} parent=0 // pred_region
    _
  $region29: #{celeba_vae_forward.22} parent=0 // pred_fallthru
    _

// kernel: celeba_vae_forward.25
$region0: #{celeba_vae_forward.25}
  #allocation0 [shape = 'u32[]', space=smem, size = 0x4, offset = 0x4, fixed_abs, tag = 'smem constant byte address 0x4 - core index']
  #allocation1 [shape = 'u32[72,128]{1,0:T(1,128)}', space=vmem, size = 0x9000, scoped, tag = 'internal scratch']
  #allocation2 [shape = 'f32[16,128]{1,0:T(8,128)}', space=vmem, size = 0x2000, scoped, tag = 'scratch operand']
  %s0 = inlined_call_operand.vmem [shape: bf16[16,96], index: 0, kind: input, shape index: {}]
  %s1 = inlined_call_operand.vmem [shape: bf16[96,128], index: 1, kind: input, shape index: {}]
  %s2 = inlined_call_operand.vmem [shape: f32[16,1], index: 2, kind: input, shape index: {}]
  %s3 = inlined_call_operand.vmem [shape: bf16[16,128], index: 3, kind: output, shape index: {}]
  %s4 = sld [smem:[#allocation0]]
  $region30: #{celeba_vae_forward.25} parent=0
    _
  %s6 = ssub.s32 1, %s4
  %s7 = scalar_select 0, %s6, %s4
  // Predicated region
  $region2: #{celeba_vae_forward.25} parent=0 // pred_check
    _
  $region3: #{celeba_vae_forward.25} parent=0 // pred_check_branch
    %9 = sbr.rel (0) target = $region5
  $region4: #{celeba_vae_forward.25} parent=0 // pred_region
    _
  $region5: #{celeba_vae_forward.25} parent=0 // pred_fallthru
    _
  // Predicated region
  $region6: #{celeba_vae_forward.25} parent=0 // pred_check
    _
  $region7: #{celeba_vae_forward.25} parent=0 // pred_check_branch
    %11 = sbr.rel (0) target = $region9
  $region8: #{celeba_vae_forward.25} parent=0 // pred_region
    _
  $region9: #{celeba_vae_forward.25} parent=0 // pred_fallthru
    _
  // Predicated region
  $region10: #{celeba_vae_forward.25} parent=0 // pred_check
    _
  $region11: #{celeba_vae_forward.25} parent=0 // pred_check_branch
    %13 = sbr.rel (0) target = $region13
  $region12: #{celeba_vae_forward.25} parent=0 // pred_region
    _
  $region13: #{celeba_vae_forward.25} parent=0 // pred_fallthru
    _
  %p15 = scmp.eq.s32.totalorder 0, 0
  // Predicated region
  $region14: #{celeba_vae_forward.25} parent=0 // pred_check
    %p16 = pneg %p15
  $region15: #{celeba_vae_forward.25} parent=0 // pred_check_branch
    %18 = sbr.rel (%p16) target = $region17
  $region16: #{celeba_vae_forward.25} parent=0 // pred_region
    %v19 = vld [vmem:[%s2] sm:$0xff]
    %v20 = vld [vmem:[%s2 + $0x8] sm:$0xff]
    %22 = vset.pattern.permute.xlu0 0
    %23 = vperm.xlu0 %22, %v19
    %v24 = vpop.permute.xlu0 %23
    %27 = vset.pattern.permute.xlu0 0
    %28 = vperm.xlu0 %27, %v20
    %v29 = vpop.permute.xlu0 %28
    %v31 = vadd.f32 %v24, 0.0
    %v32 = vadd.f32 %v29, 0.0
    %33 = vst [vmem:[#allocation2] sm:$0xff] %v31
    %34 = vst [vmem:[#allocation2 + $0x8] sm:$0xff] %v32
  $region17: #{celeba_vae_forward.25} parent=0 // pred_fallthru
    _
  %v35 = vld [vmem:[#allocation2] sm:$0xff]
  %v36 = vld [vmem:[#allocation2 + $0x8] sm:$0xff]
  %v37 = vld [vmem:[%s0] sm:$0xf]
  %v38 = vld [vmem:[%s0 + $0x4] sm:$0xf]
  %v39 = vld [vmem:[%s1] sm:$0xf]
  %v40 = vld [vmem:[%s1 + $0x4] sm:$0xf]
  %v41 = vld [vmem:[%s1 + $0x8] sm:$0xf]
  %v42 = vld [vmem:[%s1 + $0xc] sm:$0xf]
  %v43 = vld [vmem:[%s1 + $0x10] sm:$0xf]
  %v44 = vld [vmem:[%s1 + $0x14] sm:$0xf]
  %v45 = vld [vmem:[%s1 + $0x18] sm:$0xf]
  %v46 = vld [vmem:[%s1 + $0x1c] sm:$0xf]
  %v47 = vld [vmem:[%s1 + $0x20] sm:$0xf]
  %v48 = vld [vmem:[%s1 + $0x24] sm:$0xf]
  %v49 = vld [vmem:[%s1 + $0x28] sm:$0xf]
  %v50 = vld [vmem:[%s1 + $0x2c] sm:$0xf]
  %v53 = vunpack.c.l.b16 %v37
  %v54 = vunpack.c.l.b16 %v38
  %v55 = vpack.c.b16 %v54, %v53
  %v68 = vunpack.c.l.b16 %v39
  %v69 = vunpack.c.l.b16 %v40
  %v70 = vunpack.c.l.b16 %v41
  %v71 = vunpack.c.l.b16 %v42
  %v72 = vunpack.c.l.b16 %v43
  %v73 = vunpack.c.l.b16 %v44
  %v74 = vunpack.c.l.b16 %v45
  %v75 = vunpack.c.l.b16 %v46
  %v76 = vunpack.c.l.b16 %v47
  %v77 = vunpack.c.l.b16 %v48
  %v78 = vunpack.c.l.b16 %v49
  %v79 = vunpack.c.l.b16 %v50
  %v80 = vpack.c.b16 %v69, %v68
  %v81 = vpack.c.b16 %v71, %v70
  %v82 = vpack.c.b16 %v73, %v72
  %v83 = vpack.c.b16 %v75, %v74
  %v84 = vpack.c.b16 %v77, %v76
  %v85 = vpack.c.b16 %v79, %v78
  %vm92 = vcmask 785408
  %v94 = vsel %vm92, %v55, 0
  %96 = vmatpush.bf16.msra.mxu0 0
  %97 = vmatpush.bf16.msra.mxu0 0
  %98 = vmatpush.bf16.msra.mxu0 %v85
  %99 = vmatpush.bf16.msra.mxu0 %v84
  %100 = vmatpush.bf16.msra.mxu0 %v83
  %101 = vmatpush.bf16.msra.mxu0 %v82
  %102 = vmatpush.bf16.msra.mxu0 %v81
  %103 = vmatpush.bf16.msra.mxu0 %v80
  %104 = vmatmul.bf16.gmra.mxu0 %v94
  %v105 = vpop.f32.mrf.mxu0
  %v106 = vadd.f32 0.0, %v105
  %v107 = vpop.f32.mrf.mxu0
  %v108 = vadd.f32 0.0, %v107
  %109 = vdwg.mxu0
  %v110 = vadd.f32 %v35, %v106
  %v111 = vadd.f32 %v36, %v108
  %112 = vst [vmem:[#allocation2] sm:$0xff] %v110
  %113 = vst [vmem:[#allocation2 + $0x8] sm:$0xff] %v111
  // Predicated region
  $region18: #{celeba_vae_forward.25} parent=0 // pred_check
    %p114 = pneg %p15
  $region19: #{celeba_vae_forward.25} parent=0 // pred_check_branch
    %116 = sbr.rel (%p114) target = $region21
  $region20: #{celeba_vae_forward.25} parent=0 // pred_region
    %v117 = vld [vmem:[#allocation2] sm:$0xff]
    %v118 = vld [vmem:[#allocation2 + $0x8] sm:$0xff]
    %v119 = vmax.f32 %v117, 0.0
    %v120 = vmax.f32 %v118, 0.0
    %v121 = vpack.c.bf16 %v119, %v119
    %v122 = vpack.c.bf16 %v120, %v120
    %123 = vst [vmem:[%s3] sm:$0xf] %v121
    %124 = vst [vmem:[%s3 + $0x4] sm:$0xf] %v122
  $region21: #{celeba_vae_forward.25} parent=0 // pred_fallthru
    _
  // Predicated region
  $region22: #{celeba_vae_forward.25} parent=0 // pred_check
    _
  $region23: #{celeba_vae_forward.25} parent=0 // pred_check_branch
    %126 = sbr.rel (0) target = $region25
  $region24: #{celeba_vae_forward.25} parent=0 // pred_region
    _
  $region25: #{celeba_vae_forward.25} parent=0 // pred_fallthru
    _
  // Predicated region
  $region26: #{celeba_vae_forward.25} parent=0 // pred_check
    _
  $region27: #{celeba_vae_forward.25} parent=0 // pred_check_branch
    %128 = sbr.rel (0) target = $region29
  $region28: #{celeba_vae_forward.25} parent=0 // pred_region
    _
  $region29: #{celeba_vae_forward.25} parent=0 // pred_fallthru
    _

// kernel: celeba_vae_forward.24
$region0: #{celeba_vae_forward.24}
  #allocation0 [shape = 'u32[]', space=smem, size = 0x4, offset = 0x4, fixed_abs, tag = 'smem constant byte address 0x4 - core index']
  #allocation1 [shape = 'u32[72,128]{1,0:T(1,128)}', space=vmem, size = 0x9000, scoped, tag = 'internal scratch']
  #allocation2 [shape = 'f32[16,128]{1,0:T(8,128)}', space=vmem, size = 0x2000, scoped, tag = 'scratch operand']
  %s0 = inlined_call_operand.vmem [shape: bf16[16,144], index: 0, kind: input, shape index: {}]
  %s1 = inlined_call_operand.vmem [shape: bf16[144,128], index: 1, kind: input, shape index: {}]
  %s2 = inlined_call_operand.vmem [shape: f32[16,1], index: 2, kind: input, shape index: {}]
  %s3 = inlined_call_operand.vmem [shape: bf16[16,128], index: 3, kind: output, shape index: {}]
  %s4 = sld [smem:[#allocation0]]
  $region30: #{celeba_vae_forward.24} parent=0
    _
  %s6 = ssub.s32 1, %s4
  %s7 = scalar_select 0, %s6, %s4
  // Predicated region
  $region2: #{celeba_vae_forward.24} parent=0 // pred_check
    _
  $region3: #{celeba_vae_forward.24} parent=0 // pred_check_branch
    %9 = sbr.rel (0) target = $region5
  $region4: #{celeba_vae_forward.24} parent=0 // pred_region
    _
  $region5: #{celeba_vae_forward.24} parent=0 // pred_fallthru
    _
  // Predicated region
  $region6: #{celeba_vae_forward.24} parent=0 // pred_check
    _
  $region7: #{celeba_vae_forward.24} parent=0 // pred_check_branch
    %11 = sbr.rel (0) target = $region9
  $region8: #{celeba_vae_forward.24} parent=0 // pred_region
    _
  $region9: #{celeba_vae_forward.24} parent=0 // pred_fallthru
    _
  // Predicated region
  $region10: #{celeba_vae_forward.24} parent=0 // pred_check
    _
  $region11: #{celeba_vae_forward.24} parent=0 // pred_check_branch
    %13 = sbr.rel (0) target = $region13
  $region12: #{celeba_vae_forward.24} parent=0 // pred_region
    _
  $region13: #{celeba_vae_forward.24} parent=0 // pred_fallthru
    _
  %p15 = scmp.eq.s32.totalorder 0, 0
  // Predicated region
  $region14: #{celeba_vae_forward.24} parent=0 // pred_check
    %p16 = pneg %p15
  $region15: #{celeba_vae_forward.24} parent=0 // pred_check_branch
    %18 = sbr.rel (%p16) target = $region17
  $region16: #{celeba_vae_forward.24} parent=0 // pred_region
    %v19 = vld [vmem:[%s2] sm:$0xff]
    %v20 = vld [vmem:[%s2 + $0x8] sm:$0xff]
    %22 = vset.pattern.permute.xlu0 0
    %23 = vperm.xlu0 %22, %v19
    %v24 = vpop.permute.xlu0 %23
    %27 = vset.pattern.permute.xlu0 0
    %28 = vperm.xlu0 %27, %v20
    %v29 = vpop.permute.xlu0 %28
    %v31 = vadd.f32 %v24, 0.0
    %v32 = vadd.f32 %v29, 0.0
    %33 = vst [vmem:[#allocation2] sm:$0xff] %v31
    %34 = vst [vmem:[#allocation2 + $0x8] sm:$0xff] %v32
  $region17: #{celeba_vae_forward.24} parent=0 // pred_fallthru
    _
  %v35 = vld [vmem:[#allocation2] sm:$0xff]
  %v36 = vld [vmem:[#allocation2 + $0x8] sm:$0xff]
  %v37 = vld [vmem:[%s0] sm:$0xff]
  %v38 = vld [vmem:[%s0 + $0x8] sm:$0xff]
  %v39 = vld [vmem:[%s1] sm:$0xf]
  %v40 = vld [vmem:[%s1 + $0x4] sm:$0xf]
  %v41 = vld [vmem:[%s1 + $0x8] sm:$0xf]
  %v42 = vld [vmem:[%s1 + $0xc] sm:$0xf]
  %v43 = vld [vmem:[%s1 + $0x10] sm:$0xf]
  %v44 = vld [vmem:[%s1 + $0x14] sm:$0xf]
  %v45 = vld [vmem:[%s1 + $0x18] sm:$0xf]
  %v46 = vld [vmem:[%s1 + $0x1c] sm:$0xf]
  %v47 = vld [vmem:[%s1 + $0x20] sm:$0xf]
  %v48 = vld [vmem:[%s1 + $0x24] sm:$0xf]
  %v49 = vld [vmem:[%s1 + $0x28] sm:$0xf]
  %v50 = vld [vmem:[%s1 + $0x2c] sm:$0xf]
  %v51 = vld [vmem:[%s1 + $0x30] sm:$0xf]
  %v52 = vld [vmem:[%s1 + $0x34] sm:$0xf]
  %v53 = vld [vmem:[%s1 + $0x38] sm:$0xf]
  %v54 = vld [vmem:[%s1 + $0x3c] sm:$0xf]
  %v55 = vld [vmem:[%s1 + $0x40] sm:$0xf]
  %v56 = vld [vmem:[%s1 + $0x44] sm:$0xf]
  %v59 = vunpack.c.l.b16 %v37
  %v60 = vunpack.c.h.b16 %v37
  %v61 = vunpack.c.l.b16 %v38
  %v62 = vunpack.c.h.b16 %v38
  %v63 = vpack.c.b16 %v61, %v59
  %v64 = vpack.c.b16 %v62, %v60
  %v84 = vunpack.c.l.b16 %v39
  %v85 = vunpack.c.l.b16 %v40
  %v86 = vunpack.c.l.b16 %v41
  %v87 = vunpack.c.l.b16 %v42
  %v88 = vunpack.c.l.b16 %v43
  %v89 = vunpack.c.l.b16 %v44
  %v90 = vunpack.c.l.b16 %v45
  %v91 = vunpack.c.l.b16 %v46
  %v92 = vunpack.c.l.b16 %v47
  %v93 = vunpack.c.l.b16 %v48
  %v94 = vunpack.c.l.b16 %v49
  %v95 = vunpack.c.l.b16 %v50
  %v96 = vunpack.c.l.b16 %v51
  %v97 = vunpack.c.l.b16 %v52
  %v98 = vunpack.c.l.b16 %v53
  %v99 = vunpack.c.l.b16 %v54
  %v100 = vunpack.c.l.b16 %v55
  %v101 = vunpack.c.l.b16 %v56
  %v102 = vpack.c.b16 %v85, %v84
  %v103 = vpack.c.b16 %v87, %v86
  %v104 = vpack.c.b16 %v89, %v88
  %v105 = vpack.c.b16 %v91, %v90
  %v106 = vpack.c.b16 %v93, %v92
  %v107 = vpack.c.b16 %v95, %v94
  %v108 = vpack.c.b16 %v97, %v96
  %v109 = vpack.c.b16 %v99, %v98
  %v110 = vpack.c.b16 %v101, %v100
  %vm120 = vcmask 130048
  %v122 = vsel %vm120, %v64, 0
  %124 = vmatpush.bf16.msra.mxu0 %v109
  %125 = vmatpush.bf16.msra.mxu0 %v108
  %126 = vmatpush.bf16.msra.mxu0 %v107
  %127 = vmatpush.bf16.msra.mxu0 %v106
  %128 = vmatpush.bf16.msra.mxu0 %v105
  %129 = vmatpush.bf16.msra.mxu0 %v104
  %130 = vmatpush.bf16.msra.mxu0 %v103
  %131 = vmatpush.bf16.msra.mxu0 %v102
  %132 = vmatmul.bf16.gmra.mxu0 %v63
  %v133 = vpop.f32.mrf.mxu0
  %v134 = vadd.f32 0.0, %v133
  %v135 = vpop.f32.mrf.mxu0
  %v136 = vadd.f32 0.0, %v135
  %137 = vdwg.mxu0
  %138 = vmatpush.bf16.msra.mxu0 0
  %139 = vmatpush.bf16.msra.mxu0 0
  %140 = vmatpush.bf16.msra.mxu0 0
  %141 = vmatpush.bf16.msra.mxu0 0
  %142 = vmatpush.bf16.msra.mxu0 0
  %143 = vmatpush.bf16.msra.mxu0 0
  %144 = vmatpush.bf16.msra.mxu0 0
  %145 = vmatpush.bf16.msra.mxu0 %v110
  %146 = vmatmul.bf16.gmra.mxu0 %v122
  %v147 = vpop.f32.mrf.mxu0
  %v148 = vadd.f32 %v134, %v147
  %v149 = vpop.f32.mrf.mxu0
  %v150 = vadd.f32 %v136, %v149
  %151 = vdwg.mxu0
  %v152 = vadd.f32 %v35, %v148
  %v153 = vadd.f32 %v36, %v150
  %154 = vst [vmem:[#allocation2] sm:$0xff] %v152
  %155 = vst [vmem:[#allocation2 + $0x8] sm:$0xff] %v153
  // Predicated region
  $region18: #{celeba_vae_forward.24} parent=0 // pred_check
    %p156 = pneg %p15
  $region19: #{celeba_vae_forward.24} parent=0 // pred_check_branch
    %158 = sbr.rel (%p156) target = $region21
  $region20: #{celeba_vae_forward.24} parent=0 // pred_region
    %v159 = vld [vmem:[#allocation2] sm:$0xff]
    %v160 = vld [vmem:[#allocation2 + $0x8] sm:$0xff]
    %v161 = vmax.f32 %v159, 0.0
    %v162 = vmax.f32 %v160, 0.0
    %v163 = vpack.c.bf16 %v161, %v161
    %v164 = vpack.c.bf16 %v162, %v162
    %165 = vst [vmem:[%s3] sm:$0xf] %v163
    %166 = vst [vmem:[%s3 + $0x4] sm:$0xf] %v164
  $region21: #{celeba_vae_forward.24} parent=0 // pred_fallthru
    _
  // Predicated region
  $region22: #{celeba_vae_forward.24} parent=0 // pred_check
    _
  $region23: #{celeba_vae_forward.24} parent=0 // pred_check_branch
    %168 = sbr.rel (0) target = $region25
  $region24: #{celeba_vae_forward.24} parent=0 // pred_region
    _
  $region25: #{celeba_vae_forward.24} parent=0 // pred_fallthru
    _
  // Predicated region
  $region26: #{celeba_vae_forward.24} parent=0 // pred_check
    _
  $region27: #{celeba_vae_forward.24} parent=0 // pred_check_branch
    %170 = sbr.rel (0) target = $region29
  $region28: #{celeba_vae_forward.24} parent=0 // pred_region
    _
  $region29: #{celeba_vae_forward.24} parent=0 // pred_fallthru
    _

// kernel: celeba_vae_forward.27
$region0: #{celeba_vae_forward.27}
  #allocation0 [shape = 'u32[]', space=smem, size = 0x4, offset = 0x4, fixed_abs, tag = 'smem constant byte address 0x4 - core index']
  #allocation1 [shape = 'u32[72,128]{1,0:T(1,128)}', space=vmem, size = 0x9000, scoped, tag = 'internal scratch']
  #allocation2 [shape = 'f32[16,128]{1,0:T(8,128)}', space=vmem, size = 0x2000, scoped, tag = 'scratch operand']
  %s0 = inlined_call_operand.vmem [shape: bf16[16,64], index: 0, kind: input, shape index: {}]
  %s1 = inlined_call_operand.vmem [shape: bf16[64,128], index: 1, kind: input, shape index: {}]
  %s2 = inlined_call_operand.vmem [shape: f32[16,1], index: 2, kind: input, shape index: {}]
  %s3 = inlined_call_operand.vmem [shape: bf16[16,128], index: 3, kind: output, shape index: {}]
  %s4 = sld [smem:[#allocation0]]
  $region30: #{celeba_vae_forward.27} parent=0
    _
  %s6 = ssub.s32 1, %s4
  %s7 = scalar_select 0, %s6, %s4
  // Predicated region
  $region2: #{celeba_vae_forward.27} parent=0 // pred_check
    _
  $region3: #{celeba_vae_forward.27} parent=0 // pred_check_branch
    %9 = sbr.rel (0) target = $region5
  $region4: #{celeba_vae_forward.27} parent=0 // pred_region
    _
  $region5: #{celeba_vae_forward.27} parent=0 // pred_fallthru
    _
  // Predicated region
  $region6: #{celeba_vae_forward.27} parent=0 // pred_check
    _
  $region7: #{celeba_vae_forward.27} parent=0 // pred_check_branch
    %11 = sbr.rel (0) target = $region9
  $region8: #{celeba_vae_forward.27} parent=0 // pred_region
    _
  $region9: #{celeba_vae_forward.27} parent=0 // pred_fallthru
    _
  // Predicated region
  $region10: #{celeba_vae_forward.27} parent=0 // pred_check
    _
  $region11: #{celeba_vae_forward.27} parent=0 // pred_check_branch
    %13 = sbr.rel (0) target = $region13
  $region12: #{celeba_vae_forward.27} parent=0 // pred_region
    _
  $region13: #{celeba_vae_forward.27} parent=0 // pred_fallthru
    _
  %p15 = scmp.eq.s32.totalorder 0, 0
  // Predicated region
  $region14: #{celeba_vae_forward.27} parent=0 // pred_check
    %p16 = pneg %p15
  $region15: #{celeba_vae_forward.27} parent=0 // pred_check_branch
    %18 = sbr.rel (%p16) target = $region17
  $region16: #{celeba_vae_forward.27} parent=0 // pred_region
    %v19 = vld [vmem:[%s2] sm:$0xff]
    %v20 = vld [vmem:[%s2 + $0x8] sm:$0xff]
    %22 = vset.pattern.permute.xlu0 0
    %23 = vperm.xlu0 %22, %v19
    %v24 = vpop.permute.xlu0 %23
    %27 = vset.pattern.permute.xlu0 0
    %28 = vperm.xlu0 %27, %v20
    %v29 = vpop.permute.xlu0 %28
    %v31 = vadd.f32 %v24, 0.0
    %v32 = vadd.f32 %v29, 0.0
    %33 = vst [vmem:[#allocation2] sm:$0xff] %v31
    %34 = vst [vmem:[#allocation2 + $0x8] sm:$0xff] %v32
  $region17: #{celeba_vae_forward.27} parent=0 // pred_fallthru
    _
  %v35 = vld [vmem:[#allocation2] sm:$0xff]
  %v36 = vld [vmem:[#allocation2 + $0x8] sm:$0xff]
  %v37 = vld [vmem:[%s0] sm:$0xf]
  %v38 = vld [vmem:[%s0 + $0x4] sm:$0xf]
  %v39 = vld [vmem:[%s1] sm:$0xf]
  %v40 = vld [vmem:[%s1 + $0x4] sm:$0xf]
  %v41 = vld [vmem:[%s1 + $0x8] sm:$0xf]
  %v42 = vld [vmem:[%s1 + $0xc] sm:$0xf]
  %v43 = vld [vmem:[%s1 + $0x10] sm:$0xf]
  %v44 = vld [vmem:[%s1 + $0x14] sm:$0xf]
  %v45 = vld [vmem:[%s1 + $0x18] sm:$0xf]
  %v46 = vld [vmem:[%s1 + $0x1c] sm:$0xf]
  %v49 = vunpack.c.l.b16 %v37
  %v50 = vunpack.c.l.b16 %v38
  %v51 = vpack.c.b16 %v50, %v49
  %v60 = vunpack.c.l.b16 %v39
  %v61 = vunpack.c.l.b16 %v40
  %v62 = vunpack.c.l.b16 %v41
  %v63 = vunpack.c.l.b16 %v42
  %v64 = vunpack.c.l.b16 %v43
  %v65 = vunpack.c.l.b16 %v44
  %v66 = vunpack.c.l.b16 %v45
  %v67 = vunpack.c.l.b16 %v46
  %v68 = vpack.c.b16 %v61, %v60
  %v69 = vpack.c.b16 %v63, %v62
  %v70 = vpack.c.b16 %v65, %v64
  %v71 = vpack.c.b16 %v67, %v66
  %vm76 = vcmask 523264
  %v78 = vsel %vm76, %v51, 0
  %80 = vmatpush.bf16.msra.mxu0 0
  %81 = vmatpush.bf16.msra.mxu0 0
  %82 = vmatpush.bf16.msra.mxu0 0
  %83 = vmatpush.bf16.msra.mxu0 0
  %84 = vmatpush.bf16.msra.mxu0 %v71
  %85 = vmatpush.bf16.msra.mxu0 %v70
  %86 = vmatpush.bf16.msra.mxu0 %v69
  %87 = vmatpush.bf16.msra.mxu0 %v68
  %88 = vmatmul.bf16.gmra.mxu0 %v78
  %v89 = vpop.f32.mrf.mxu0
  %v90 = vadd.f32 0.0, %v89
  %v91 = vpop.f32.mrf.mxu0
  %v92 = vadd.f32 0.0, %v91
  %93 = vdwg.mxu0
  %v94 = vadd.f32 %v35, %v90
  %v95 = vadd.f32 %v36, %v92
  %96 = vst [vmem:[#allocation2] sm:$0xff] %v94
  %97 = vst [vmem:[#allocation2 + $0x8] sm:$0xff] %v95
  // Predicated region
  $region18: #{celeba_vae_forward.27} parent=0 // pred_check
    %p98 = pneg %p15
  $region19: #{celeba_vae_forward.27} parent=0 // pred_check_branch
    %100 = sbr.rel (%p98) target = $region21
  $region20: #{celeba_vae_forward.27} parent=0 // pred_region
    %v101 = vld [vmem:[#allocation2] sm:$0xff]
    %v102 = vld [vmem:[#allocation2 + $0x8] sm:$0xff]
    %v103 = vmax.f32 %v101, 0.0
    %v104 = vmax.f32 %v102, 0.0
    %v105 = vpack.c.bf16 %v103, %v103
    %v106 = vpack.c.bf16 %v104, %v104
    %107 = vst [vmem:[%s3] sm:$0xf] %v105
    %108 = vst [vmem:[%s3 + $0x4] sm:$0xf] %v106
  $region21: #{celeba_vae_forward.27} parent=0 // pred_fallthru
    _
  // Predicated region
  $region22: #{celeba_vae_forward.27} parent=0 // pred_check
    _
  $region23: #{celeba_vae_forward.27} parent=0 // pred_check_branch
    %110 = sbr.rel (0) target = $region25
  $region24: #{celeba_vae_forward.27} parent=0 // pred_region
    _
  $region25: #{celeba_vae_forward.27} parent=0 // pred_fallthru
    _
  // Predicated region
  $region26: #{celeba_vae_forward.27} parent=0 // pred_check
    _
  $region27: #{celeba_vae_forward.27} parent=0 // pred_check_branch
    %112 = sbr.rel (0) target = $region29
  $region28: #{celeba_vae_forward.27} parent=0 // pred_region
    _
  $region29: #{celeba_vae_forward.27} parent=0 // pred_fallthru
    _

// kernel: celeba_vae_forward.29
$region0: #{celeba_vae_forward.29}
  #allocation0 [shape = 'u32[]', space=smem, size = 0x4, offset = 0x4, fixed_abs, tag = 'smem constant byte address 0x4 - core index']
  #allocation1 [shape = 'u32[72,128]{1,0:T(1,128)}', space=vmem, size = 0x9000, scoped, tag = 'internal scratch']
  #allocation2 [shape = 'f32[16,128]{1,0:T(8,128)}', space=vmem, size = 0x2000, scoped, tag = 'scratch operand']
  %s0 = inlined_call_operand.vmem [shape: bf16[16,48], index: 0, kind: input, shape index: {}]
  %s1 = inlined_call_operand.vmem [shape: bf16[48,128], index: 1, kind: input, shape index: {}]
  %s2 = inlined_call_operand.vmem [shape: f32[16,1], index: 2, kind: input, shape index: {}]
  %s3 = inlined_call_operand.vmem [shape: bf16[16,128], index: 3, kind: output, shape index: {}]
  %s4 = sld [smem:[#allocation0]]
  $region30: #{celeba_vae_forward.29} parent=0
    _
  %s6 = ssub.s32 1, %s4
  %s7 = scalar_select 0, %s6, %s4
  // Predicated region
  $region2: #{celeba_vae_forward.29} parent=0 // pred_check
    _
  $region3: #{celeba_vae_forward.29} parent=0 // pred_check_branch
    %9 = sbr.rel (0) target = $region5
  $region4: #{celeba_vae_forward.29} parent=0 // pred_region
    _
  $region5: #{celeba_vae_forward.29} parent=0 // pred_fallthru
    _
  // Predicated region
  $region6: #{celeba_vae_forward.29} parent=0 // pred_check
    _
  $region7: #{celeba_vae_forward.29} parent=0 // pred_check_branch
    %11 = sbr.rel (0) target = $region9
  $region8: #{celeba_vae_forward.29} parent=0 // pred_region
    _
  $region9: #{celeba_vae_forward.29} parent=0 // pred_fallthru
    _
  // Predicated region
  $region10: #{celeba_vae_forward.29} parent=0 // pred_check
    _
  $region11: #{celeba_vae_forward.29} parent=0 // pred_check_branch
    %13 = sbr.rel (0) target = $region13
  $region12: #{celeba_vae_forward.29} parent=0 // pred_region
    _
  $region13: #{celeba_vae_forward.29} parent=0 // pred_fallthru
    _
  %p15 = scmp.eq.s32.totalorder 0, 0
  // Predicated region
  $region14: #{celeba_vae_forward.29} parent=0 // pred_check
    %p16 = pneg %p15
  $region15: #{celeba_vae_forward.29} parent=0 // pred_check_branch
    %18 = sbr.rel (%p16) target = $region17
  $region16: #{celeba_vae_forward.29} parent=0 // pred_region
    %v19 = vld [vmem:[%s2] sm:$0xff]
    %v20 = vld [vmem:[%s2 + $0x8] sm:$0xff]
    %22 = vset.pattern.permute.xlu0 0
    %23 = vperm.xlu0 %22, %v19
    %v24 = vpop.permute.xlu0 %23
    %27 = vset.pattern.permute.xlu0 0
    %28 = vperm.xlu0 %27, %v20
    %v29 = vpop.permute.xlu0 %28
    %v31 = vadd.f32 %v24, 0.0
    %v32 = vadd.f32 %v29, 0.0
    %33 = vst [vmem:[#allocation2] sm:$0xff] %v31
    %34 = vst [vmem:[#allocation2 + $0x8] sm:$0xff] %v32
  $region17: #{celeba_vae_forward.29} parent=0 // pred_fallthru
    _
  %v35 = vld [vmem:[#allocation2] sm:$0xff]
  %v36 = vld [vmem:[#allocation2 + $0x8] sm:$0xff]
  %v37 = vld [vmem:[%s0] sm:$0xf]
  %v38 = vld [vmem:[%s0 + $0x4] sm:$0xf]
  %v39 = vld [vmem:[%s1] sm:$0xf]
  %v40 = vld [vmem:[%s1 + $0x4] sm:$0xf]
  %v41 = vld [vmem:[%s1 + $0x8] sm:$0xf]
  %v42 = vld [vmem:[%s1 + $0xc] sm:$0xf]
  %v43 = vld [vmem:[%s1 + $0x10] sm:$0xf]
  %v44 = vld [vmem:[%s1 + $0x14] sm:$0xf]
  %v47 = vunpack.c.l.b16 %v37
  %v48 = vunpack.c.l.b16 %v38
  %v49 = vpack.c.b16 %v48, %v47
  %v56 = vunpack.c.l.b16 %v39
  %v57 = vunpack.c.l.b16 %v40
  %v58 = vunpack.c.l.b16 %v41
  %v59 = vunpack.c.l.b16 %v42
  %v60 = vunpack.c.l.b16 %v43
  %v61 = vunpack.c.l.b16 %v44
  %v62 = vpack.c.b16 %v57, %v56
  %v63 = vpack.c.b16 %v59, %v58
  %v64 = vpack.c.b16 %v61, %v60
  %vm68 = vcmask 392192
  %v70 = vsel %vm68, %v49, 0
  %72 = vmatpush.bf16.msra.mxu0 0
  %73 = vmatpush.bf16.msra.mxu0 0
  %74 = vmatpush.bf16.msra.mxu0 0
  %75 = vmatpush.bf16.msra.mxu0 0
  %76 = vmatpush.bf16.msra.mxu0 0
  %77 = vmatpush.bf16.msra.mxu0 %v64
  %78 = vmatpush.bf16.msra.mxu0 %v63
  %79 = vmatpush.bf16.msra.mxu0 %v62
  %80 = vmatmul.bf16.gmra.mxu0 %v70
  %v81 = vpop.f32.mrf.mxu0
  %v82 = vadd.f32 0.0, %v81
  %v83 = vpop.f32.mrf.mxu0
  %v84 = vadd.f32 0.0, %v83
  %85 = vdwg.mxu0
  %v86 = vadd.f32 %v35, %v82
  %v87 = vadd.f32 %v36, %v84
  %88 = vst [vmem:[#allocation2] sm:$0xff] %v86
  %89 = vst [vmem:[#allocation2 + $0x8] sm:$0xff] %v87
  // Predicated region
  $region18: #{celeba_vae_forward.29} parent=0 // pred_check
    %p90 = pneg %p15
  $region19: #{celeba_vae_forward.29} parent=0 // pred_check_branch
    %92 = sbr.rel (%p90) target = $region21
  $region20: #{celeba_vae_forward.29} parent=0 // pred_region
    %v93 = vld [vmem:[#allocation2] sm:$0xff]
    %v94 = vld [vmem:[#allocation2 + $0x8] sm:$0xff]
    %v95 = vmax.f32 %v93, 0.0
    %v96 = vmax.f32 %v94, 0.0
    %v97 = vpack.c.bf16 %v95, %v95
    %v98 = vpack.c.bf16 %v96, %v96
    %99 = vst [vmem:[%s3] sm:$0xf] %v97
    %100 = vst [vmem:[%s3 + $0x4] sm:$0xf] %v98
  $region21: #{celeba_vae_forward.29} parent=0 // pred_fallthru
    _
  // Predicated region
  $region22: #{celeba_vae_forward.29} parent=0 // pred_check
    _
  $region23: #{celeba_vae_forward.29} parent=0 // pred_check_branch
    %102 = sbr.rel (0) target = $region25
  $region24: #{celeba_vae_forward.29} parent=0 // pred_region
    _
  $region25: #{celeba_vae_forward.29} parent=0 // pred_fallthru
    _
  // Predicated region
  $region26: #{celeba_vae_forward.29} parent=0 // pred_check
    _
  $region27: #{celeba_vae_forward.29} parent=0 // pred_check_branch
    %104 = sbr.rel (0) target = $region29
  $region28: #{celeba_vae_forward.29} parent=0 // pred_region
    _
  $region29: #{celeba_vae_forward.29} parent=0 // pred_fallthru
    _

// kernel: celeba_vae_forward.28
$region0: #{celeba_vae_forward.28}
  #allocation0 [shape = 'u32[]', space=smem, size = 0x4, offset = 0x4, fixed_abs, tag = 'smem constant byte address 0x4 - core index']
  #allocation1 [shape = 'u32[72,128]{1,0:T(1,128)}', space=vmem, size = 0x9000, scoped, tag = 'internal scratch']
  #allocation2 [shape = 'f32[16,128]{1,0:T(8,128)}', space=vmem, size = 0x2000, scoped, tag = 'scratch operand']
  %s0 = inlined_call_operand.vmem [shape: bf16[16,72], index: 0, kind: input, shape index: {}]
  %s1 = inlined_call_operand.vmem [shape: bf16[72,128], index: 1, kind: input, shape index: {}]
  %s2 = inlined_call_operand.vmem [shape: f32[16,1], index: 2, kind: input, shape index: {}]
  %s3 = inlined_call_operand.vmem [shape: bf16[16,128], index: 3, kind: output, shape index: {}]
  %s4 = sld [smem:[#allocation0]]
  $region30: #{celeba_vae_forward.28} parent=0
    _
  %s6 = ssub.s32 1, %s4
  %s7 = scalar_select 0, %s6, %s4
  // Predicated region
  $region2: #{celeba_vae_forward.28} parent=0 // pred_check
    _
  $region3: #{celeba_vae_forward.28} parent=0 // pred_check_branch
    %9 = sbr.rel (0) target = $region5
  $region4: #{celeba_vae_forward.28} parent=0 // pred_region
    _
  $region5: #{celeba_vae_forward.28} parent=0 // pred_fallthru
    _
  // Predicated region
  $region6: #{celeba_vae_forward.28} parent=0 // pred_check
    _
  $region7: #{celeba_vae_forward.28} parent=0 // pred_check_branch
    %11 = sbr.rel (0) target = $region9
  $region8: #{celeba_vae_forward.28} parent=0 // pred_region
    _
  $region9: #{celeba_vae_forward.28} parent=0 // pred_fallthru
    _
  // Predicated region
  $region10: #{celeba_vae_forward.28} parent=0 // pred_check
    _
  $region11: #{celeba_vae_forward.28} parent=0 // pred_check_branch
    %13 = sbr.rel (0) target = $region13
  $region12: #{celeba_vae_forward.28} parent=0 // pred_region
    _
  $region13: #{celeba_vae_forward.28} parent=0 // pred_fallthru
    _
  %p15 = scmp.eq.s32.totalorder 0, 0
  // Predicated region
  $region14: #{celeba_vae_forward.28} parent=0 // pred_check
    %p16 = pneg %p15
  $region15: #{celeba_vae_forward.28} parent=0 // pred_check_branch
    %18 = sbr.rel (%p16) target = $region17
  $region16: #{celeba_vae_forward.28} parent=0 // pred_region
    %v19 = vld [vmem:[%s2] sm:$0xff]
    %v20 = vld [vmem:[%s2 + $0x8] sm:$0xff]
    %22 = vset.pattern.permute.xlu0 0
    %23 = vperm.xlu0 %22, %v19
    %v24 = vpop.permute.xlu0 %23
    %27 = vset.pattern.permute.xlu0 0
    %28 = vperm.xlu0 %27, %v20
    %v29 = vpop.permute.xlu0 %28
    %v31 = vadd.f32 %v24, 0.0
    %v32 = vadd.f32 %v29, 0.0
    %33 = vst [vmem:[#allocation2] sm:$0xff] %v31
    %34 = vst [vmem:[#allocation2 + $0x8] sm:$0xff] %v32
  $region17: #{celeba_vae_forward.28} parent=0 // pred_fallthru
    _
  %v35 = vld [vmem:[#allocation2] sm:$0xff]
  %v36 = vld [vmem:[#allocation2 + $0x8] sm:$0xff]
  %v37 = vld [vmem:[%s0] sm:$0xf]
  %v38 = vld [vmem:[%s0 + $0x4] sm:$0xf]
  %v39 = vld [vmem:[%s1] sm:$0xf]
  %v40 = vld [vmem:[%s1 + $0x4] sm:$0xf]
  %v41 = vld [vmem:[%s1 + $0x8] sm:$0xf]
  %v42 = vld [vmem:[%s1 + $0xc] sm:$0xf]
  %v43 = vld [vmem:[%s1 + $0x10] sm:$0xf]
  %v44 = vld [vmem:[%s1 + $0x14] sm:$0xf]
  %v45 = vld [vmem:[%s1 + $0x18] sm:$0xf]
  %v46 = vld [vmem:[%s1 + $0x1c] sm:$0xf]
  %v47 = vld [vmem:[%s1 + $0x20] sm:$0xf]
  %v50 = vunpack.c.l.b16 %v37
  %v51 = vunpack.c.l.b16 %v38
  %v52 = vpack.c.b16 %v51, %v50
  %v62 = vunpack.c.l.b16 %v39
  %v63 = vunpack.c.l.b16 %v40
  %v64 = vunpack.c.l.b16 %v41
  %v65 = vunpack.c.l.b16 %v42
  %v66 = vunpack.c.l.b16 %v43
  %v67 = vunpack.c.l.b16 %v44
  %v68 = vunpack.c.l.b16 %v45
  %v69 = vunpack.c.l.b16 %v46
  %v70 = vunpack.c.l.b16 %v47
  %v71 = vpack.c.b16 %v63, %v62
  %v72 = vpack.c.b16 %v65, %v64
  %v73 = vpack.c.b16 %v67, %v66
  %v74 = vpack.c.b16 %v69, %v68
  %v75 = vpack.c.b16 %v70, %v70
  %vm80 = vcmask 588800
  %v82 = vsel %vm80, %v52, 0
  %vm84 = vcmask 1043456
  %v86 = vsel %vm84, %v75, 0
  %88 = vmatpush.bf16.msra.mxu0 0
  %89 = vmatpush.bf16.msra.mxu0 0
  %90 = vmatpush.bf16.msra.mxu0 0
  %91 = vmatpush.bf16.msra.mxu0 %v86
  %92 = vmatpush.bf16.msra.mxu0 %v74
  %93 = vmatpush.bf16.msra.mxu0 %v73
  %94 = vmatpush.bf16.msra.mxu0 %v72
  %95 = vmatpush.bf16.msra.mxu0 %v71
  %96 = vmatmul.bf16.gmra.mxu0 %v82
  %v97 = vpop.f32.mrf.mxu0
  %v98 = vadd.f32 0.0, %v97
  %v99 = vpop.f32.mrf.mxu0
  %v100 = vadd.f32 0.0, %v99
  %101 = vdwg.mxu0
  %v102 = vadd.f32 %v35, %v98
  %v103 = vadd.f32 %v36, %v100
  %104 = vst [vmem:[#allocation2] sm:$0xff] %v102
  %105 = vst [vmem:[#allocation2 + $0x8] sm:$0xff] %v103
  // Predicated region
  $region18: #{celeba_vae_forward.28} parent=0 // pred_check
    %p106 = pneg %p15
  $region19: #{celeba_vae_forward.28} parent=0 // pred_check_branch
    %108 = sbr.rel (%p106) target = $region21
  $region20: #{celeba_vae_forward.28} parent=0 // pred_region
    %v109 = vld [vmem:[#allocation2] sm:$0xff]
    %v110 = vld [vmem:[#allocation2 + $0x8] sm:$0xff]
    %v111 = vmax.f32 %v109, 0.0
    %v112 = vmax.f32 %v110, 0.0
    %v113 = vpack.c.bf16 %v111, %v111
    %v114 = vpack.c.bf16 %v112, %v112
    %115 = vst [vmem:[%s3] sm:$0xf] %v113
    %116 = vst [vmem:[%s3 + $0x4] sm:$0xf] %v114
  $region21: #{celeba_vae_forward.28} parent=0 // pred_fallthru
    _
  // Predicated region
  $region22: #{celeba_vae_forward.28} parent=0 // pred_check
    _
  $region23: #{celeba_vae_forward.28} parent=0 // pred_check_branch
    %118 = sbr.rel (0) target = $region25
  $region24: #{celeba_vae_forward.28} parent=0 // pred_region
    _
  $region25: #{celeba_vae_forward.28} parent=0 // pred_fallthru
    _
  // Predicated region
  $region26: #{celeba_vae_forward.28} parent=0 // pred_check
    _
  $region27: #{celeba_vae_forward.28} parent=0 // pred_check_branch
    %120 = sbr.rel (0) target = $region29
  $region28: #{celeba_vae_forward.28} parent=0 // pred_region
    _
  $region29: #{celeba_vae_forward.28} parent=0 // pred_fallthru
    _

// kernel: celeba_vae_forward.31
$region0: #{celeba_vae_forward.31}
  #allocation0 [shape = 'u32[]', space=smem, size = 0x4, offset = 0x4, fixed_abs, tag = 'smem constant byte address 0x4 - core index']
  #allocation1 [shape = 'u32[72,128]{1,0:T(1,128)}', space=vmem, size = 0x9000, scoped, tag = 'internal scratch']
  #allocation2 [shape = 'f32[16,128]{1,0:T(8,128)}', space=vmem, size = 0x2000, scoped, tag = 'scratch operand']
  %s0 = inlined_call_operand.vmem [shape: bf16[16,32], index: 0, kind: input, shape index: {}]
  %s1 = inlined_call_operand.vmem [shape: bf16[32,128], index: 1, kind: input, shape index: {}]
  %s2 = inlined_call_operand.vmem [shape: f32[16,1], index: 2, kind: input, shape index: {}]
  %s3 = inlined_call_operand.vmem [shape: bf16[16,128], index: 3, kind: output, shape index: {}]
  %s4 = sld [smem:[#allocation0]]
  $region30: #{celeba_vae_forward.31} parent=0
    _
  %s6 = ssub.s32 1, %s4
  %s7 = scalar_select 0, %s6, %s4
  // Predicated region
  $region2: #{celeba_vae_forward.31} parent=0 // pred_check
    _
  $region3: #{celeba_vae_forward.31} parent=0 // pred_check_branch
    %9 = sbr.rel (0) target = $region5
  $region4: #{celeba_vae_forward.31} parent=0 // pred_region
    _
  $region5: #{celeba_vae_forward.31} parent=0 // pred_fallthru
    _
  // Predicated region
  $region6: #{celeba_vae_forward.31} parent=0 // pred_check
    _
  $region7: #{celeba_vae_forward.31} parent=0 // pred_check_branch
    %11 = sbr.rel (0) target = $region9
  $region8: #{celeba_vae_forward.31} parent=0 // pred_region
    _
  $region9: #{celeba_vae_forward.31} parent=0 // pred_fallthru
    _
  // Predicated region
  $region10: #{celeba_vae_forward.31} parent=0 // pred_check
    _
  $region11: #{celeba_vae_forward.31} parent=0 // pred_check_branch
    %13 = sbr.rel (0) target = $region13
  $region12: #{celeba_vae_forward.31} parent=0 // pred_region
    _
  $region13: #{celeba_vae_forward.31} parent=0 // pred_fallthru
    _
  %p15 = scmp.eq.s32.totalorder 0, 0
  // Predicated region
  $region14: #{celeba_vae_forward.31} parent=0 // pred_check
    %p16 = pneg %p15
  $region15: #{celeba_vae_forward.31} parent=0 // pred_check_branch
    %18 = sbr.rel (%p16) target = $region17
  $region16: #{celeba_vae_forward.31} parent=0 // pred_region
    %v19 = vld [vmem:[%s2] sm:$0xff]
    %v20 = vld [vmem:[%s2 + $0x8] sm:$0xff]
    %22 = vset.pattern.permute.xlu0 0
    %23 = vperm.xlu0 %22, %v19
    %v24 = vpop.permute.xlu0 %23
    %27 = vset.pattern.permute.xlu0 0
    %28 = vperm.xlu0 %27, %v20
    %v29 = vpop.permute.xlu0 %28
    %v31 = vadd.f32 %v24, 0.0
    %v32 = vadd.f32 %v29, 0.0
    %33 = vst [vmem:[#allocation2] sm:$0xff] %v31
    %34 = vst [vmem:[#allocation2 + $0x8] sm:$0xff] %v32
  $region17: #{celeba_vae_forward.31} parent=0 // pred_fallthru
    _
  %v35 = vld [vmem:[#allocation2] sm:$0xff]
  %v36 = vld [vmem:[#allocation2 + $0x8] sm:$0xff]
  %v37 = vld [vmem:[%s0] sm:$0xf]
  %v38 = vld [vmem:[%s0 + $0x4] sm:$0xf]
  %v39 = vld [vmem:[%s1] sm:$0xf]
  %v40 = vld [vmem:[%s1 + $0x4] sm:$0xf]
  %v41 = vld [vmem:[%s1 + $0x8] sm:$0xf]
  %v42 = vld [vmem:[%s1 + $0xc] sm:$0xf]
  %v45 = vunpack.c.l.b16 %v37
  %v46 = vunpack.c.l.b16 %v38
  %v47 = vpack.c.b16 %v46, %v45
  %v52 = vunpack.c.l.b16 %v39
  %v53 = vunpack.c.l.b16 %v40
  %v54 = vunpack.c.l.b16 %v41
  %v55 = vunpack.c.l.b16 %v42
  %v56 = vpack.c.b16 %v53, %v52
  %v57 = vpack.c.b16 %v55, %v54
  %vm60 = vcmask 261120
  %v62 = vsel %vm60, %v47, 0
  %64 = vmatpush.bf16.msra.mxu0 0
  %65 = vmatpush.bf16.msra.mxu0 0
  %66 = vmatpush.bf16.msra.mxu0 0
  %67 = vmatpush.bf16.msra.mxu0 0
  %68 = vmatpush.bf16.msra.mxu0 0
  %69 = vmatpush.bf16.msra.mxu0 0
  %70 = vmatpush.bf16.msra.mxu0 %v57
  %71 = vmatpush.bf16.msra.mxu0 %v56
  %72 = vmatmul.bf16.gmra.mxu0 %v62
  %v73 = vpop.f32.mrf.mxu0
  %v74 = vadd.f32 0.0, %v73
  %v75 = vpop.f32.mrf.mxu0
  %v76 = vadd.f32 0.0, %v75
  %77 = vdwg.mxu0
  %v78 = vadd.f32 %v35, %v74
  %v79 = vadd.f32 %v36, %v76
  %80 = vst [vmem:[#allocation2] sm:$0xff] %v78
  %81 = vst [vmem:[#allocation2 + $0x8] sm:$0xff] %v79
  // Predicated region
  $region18: #{celeba_vae_forward.31} parent=0 // pred_check
    %p82 = pneg %p15
  $region19: #{celeba_vae_forward.31} parent=0 // pred_check_branch
    %84 = sbr.rel (%p82) target = $region21
  $region20: #{celeba_vae_forward.31} parent=0 // pred_region
    %v85 = vld [vmem:[#allocation2] sm:$0xff]
    %v86 = vld [vmem:[#allocation2 + $0x8] sm:$0xff]
    %v87 = vmax.f32 %v85, 0.0
    %v88 = vmax.f32 %v86, 0.0
    %v89 = vpack.c.bf16 %v87, %v87
    %v90 = vpack.c.bf16 %v88, %v88
    %91 = vst [vmem:[%s3] sm:$0xf] %v89
    %92 = vst [vmem:[%s3 + $0x4] sm:$0xf] %v90
  $region21: #{celeba_vae_forward.31} parent=0 // pred_fallthru
    _
  // Predicated region
  $region22: #{celeba_vae_forward.31} parent=0 // pred_check
    _
  $region23: #{celeba_vae_forward.31} parent=0 // pred_check_branch
    %94 = sbr.rel (0) target = $region25
  $region24: #{celeba_vae_forward.31} parent=0 // pred_region
    _
  $region25: #{celeba_vae_forward.31} parent=0 // pred_fallthru
    _
  // Predicated region
  $region26: #{celeba_vae_forward.31} parent=0 // pred_check
    _
  $region27: #{celeba_vae_forward.31} parent=0 // pred_check_branch
    %96 = sbr.rel (0) target = $region29
  $region28: #{celeba_vae_forward.31} parent=0 // pred_region
    _
  $region29: #{celeba_vae_forward.31} parent=0 // pred_fallthru
    _

// kernel: celeba_vae_forward.33
$region0: #{celeba_vae_forward.33}
  #allocation0 [shape = 'u32[]', space=smem, size = 0x4, offset = 0x4, fixed_abs, tag = 'smem constant byte address 0x4 - core index']
  #allocation1 [shape = 'u32[72,128]{1,0:T(1,128)}', space=vmem, size = 0x9000, scoped, tag = 'internal scratch']
  #allocation2 [shape = 'f32[16,256]{1,0:T(8,128)}', space=vmem, size = 0x4000, scoped, tag = 'scratch operand']
  %s0 = inlined_call_operand.vmem [shape: bf16[16,16], index: 0, kind: input, shape index: {}]
  %s1 = inlined_call_operand.vmem [shape: bf16[16,512], index: 1, kind: input, shape index: {}]
  %s2 = inlined_call_operand.vmem [shape: f32[16,1], index: 2, kind: input, shape index: {}]
  %s3 = inlined_call_operand.vmem [shape: bf16[16,512], index: 3, kind: output, shape index: {}]
  %s4 = sld [smem:[#allocation0]]
  $region125: #{celeba_vae_forward.33} parent=0
    _
  %s6 = ssub.s32 1, %s4
  %s7 = scalar_select 0, %s6, %s4
  $region1: #{celeba_vae_forward.33} parent=0
    #allocation3 [shape = 'u8[16384]{0}', space=vmem, size = 0x4000, scoped, tag = 'input window, operand 1']
    #allocation4 [shape = 'u8[16384]{0}', space=vmem, size = 0x4000, scoped, tag = 'output window, operand 0']
    loop: start=0, step=1, limit=4
    $region2: #{celeba_vae_forward.33} parent=1 // loop_pre_header
      _
    $region3: #{celeba_vae_forward.33} parent=1 // loop_header
      %s9 = sphi 0, %s13
      %p10 = scmp.ge.s32.totalorder %s9, 4
      %s16 = sphi 0, %s28
      %s17 = sphi 0, %s24
      %s18 = sphi 0, %s16
      %s19 = sphi 0, %s17
      %s20 = sphi 0, %s18
      %s21 = sphi 0, %s19
      %s31 = sphi 0, %s33
      %s34 = sphi 0, %s31
      %s35 = sphi 0, %s34
      %s51 = sphi 0, %s35
      %s59 = sphi 0, %s61
      %s62 = sphi 0, %s59
      %s63 = sphi 0, %s62
      %s79 = sphi 0, %s63
      %s83 = sphi 0, %s83
      %s85 = sphi 0, %s83
      %s86 = sphi 0, %s85
      %s100 = sphi 0, %s86
      %s106 = sphi 0, %s108
      %s109 = sphi 0, %s106
      %s110 = sphi 0, %s109
      %s126 = sphi 0, %s110
    $region4: #{celeba_vae_forward.33} parent=1 // loop_header_branch
      %12 = sbr.rel (%p10) target = $region8
    $region5: #{celeba_vae_forward.33} parent=1 // loop_body
      %s14 = ssub.s32 %s9, 1
      %s15 = ssub.s32 %s9, 2
      %s22 = sadd.s32 1, %s17
      %p23 = scmp.ge.s32.totalorder %s22, 1
      %s24 = scalar_select %p23, 0, %s22
      %s25 = sadd.s32 1, %s16
      %s26 = scalar_select %p23, %s25, %s16
      %p27 = scmp.ge.s32.totalorder %s26, 2
      %s28 = scalar_select %p27, 0, %s26
      %s29 = ssub.s32 %s17, %s24
      %p30 = scmp.eq.s32.totalorder %s29, 0
      %s32 = sadd.s32 %s31, 1
      %s33 = scalar_select %p30, %s31, %s32
      %p36 = pneg %p30
      %p37 = scmp.eq.s32.totalorder %s9, 1
      %p38 = por %p36, %p37
      %p39 = scmp.ne.s32.totalorder %s31, %s34
      %p40 = scmp.eq.s32.totalorder %s9, 0
      %p41 = por %p39, %p40
      %p42 = scmp.ne.s32.totalorder %s31, %s34
      %p43 = scmp.eq.s32.totalorder %s14, 1
      %p44 = por %p42, %p43
      %p45 = scmp.ne.s32.totalorder %s34, %s35
      %p46 = scmp.eq.s32.totalorder %s14, 0
      %p47 = por %p45, %p46
      %p48 = scmp.ne.s32.totalorder %s34, %s35
      %p49 = scmp.eq.s32.totalorder %s15, 1
      %p50 = por %p48, %p49
      %p52 = scmp.ne.s32.totalorder %s35, %s51
      %p53 = scmp.eq.s32.totalorder %s15, 0
      %p54 = por %p52, %p53
      %s55 = ssub.s32 %s17, %s24
      %s56 = ssub.s32 %s16, %s28
      %s57 = sor.u32 %s55, %s56
      %p58 = scmp.eq.s32.totalorder %s57, 0
      %s60 = sadd.s32 %s59, 1
      %s61 = scalar_select %p58, %s59, %s60
      %p64 = pneg %p58
      %p65 = scmp.eq.s32.totalorder %s9, 1
      %p66 = por %p64, %p65
      %p67 = scmp.ne.s32.totalorder %s59, %s62
      %p68 = scmp.eq.s32.totalorder %s9, 0
      %p69 = por %p67, %p68
      %p70 = scmp.ne.s32.totalorder %s59, %s62
      %p71 = scmp.eq.s32.totalorder %s14, 1
      %p72 = por %p70, %p71
      %p73 = scmp.ne.s32.totalorder %s62, %s63
      %p74 = scmp.eq.s32.totalorder %s14, 0
      %p75 = por %p73, %p74
      %p76 = scmp.ne.s32.totalorder %s62, %s63
      %p77 = scmp.eq.s32.totalorder %s15, 1
      %p78 = por %p76, %p77
      %p80 = scmp.ne.s32.totalorder %s63, %s79
      %p81 = scmp.eq.s32.totalorder %s15, 0
      %p82 = por %p80, %p81
      %s84 = sadd.s32 %s83, 1
      %p87 = scmp.eq.s32.totalorder %s9, 1
      %p88 = scmp.ne.s32.totalorder %s83, %s85
      %p89 = scmp.eq.s32.totalorder %s9, 0
      %p90 = por %p88, %p89
      %p91 = scmp.ne.s32.totalorder %s83, %s85
      %p92 = scmp.eq.s32.totalorder %s14, 1
      %p93 = por %p91, %p92
      %p94 = scmp.ne.s32.totalorder %s85, %s86
      %p95 = scmp.eq.s32.totalorder %s14, 0
      %p96 = por %p94, %p95
      %p97 = scmp.ne.s32.totalorder %s85, %s86
      %p98 = scmp.eq.s32.totalorder %s15, 1
      %p99 = por %p97, %p98
      %p101 = scmp.ne.s32.totalorder %s86, %s100
      %p102 = scmp.eq.s32.totalorder %s15, 0
      %p103 = por %p101, %p102
      %s104 = ssub.s32 %s16, %s28
      %p105 = scmp.eq.s32.totalorder %s104, 0
      %s107 = sadd.s32 %s106, 1
      %s108 = scalar_select %p105, %s106, %s107
      %p111 = pneg %p105
      %p112 = scmp.eq.s32.totalorder %s9, 1
      %p113 = por %p111, %p112
      %p114 = scmp.ne.s32.totalorder %s106, %s109
      %p115 = scmp.eq.s32.totalorder %s9, 0
      %p116 = por %p114, %p115
      %p117 = scmp.ne.s32.totalorder %s106, %s109
      %p118 = scmp.eq.s32.totalorder %s14, 1
      %p119 = por %p117, %p118
      %p120 = scmp.ne.s32.totalorder %s109, %s110
      %p121 = scmp.eq.s32.totalorder %s14, 0
      %p122 = por %p120, %p121
      %p123 = scmp.ne.s32.totalorder %s109, %s110
      %p124 = scmp.eq.s32.totalorder %s15, 1
      %p125 = por %p123, %p124
      %p127 = scmp.ne.s32.totalorder %s110, %s126
      %p128 = scmp.eq.s32.totalorder %s15, 0
      %p129 = por %p127, %p128
      %p130 = scmp.le.s32.totalorder 1, %s9
      %p131 = scmp.lt.s32.totalorder %s9, 3
      %p132 = pnand %p130, %p131
      %p133 = pneg %p132
      // Predicated region
      $region9: #{celeba_vae_forward.33} parent=5 // pred_check
        _
      $region10: #{celeba_vae_forward.33} parent=5 // pred_check_branch
        %135 = sbr.rel (%p132) target = $region12
      $region11: #{celeba_vae_forward.33} parent=5 // pred_region
        %s136 = ssub.s32 %s9, 1
        // Predicated region
        $region13: #{celeba_vae_forward.33} parent=11 // pred_check
          %p137 = pneg %p47
        $region14: #{celeba_vae_forward.33} parent=11 // pred_check_branch
          %139 = sbr.rel (%p137) target = $region16
        $region15: #{celeba_vae_forward.33} parent=11 // pred_region
          %p140 = scmp.lt.s32.totalorder %s19, 0
          %s141 = scalar_select %p140, %s19, 0
          %s142 = smul.addr %s141, 4
          %s143 = scalar_lea.vmem %s0, %s142
        $region16: #{celeba_vae_forward.33} parent=11 // pred_fallthru
          _
        // Predicated region
        $region17: #{celeba_vae_forward.33} parent=11 // pred_check
          %p144 = pneg %p96
        $region18: #{celeba_vae_forward.33} parent=11 // pred_check_branch
          %146 = sbr.rel (%p144) target = $region20
        $region19: #{celeba_vae_forward.33} parent=11 // pred_region
          _
        $region20: #{celeba_vae_forward.33} parent=11 // pred_fallthru
          _
      $region12: #{celeba_vae_forward.33} parent=5 // pred_fallthru
        _
      %p147 = scmp.lt.s32.totalorder %s9, 2
      // Predicated region
      $region21: #{celeba_vae_forward.33} parent=5 // pred_check
        %p148 = pneg %p147
      $region22: #{celeba_vae_forward.33} parent=5 // pred_check_branch
        %150 = sbr.rel (%p148) target = $region24
      $region23: #{celeba_vae_forward.33} parent=5 // pred_region
        // Predicated region
        $region25: #{celeba_vae_forward.33} parent=23 // pred_check
          %p151 = pneg %p69
        $region26: #{celeba_vae_forward.33} parent=23 // pred_check_branch
          %153 = sbr.rel (%p151) target = $region28
        $region27: #{celeba_vae_forward.33} parent=23 // pred_region
          %s154 = sand.u32 %s59, 1
          %s155 = sand.u32 %s59, 1
          %s156 = smul.addr %s155, 16
          %s157 = scalar_lea.vmem [#allocation3], %s156
          %s158 = smul.u32 2, %s17
          %s159 = smul.u32 2, %s16
          %s160 = smul.addr %s158, 4
          %s161 = sadd.s32 %s159, %s160
          %s162 = smul.addr %s161, 4
          %s163 = scalar_lea.vmem %s1, %s162
          // Predicated region
          $region29: #{celeba_vae_forward.33} parent=27 // pred_check
            _
          $region30: #{celeba_vae_forward.33} parent=27 // pred_check_branch
            %165 = sbr.rel (0) target = $region32
          $region31: #{celeba_vae_forward.33} parent=27 // pred_region
            // Predicated region
            $region33: #{celeba_vae_forward.33} parent=31 // pred_check
              _
            $region34: #{celeba_vae_forward.33} parent=31 // pred_check_branch
              %167 = sbr.rel (0) target = $region36
            $region35: #{celeba_vae_forward.33} parent=31 // pred_region
              // Predicated region
              $region48: #{celeba_vae_forward.33} parent=35 // pred_check
                _
              $region49: #{celeba_vae_forward.33} parent=35 // pred_check_branch
                %185 = sbr.rel (0) target = $region51
              $region50: #{celeba_vae_forward.33} parent=35 // pred_region
                loop: start=0, step=1, limit=1
                $region52: #{celeba_vae_forward.33} parent=50 // loop_pre_header
                  _
                $region53: #{celeba_vae_forward.33} parent=50 // loop_header
                  %s187 = sphi 0, %s191
                  %p188 = scmp.ge.s32.totalorder %s187, 1
                  %s192 = sphi %s163, %s163
                  %s193 = sphi %s157, %s157
                $region54: #{celeba_vae_forward.33} parent=50 // loop_header_branch
                  %190 = sbr.rel (%p188) target = $region58
                $region55: #{celeba_vae_forward.33} parent=50 // loop_body
                  %v194 = vld [vmem:[%s192] sm:$0xff]
                  %195 = vst [vmem:[%s193] sm:$0xff] %v194
                  %v196 = vld [vmem:[%s192 + $0x10] sm:$0xff]
                  %197 = vst [vmem:[%s193 + $0x8] sm:$0xff] %v196
                $region56: #{celeba_vae_forward.33} parent=50 // loop_footer
                  %s191 = sadd.s32 1, %s187
                $region57: #{celeba_vae_forward.33} parent=50 // loop_footer_branch
                  %186 = sbr.rel target = $region53
                $region58: #{celeba_vae_forward.33} parent=50 // loop_exit
                  _
              $region51: #{celeba_vae_forward.33} parent=35 // pred_fallthru
                _
              // Predicated region
              $region59: #{celeba_vae_forward.33} parent=35 // pred_check
                _
              $region60: #{celeba_vae_forward.33} parent=35 // pred_check_branch
                %199 = sbr.rel target = $region62
              $region61: #{celeba_vae_forward.33} parent=35 // pred_region
                _
              $region62: #{celeba_vae_forward.33} parent=35 // pred_fallthru
                _
            $region36: #{celeba_vae_forward.33} parent=31 // pred_fallthru
              _
            // Predicated region
            $region37: #{celeba_vae_forward.33} parent=31 // pred_check
              _
            $region38: #{celeba_vae_forward.33} parent=31 // pred_check_branch
              %169 = sbr.rel target = $region40
            $region39: #{celeba_vae_forward.33} parent=31 // pred_region
              %s171 = ssub.s32 256, 1
              loop: start=0, step=1, limit=1
              $region41: #{celeba_vae_forward.33} parent=39 // loop_pre_header
                _
              $region42: #{celeba_vae_forward.33} parent=39 // loop_header
                %s173 = sphi 0, %s177
                %p174 = scmp.ge.s32.totalorder %s173, 1
                %s178 = sphi %s163, %s163
                %s179 = sphi %s157, %s157
              $region43: #{celeba_vae_forward.33} parent=39 // loop_header_branch
                %176 = sbr.rel (%p174) target = $region47
              $region44: #{celeba_vae_forward.33} parent=39 // loop_body
                %v180 = vld [vmem:[%s178] sm:%s171]
                %181 = vst [vmem:[%s179] sm:%s171] %v180
                %v182 = vld [vmem:[%s178 + $0x10] sm:%s171]
                %183 = vst [vmem:[%s179 + $0x8] sm:%s171] %v182
              $region45: #{celeba_vae_forward.33} parent=39 // loop_footer
                %s177 = sadd.s32 1, %s173
              $region46: #{celeba_vae_forward.33} parent=39 // loop_footer_branch
                %172 = sbr.rel target = $region42
              $region47: #{celeba_vae_forward.33} parent=39 // loop_exit
                _
            $region40: #{celeba_vae_forward.33} parent=31 // pred_fallthru
              _
          $region32: #{celeba_vae_forward.33} parent=27 // pred_fallthru
            _
          %200 = vnop
        $region28: #{celeba_vae_forward.33} parent=23 // pred_fallthru
          _
      $region24: #{celeba_vae_forward.33} parent=5 // pred_fallthru
        _
      %p201 = scmp.le.s32.totalorder 1, %s9
      %p202 = scmp.lt.s32.totalorder %s9, 3
      %p203 = pnand %p201, %p202
      %p204 = pneg %p203
      // Predicated region
      $region63: #{celeba_vae_forward.33} parent=5 // pred_check
        _
      $region64: #{celeba_vae_forward.33} parent=5 // pred_check_branch
        %206 = sbr.rel (%p203) target = $region66
      $region65: #{celeba_vae_forward.33} parent=5 // pred_region
        %s207 = ssub.s32 %s9, 1
        %s208 = sand.u32 %s62, 1
        %s209 = sand.u32 %s62, 1
        %s210 = smul.addr %s209, 16
        %s211 = scalar_lea.vmem [#allocation3], %s210
        // Predicated region
        $region67: #{celeba_vae_forward.33} parent=65 // pred_check
          %p212 = pneg %p75
        $region68: #{celeba_vae_forward.33} parent=65 // pred_check_branch
          %214 = sbr.rel (%p212) target = $region70
        $region69: #{celeba_vae_forward.33} parent=65 // pred_region
          _
        $region70: #{celeba_vae_forward.33} parent=65 // pred_fallthru
          _
        %p215 = scmp.lt.s32.totalorder %s19, 0
        %s216 = scalar_select %p215, %s19, 0
        %s217 = smul.addr %s216, 4
        %s218 = scalar_lea.vmem %s0, %s217
        %p219 = pneg %p47
        %p220 = pneg %p44
        %s221 = sand.u32 %s62, 1
        %s222 = sand.u32 %s62, 1
        %s223 = smul.addr %s222, 16
        %s224 = scalar_lea.vmem [#allocation3], %s223
        %p225 = pneg %p75
        %p226 = pneg %p72
        %p227 = pneg %p96
        %p228 = pneg %p93
        %p229 = pneg %p122
        %p230 = pneg %p119
        %s231 = sand.u32 %s109, 1
        %s232 = sand.u32 %s109, 1
        %s233 = smul.addr %s232, 16
        %s234 = scalar_lea.vmem [#allocation4], %s233
        %p235 = scmp.lt.s32.totalorder %s19, 0
        %s236 = scalar_select %p235, %s19, 0
        %s237 = smul.addr %s236, 4
        %s238 = scalar_lea.vmem %s0, %s237
        %s239 = smul.u32 2, %s19
        %s240 = smul.u32 2, %s18
        %s241 = smul.u32 2, %s18
        %p243 = scmp.eq.s32.totalorder %s19, 0
        // Predicated region
        $region71: #{celeba_vae_forward.33} parent=65 // pred_check
          %p244 = pneg %p243
        $region72: #{celeba_vae_forward.33} parent=65 // pred_check_branch
          %246 = sbr.rel (%p244) target = $region74
        $region73: #{celeba_vae_forward.33} parent=65 // pred_region
          %v247 = vld [vmem:[%s2] sm:$0xff]
          %v248 = vld [vmem:[%s2 + $0x8] sm:$0xff]
          %250 = vset.pattern.permute.xlu0 0
          %251 = vperm.xlu0 %250, %v247
          %v252 = vpop.permute.xlu0 %251
          %255 = vset.pattern.permute.xlu0 0
          %256 = vperm.xlu0 %255, %v248
          %v257 = vpop.permute.xlu0 %256
          %v259 = vadd.f32 %v252, 0.0
          %v260 = vadd.f32 %v257, 0.0
          %261 = vst [vmem:[#allocation2] sm:$0xff] %v259
          %262 = vst [vmem:[#allocation2 + $0x8] sm:$0xff] %v259
          %263 = vst [vmem:[#allocation2 + $0x10] sm:$0xff] %v260
          %264 = vst [vmem:[#allocation2 + $0x18] sm:$0xff] %v260
        $region74: #{celeba_vae_forward.33} parent=65 // pred_fallthru
          _
        %v265 = vld [vmem:[#allocation2] sm:$0xff]
        %v266 = vld [vmem:[#allocation2 + $0x8] sm:$0xff]
        %v267 = vld [vmem:[#allocation2 + $0x10] sm:$0xff]
        %v268 = vld [vmem:[#allocation2 + $0x18] sm:$0xff]
        %v269 = vld [vmem:[%s238] sm:$0xf]
        %v270 = vld [vmem:[%s238 + $0x4] sm:$0xf]
        %v271 = vld [vmem:[%s211] sm:$0xff]
        %v272 = vld [vmem:[%s211 + $0x8] sm:$0xff]
        %v275 = vunpack.c.l.b16 %v269
        %v276 = vunpack.c.l.b16 %v270
        %v277 = vpack.c.b16 %v276, %v275
        %v280 = vunpack.c.l.b16 %v271
        %v281 = vunpack.c.h.b16 %v271
        %v282 = vunpack.c.l.b16 %v272
        %v283 = vunpack.c.h.b16 %v272
        %v284 = vpack.c.b16 %v282, %v280
        %v285 = vpack.c.b16 %v283, %v281
        %vm288 = vcmask 130048
        %v290 = vsel %vm288, %v277, 0
        %292 = vmatpush.bf16.msra.mxu0 0
        %293 = vmatpush.bf16.msra.mxu0 0
        %294 = vmatpush.bf16.msra.mxu0 0
        %295 = vmatpush.bf16.msra.mxu0 0
        %296 = vmatpush.bf16.msra.mxu0 0
        %297 = vmatpush.bf16.msra.mxu0 0
        %298 = vmatpush.bf16.msra.mxu0 0
        %299 = vmatpush.bf16.msra.mxu0 %v284
        %300 = vmatmul.bf16.gmra.mxu0 %v290
        %v301 = vpop.f32.mrf.mxu0
        %v302 = vadd.f32 0.0, %v301
        %v303 = vpop.f32.mrf.mxu0
        %v304 = vadd.f32 0.0, %v303
        %305 = vdwg.mxu0
        %306 = vmatpush.bf16.msra.mxu0 0
        %307 = vmatpush.bf16.msra.mxu0 0
        %308 = vmatpush.bf16.msra.mxu0 0
        %309 = vmatpush.bf16.msra.mxu0 0
        %310 = vmatpush.bf16.msra.mxu0 0
        %311 = vmatpush.bf16.msra.mxu0 0
        %312 = vmatpush.bf16.msra.mxu0 0
        %313 = vmatpush.bf16.msra.mxu0 %v285
        %314 = vmatmul.bf16.gmra.mxu0 %v290
        %v315 = vpop.f32.mrf.mxu0
        %v316 = vadd.f32 0.0, %v315
        %v317 = vpop.f32.mrf.mxu0
        %v318 = vadd.f32 0.0, %v317
        %319 = vdwg.mxu0
        %v320 = vadd.f32 %v265, %v302
        %v321 = vadd.f32 %v266, %v316
        %v322 = vadd.f32 %v267, %v304
        %v323 = vadd.f32 %v268, %v318
        %324 = vst [vmem:[#allocation2] sm:$0xff] %v320
        %325 = vst [vmem:[#allocation2 + $0x8] sm:$0xff] %v321
        %326 = vst [vmem:[#allocation2 + $0x10] sm:$0xff] %v322
        %327 = vst [vmem:[#allocation2 + $0x18] sm:$0xff] %v323
        // Predicated region
        $region75: #{celeba_vae_forward.33} parent=65 // pred_check
          %p328 = pneg %p243
        $region76: #{celeba_vae_forward.33} parent=65 // pred_check_branch
          %330 = sbr.rel (%p328) target = $region78
        $region77: #{celeba_vae_forward.33} parent=65 // pred_region
          %v331 = vld [vmem:[#allocation2] sm:$0xff]
          %v332 = vld [vmem:[#allocation2 + $0x8] sm:$0xff]
          %v333 = vld [vmem:[#allocation2 + $0x10] sm:$0xff]
          %v334 = vld [vmem:[#allocation2 + $0x18] sm:$0xff]
          %v335 = vmax.f32 %v331, 0.0
          %v336 = vmax.f32 %v332, 0.0
          %v337 = vmax.f32 %v333, 0.0
          %v338 = vmax.f32 %v334, 0.0
          %v339 = vpack.c.bf16 %v336, %v335
          %v340 = vpack.c.bf16 %v338, %v337
          %341 = vst [vmem:[%s234] sm:$0xff] %v339
          %342 = vst [vmem:[%s234 + $0x8] sm:$0xff] %v340
        $region78: #{celeba_vae_forward.33} parent=65 // pred_fallthru
          _
        %s343 = sand.u32 %s109, 1
        %s344 = sand.u32 %s109, 1
        %s345 = smul.addr %s344, 16
        %s346 = scalar_lea.vmem [#allocation4], %s345
        // Predicated region
        $region79: #{celeba_vae_forward.33} parent=65 // pred_check
          %p347 = pneg %p119
        $region80: #{celeba_vae_forward.33} parent=65 // pred_check_branch
          %349 = sbr.rel (%p347) target = $region82
        $region81: #{celeba_vae_forward.33} parent=65 // pred_region
          %s350 = smul.u32 2, %s18
          %s351 = smul.addr %s350, 4
          %s352 = scalar_lea.vmem %s3, %s351
          // Predicated region
          $region83: #{celeba_vae_forward.33} parent=81 // pred_check
            _
          $region84: #{celeba_vae_forward.33} parent=81 // pred_check_branch
            %354 = sbr.rel (0) target = $region86
          $region85: #{celeba_vae_forward.33} parent=81 // pred_region
            // Predicated region
            $region87: #{celeba_vae_forward.33} parent=85 // pred_check
              _
            $region88: #{celeba_vae_forward.33} parent=85 // pred_check_branch
              %356 = sbr.rel (0) target = $region90
            $region89: #{celeba_vae_forward.33} parent=85 // pred_region
              // Predicated region
              $region102: #{celeba_vae_forward.33} parent=89 // pred_check
                _
              $region103: #{celeba_vae_forward.33} parent=89 // pred_check_branch
                %374 = sbr.rel (0) target = $region105
              $region104: #{celeba_vae_forward.33} parent=89 // pred_region
                loop: start=0, step=1, limit=1
                $region106: #{celeba_vae_forward.33} parent=104 // loop_pre_header
                  _
                $region107: #{celeba_vae_forward.33} parent=104 // loop_header
                  %s376 = sphi 0, %s380
                  %p377 = scmp.ge.s32.totalorder %s376, 1
                  %s381 = sphi %s346, %s346
                  %s382 = sphi %s352, %s352
                $region108: #{celeba_vae_forward.33} parent=104 // loop_header_branch
                  %379 = sbr.rel (%p377) target = $region112
                $region109: #{celeba_vae_forward.33} parent=104 // loop_body
                  %v383 = vld [vmem:[%s381] sm:$0xff]
                  %384 = vst [vmem:[%s382] sm:$0xff] %v383
                  %v385 = vld [vmem:[%s381 + $0x8] sm:$0xff]
                  %386 = vst [vmem:[%s382 + $0x10] sm:$0xff] %v385
                $region110: #{celeba_vae_forward.33} parent=104 // loop_footer
                  %s380 = sadd.s32 1, %s376
                $region111: #{celeba_vae_forward.33} parent=104 // loop_footer_branch
                  %375 = sbr.rel target = $region107
                $region112: #{celeba_vae_forward.33} parent=104 // loop_exit
                  _
              $region105: #{celeba_vae_forward.33} parent=89 // pred_fallthru
                _
              // Predicated region
              $region113: #{celeba_vae_forward.33} parent=89 // pred_check
                _
              $region114: #{celeba_vae_forward.33} parent=89 // pred_check_branch
                %388 = sbr.rel target = $region116
              $region115: #{celeba_vae_forward.33} parent=89 // pred_region
                _
              $region116: #{celeba_vae_forward.33} parent=89 // pred_fallthru
                _
            $region90: #{celeba_vae_forward.33} parent=85 // pred_fallthru
              _
            // Predicated region
            $region91: #{celeba_vae_forward.33} parent=85 // pred_check
              _
            $region92: #{celeba_vae_forward.33} parent=85 // pred_check_branch
              %358 = sbr.rel target = $region94
            $region93: #{celeba_vae_forward.33} parent=85 // pred_region
              %s360 = ssub.s32 256, 1
              loop: start=0, step=1, limit=1
              $region95: #{celeba_vae_forward.33} parent=93 // loop_pre_header
                _
              $region96: #{celeba_vae_forward.33} parent=93 // loop_header
                %s362 = sphi 0, %s366
                %p363 = scmp.ge.s32.totalorder %s362, 1
                %s367 = sphi %s346, %s346
                %s368 = sphi %s352, %s352
              $region97: #{celeba_vae_forward.33} parent=93 // loop_header_branch
                %365 = sbr.rel (%p363) target = $region101
              $region98: #{celeba_vae_forward.33} parent=93 // loop_body
                %v369 = vld [vmem:[%s367] sm:%s360]
                %370 = vst [vmem:[%s368] sm:%s360] %v369
                %v371 = vld [vmem:[%s367 + $0x8] sm:%s360]
                %372 = vst [vmem:[%s368 + $0x10] sm:%s360] %v371
              $region99: #{celeba_vae_forward.33} parent=93 // loop_footer
                %s366 = sadd.s32 1, %s362
              $region100: #{celeba_vae_forward.33} parent=93 // loop_footer_branch
                %361 = sbr.rel target = $region96
              $region101: #{celeba_vae_forward.33} parent=93 // loop_exit
                _
            $region94: #{celeba_vae_forward.33} parent=85 // pred_fallthru
              _
          $region86: #{celeba_vae_forward.33} parent=81 // pred_fallthru
            _
          %389 = vnop
        $region82: #{celeba_vae_forward.33} parent=65 // pred_fallthru
          _
      $region66: #{celeba_vae_forward.33} parent=5 // pred_fallthru
        _
      %p390 = scmp.le.s32.totalorder 2, %s9
      // Predicated region
      $region117: #{celeba_vae_forward.33} parent=5 // pred_check
        %p391 = pneg %p390
      $region118: #{celeba_vae_forward.33} parent=5 // pred_check_branch
        %393 = sbr.rel (%p391) target = $region120
      $region119: #{celeba_vae_forward.33} parent=5 // pred_region
        %s394 = ssub.s32 %s9, 2
        // Predicated region
        $region121: #{celeba_vae_forward.33} parent=119 // pred_check
          %p395 = pneg %p125
        $region122: #{celeba_vae_forward.33} parent=119 // pred_check_branch
          %397 = sbr.rel (%p395) target = $region124
        $region123: #{celeba_vae_forward.33} parent=119 // pred_region
          %s398 = sand.u32 %s110, 1
          %s399 = sand.u32 %s110, 1
          %s400 = smul.addr %s399, 16
          %s401 = scalar_lea.vmem [#allocation4], %s400
        $region124: #{celeba_vae_forward.33} parent=119 // pred_fallthru
          _
      $region120: #{celeba_vae_forward.33} parent=5 // pred_fallthru
        _
    $region6: #{celeba_vae_forward.33} parent=1 // loop_footer
      %s13 = sadd.s32 1, %s9
    $region7: #{celeba_vae_forward.33} parent=1 // loop_footer_branch
      %8 = sbr.rel target = $region3
    $region8: #{celeba_vae_forward.33} parent=1 // loop_exit
      _

// kernel: celeba_vae_forward.32
$region0: #{celeba_vae_forward.32}
  #allocation0 [shape = 'u32[]', space=smem, size = 0x4, offset = 0x4, fixed_abs, tag = 'smem constant byte address 0x4 - core index']
  #allocation1 [shape = 'u32[72,128]{1,0:T(1,128)}', space=vmem, size = 0x9000, scoped, tag = 'internal scratch']
  #allocation2 [shape = 'f32[16,256]{1,0:T(8,128)}', space=vmem, size = 0x4000, scoped, tag = 'scratch operand']
  %s0 = inlined_call_operand.vmem [shape: bf16[16,8], index: 0, kind: input, shape index: {}]
  %s1 = inlined_call_operand.vmem [shape: bf16[8,512], index: 1, kind: input, shape index: {}]
  %s2 = inlined_call_operand.vmem [shape: f32[16,1], index: 2, kind: input, shape index: {}]
  %s3 = inlined_call_operand.vmem [shape: bf16[16,512], index: 3, kind: output, shape index: {}]
  %s4 = sld [smem:[#allocation0]]
  $region87: #{celeba_vae_forward.32} parent=0
    _
  %s6 = ssub.s32 1, %s4
  %s7 = scalar_select 0, %s6, %s4
  $region1: #{celeba_vae_forward.32} parent=0
    #allocation3 [shape = 'u8[16384]{0}', space=vmem, size = 0x4000, scoped, tag = 'output window, operand 0']
    loop: start=0, step=1, limit=4
    $region2: #{celeba_vae_forward.32} parent=1 // loop_pre_header
      _
    $region3: #{celeba_vae_forward.32} parent=1 // loop_header
      %s9 = sphi 0, %s13
      %p10 = scmp.ge.s32.totalorder %s9, 4
      %s16 = sphi 0, %s28
      %s17 = sphi 0, %s24
      %s18 = sphi 0, %s16
      %s19 = sphi 0, %s17
      %s20 = sphi 0, %s18
      %s21 = sphi 0, %s19
      %s31 = sphi 0, %s33
      %s34 = sphi 0, %s31
      %s35 = sphi 0, %s34
      %s51 = sphi 0, %s35
      %s59 = sphi 0, %s61
      %s62 = sphi 0, %s59
      %s63 = sphi 0, %s62
      %s79 = sphi 0, %s63
      %s83 = sphi 0, %s83
      %s85 = sphi 0, %s83
      %s86 = sphi 0, %s85
      %s100 = sphi 0, %s86
      %s106 = sphi 0, %s108
      %s109 = sphi 0, %s106
      %s110 = sphi 0, %s109
      %s126 = sphi 0, %s110
    $region4: #{celeba_vae_forward.32} parent=1 // loop_header_branch
      %12 = sbr.rel (%p10) target = $region8
    $region5: #{celeba_vae_forward.32} parent=1 // loop_body
      %s14 = ssub.s32 %s9, 1
      %s15 = ssub.s32 %s9, 2
      %s22 = sadd.s32 1, %s17
      %p23 = scmp.ge.s32.totalorder %s22, 1
      %s24 = scalar_select %p23, 0, %s22
      %s25 = sadd.s32 1, %s16
      %s26 = scalar_select %p23, %s25, %s16
      %p27 = scmp.ge.s32.totalorder %s26, 2
      %s28 = scalar_select %p27, 0, %s26
      %s29 = ssub.s32 %s17, %s24
      %p30 = scmp.eq.s32.totalorder %s29, 0
      %s32 = sadd.s32 %s31, 1
      %s33 = scalar_select %p30, %s31, %s32
      %p36 = pneg %p30
      %p37 = scmp.eq.s32.totalorder %s9, 1
      %p38 = por %p36, %p37
      %p39 = scmp.ne.s32.totalorder %s31, %s34
      %p40 = scmp.eq.s32.totalorder %s9, 0
      %p41 = por %p39, %p40
      %p42 = scmp.ne.s32.totalorder %s31, %s34
      %p43 = scmp.eq.s32.totalorder %s14, 1
      %p44 = por %p42, %p43
      %p45 = scmp.ne.s32.totalorder %s34, %s35
      %p46 = scmp.eq.s32.totalorder %s14, 0
      %p47 = por %p45, %p46
      %p48 = scmp.ne.s32.totalorder %s34, %s35
      %p49 = scmp.eq.s32.totalorder %s15, 1
      %p50 = por %p48, %p49
      %p52 = scmp.ne.s32.totalorder %s35, %s51
      %p53 = scmp.eq.s32.totalorder %s15, 0
      %p54 = por %p52, %p53
      %s55 = ssub.s32 %s17, %s24
      %s56 = ssub.s32 %s16, %s28
      %s57 = sor.u32 %s55, %s56
      %p58 = scmp.eq.s32.totalorder %s57, 0
      %s60 = sadd.s32 %s59, 1
      %s61 = scalar_select %p58, %s59, %s60
      %p64 = pneg %p58
      %p65 = scmp.eq.s32.totalorder %s9, 1
      %p66 = por %p64, %p65
      %p67 = scmp.ne.s32.totalorder %s59, %s62
      %p68 = scmp.eq.s32.totalorder %s9, 0
      %p69 = por %p67, %p68
      %p70 = scmp.ne.s32.totalorder %s59, %s62
      %p71 = scmp.eq.s32.totalorder %s14, 1
      %p72 = por %p70, %p71
      %p73 = scmp.ne.s32.totalorder %s62, %s63
      %p74 = scmp.eq.s32.totalorder %s14, 0
      %p75 = por %p73, %p74
      %p76 = scmp.ne.s32.totalorder %s62, %s63
      %p77 = scmp.eq.s32.totalorder %s15, 1
      %p78 = por %p76, %p77
      %p80 = scmp.ne.s32.totalorder %s63, %s79
      %p81 = scmp.eq.s32.totalorder %s15, 0
      %p82 = por %p80, %p81
      %s84 = sadd.s32 %s83, 1
      %p87 = scmp.eq.s32.totalorder %s9, 1
      %p88 = scmp.ne.s32.totalorder %s83, %s85
      %p89 = scmp.eq.s32.totalorder %s9, 0
      %p90 = por %p88, %p89
      %p91 = scmp.ne.s32.totalorder %s83, %s85
      %p92 = scmp.eq.s32.totalorder %s14, 1
      %p93 = por %p91, %p92
      %p94 = scmp.ne.s32.totalorder %s85, %s86
      %p95 = scmp.eq.s32.totalorder %s14, 0
      %p96 = por %p94, %p95
      %p97 = scmp.ne.s32.totalorder %s85, %s86
      %p98 = scmp.eq.s32.totalorder %s15, 1
      %p99 = por %p97, %p98
      %p101 = scmp.ne.s32.totalorder %s86, %s100
      %p102 = scmp.eq.s32.totalorder %s15, 0
      %p103 = por %p101, %p102
      %s104 = ssub.s32 %s16, %s28
      %p105 = scmp.eq.s32.totalorder %s104, 0
      %s107 = sadd.s32 %s106, 1
      %s108 = scalar_select %p105, %s106, %s107
      %p111 = pneg %p105
      %p112 = scmp.eq.s32.totalorder %s9, 1
      %p113 = por %p111, %p112
      %p114 = scmp.ne.s32.totalorder %s106, %s109
      %p115 = scmp.eq.s32.totalorder %s9, 0
      %p116 = por %p114, %p115
      %p117 = scmp.ne.s32.totalorder %s106, %s109
      %p118 = scmp.eq.s32.totalorder %s14, 1
      %p119 = por %p117, %p118
      %p120 = scmp.ne.s32.totalorder %s109, %s110
      %p121 = scmp.eq.s32.totalorder %s14, 0
      %p122 = por %p120, %p121
      %p123 = scmp.ne.s32.totalorder %s109, %s110
      %p124 = scmp.eq.s32.totalorder %s15, 1
      %p125 = por %p123, %p124
      %p127 = scmp.ne.s32.totalorder %s110, %s126
      %p128 = scmp.eq.s32.totalorder %s15, 0
      %p129 = por %p127, %p128
      %p130 = scmp.le.s32.totalorder 1, %s9
      %p131 = scmp.lt.s32.totalorder %s9, 3
      %p132 = pnand %p130, %p131
      %p133 = pneg %p132
      // Predicated region
      $region9: #{celeba_vae_forward.32} parent=5 // pred_check
        _
      $region10: #{celeba_vae_forward.32} parent=5 // pred_check_branch
        %135 = sbr.rel (%p132) target = $region12
      $region11: #{celeba_vae_forward.32} parent=5 // pred_region
        %s136 = ssub.s32 %s9, 1
        // Predicated region
        $region13: #{celeba_vae_forward.32} parent=11 // pred_check
          %p137 = pneg %p47
        $region14: #{celeba_vae_forward.32} parent=11 // pred_check_branch
          %139 = sbr.rel (%p137) target = $region16
        $region15: #{celeba_vae_forward.32} parent=11 // pred_region
          %p140 = scmp.lt.s32.totalorder %s19, 0
          %s141 = scalar_select %p140, %s19, 0
          %s142 = smul.addr %s141, 4
          %s143 = scalar_lea.vmem %s0, %s142
        $region16: #{celeba_vae_forward.32} parent=11 // pred_fallthru
          _
        // Predicated region
        $region17: #{celeba_vae_forward.32} parent=11 // pred_check
          %p144 = pneg %p96
        $region18: #{celeba_vae_forward.32} parent=11 // pred_check_branch
          %146 = sbr.rel (%p144) target = $region20
        $region19: #{celeba_vae_forward.32} parent=11 // pred_region
          _
        $region20: #{celeba_vae_forward.32} parent=11 // pred_fallthru
          _
      $region12: #{celeba_vae_forward.32} parent=5 // pred_fallthru
        _
      %p147 = scmp.lt.s32.totalorder %s9, 2
      // Predicated region
      $region21: #{celeba_vae_forward.32} parent=5 // pred_check
        %p148 = pneg %p147
      $region22: #{celeba_vae_forward.32} parent=5 // pred_check_branch
        %150 = sbr.rel (%p148) target = $region24
      $region23: #{celeba_vae_forward.32} parent=5 // pred_region
        // Predicated region
        $region25: #{celeba_vae_forward.32} parent=23 // pred_check
          %p151 = pneg %p69
        $region26: #{celeba_vae_forward.32} parent=23 // pred_check_branch
          %153 = sbr.rel (%p151) target = $region28
        $region27: #{celeba_vae_forward.32} parent=23 // pred_region
          %s154 = smul.u32 2, %s16
          %p155 = scmp.lt.s32.totalorder %s17, 0
          %s156 = scalar_select %p155, %s17, 0
          %p157 = scmp.lt.s32.totalorder %s154, 3
          %s158 = scalar_select %p157, %s154, 3
          %s159 = smul.addr %s156, 4
          %s160 = sadd.s32 %s158, %s159
          %s161 = smul.addr %s160, 4
          %s162 = scalar_lea.vmem %s1, %s161
          %s163 = smul.u32 2, %s16
        $region28: #{celeba_vae_forward.32} parent=23 // pred_fallthru
          _
      $region24: #{celeba_vae_forward.32} parent=5 // pred_fallthru
        _
      %p164 = scmp.le.s32.totalorder 1, %s9
      %p165 = scmp.lt.s32.totalorder %s9, 3
      %p166 = pnand %p164, %p165
      %p167 = pneg %p166
      // Predicated region
      $region29: #{celeba_vae_forward.32} parent=5 // pred_check
        _
      $region30: #{celeba_vae_forward.32} parent=5 // pred_check_branch
        %169 = sbr.rel (%p166) target = $region32
      $region31: #{celeba_vae_forward.32} parent=5 // pred_region
        %s170 = ssub.s32 %s9, 1
        %p171 = scmp.lt.s32.totalorder %s19, 0
        %s172 = scalar_select %p171, %s19, 0
        %s173 = smul.addr %s172, 4
        %s174 = scalar_lea.vmem %s0, %s173
        %p175 = pneg %p47
        %p176 = pneg %p44
        %s177 = smul.u32 2, %s18
        %p178 = scmp.lt.s32.totalorder %s19, 0
        %s179 = scalar_select %p178, %s19, 0
        %p180 = scmp.lt.s32.totalorder %s177, 3
        %s181 = scalar_select %p180, %s177, 3
        %s182 = smul.addr %s179, 4
        %s183 = sadd.s32 %s181, %s182
        %s184 = smul.addr %s183, 4
        %s185 = scalar_lea.vmem %s1, %s184
        %p186 = pneg %p75
        %p187 = pneg %p72
        %p188 = pneg %p96
        %p189 = pneg %p93
        %p190 = pneg %p122
        %p191 = pneg %p119
        %s192 = sand.u32 %s109, 1
        %s193 = sand.u32 %s109, 1
        %s194 = smul.addr %s193, 16
        %s195 = scalar_lea.vmem [#allocation3], %s194
        %p196 = scmp.lt.s32.totalorder %s19, 0
        %s197 = scalar_select %p196, %s19, 0
        %s198 = smul.addr %s197, 4
        %s199 = scalar_lea.vmem %s0, %s198
        %s200 = smul.u32 2, %s18
        %p201 = scmp.lt.s32.totalorder %s19, 0
        %s202 = scalar_select %p201, %s19, 0
        %p203 = scmp.lt.s32.totalorder %s200, 3
        %s204 = scalar_select %p203, %s200, 3
        %s205 = smul.addr %s202, 4
        %s206 = sadd.s32 %s204, %s205
        %s207 = smul.addr %s206, 4
        %s208 = scalar_lea.vmem %s1, %s207
        %s209 = smul.u32 2, %s18
        %s210 = smul.u32 2, %s18
        %p212 = scmp.eq.s32.totalorder %s19, 0
        // Predicated region
        $region33: #{celeba_vae_forward.32} parent=31 // pred_check
          %p213 = pneg %p212
        $region34: #{celeba_vae_forward.32} parent=31 // pred_check_branch
          %215 = sbr.rel (%p213) target = $region36
        $region35: #{celeba_vae_forward.32} parent=31 // pred_region
          %v216 = vld [vmem:[%s2] sm:$0xff]
          %v217 = vld [vmem:[%s2 + $0x8] sm:$0xff]
          %219 = vset.pattern.permute.xlu0 0
          %220 = vperm.xlu0 %219, %v216
          %v221 = vpop.permute.xlu0 %220
          %224 = vset.pattern.permute.xlu0 0
          %225 = vperm.xlu0 %224, %v217
          %v226 = vpop.permute.xlu0 %225
          %v228 = vadd.f32 %v221, 0.0
          %v229 = vadd.f32 %v226, 0.0
          %230 = vst [vmem:[#allocation2] sm:$0xff] %v228
          %231 = vst [vmem:[#allocation2 + $0x8] sm:$0xff] %v228
          %232 = vst [vmem:[#allocation2 + $0x10] sm:$0xff] %v229
          %233 = vst [vmem:[#allocation2 + $0x18] sm:$0xff] %v229
        $region36: #{celeba_vae_forward.32} parent=31 // pred_fallthru
          _
        %v234 = vld [vmem:[#allocation2] sm:$0xff]
        %v235 = vld [vmem:[#allocation2 + $0x8] sm:$0xff]
        %v236 = vld [vmem:[#allocation2 + $0x10] sm:$0xff]
        %v237 = vld [vmem:[#allocation2 + $0x18] sm:$0xff]
        %v238 = vld [vmem:[%s199] sm:$0xf]
        %v239 = vld [vmem:[%s199 + $0x4] sm:$0xf]
        %v240 = vld [vmem:[%s208] sm:$0xff]
        %v243 = vunpack.c.l.b16 %v238
        %v244 = vunpack.c.l.b16 %v239
        %v245 = vpack.c.b16 %v244, %v243
        %v247 = vunpack.c.l.b16 %v240
        %v248 = vunpack.c.h.b16 %v240
        %v249 = vpack.c.b16 %v247, %v247
        %v250 = vpack.c.b16 %v248, %v248
        %vm251 = vcmask 64512
        %v253 = vsel %vm251, %v245, 0
        %vm255 = vcmask 1043456
        %v257 = vsel %vm255, %v249, 0
        %v260 = vsel %vm255, %v250, 0
        %262 = vmatpush.bf16.msra.mxu0 0
        %263 = vmatpush.bf16.msra.mxu0 0
        %264 = vmatpush.bf16.msra.mxu0 0
        %265 = vmatpush.bf16.msra.mxu0 0
        %266 = vmatpush.bf16.msra.mxu0 0
        %267 = vmatpush.bf16.msra.mxu0 0
        %268 = vmatpush.bf16.msra.mxu0 0
        %269 = vmatpush.bf16.msra.mxu0 %v257
        %270 = vmatmul.bf16.gmra.mxu0 %v253
        %v271 = vpop.f32.mrf.mxu0
        %v272 = vadd.f32 0.0, %v271
        %v273 = vpop.f32.mrf.mxu0
        %v274 = vadd.f32 0.0, %v273
        %275 = vdwg.mxu0
        %276 = vmatpush.bf16.msra.mxu0 0
        %277 = vmatpush.bf16.msra.mxu0 0
        %278 = vmatpush.bf16.msra.mxu0 0
        %279 = vmatpush.bf16.msra.mxu0 0
        %280 = vmatpush.bf16.msra.mxu0 0
        %281 = vmatpush.bf16.msra.mxu0 0
        %282 = vmatpush.bf16.msra.mxu0 0
        %283 = vmatpush.bf16.msra.mxu0 %v260
        %284 = vmatmul.bf16.gmra.mxu0 %v253
        %v285 = vpop.f32.mrf.mxu0
        %v286 = vadd.f32 0.0, %v285
        %v287 = vpop.f32.mrf.mxu0
        %v288 = vadd.f32 0.0, %v287
        %289 = vdwg.mxu0
        %v290 = vadd.f32 %v234, %v272
        %v291 = vadd.f32 %v235, %v286
        %v292 = vadd.f32 %v236, %v274
        %v293 = vadd.f32 %v237, %v288
        %294 = vst [vmem:[#allocation2] sm:$0xff] %v290
        %295 = vst [vmem:[#allocation2 + $0x8] sm:$0xff] %v291
        %296 = vst [vmem:[#allocation2 + $0x10] sm:$0xff] %v292
        %297 = vst [vmem:[#allocation2 + $0x18] sm:$0xff] %v293
        // Predicated region
        $region37: #{celeba_vae_forward.32} parent=31 // pred_check
          %p298 = pneg %p212
        $region38: #{celeba_vae_forward.32} parent=31 // pred_check_branch
          %300 = sbr.rel (%p298) target = $region40
        $region39: #{celeba_vae_forward.32} parent=31 // pred_region
          %v301 = vld [vmem:[#allocation2] sm:$0xff]
          %v302 = vld [vmem:[#allocation2 + $0x8] sm:$0xff]
          %v303 = vld [vmem:[#allocation2 + $0x10] sm:$0xff]
          %v304 = vld [vmem:[#allocation2 + $0x18] sm:$0xff]
          %v305 = vmax.f32 %v301, 0.0
          %v306 = vmax.f32 %v302, 0.0
          %v307 = vmax.f32 %v303, 0.0
          %v308 = vmax.f32 %v304, 0.0
          %v309 = vpack.c.bf16 %v306, %v305
          %v310 = vpack.c.bf16 %v308, %v307
          %311 = vst [vmem:[%s195] sm:$0xff] %v309
          %312 = vst [vmem:[%s195 + $0x8] sm:$0xff] %v310
        $region40: #{celeba_vae_forward.32} parent=31 // pred_fallthru
          _
        %s313 = sand.u32 %s109, 1
        %s314 = sand.u32 %s109, 1
        %s315 = smul.addr %s314, 16
        %s316 = scalar_lea.vmem [#allocation3], %s315
        // Predicated region
        $region41: #{celeba_vae_forward.32} parent=31 // pred_check
          %p317 = pneg %p119
        $region42: #{celeba_vae_forward.32} parent=31 // pred_check_branch
          %319 = sbr.rel (%p317) target = $region44
        $region43: #{celeba_vae_forward.32} parent=31 // pred_region
          %s320 = smul.u32 2, %s18
          %s321 = smul.addr %s320, 4
          %s322 = scalar_lea.vmem %s3, %s321
          // Predicated region
          $region45: #{celeba_vae_forward.32} parent=43 // pred_check
            _
          $region46: #{celeba_vae_forward.32} parent=43 // pred_check_branch
            %324 = sbr.rel (0) target = $region48
          $region47: #{celeba_vae_forward.32} parent=43 // pred_region
            // Predicated region
            $region49: #{celeba_vae_forward.32} parent=47 // pred_check
              _
            $region50: #{celeba_vae_forward.32} parent=47 // pred_check_branch
              %326 = sbr.rel (0) target = $region52
            $region51: #{celeba_vae_forward.32} parent=47 // pred_region
              // Predicated region
              $region64: #{celeba_vae_forward.32} parent=51 // pred_check
                _
              $region65: #{celeba_vae_forward.32} parent=51 // pred_check_branch
                %344 = sbr.rel (0) target = $region67
              $region66: #{celeba_vae_forward.32} parent=51 // pred_region
                loop: start=0, step=1, limit=1
                $region68: #{celeba_vae_forward.32} parent=66 // loop_pre_header
                  _
                $region69: #{celeba_vae_forward.32} parent=66 // loop_header
                  %s346 = sphi 0, %s350
                  %p347 = scmp.ge.s32.totalorder %s346, 1
                  %s351 = sphi %s316, %s316
                  %s352 = sphi %s322, %s322
                $region70: #{celeba_vae_forward.32} parent=66 // loop_header_branch
                  %349 = sbr.rel (%p347) target = $region74
                $region71: #{celeba_vae_forward.32} parent=66 // loop_body
                  %v353 = vld [vmem:[%s351] sm:$0xff]
                  %354 = vst [vmem:[%s352] sm:$0xff] %v353
                  %v355 = vld [vmem:[%s351 + $0x8] sm:$0xff]
                  %356 = vst [vmem:[%s352 + $0x10] sm:$0xff] %v355
                $region72: #{celeba_vae_forward.32} parent=66 // loop_footer
                  %s350 = sadd.s32 1, %s346
                $region73: #{celeba_vae_forward.32} parent=66 // loop_footer_branch
                  %345 = sbr.rel target = $region69
                $region74: #{celeba_vae_forward.32} parent=66 // loop_exit
                  _
              $region67: #{celeba_vae_forward.32} parent=51 // pred_fallthru
                _
              // Predicated region
              $region75: #{celeba_vae_forward.32} parent=51 // pred_check
                _
              $region76: #{celeba_vae_forward.32} parent=51 // pred_check_branch
                %358 = sbr.rel target = $region78
              $region77: #{celeba_vae_forward.32} parent=51 // pred_region
                _
              $region78: #{celeba_vae_forward.32} parent=51 // pred_fallthru
                _
            $region52: #{celeba_vae_forward.32} parent=47 // pred_fallthru
              _
            // Predicated region
            $region53: #{celeba_vae_forward.32} parent=47 // pred_check
              _
            $region54: #{celeba_vae_forward.32} parent=47 // pred_check_branch
              %328 = sbr.rel target = $region56
            $region55: #{celeba_vae_forward.32} parent=47 // pred_region
              %s330 = ssub.s32 256, 1
              loop: start=0, step=1, limit=1
              $region57: #{celeba_vae_forward.32} parent=55 // loop_pre_header
                _
              $region58: #{celeba_vae_forward.32} parent=55 // loop_header
                %s332 = sphi 0, %s336
                %p333 = scmp.ge.s32.totalorder %s332, 1
                %s337 = sphi %s316, %s316
                %s338 = sphi %s322, %s322
              $region59: #{celeba_vae_forward.32} parent=55 // loop_header_branch
                %335 = sbr.rel (%p333) target = $region63
              $region60: #{celeba_vae_forward.32} parent=55 // loop_body
                %v339 = vld [vmem:[%s337] sm:%s330]
                %340 = vst [vmem:[%s338] sm:%s330] %v339
                %v341 = vld [vmem:[%s337 + $0x8] sm:%s330]
                %342 = vst [vmem:[%s338 + $0x10] sm:%s330] %v341
              $region61: #{celeba_vae_forward.32} parent=55 // loop_footer
                %s336 = sadd.s32 1, %s332
              $region62: #{celeba_vae_forward.32} parent=55 // loop_footer_branch
                %331 = sbr.rel target = $region58
              $region63: #{celeba_vae_forward.32} parent=55 // loop_exit
                _
            $region56: #{celeba_vae_forward.32} parent=47 // pred_fallthru
              _
          $region48: #{celeba_vae_forward.32} parent=43 // pred_fallthru
            _
          %359 = vnop
        $region44: #{celeba_vae_forward.32} parent=31 // pred_fallthru
          _
      $region32: #{celeba_vae_forward.32} parent=5 // pred_fallthru
        _
      %p360 = scmp.le.s32.totalorder 2, %s9
      // Predicated region
      $region79: #{celeba_vae_forward.32} parent=5 // pred_check
        %p361 = pneg %p360
      $region80: #{celeba_vae_forward.32} parent=5 // pred_check_branch
        %363 = sbr.rel (%p361) target = $region82
      $region81: #{celeba_vae_forward.32} parent=5 // pred_region
        %s364 = ssub.s32 %s9, 2
        // Predicated region
        $region83: #{celeba_vae_forward.32} parent=81 // pred_check
          %p365 = pneg %p125
        $region84: #{celeba_vae_forward.32} parent=81 // pred_check_branch
          %367 = sbr.rel (%p365) target = $region86
        $region85: #{celeba_vae_forward.32} parent=81 // pred_region
          %s368 = sand.u32 %s110, 1
          %s369 = sand.u32 %s110, 1
          %s370 = smul.addr %s369, 16
          %s371 = scalar_lea.vmem [#allocation3], %s370
        $region86: #{celeba_vae_forward.32} parent=81 // pred_fallthru
          _
      $region82: #{celeba_vae_forward.32} parent=5 // pred_fallthru
        _
    $region6: #{celeba_vae_forward.32} parent=1 // loop_footer
      %s13 = sadd.s32 1, %s9
    $region7: #{celeba_vae_forward.32} parent=1 // loop_footer_branch
      %8 = sbr.rel target = $region3
    $region8: #{celeba_vae_forward.32} parent=1 // loop_exit
      _

// kernel: celeba_vae_forward.35
$region0: #{celeba_vae_forward.35}
  #allocation0 [shape = 'u32[]', space=smem, size = 0x4, offset = 0x4, fixed_abs, tag = 'smem constant byte address 0x4 - core index']
  #allocation1 [shape = 'u32[72,128]{1,0:T(1,128)}', space=vmem, size = 0x9000, scoped, tag = 'internal scratch']
  #allocation2 [shape = 'f32[16,256]{1,0:T(8,128)}', space=vmem, size = 0x4000, scoped, tag = 'scratch operand']
  %s0 = inlined_call_operand.vmem [shape: bf16[16,32], index: 0, kind: input, shape index: {}]
  %s1 = inlined_call_operand.vmem [shape: bf16[32,512], index: 1, kind: input, shape index: {}]
  %s2 = inlined_call_operand.vmem [shape: f32[16,1], index: 2, kind: input, shape index: {}]
  %s3 = inlined_call_operand.vmem [shape: bf16[16,512], index: 3, kind: output, shape index: {}]
  %s4 = sld [smem:[#allocation0]]
  $region125: #{celeba_vae_forward.35} parent=0
    _
  %s6 = ssub.s32 1, %s4
  %s7 = scalar_select 0, %s6, %s4
  $region1: #{celeba_vae_forward.35} parent=0
    #allocation3 [shape = 'u8[32768]{0}', space=vmem, size = 0x8000, scoped, tag = 'input window, operand 1']
    #allocation4 [shape = 'u8[16384]{0}', space=vmem, size = 0x4000, scoped, tag = 'output window, operand 0']
    loop: start=0, step=1, limit=4
    $region2: #{celeba_vae_forward.35} parent=1 // loop_pre_header
      _
    $region3: #{celeba_vae_forward.35} parent=1 // loop_header
      %s9 = sphi 0, %s13
      %p10 = scmp.ge.s32.totalorder %s9, 4
      %s16 = sphi 0, %s28
      %s17 = sphi 0, %s24
      %s18 = sphi 0, %s16
      %s19 = sphi 0, %s17
      %s20 = sphi 0, %s18
      %s21 = sphi 0, %s19
      %s31 = sphi 0, %s33
      %s34 = sphi 0, %s31
      %s35 = sphi 0, %s34
      %s51 = sphi 0, %s35
      %s59 = sphi 0, %s61
      %s62 = sphi 0, %s59
      %s63 = sphi 0, %s62
      %s79 = sphi 0, %s63
      %s83 = sphi 0, %s83
      %s85 = sphi 0, %s83
      %s86 = sphi 0, %s85
      %s100 = sphi 0, %s86
      %s106 = sphi 0, %s108
      %s109 = sphi 0, %s106
      %s110 = sphi 0, %s109
      %s126 = sphi 0, %s110
    $region4: #{celeba_vae_forward.35} parent=1 // loop_header_branch
      %12 = sbr.rel (%p10) target = $region8
    $region5: #{celeba_vae_forward.35} parent=1 // loop_body
      %s14 = ssub.s32 %s9, 1
      %s15 = ssub.s32 %s9, 2
      %s22 = sadd.s32 1, %s17
      %p23 = scmp.ge.s32.totalorder %s22, 1
      %s24 = scalar_select %p23, 0, %s22
      %s25 = sadd.s32 1, %s16
      %s26 = scalar_select %p23, %s25, %s16
      %p27 = scmp.ge.s32.totalorder %s26, 2
      %s28 = scalar_select %p27, 0, %s26
      %s29 = ssub.s32 %s17, %s24
      %p30 = scmp.eq.s32.totalorder %s29, 0
      %s32 = sadd.s32 %s31, 1
      %s33 = scalar_select %p30, %s31, %s32
      %p36 = pneg %p30
      %p37 = scmp.eq.s32.totalorder %s9, 1
      %p38 = por %p36, %p37
      %p39 = scmp.ne.s32.totalorder %s31, %s34
      %p40 = scmp.eq.s32.totalorder %s9, 0
      %p41 = por %p39, %p40
      %p42 = scmp.ne.s32.totalorder %s31, %s34
      %p43 = scmp.eq.s32.totalorder %s14, 1
      %p44 = por %p42, %p43
      %p45 = scmp.ne.s32.totalorder %s34, %s35
      %p46 = scmp.eq.s32.totalorder %s14, 0
      %p47 = por %p45, %p46
      %p48 = scmp.ne.s32.totalorder %s34, %s35
      %p49 = scmp.eq.s32.totalorder %s15, 1
      %p50 = por %p48, %p49
      %p52 = scmp.ne.s32.totalorder %s35, %s51
      %p53 = scmp.eq.s32.totalorder %s15, 0
      %p54 = por %p52, %p53
      %s55 = ssub.s32 %s17, %s24
      %s56 = ssub.s32 %s16, %s28
      %s57 = sor.u32 %s55, %s56
      %p58 = scmp.eq.s32.totalorder %s57, 0
      %s60 = sadd.s32 %s59, 1
      %s61 = scalar_select %p58, %s59, %s60
      %p64 = pneg %p58
      %p65 = scmp.eq.s32.totalorder %s9, 1
      %p66 = por %p64, %p65
      %p67 = scmp.ne.s32.totalorder %s59, %s62
      %p68 = scmp.eq.s32.totalorder %s9, 0
      %p69 = por %p67, %p68
      %p70 = scmp.ne.s32.totalorder %s59, %s62
      %p71 = scmp.eq.s32.totalorder %s14, 1
      %p72 = por %p70, %p71
      %p73 = scmp.ne.s32.totalorder %s62, %s63
      %p74 = scmp.eq.s32.totalorder %s14, 0
      %p75 = por %p73, %p74
      %p76 = scmp.ne.s32.totalorder %s62, %s63
      %p77 = scmp.eq.s32.totalorder %s15, 1
      %p78 = por %p76, %p77
      %p80 = scmp.ne.s32.totalorder %s63, %s79
      %p81 = scmp.eq.s32.totalorder %s15, 0
      %p82 = por %p80, %p81
      %s84 = sadd.s32 %s83, 1
      %p87 = scmp.eq.s32.totalorder %s9, 1
      %p88 = scmp.ne.s32.totalorder %s83, %s85
      %p89 = scmp.eq.s32.totalorder %s9, 0
      %p90 = por %p88, %p89
      %p91 = scmp.ne.s32.totalorder %s83, %s85
      %p92 = scmp.eq.s32.totalorder %s14, 1
      %p93 = por %p91, %p92
      %p94 = scmp.ne.s32.totalorder %s85, %s86
      %p95 = scmp.eq.s32.totalorder %s14, 0
      %p96 = por %p94, %p95
      %p97 = scmp.ne.s32.totalorder %s85, %s86
      %p98 = scmp.eq.s32.totalorder %s15, 1
      %p99 = por %p97, %p98
      %p101 = scmp.ne.s32.totalorder %s86, %s100
      %p102 = scmp.eq.s32.totalorder %s15, 0
      %p103 = por %p101, %p102
      %s104 = ssub.s32 %s16, %s28
      %p105 = scmp.eq.s32.totalorder %s104, 0
      %s107 = sadd.s32 %s106, 1
      %s108 = scalar_select %p105, %s106, %s107
      %p111 = pneg %p105
      %p112 = scmp.eq.s32.totalorder %s9, 1
      %p113 = por %p111, %p112
      %p114 = scmp.ne.s32.totalorder %s106, %s109
      %p115 = scmp.eq.s32.totalorder %s9, 0
      %p116 = por %p114, %p115
      %p117 = scmp.ne.s32.totalorder %s106, %s109
      %p118 = scmp.eq.s32.totalorder %s14, 1
      %p119 = por %p117, %p118
      %p120 = scmp.ne.s32.totalorder %s109, %s110
      %p121 = scmp.eq.s32.totalorder %s14, 0
      %p122 = por %p120, %p121
      %p123 = scmp.ne.s32.totalorder %s109, %s110
      %p124 = scmp.eq.s32.totalorder %s15, 1
      %p125 = por %p123, %p124
      %p127 = scmp.ne.s32.totalorder %s110, %s126
      %p128 = scmp.eq.s32.totalorder %s15, 0
      %p129 = por %p127, %p128
      %p130 = scmp.le.s32.totalorder 1, %s9
      %p131 = scmp.lt.s32.totalorder %s9, 3
      %p132 = pnand %p130, %p131
      %p133 = pneg %p132
      // Predicated region
      $region9: #{celeba_vae_forward.35} parent=5 // pred_check
        _
      $region10: #{celeba_vae_forward.35} parent=5 // pred_check_branch
        %135 = sbr.rel (%p132) target = $region12
      $region11: #{celeba_vae_forward.35} parent=5 // pred_region
        %s136 = ssub.s32 %s9, 1
        // Predicated region
        $region13: #{celeba_vae_forward.35} parent=11 // pred_check
          %p137 = pneg %p47
        $region14: #{celeba_vae_forward.35} parent=11 // pred_check_branch
          %139 = sbr.rel (%p137) target = $region16
        $region15: #{celeba_vae_forward.35} parent=11 // pred_region
          %p140 = scmp.lt.s32.totalorder %s19, 0
          %s141 = scalar_select %p140, %s19, 0
          %s142 = smul.addr %s141, 4
          %s143 = scalar_lea.vmem %s0, %s142
        $region16: #{celeba_vae_forward.35} parent=11 // pred_fallthru
          _
        // Predicated region
        $region17: #{celeba_vae_forward.35} parent=11 // pred_check
          %p144 = pneg %p96
        $region18: #{celeba_vae_forward.35} parent=11 // pred_check_branch
          %146 = sbr.rel (%p144) target = $region20
        $region19: #{celeba_vae_forward.35} parent=11 // pred_region
          _
        $region20: #{celeba_vae_forward.35} parent=11 // pred_fallthru
          _
      $region12: #{celeba_vae_forward.35} parent=5 // pred_fallthru
        _
      %p147 = scmp.lt.s32.totalorder %s9, 2
      // Predicated region
      $region21: #{celeba_vae_forward.35} parent=5 // pred_check
        %p148 = pneg %p147
      $region22: #{celeba_vae_forward.35} parent=5 // pred_check_branch
        %150 = sbr.rel (%p148) target = $region24
      $region23: #{celeba_vae_forward.35} parent=5 // pred_region
        // Predicated region
        $region25: #{celeba_vae_forward.35} parent=23 // pred_check
          %p151 = pneg %p69
        $region26: #{celeba_vae_forward.35} parent=23 // pred_check_branch
          %153 = sbr.rel (%p151) target = $region28
        $region27: #{celeba_vae_forward.35} parent=23 // pred_region
          %s154 = sand.u32 %s59, 1
          %s155 = sand.u32 %s59, 1
          %s156 = smul.addr %s155, 32
          %s157 = scalar_lea.vmem [#allocation3], %s156
          %s158 = smul.u32 4, %s17
          %s159 = smul.u32 2, %s16
          %s160 = smul.addr %s158, 4
          %s161 = sadd.s32 %s159, %s160
          %s162 = smul.addr %s161, 4
          %s163 = scalar_lea.vmem %s1, %s162
          // Predicated region
          $region29: #{celeba_vae_forward.35} parent=27 // pred_check
            _
          $region30: #{celeba_vae_forward.35} parent=27 // pred_check_branch
            %165 = sbr.rel (0) target = $region32
          $region31: #{celeba_vae_forward.35} parent=27 // pred_region
            // Predicated region
            $region33: #{celeba_vae_forward.35} parent=31 // pred_check
              _
            $region34: #{celeba_vae_forward.35} parent=31 // pred_check_branch
              %167 = sbr.rel (0) target = $region36
            $region35: #{celeba_vae_forward.35} parent=31 // pred_region
              // Predicated region
              $region48: #{celeba_vae_forward.35} parent=35 // pred_check
                _
              $region49: #{celeba_vae_forward.35} parent=35 // pred_check_branch
                %189 = sbr.rel (0) target = $region51
              $region50: #{celeba_vae_forward.35} parent=35 // pred_region
                loop: start=0, step=1, limit=1
                $region52: #{celeba_vae_forward.35} parent=50 // loop_pre_header
                  _
                $region53: #{celeba_vae_forward.35} parent=50 // loop_header
                  %s191 = sphi 0, %s195
                  %p192 = scmp.ge.s32.totalorder %s191, 1
                  %s196 = sphi %s163, %s163
                  %s197 = sphi %s157, %s157
                $region54: #{celeba_vae_forward.35} parent=50 // loop_header_branch
                  %194 = sbr.rel (%p192) target = $region58
                $region55: #{celeba_vae_forward.35} parent=50 // loop_body
                  %v198 = vld [vmem:[%s196] sm:$0xff]
                  %199 = vst [vmem:[%s197] sm:$0xff] %v198
                  %v200 = vld [vmem:[%s196 + $0x10] sm:$0xff]
                  %201 = vst [vmem:[%s197 + $0x8] sm:$0xff] %v200
                  %v202 = vld [vmem:[%s196 + $0x20] sm:$0xff]
                  %203 = vst [vmem:[%s197 + $0x10] sm:$0xff] %v202
                  %v204 = vld [vmem:[%s196 + $0x30] sm:$0xff]
                  %205 = vst [vmem:[%s197 + $0x18] sm:$0xff] %v204
                $region56: #{celeba_vae_forward.35} parent=50 // loop_footer
                  %s195 = sadd.s32 1, %s191
                $region57: #{celeba_vae_forward.35} parent=50 // loop_footer_branch
                  %190 = sbr.rel target = $region53
                $region58: #{celeba_vae_forward.35} parent=50 // loop_exit
                  _
              $region51: #{celeba_vae_forward.35} parent=35 // pred_fallthru
                _
              // Predicated region
              $region59: #{celeba_vae_forward.35} parent=35 // pred_check
                _
              $region60: #{celeba_vae_forward.35} parent=35 // pred_check_branch
                %207 = sbr.rel target = $region62
              $region61: #{celeba_vae_forward.35} parent=35 // pred_region
                _
              $region62: #{celeba_vae_forward.35} parent=35 // pred_fallthru
                _
            $region36: #{celeba_vae_forward.35} parent=31 // pred_fallthru
              _
            // Predicated region
            $region37: #{celeba_vae_forward.35} parent=31 // pred_check
              _
            $region38: #{celeba_vae_forward.35} parent=31 // pred_check_branch
              %169 = sbr.rel target = $region40
            $region39: #{celeba_vae_forward.35} parent=31 // pred_region
              %s171 = ssub.s32 256, 1
              loop: start=0, step=1, limit=1
              $region41: #{celeba_vae_forward.35} parent=39 // loop_pre_header
                _
              $region42: #{celeba_vae_forward.35} parent=39 // loop_header
                %s173 = sphi 0, %s177
                %p174 = scmp.ge.s32.totalorder %s173, 1
                %s178 = sphi %s163, %s163
                %s179 = sphi %s157, %s157
              $region43: #{celeba_vae_forward.35} parent=39 // loop_header_branch
                %176 = sbr.rel (%p174) target = $region47
              $region44: #{celeba_vae_forward.35} parent=39 // loop_body
                %v180 = vld [vmem:[%s178] sm:%s171]
                %181 = vst [vmem:[%s179] sm:%s171] %v180
                %v182 = vld [vmem:[%s178 + $0x10] sm:%s171]
                %183 = vst [vmem:[%s179 + $0x8] sm:%s171] %v182
                %v184 = vld [vmem:[%s178 + $0x20] sm:%s171]
                %185 = vst [vmem:[%s179 + $0x10] sm:%s171] %v184
                %v186 = vld [vmem:[%s178 + $0x30] sm:%s171]
                %187 = vst [vmem:[%s179 + $0x18] sm:%s171] %v186
              $region45: #{celeba_vae_forward.35} parent=39 // loop_footer
                %s177 = sadd.s32 1, %s173
              $region46: #{celeba_vae_forward.35} parent=39 // loop_footer_branch
                %172 = sbr.rel target = $region42
              $region47: #{celeba_vae_forward.35} parent=39 // loop_exit
                _
            $region40: #{celeba_vae_forward.35} parent=31 // pred_fallthru
              _
          $region32: #{celeba_vae_forward.35} parent=27 // pred_fallthru
            _
          %208 = vnop
        $region28: #{celeba_vae_forward.35} parent=23 // pred_fallthru
          _
      $region24: #{celeba_vae_forward.35} parent=5 // pred_fallthru
        _
      %p209 = scmp.le.s32.totalorder 1, %s9
      %p210 = scmp.lt.s32.totalorder %s9, 3
      %p211 = pnand %p209, %p210
      %p212 = pneg %p211
      // Predicated region
      $region63: #{celeba_vae_forward.35} parent=5 // pred_check
        _
      $region64: #{celeba_vae_forward.35} parent=5 // pred_check_branch
        %214 = sbr.rel (%p211) target = $region66
      $region65: #{celeba_vae_forward.35} parent=5 // pred_region
        %s215 = ssub.s32 %s9, 1
        %s216 = sand.u32 %s62, 1
        %s217 = sand.u32 %s62, 1
        %s218 = smul.addr %s217, 32
        %s219 = scalar_lea.vmem [#allocation3], %s218
        // Predicated region
        $region67: #{celeba_vae_forward.35} parent=65 // pred_check
          %p220 = pneg %p75
        $region68: #{celeba_vae_forward.35} parent=65 // pred_check_branch
          %222 = sbr.rel (%p220) target = $region70
        $region69: #{celeba_vae_forward.35} parent=65 // pred_region
          _
        $region70: #{celeba_vae_forward.35} parent=65 // pred_fallthru
          _
        %p223 = scmp.lt.s32.totalorder %s19, 0
        %s224 = scalar_select %p223, %s19, 0
        %s225 = smul.addr %s224, 4
        %s226 = scalar_lea.vmem %s0, %s225
        %p227 = pneg %p47
        %p228 = pneg %p44
        %s229 = sand.u32 %s62, 1
        %s230 = sand.u32 %s62, 1
        %s231 = smul.addr %s230, 32
        %s232 = scalar_lea.vmem [#allocation3], %s231
        %p233 = pneg %p75
        %p234 = pneg %p72
        %p235 = pneg %p96
        %p236 = pneg %p93
        %p237 = pneg %p122
        %p238 = pneg %p119
        %s239 = sand.u32 %s109, 1
        %s240 = sand.u32 %s109, 1
        %s241 = smul.addr %s240, 16
        %s242 = scalar_lea.vmem [#allocation4], %s241
        %p243 = scmp.lt.s32.totalorder %s19, 0
        %s244 = scalar_select %p243, %s19, 0
        %s245 = smul.addr %s244, 4
        %s246 = scalar_lea.vmem %s0, %s245
        %s247 = smul.u32 4, %s19
        %s248 = smul.u32 2, %s18
        %s249 = smul.u32 2, %s18
        %p251 = scmp.eq.s32.totalorder %s19, 0
        // Predicated region
        $region71: #{celeba_vae_forward.35} parent=65 // pred_check
          %p252 = pneg %p251
        $region72: #{celeba_vae_forward.35} parent=65 // pred_check_branch
          %254 = sbr.rel (%p252) target = $region74
        $region73: #{celeba_vae_forward.35} parent=65 // pred_region
          %v255 = vld [vmem:[%s2] sm:$0xff]
          %v256 = vld [vmem:[%s2 + $0x8] sm:$0xff]
          %258 = vset.pattern.permute.xlu0 0
          %259 = vperm.xlu0 %258, %v255
          %v260 = vpop.permute.xlu0 %259
          %263 = vset.pattern.permute.xlu0 0
          %264 = vperm.xlu0 %263, %v256
          %v265 = vpop.permute.xlu0 %264
          %v267 = vadd.f32 %v260, 0.0
          %v268 = vadd.f32 %v265, 0.0
          %269 = vst [vmem:[#allocation2] sm:$0xff] %v267
          %270 = vst [vmem:[#allocation2 + $0x8] sm:$0xff] %v267
          %271 = vst [vmem:[#allocation2 + $0x10] sm:$0xff] %v268
          %272 = vst [vmem:[#allocation2 + $0x18] sm:$0xff] %v268
        $region74: #{celeba_vae_forward.35} parent=65 // pred_fallthru
          _
        %v273 = vld [vmem:[#allocation2] sm:$0xff]
        %v274 = vld [vmem:[#allocation2 + $0x8] sm:$0xff]
        %v275 = vld [vmem:[#allocation2 + $0x10] sm:$0xff]
        %v276 = vld [vmem:[#allocation2 + $0x18] sm:$0xff]
        %v277 = vld [vmem:[%s246] sm:$0xf]
        %v278 = vld [vmem:[%s246 + $0x4] sm:$0xf]
        %v279 = vld [vmem:[%s219] sm:$0xff]
        %v280 = vld [vmem:[%s219 + $0x8] sm:$0xff]
        %v281 = vld [vmem:[%s219 + $0x10] sm:$0xff]
        %v282 = vld [vmem:[%s219 + $0x18] sm:$0xff]
        %v285 = vunpack.c.l.b16 %v277
        %v286 = vunpack.c.l.b16 %v278
        %v287 = vpack.c.b16 %v286, %v285
        %v292 = vunpack.c.l.b16 %v279
        %v293 = vunpack.c.h.b16 %v279
        %v294 = vunpack.c.l.b16 %v280
        %v295 = vunpack.c.h.b16 %v280
        %v296 = vunpack.c.l.b16 %v281
        %v297 = vunpack.c.h.b16 %v281
        %v298 = vunpack.c.l.b16 %v282
        %v299 = vunpack.c.h.b16 %v282
        %v300 = vpack.c.b16 %v294, %v292
        %v301 = vpack.c.b16 %v295, %v293
        %v302 = vpack.c.b16 %v298, %v296
        %v303 = vpack.c.b16 %v299, %v297
        %vm308 = vcmask 261120
        %v310 = vsel %vm308, %v287, 0
        %312 = vmatpush.bf16.msra.mxu0 0
        %313 = vmatpush.bf16.msra.mxu0 0
        %314 = vmatpush.bf16.msra.mxu0 0
        %315 = vmatpush.bf16.msra.mxu0 0
        %316 = vmatpush.bf16.msra.mxu0 0
        %317 = vmatpush.bf16.msra.mxu0 0
        %318 = vmatpush.bf16.msra.mxu0 %v302
        %319 = vmatpush.bf16.msra.mxu0 %v300
        %320 = vmatmul.bf16.gmra.mxu0 %v310
        %v321 = vpop.f32.mrf.mxu0
        %v322 = vadd.f32 0.0, %v321
        %v323 = vpop.f32.mrf.mxu0
        %v324 = vadd.f32 0.0, %v323
        %325 = vdwg.mxu0
        %326 = vmatpush.bf16.msra.mxu0 0
        %327 = vmatpush.bf16.msra.mxu0 0
        %328 = vmatpush.bf16.msra.mxu0 0
        %329 = vmatpush.bf16.msra.mxu0 0
        %330 = vmatpush.bf16.msra.mxu0 0
        %331 = vmatpush.bf16.msra.mxu0 0
        %332 = vmatpush.bf16.msra.mxu0 %v303
        %333 = vmatpush.bf16.msra.mxu0 %v301
        %334 = vmatmul.bf16.gmra.mxu0 %v310
        %v335 = vpop.f32.mrf.mxu0
        %v336 = vadd.f32 0.0, %v335
        %v337 = vpop.f32.mrf.mxu0
        %v338 = vadd.f32 0.0, %v337
        %339 = vdwg.mxu0
        %v340 = vadd.f32 %v273, %v322
        %v341 = vadd.f32 %v274, %v336
        %v342 = vadd.f32 %v275, %v324
        %v343 = vadd.f32 %v276, %v338
        %344 = vst [vmem:[#allocation2] sm:$0xff] %v340
        %345 = vst [vmem:[#allocation2 + $0x8] sm:$0xff] %v341
        %346 = vst [vmem:[#allocation2 + $0x10] sm:$0xff] %v342
        %347 = vst [vmem:[#allocation2 + $0x18] sm:$0xff] %v343
        // Predicated region
        $region75: #{celeba_vae_forward.35} parent=65 // pred_check
          %p348 = pneg %p251
        $region76: #{celeba_vae_forward.35} parent=65 // pred_check_branch
          %350 = sbr.rel (%p348) target = $region78
        $region77: #{celeba_vae_forward.35} parent=65 // pred_region
          %v351 = vld [vmem:[#allocation2] sm:$0xff]
          %v352 = vld [vmem:[#allocation2 + $0x8] sm:$0xff]
          %v353 = vld [vmem:[#allocation2 + $0x10] sm:$0xff]
          %v354 = vld [vmem:[#allocation2 + $0x18] sm:$0xff]
          %v355 = vmax.f32 %v351, 0.0
          %v356 = vmax.f32 %v352, 0.0
          %v357 = vmax.f32 %v353, 0.0
          %v358 = vmax.f32 %v354, 0.0
          %v359 = vpack.c.bf16 %v356, %v355
          %v360 = vpack.c.bf16 %v358, %v357
          %361 = vst [vmem:[%s242] sm:$0xff] %v359
          %362 = vst [vmem:[%s242 + $0x8] sm:$0xff] %v360
        $region78: #{celeba_vae_forward.35} parent=65 // pred_fallthru
          _
        %s363 = sand.u32 %s109, 1
        %s364 = sand.u32 %s109, 1
        %s365 = smul.addr %s364, 16
        %s366 = scalar_lea.vmem [#allocation4], %s365
        // Predicated region
        $region79: #{celeba_vae_forward.35} parent=65 // pred_check
          %p367 = pneg %p119
        $region80: #{celeba_vae_forward.35} parent=65 // pred_check_branch
          %369 = sbr.rel (%p367) target = $region82
        $region81: #{celeba_vae_forward.35} parent=65 // pred_region
          %s370 = smul.u32 2, %s18
          %s371 = smul.addr %s370, 4
          %s372 = scalar_lea.vmem %s3, %s371
          // Predicated region
          $region83: #{celeba_vae_forward.35} parent=81 // pred_check
            _
          $region84: #{celeba_vae_forward.35} parent=81 // pred_check_branch
            %374 = sbr.rel (0) target = $region86
          $region85: #{celeba_vae_forward.35} parent=81 // pred_region
            // Predicated region
            $region87: #{celeba_vae_forward.35} parent=85 // pred_check
              _
            $region88: #{celeba_vae_forward.35} parent=85 // pred_check_branch
              %376 = sbr.rel (0) target = $region90
            $region89: #{celeba_vae_forward.35} parent=85 // pred_region
              // Predicated region
              $region102: #{celeba_vae_forward.35} parent=89 // pred_check
                _
              $region103: #{celeba_vae_forward.35} parent=89 // pred_check_branch
                %394 = sbr.rel (0) target = $region105
              $region104: #{celeba_vae_forward.35} parent=89 // pred_region
                loop: start=0, step=1, limit=1
                $region106: #{celeba_vae_forward.35} parent=104 // loop_pre_header
                  _
                $region107: #{celeba_vae_forward.35} parent=104 // loop_header
                  %s396 = sphi 0, %s400
                  %p397 = scmp.ge.s32.totalorder %s396, 1
                  %s401 = sphi %s366, %s366
                  %s402 = sphi %s372, %s372
                $region108: #{celeba_vae_forward.35} parent=104 // loop_header_branch
                  %399 = sbr.rel (%p397) target = $region112
                $region109: #{celeba_vae_forward.35} parent=104 // loop_body
                  %v403 = vld [vmem:[%s401] sm:$0xff]
                  %404 = vst [vmem:[%s402] sm:$0xff] %v403
                  %v405 = vld [vmem:[%s401 + $0x8] sm:$0xff]
                  %406 = vst [vmem:[%s402 + $0x10] sm:$0xff] %v405
                $region110: #{celeba_vae_forward.35} parent=104 // loop_footer
                  %s400 = sadd.s32 1, %s396
                $region111: #{celeba_vae_forward.35} parent=104 // loop_footer_branch
                  %395 = sbr.rel target = $region107
                $region112: #{celeba_vae_forward.35} parent=104 // loop_exit
                  _
              $region105: #{celeba_vae_forward.35} parent=89 // pred_fallthru
                _
              // Predicated region
              $region113: #{celeba_vae_forward.35} parent=89 // pred_check
                _
              $region114: #{celeba_vae_forward.35} parent=89 // pred_check_branch
                %408 = sbr.rel target = $region116
              $region115: #{celeba_vae_forward.35} parent=89 // pred_region
                _
              $region116: #{celeba_vae_forward.35} parent=89 // pred_fallthru
                _
            $region90: #{celeba_vae_forward.35} parent=85 // pred_fallthru
              _
            // Predicated region
            $region91: #{celeba_vae_forward.35} parent=85 // pred_check
              _
            $region92: #{celeba_vae_forward.35} parent=85 // pred_check_branch
              %378 = sbr.rel target = $region94
            $region93: #{celeba_vae_forward.35} parent=85 // pred_region
              %s380 = ssub.s32 256, 1
              loop: start=0, step=1, limit=1
              $region95: #{celeba_vae_forward.35} parent=93 // loop_pre_header
                _
              $region96: #{celeba_vae_forward.35} parent=93 // loop_header
                %s382 = sphi 0, %s386
                %p383 = scmp.ge.s32.totalorder %s382, 1
                %s387 = sphi %s366, %s366
                %s388 = sphi %s372, %s372
              $region97: #{celeba_vae_forward.35} parent=93 // loop_header_branch
                %385 = sbr.rel (%p383) target = $region101
              $region98: #{celeba_vae_forward.35} parent=93 // loop_body
                %v389 = vld [vmem:[%s387] sm:%s380]
                %390 = vst [vmem:[%s388] sm:%s380] %v389
                %v391 = vld [vmem:[%s387 + $0x8] sm:%s380]
                %392 = vst [vmem:[%s388 + $0x10] sm:%s380] %v391
              $region99: #{celeba_vae_forward.35} parent=93 // loop_footer
                %s386 = sadd.s32 1, %s382
              $region100: #{celeba_vae_forward.35} parent=93 // loop_footer_branch
                %381 = sbr.rel target = $region96
              $region101: #{celeba_vae_forward.35} parent=93 // loop_exit
                _
            $region94: #{celeba_vae_forward.35} parent=85 // pred_fallthru
              _
          $region86: #{celeba_vae_forward.35} parent=81 // pred_fallthru
            _
          %409 = vnop
        $region82: #{celeba_vae_forward.35} parent=65 // pred_fallthru
          _
      $region66: #{celeba_vae_forward.35} parent=5 // pred_fallthru
        _
      %p410 = scmp.le.s32.totalorder 2, %s9
      // Predicated region
      $region117: #{celeba_vae_forward.35} parent=5 // pred_check
        %p411 = pneg %p410
      $region118: #{celeba_vae_forward.35} parent=5 // pred_check_branch
        %413 = sbr.rel (%p411) target = $region120
      $region119: #{celeba_vae_forward.35} parent=5 // pred_region
        %s414 = ssub.s32 %s9, 2
        // Predicated region
        $region121: #{celeba_vae_forward.35} parent=119 // pred_check
          %p415 = pneg %p125
        $region122: #{celeba_vae_forward.35} parent=119 // pred_check_branch
          %417 = sbr.rel (%p415) target = $region124
        $region123: #{celeba_vae_forward.35} parent=119 // pred_region
          %s418 = sand.u32 %s110, 1
          %s419 = sand.u32 %s110, 1
          %s420 = smul.addr %s419, 16
          %s421 = scalar_lea.vmem [#allocation4], %s420
        $region124: #{celeba_vae_forward.35} parent=119 // pred_fallthru
          _
      $region120: #{celeba_vae_forward.35} parent=5 // pred_fallthru
        _
    $region6: #{celeba_vae_forward.35} parent=1 // loop_footer
      %s13 = sadd.s32 1, %s9
    $region7: #{celeba_vae_forward.35} parent=1 // loop_footer_branch
      %8 = sbr.rel target = $region3
    $region8: #{celeba_vae_forward.35} parent=1 // loop_exit
      _

// kernel: celeba_vae_forward.37
$region0: #{celeba_vae_forward.37}
  #allocation0 [shape = 'u32[]', space=smem, size = 0x4, offset = 0x4, fixed_abs, tag = 'smem constant byte address 0x4 - core index']
  #allocation1 [shape = 'u32[72,128]{1,0:T(1,128)}', space=vmem, size = 0x9000, scoped, tag = 'internal scratch']
  #allocation2 [shape = 'f32[16,1024]{1,0:T(8,128)}', space=vmem, size = 0x10000, scoped, tag = 'scratch operand']
  %s0 = inlined_call_operand.vmem [shape: bf16[16,8], index: 0, kind: input, shape index: {}]
  %s1 = inlined_call_operand.vmem [shape: bf16[8,2048], index: 1, kind: input, shape index: {}]
  %s2 = inlined_call_operand.vmem [shape: f32[16,1], index: 2, kind: input, shape index: {}]
  %s3 = inlined_call_operand.vmem [shape: bf16[16,2048], index: 3, kind: output, shape index: {}]
  %s4 = sld [smem:[#allocation0]]
  $region72: #{celeba_vae_forward.37} parent=0
    _
  %s6 = ssub.s32 1, %s4
  %s7 = scalar_select 0, %s6, %s4
  $region1: #{celeba_vae_forward.37} parent=0
    #allocation3 [shape = 'u8[65536]{0}', space=vmem, size = 0x10000, scoped, tag = 'output window, operand 0']
    loop: start=0, step=1, limit=4
    $region2: #{celeba_vae_forward.37} parent=1 // loop_pre_header
      _
    $region3: #{celeba_vae_forward.37} parent=1 // loop_header
      %s9 = sphi 0, %s13
      %p10 = scmp.ge.s32.totalorder %s9, 4
      %s16 = sphi 0, %s28
      %s17 = sphi 0, %s24
      %s18 = sphi 0, %s16
      %s19 = sphi 0, %s17
      %s20 = sphi 0, %s18
      %s21 = sphi 0, %s19
      %s31 = sphi 0, %s33
      %s34 = sphi 0, %s31
      %s35 = sphi 0, %s34
      %s51 = sphi 0, %s35
      %s59 = sphi 0, %s61
      %s62 = sphi 0, %s59
      %s63 = sphi 0, %s62
      %s79 = sphi 0, %s63
      %s83 = sphi 0, %s83
      %s85 = sphi 0, %s83
      %s86 = sphi 0, %s85
      %s100 = sphi 0, %s86
      %s106 = sphi 0, %s108
      %s109 = sphi 0, %s106
      %s110 = sphi 0, %s109
      %s126 = sphi 0, %s110
    $region4: #{celeba_vae_forward.37} parent=1 // loop_header_branch
      %12 = sbr.rel (%p10) target = $region8
    $region5: #{celeba_vae_forward.37} parent=1 // loop_body
      %s14 = ssub.s32 %s9, 1
      %s15 = ssub.s32 %s9, 2
      %s22 = sadd.s32 1, %s17
      %p23 = scmp.ge.s32.totalorder %s22, 1
      %s24 = scalar_select %p23, 0, %s22
      %s25 = sadd.s32 1, %s16
      %s26 = scalar_select %p23, %s25, %s16
      %p27 = scmp.ge.s32.totalorder %s26, 2
      %s28 = scalar_select %p27, 0, %s26
      %s29 = ssub.s32 %s17, %s24
      %p30 = scmp.eq.s32.totalorder %s29, 0
      %s32 = sadd.s32 %s31, 1
      %s33 = scalar_select %p30, %s31, %s32
      %p36 = pneg %p30
      %p37 = scmp.eq.s32.totalorder %s9, 1
      %p38 = por %p36, %p37
      %p39 = scmp.ne.s32.totalorder %s31, %s34
      %p40 = scmp.eq.s32.totalorder %s9, 0
      %p41 = por %p39, %p40
      %p42 = scmp.ne.s32.totalorder %s31, %s34
      %p43 = scmp.eq.s32.totalorder %s14, 1
      %p44 = por %p42, %p43
      %p45 = scmp.ne.s32.totalorder %s34, %s35
      %p46 = scmp.eq.s32.totalorder %s14, 0
      %p47 = por %p45, %p46
      %p48 = scmp.ne.s32.totalorder %s34, %s35
      %p49 = scmp.eq.s32.totalorder %s15, 1
      %p50 = por %p48, %p49
      %p52 = scmp.ne.s32.totalorder %s35, %s51
      %p53 = scmp.eq.s32.totalorder %s15, 0
      %p54 = por %p52, %p53
      %s55 = ssub.s32 %s17, %s24
      %s56 = ssub.s32 %s16, %s28
      %s57 = sor.u32 %s55, %s56
      %p58 = scmp.eq.s32.totalorder %s57, 0
      %s60 = sadd.s32 %s59, 1
      %s61 = scalar_select %p58, %s59, %s60
      %p64 = pneg %p58
      %p65 = scmp.eq.s32.totalorder %s9, 1
      %p66 = por %p64, %p65
      %p67 = scmp.ne.s32.totalorder %s59, %s62
      %p68 = scmp.eq.s32.totalorder %s9, 0
      %p69 = por %p67, %p68
      %p70 = scmp.ne.s32.totalorder %s59, %s62
      %p71 = scmp.eq.s32.totalorder %s14, 1
      %p72 = por %p70, %p71
      %p73 = scmp.ne.s32.totalorder %s62, %s63
      %p74 = scmp.eq.s32.totalorder %s14, 0
      %p75 = por %p73, %p74
      %p76 = scmp.ne.s32.totalorder %s62, %s63
      %p77 = scmp.eq.s32.totalorder %s15, 1
      %p78 = por %p76, %p77
      %p80 = scmp.ne.s32.totalorder %s63, %s79
      %p81 = scmp.eq.s32.totalorder %s15, 0
      %p82 = por %p80, %p81
      %s84 = sadd.s32 %s83, 1
      %p87 = scmp.eq.s32.totalorder %s9, 1
      %p88 = scmp.ne.s32.totalorder %s83, %s85
      %p89 = scmp.eq.s32.totalorder %s9, 0
      %p90 = por %p88, %p89
      %p91 = scmp.ne.s32.totalorder %s83, %s85
      %p92 = scmp.eq.s32.totalorder %s14, 1
      %p93 = por %p91, %p92
      %p94 = scmp.ne.s32.totalorder %s85, %s86
      %p95 = scmp.eq.s32.totalorder %s14, 0
      %p96 = por %p94, %p95
      %p97 = scmp.ne.s32.totalorder %s85, %s86
      %p98 = scmp.eq.s32.totalorder %s15, 1
      %p99 = por %p97, %p98
      %p101 = scmp.ne.s32.totalorder %s86, %s100
      %p102 = scmp.eq.s32.totalorder %s15, 0
      %p103 = por %p101, %p102
      %s104 = ssub.s32 %s16, %s28
      %p105 = scmp.eq.s32.totalorder %s104, 0
      %s107 = sadd.s32 %s106, 1
      %s108 = scalar_select %p105, %s106, %s107
      %p111 = pneg %p105
      %p112 = scmp.eq.s32.totalorder %s9, 1
      %p113 = por %p111, %p112
      %p114 = scmp.ne.s32.totalorder %s106, %s109
      %p115 = scmp.eq.s32.totalorder %s9, 0
      %p116 = por %p114, %p115
      %p117 = scmp.ne.s32.totalorder %s106, %s109
      %p118 = scmp.eq.s32.totalorder %s14, 1
      %p119 = por %p117, %p118
      %p120 = scmp.ne.s32.totalorder %s109, %s110
      %p121 = scmp.eq.s32.totalorder %s14, 0
      %p122 = por %p120, %p121
      %p123 = scmp.ne.s32.totalorder %s109, %s110
      %p124 = scmp.eq.s32.totalorder %s15, 1
      %p125 = por %p123, %p124
      %p127 = scmp.ne.s32.totalorder %s110, %s126
      %p128 = scmp.eq.s32.totalorder %s15, 0
      %p129 = por %p127, %p128
      %p130 = scmp.le.s32.totalorder 1, %s9
      %p131 = scmp.lt.s32.totalorder %s9, 3
      %p132 = pnand %p130, %p131
      %p133 = pneg %p132
      // Predicated region
      $region9: #{celeba_vae_forward.37} parent=5 // pred_check
        _
      $region10: #{celeba_vae_forward.37} parent=5 // pred_check_branch
        %135 = sbr.rel (%p132) target = $region12
      $region11: #{celeba_vae_forward.37} parent=5 // pred_region
        %s136 = ssub.s32 %s9, 1
        // Predicated region
        $region13: #{celeba_vae_forward.37} parent=11 // pred_check
          %p137 = pneg %p47
        $region14: #{celeba_vae_forward.37} parent=11 // pred_check_branch
          %139 = sbr.rel (%p137) target = $region16
        $region15: #{celeba_vae_forward.37} parent=11 // pred_region
          %p140 = scmp.lt.s32.totalorder %s19, 0
          %s141 = scalar_select %p140, %s19, 0
          %s142 = smul.addr %s141, 4
          %s143 = scalar_lea.vmem %s0, %s142
        $region16: #{celeba_vae_forward.37} parent=11 // pred_fallthru
          _
        // Predicated region
        $region17: #{celeba_vae_forward.37} parent=11 // pred_check
          %p144 = pneg %p96
        $region18: #{celeba_vae_forward.37} parent=11 // pred_check_branch
          %146 = sbr.rel (%p144) target = $region20
        $region19: #{celeba_vae_forward.37} parent=11 // pred_region
          _
        $region20: #{celeba_vae_forward.37} parent=11 // pred_fallthru
          _
      $region12: #{celeba_vae_forward.37} parent=5 // pred_fallthru
        _
      %p147 = scmp.lt.s32.totalorder %s9, 2
      // Predicated region
      $region21: #{celeba_vae_forward.37} parent=5 // pred_check
        %p148 = pneg %p147
      $region22: #{celeba_vae_forward.37} parent=5 // pred_check_branch
        %150 = sbr.rel (%p148) target = $region24
      $region23: #{celeba_vae_forward.37} parent=5 // pred_region
        // Predicated region
        $region25: #{celeba_vae_forward.37} parent=23 // pred_check
          %p151 = pneg %p69
        $region26: #{celeba_vae_forward.37} parent=23 // pred_check_branch
          %153 = sbr.rel (%p151) target = $region28
        $region27: #{celeba_vae_forward.37} parent=23 // pred_region
          %s154 = smul.u32 8, %s16
          %p155 = scmp.lt.s32.totalorder %s17, 0
          %s156 = scalar_select %p155, %s17, 0
          %p157 = scmp.lt.s32.totalorder %s154, 15
          %s158 = scalar_select %p157, %s154, 15
          %s159 = smul.addr %s156, 16
          %s160 = sadd.s32 %s158, %s159
          %s161 = smul.addr %s160, 4
          %s162 = scalar_lea.vmem %s1, %s161
          %s163 = smul.u32 8, %s16
        $region28: #{celeba_vae_forward.37} parent=23 // pred_fallthru
          _
      $region24: #{celeba_vae_forward.37} parent=5 // pred_fallthru
        _
      %p164 = scmp.le.s32.totalorder 1, %s9
      %p165 = scmp.lt.s32.totalorder %s9, 3
      %p166 = pnand %p164, %p165
      %p167 = pneg %p166
      // Predicated region
      $region29: #{celeba_vae_forward.37} parent=5 // pred_check
        _
      $region30: #{celeba_vae_forward.37} parent=5 // pred_check_branch
        %169 = sbr.rel (%p166) target = $region32
      $region31: #{celeba_vae_forward.37} parent=5 // pred_region
        %s170 = ssub.s32 %s9, 1
        %p171 = scmp.lt.s32.totalorder %s19, 0
        %s172 = scalar_select %p171, %s19, 0
        %s173 = smul.addr %s172, 4
        %s174 = scalar_lea.vmem %s0, %s173
        %p175 = pneg %p47
        %p176 = pneg %p44
        %s177 = smul.u32 8, %s18
        %p178 = scmp.lt.s32.totalorder %s19, 0
        %s179 = scalar_select %p178, %s19, 0
        %p180 = scmp.lt.s32.totalorder %s177, 15
        %s181 = scalar_select %p180, %s177, 15
        %s182 = smul.addr %s179, 16
        %s183 = sadd.s32 %s181, %s182
        %s184 = smul.addr %s183, 4
        %s185 = scalar_lea.vmem %s1, %s184
        %p186 = pneg %p75
        %p187 = pneg %p72
        %p188 = pneg %p96
        %p189 = pneg %p93
        %p190 = pneg %p122
        %p191 = pneg %p119
        %s192 = sand.u32 %s109, 1
        %s193 = sand.u32 %s109, 1
        %s194 = smul.addr %s193, 64
        %s195 = scalar_lea.vmem [#allocation3], %s194
        %p196 = scmp.lt.s32.totalorder %s19, 0
        %s197 = scalar_select %p196, %s19, 0
        %s198 = smul.addr %s197, 4
        %s199 = scalar_lea.vmem %s0, %s198
        %s200 = smul.u32 8, %s18
        %p201 = scmp.lt.s32.totalorder %s19, 0
        %s202 = scalar_select %p201, %s19, 0
        %p203 = scmp.lt.s32.totalorder %s200, 15
        %s204 = scalar_select %p203, %s200, 15
        %s205 = smul.addr %s202, 16
        %s206 = sadd.s32 %s204, %s205
        %s207 = smul.addr %s206, 4
        %s208 = scalar_lea.vmem %s1, %s207
        %s209 = smul.u32 8, %s18
        %s210 = smul.u32 8, %s18
        %p212 = scmp.eq.s32.totalorder %s19, 0
        // Predicated region
        $region33: #{celeba_vae_forward.37} parent=31 // pred_check
          %p213 = pneg %p212
        $region34: #{celeba_vae_forward.37} parent=31 // pred_check_branch
          %215 = sbr.rel (%p213) target = $region36
        $region35: #{celeba_vae_forward.37} parent=31 // pred_region
          %v216 = vld [vmem:[%s2] sm:$0xff]
          %v217 = vld [vmem:[%s2 + $0x8] sm:$0xff]
          %219 = vset.pattern.permute.xlu0 0
          %220 = vperm.xlu0 %219, %v216
          %v221 = vpop.permute.xlu0 %220
          %224 = vset.pattern.permute.xlu0 0
          %225 = vperm.xlu0 %224, %v217
          %v226 = vpop.permute.xlu0 %225
          %v228 = vadd.f32 %v221, 0.0
          %v229 = vadd.f32 %v226, 0.0
          %230 = vst [vmem:[#allocation2] sm:$0xff] %v228
          %231 = vst [vmem:[#allocation2 + $0x8] sm:$0xff] %v228
          %232 = vst [vmem:[#allocation2 + $0x10] sm:$0xff] %v228
          %233 = vst [vmem:[#allocation2 + $0x18] sm:$0xff] %v228
          %234 = vst [vmem:[#allocation2 + $0x20] sm:$0xff] %v228
          %235 = vst [vmem:[#allocation2 + $0x28] sm:$0xff] %v228
          %236 = vst [vmem:[#allocation2 + $0x30] sm:$0xff] %v228
          %237 = vst [vmem:[#allocation2 + $0x38] sm:$0xff] %v228
          %238 = vst [vmem:[#allocation2 + $0x40] sm:$0xff] %v229
          %239 = vst [vmem:[#allocation2 + $0x48] sm:$0xff] %v229
          %240 = vst [vmem:[#allocation2 + $0x50] sm:$0xff] %v229
          %241 = vst [vmem:[#allocation2 + $0x58] sm:$0xff] %v229
          %242 = vst [vmem:[#allocation2 + $0x60] sm:$0xff] %v229
          %243 = vst [vmem:[#allocation2 + $0x68] sm:$0xff] %v229
          %244 = vst [vmem:[#allocation2 + $0x70] sm:$0xff] %v229
          %245 = vst [vmem:[#allocation2 + $0x78] sm:$0xff] %v229
        $region36: #{celeba_vae_forward.37} parent=31 // pred_fallthru
          _
        %v246 = vld [vmem:[#allocation2] sm:$0xff]
        %v247 = vld [vmem:[#allocation2 + $0x8] sm:$0xff]
        %v248 = vld [vmem:[#allocation2 + $0x10] sm:$0xff]
        %v249 = vld [vmem:[#allocation2 + $0x18] sm:$0xff]
        %v250 = vld [vmem:[#allocation2 + $0x20] sm:$0xff]
        %v251 = vld [vmem:[#allocation2 + $0x28] sm:$0xff]
        %v252 = vld [vmem:[#allocation2 + $0x30] sm:$0xff]
        %v253 = vld [vmem:[#allocation2 + $0x38] sm:$0xff]
        %v254 = vld [vmem:[#allocation2 + $0x40] sm:$0xff]
        %v255 = vld [vmem:[#allocation2 + $0x48] sm:$0xff]
        %v256 = vld [vmem:[#allocation2 + $0x50] sm:$0xff]
        %v257 = vld [vmem:[#allocation2 + $0x58] sm:$0xff]
        %v258 = vld [vmem:[#allocation2 + $0x60] sm:$0xff]
        %v259 = vld [vmem:[#allocation2 + $0x68] sm:$0xff]
        %v260 = vld [vmem:[#allocation2 + $0x70] sm:$0xff]
        %v261 = vld [vmem:[#allocation2 + $0x78] sm:$0xff]
        %v262 = vld [vmem:[%s199] sm:$0xf]
        %v263 = vld [vmem:[%s199 + $0x4] sm:$0xf]
        %v264 = vld [vmem:[%s208] sm:$0xff]
        %v265 = vld [vmem:[%s208 + $0x8] sm:$0xff]
        %v266 = vld [vmem:[%s208 + $0x10] sm:$0xff]
        %v267 = vld [vmem:[%s208 + $0x18] sm:$0xff]
        %v270 = vunpack.c.l.b16 %v262
        %v271 = vunpack.c.l.b16 %v263
        %v272 = vpack.c.b16 %v271, %v270
        %v277 = vunpack.c.l.b16 %v264
        %v278 = vunpack.c.h.b16 %v264
        %v279 = vunpack.c.l.b16 %v265
        %v280 = vunpack.c.h.b16 %v265
        %v281 = vunpack.c.l.b16 %v266
        %v282 = vunpack.c.h.b16 %v266
        %v283 = vunpack.c.l.b16 %v267
        %v284 = vunpack.c.h.b16 %v267
        %v285 = vpack.c.b16 %v277, %v277
        %v286 = vpack.c.b16 %v278, %v278
        %v287 = vpack.c.b16 %v279, %v279
        %v288 = vpack.c.b16 %v280, %v280
        %v289 = vpack.c.b16 %v281, %v281
        %v290 = vpack.c.b16 %v282, %v282
        %v291 = vpack.c.b16 %v283, %v283
        %v292 = vpack.c.b16 %v284, %v284
        %vm293 = vcmask 64512
        %v295 = vsel %vm293, %v272, 0
        %vm297 = vcmask 1043456
        %v299 = vsel %vm297, %v285, 0
        %v302 = vsel %vm297, %v286, 0
        %v305 = vsel %vm297, %v287, 0
        %v308 = vsel %vm297, %v288, 0
        %v311 = vsel %vm297, %v289, 0
        %v314 = vsel %vm297, %v290, 0
        %v317 = vsel %vm297, %v291, 0
        %v320 = vsel %vm297, %v292, 0
        %322 = vmatpush.bf16.msra.mxu0 0
        %323 = vmatpush.bf16.msra.mxu0 0
        %324 = vmatpush.bf16.msra.mxu0 0
        %325 = vmatpush.bf16.msra.mxu0 0
        %326 = vmatpush.bf16.msra.mxu0 0
        %327 = vmatpush.bf16.msra.mxu0 0
        %328 = vmatpush.bf16.msra.mxu0 0
        %329 = vmatpush.bf16.msra.mxu0 %v299
        %330 = vmatmul.bf16.gmra.mxu0 %v295
        %v331 = vpop.f32.mrf.mxu0
        %v332 = vadd.f32 0.0, %v331
        %v333 = vpop.f32.mrf.mxu0
        %v334 = vadd.f32 0.0, %v333
        %335 = vdwg.mxu0
        %336 = vmatpush.bf16.msra.mxu0 0
        %337 = vmatpush.bf16.msra.mxu0 0
        %338 = vmatpush.bf16.msra.mxu0 0
        %339 = vmatpush.bf16.msra.mxu0 0
        %340 = vmatpush.bf16.msra.mxu0 0
        %341 = vmatpush.bf16.msra.mxu0 0
        %342 = vmatpush.bf16.msra.mxu0 0
        %343 = vmatpush.bf16.msra.mxu0 %v302
        %344 = vmatmul.bf16.gmra.mxu0 %v295
        %v345 = vpop.f32.mrf.mxu0
        %v346 = vadd.f32 0.0, %v345
        %v347 = vpop.f32.mrf.mxu0
        %v348 = vadd.f32 0.0, %v347
        %349 = vdwg.mxu0
        %350 = vmatpush.bf16.msra.mxu0 0
        %351 = vmatpush.bf16.msra.mxu0 0
        %352 = vmatpush.bf16.msra.mxu0 0
        %353 = vmatpush.bf16.msra.mxu0 0
        %354 = vmatpush.bf16.msra.mxu0 0
        %355 = vmatpush.bf16.msra.mxu0 0
        %356 = vmatpush.bf16.msra.mxu0 0
        %357 = vmatpush.bf16.msra.mxu0 %v305
        %358 = vmatmul.bf16.gmra.mxu0 %v295
        %v359 = vpop.f32.mrf.mxu0
        %v360 = vadd.f32 0.0, %v359
        %v361 = vpop.f32.mrf.mxu0
        %v362 = vadd.f32 0.0, %v361
        %363 = vdwg.mxu0
        %364 = vmatpush.bf16.msra.mxu0 0
        %365 = vmatpush.bf16.msra.mxu0 0
        %366 = vmatpush.bf16.msra.mxu0 0
        %367 = vmatpush.bf16.msra.mxu0 0
        %368 = vmatpush.bf16.msra.mxu0 0
        %369 = vmatpush.bf16.msra.mxu0 0
        %370 = vmatpush.bf16.msra.mxu0 0
        %371 = vmatpush.bf16.msra.mxu0 %v308
        %372 = vmatmul.bf16.gmra.mxu0 %v295
        %v373 = vpop.f32.mrf.mxu0
        %v374 = vadd.f32 0.0, %v373
        %v375 = vpop.f32.mrf.mxu0
        %v376 = vadd.f32 0.0, %v375
        %377 = vdwg.mxu0
        %378 = vmatpush.bf16.msra.mxu0 0
        %379 = vmatpush.bf16.msra.mxu0 0
        %380 = vmatpush.bf16.msra.mxu0 0
        %381 = vmatpush.bf16.msra.mxu0 0
        %382 = vmatpush.bf16.msra.mxu0 0
        %383 = vmatpush.bf16.msra.mxu0 0
        %384 = vmatpush.bf16.msra.mxu0 0
        %385 = vmatpush.bf16.msra.mxu0 %v311
        %386 = vmatmul.bf16.gmra.mxu0 %v295
        %v387 = vpop.f32.mrf.mxu0
        %v388 = vadd.f32 0.0, %v387
        %v389 = vpop.f32.mrf.mxu0
        %v390 = vadd.f32 0.0, %v389
        %391 = vdwg.mxu0
        %392 = vmatpush.bf16.msra.mxu0 0
        %393 = vmatpush.bf16.msra.mxu0 0
        %394 = vmatpush.bf16.msra.mxu0 0
        %395 = vmatpush.bf16.msra.mxu0 0
        %396 = vmatpush.bf16.msra.mxu0 0
        %397 = vmatpush.bf16.msra.mxu0 0
        %398 = vmatpush.bf16.msra.mxu0 0
        %399 = vmatpush.bf16.msra.mxu0 %v314
        %400 = vmatmul.bf16.gmra.mxu0 %v295
        %v401 = vpop.f32.mrf.mxu0
        %v402 = vadd.f32 0.0, %v401
        %v403 = vpop.f32.mrf.mxu0
        %v404 = vadd.f32 0.0, %v403
        %405 = vdwg.mxu0
        %406 = vmatpush.bf16.msra.mxu0 0
        %407 = vmatpush.bf16.msra.mxu0 0
        %408 = vmatpush.bf16.msra.mxu0 0
        %409 = vmatpush.bf16.msra.mxu0 0
        %410 = vmatpush.bf16.msra.mxu0 0
        %411 = vmatpush.bf16.msra.mxu0 0
        %412 = vmatpush.bf16.msra.mxu0 0
        %413 = vmatpush.bf16.msra.mxu0 %v317
        %414 = vmatmul.bf16.gmra.mxu0 %v295
        %v415 = vpop.f32.mrf.mxu0
        %v416 = vadd.f32 0.0, %v415
        %v417 = vpop.f32.mrf.mxu0
        %v418 = vadd.f32 0.0, %v417
        %419 = vdwg.mxu0
        %420 = vmatpush.bf16.msra.mxu0 0
        %421 = vmatpush.bf16.msra.mxu0 0
        %422 = vmatpush.bf16.msra.mxu0 0
        %423 = vmatpush.bf16.msra.mxu0 0
        %424 = vmatpush.bf16.msra.mxu0 0
        %425 = vmatpush.bf16.msra.mxu0 0
        %426 = vmatpush.bf16.msra.mxu0 0
        %427 = vmatpush.bf16.msra.mxu0 %v320
        %428 = vmatmul.bf16.gmra.mxu0 %v295
        %v429 = vpop.f32.mrf.mxu0
        %v430 = vadd.f32 0.0, %v429
        %v431 = vpop.f32.mrf.mxu0
        %v432 = vadd.f32 0.0, %v431
        %433 = vdwg.mxu0
        %v434 = vadd.f32 %v246, %v332
        %v435 = vadd.f32 %v247, %v346
        %v436 = vadd.f32 %v248, %v360
        %v437 = vadd.f32 %v249, %v374
        %v438 = vadd.f32 %v250, %v388
        %v439 = vadd.f32 %v251, %v402
        %v440 = vadd.f32 %v252, %v416
        %v441 = vadd.f32 %v253, %v430
        %v442 = vadd.f32 %v254, %v334
        %v443 = vadd.f32 %v255, %v348
        %v444 = vadd.f32 %v256, %v362
        %v445 = vadd.f32 %v257, %v376
        %v446 = vadd.f32 %v258, %v390
        %v447 = vadd.f32 %v259, %v404
        %v448 = vadd.f32 %v260, %v418
        %v449 = vadd.f32 %v261, %v432
        %450 = vst [vmem:[#allocation2] sm:$0xff] %v434
        %451 = vst [vmem:[#allocation2 + $0x8] sm:$0xff] %v435
        %452 = vst [vmem:[#allocation2 + $0x10] sm:$0xff] %v436
        %453 = vst [vmem:[#allocation2 + $0x18] sm:$0xff] %v437
        %454 = vst [vmem:[#allocation2 + $0x20] sm:$0xff] %v438
        %455 = vst [vmem:[#allocation2 + $0x28] sm:$0xff] %v439
        %456 = vst [vmem:[#allocation2 + $0x30] sm:$0xff] %v440
        %457 = vst [vmem:[#allocation2 + $0x38] sm:$0xff] %v441
        %458 = vst [vmem:[#allocation2 + $0x40] sm:$0xff] %v442
        %459 = vst [vmem:[#allocation2 + $0x48] sm:$0xff] %v443
        %460 = vst [vmem:[#allocation2 + $0x50] sm:$0xff] %v444
        %461 = vst [vmem:[#allocation2 + $0x58] sm:$0xff] %v445
        %462 = vst [vmem:[#allocation2 + $0x60] sm:$0xff] %v446
        %463 = vst [vmem:[#allocation2 + $0x68] sm:$0xff] %v447
        %464 = vst [vmem:[#allocation2 + $0x70] sm:$0xff] %v448
        %465 = vst [vmem:[#allocation2 + $0x78] sm:$0xff] %v449
        // Predicated region
        $region37: #{celeba_vae_forward.37} parent=31 // pred_check
          %p466 = pneg %p212
        $region38: #{celeba_vae_forward.37} parent=31 // pred_check_branch
          %468 = sbr.rel (%p466) target = $region40
        $region39: #{celeba_vae_forward.37} parent=31 // pred_region
          %v469 = vld [vmem:[#allocation2] sm:$0xff]
          %v470 = vld [vmem:[#allocation2 + $0x8] sm:$0xff]
          %v471 = vld [vmem:[#allocation2 + $0x10] sm:$0xff]
          %v472 = vld [vmem:[#allocation2 + $0x18] sm:$0xff]
          %v473 = vld [vmem:[#allocation2 + $0x20] sm:$0xff]
          %v474 = vld [vmem:[#allocation2 + $0x28] sm:$0xff]
          %v475 = vld [vmem:[#allocation2 + $0x30] sm:$0xff]
          %v476 = vld [vmem:[#allocation2 + $0x38] sm:$0xff]
          %v477 = vld [vmem:[#allocation2 + $0x40] sm:$0xff]
          %v478 = vld [vmem:[#allocation2 + $0x48] sm:$0xff]
          %v479 = vld [vmem:[#allocation2 + $0x50] sm:$0xff]
          %v480 = vld [vmem:[#allocation2 + $0x58] sm:$0xff]
          %v481 = vld [vmem:[#allocation2 + $0x60] sm:$0xff]
          %v482 = vld [vmem:[#allocation2 + $0x68] sm:$0xff]
          %v483 = vld [vmem:[#allocation2 + $0x70] sm:$0xff]
          %v484 = vld [vmem:[#allocation2 + $0x78] sm:$0xff]
          %v485 = vmul.f32 %v469, 0.5
          %v486 = vmul.f32 %v470, 0.5
          %v487 = vmul.f32 %v471, 0.5
          %v488 = vmul.f32 %v472, 0.5
          %v489 = vmul.f32 %v473, 0.5
          %v490 = vmul.f32 %v474, 0.5
          %v491 = vmul.f32 %v475, 0.5
          %v492 = vmul.f32 %v476, 0.5
          %v493 = vmul.f32 %v477, 0.5
          %v494 = vmul.f32 %v478, 0.5
          %v495 = vmul.f32 %v479, 0.5
          %v496 = vmul.f32 %v480, 0.5
          %v497 = vmul.f32 %v481, 0.5
          %v498 = vmul.f32 %v482, 0.5
          %v499 = vmul.f32 %v483, 0.5
          %v500 = vmul.f32 %v484, 0.5
          %v501 = vtanh.pop %v485
          %v502 = vtanh.pop %v486
          %v503 = vtanh.pop %v487
          %v504 = vtanh.pop %v488
          %v505 = vtanh.pop %v489
          %v506 = vtanh.pop %v490
          %v507 = vtanh.pop %v491
          %v508 = vtanh.pop %v492
          %v509 = vtanh.pop %v493
          %v510 = vtanh.pop %v494
          %v511 = vtanh.pop %v495
          %v512 = vtanh.pop %v496
          %v513 = vtanh.pop %v497
          %v514 = vtanh.pop %v498
          %v515 = vtanh.pop %v499
          %v516 = vtanh.pop %v500
          %v517 = vmul.f32 %v501, 0.5
          %v518 = vmul.f32 %v502, 0.5
          %v519 = vmul.f32 %v503, 0.5
          %v520 = vmul.f32 %v504, 0.5
          %v521 = vmul.f32 %v505, 0.5
          %v522 = vmul.f32 %v506, 0.5
          %v523 = vmul.f32 %v507, 0.5
          %v524 = vmul.f32 %v508, 0.5
          %v525 = vmul.f32 %v509, 0.5
          %v526 = vmul.f32 %v510, 0.5
          %v527 = vmul.f32 %v511, 0.5
          %v528 = vmul.f32 %v512, 0.5
          %v529 = vmul.f32 %v513, 0.5
          %v530 = vmul.f32 %v514, 0.5
          %v531 = vmul.f32 %v515, 0.5
          %v532 = vmul.f32 %v516, 0.5
          %v533 = vadd.f32 %v517, 0.5
          %v534 = vadd.f32 %v518, 0.5
          %v535 = vadd.f32 %v519, 0.5
          %v536 = vadd.f32 %v520, 0.5
          %v537 = vadd.f32 %v521, 0.5
          %v538 = vadd.f32 %v522, 0.5
          %v539 = vadd.f32 %v523, 0.5
          %v540 = vadd.f32 %v524, 0.5
          %v541 = vadd.f32 %v525, 0.5
          %v542 = vadd.f32 %v526, 0.5
          %v543 = vadd.f32 %v527, 0.5
          %v544 = vadd.f32 %v528, 0.5
          %v545 = vadd.f32 %v529, 0.5
          %v546 = vadd.f32 %v530, 0.5
          %v547 = vadd.f32 %v531, 0.5
          %v548 = vadd.f32 %v532, 0.5
          %v549 = vpack.c.bf16 %v534, %v533
          %v550 = vpack.c.bf16 %v536, %v535
          %v551 = vpack.c.bf16 %v538, %v537
          %v552 = vpack.c.bf16 %v540, %v539
          %v553 = vpack.c.bf16 %v542, %v541
          %v554 = vpack.c.bf16 %v544, %v543
          %v555 = vpack.c.bf16 %v546, %v545
          %v556 = vpack.c.bf16 %v548, %v547
          %557 = vst [vmem:[%s195] sm:$0xff] %v549
          %558 = vst [vmem:[%s195 + $0x8] sm:$0xff] %v550
          %559 = vst [vmem:[%s195 + $0x10] sm:$0xff] %v551
          %560 = vst [vmem:[%s195 + $0x18] sm:$0xff] %v552
          %561 = vst [vmem:[%s195 + $0x20] sm:$0xff] %v553
          %562 = vst [vmem:[%s195 + $0x28] sm:$0xff] %v554
          %563 = vst [vmem:[%s195 + $0x30] sm:$0xff] %v555
          %564 = vst [vmem:[%s195 + $0x38] sm:$0xff] %v556
        $region40: #{celeba_vae_forward.37} parent=31 // pred_fallthru
          _
        %s565 = sand.u32 %s109, 1
        %s566 = sand.u32 %s109, 1
        %s567 = smul.addr %s566, 64
        %s568 = scalar_lea.vmem [#allocation3], %s567
        // Predicated region
        $region41: #{celeba_vae_forward.37} parent=31 // pred_check
          %p569 = pneg %p119
        $region42: #{celeba_vae_forward.37} parent=31 // pred_check_branch
          %571 = sbr.rel (%p569) target = $region44
        $region43: #{celeba_vae_forward.37} parent=31 // pred_region
          %s572 = smul.u32 8, %s18
          %s573 = smul.addr %s572, 4
          %s574 = scalar_lea.vmem %s3, %s573
          // Predicated region
          $region45: #{celeba_vae_forward.37} parent=43 // pred_check
            _
          $region46: #{celeba_vae_forward.37} parent=43 // pred_check_branch
            %576 = sbr.rel (0) target = $region48
          $region47: #{celeba_vae_forward.37} parent=43 // pred_region
            // Predicated region
            $region49: #{celeba_vae_forward.37} parent=47 // pred_check
              _
            $region50: #{celeba_vae_forward.37} parent=47 // pred_check_branch
              %578 = sbr.rel (0) target = $region52
            $region51: #{celeba_vae_forward.37} parent=47 // pred_region
              loop: start=0, step=1, limit=1
              $region53: #{celeba_vae_forward.37} parent=51 // loop_pre_header
                _
              $region54: #{celeba_vae_forward.37} parent=51 // loop_header
                %s580 = sphi 0, %s584
                %p581 = scmp.ge.s32.totalorder %s580, 1
                %s585 = sphi %s568, %s568
                %s586 = sphi %s574, %s574
              $region55: #{celeba_vae_forward.37} parent=51 // loop_header_branch
                %583 = sbr.rel (%p581) target = $region59
              $region56: #{celeba_vae_forward.37} parent=51 // loop_body
                %v587 = vld [vmem:[%s585] sm:$0xff]
                %588 = vst [vmem:[%s586] sm:$0xff] %v587
                %v589 = vld [vmem:[%s585 + $0x8] sm:$0xff]
                %590 = vst [vmem:[%s586 + $0x8] sm:$0xff] %v589
                %v591 = vld [vmem:[%s585 + $0x10] sm:$0xff]
                %592 = vst [vmem:[%s586 + $0x10] sm:$0xff] %v591
                %v593 = vld [vmem:[%s585 + $0x18] sm:$0xff]
                %594 = vst [vmem:[%s586 + $0x18] sm:$0xff] %v593
                %v595 = vld [vmem:[%s585 + $0x20] sm:$0xff]
                %596 = vst [vmem:[%s586 + $0x40] sm:$0xff] %v595
                %v597 = vld [vmem:[%s585 + $0x28] sm:$0xff]
                %598 = vst [vmem:[%s586 + $0x48] sm:$0xff] %v597
                %v599 = vld [vmem:[%s585 + $0x30] sm:$0xff]
                %600 = vst [vmem:[%s586 + $0x50] sm:$0xff] %v599
                %v601 = vld [vmem:[%s585 + $0x38] sm:$0xff]
                %602 = vst [vmem:[%s586 + $0x58] sm:$0xff] %v601
              $region57: #{celeba_vae_forward.37} parent=51 // loop_footer
                %s584 = sadd.s32 1, %s580
              $region58: #{celeba_vae_forward.37} parent=51 // loop_footer_branch
                %579 = sbr.rel target = $region54
              $region59: #{celeba_vae_forward.37} parent=51 // loop_exit
                _
            $region52: #{celeba_vae_forward.37} parent=47 // pred_fallthru
              _
            // Predicated region
            $region60: #{celeba_vae_forward.37} parent=47 // pred_check
              _
            $region61: #{celeba_vae_forward.37} parent=47 // pred_check_branch
              %604 = sbr.rel target = $region63
            $region62: #{celeba_vae_forward.37} parent=47 // pred_region
              _
            $region63: #{celeba_vae_forward.37} parent=47 // pred_fallthru
              _
          $region48: #{celeba_vae_forward.37} parent=43 // pred_fallthru
            _
          %605 = vnop
        $region44: #{celeba_vae_forward.37} parent=31 // pred_fallthru
          _
      $region32: #{celeba_vae_forward.37} parent=5 // pred_fallthru
        _
      %p606 = scmp.le.s32.totalorder 2, %s9
      // Predicated region
      $region64: #{celeba_vae_forward.37} parent=5 // pred_check
        %p607 = pneg %p606
      $region65: #{celeba_vae_forward.37} parent=5 // pred_check_branch
        %609 = sbr.rel (%p607) target = $region67
      $region66: #{celeba_vae_forward.37} parent=5 // pred_region
        %s610 = ssub.s32 %s9, 2
        // Predicated region
        $region68: #{celeba_vae_forward.37} parent=66 // pred_check
          %p611 = pneg %p125
        $region69: #{celeba_vae_forward.37} parent=66 // pred_check_branch
          %613 = sbr.rel (%p611) target = $region71
        $region70: #{celeba_vae_forward.37} parent=66 // pred_region
          %s614 = sand.u32 %s110, 1
          %s615 = sand.u32 %s110, 1
          %s616 = smul.addr %s615, 64
          %s617 = scalar_lea.vmem [#allocation3], %s616
        $region71: #{celeba_vae_forward.37} parent=66 // pred_fallthru
          _
      $region67: #{celeba_vae_forward.37} parent=5 // pred_fallthru
        _
    $region6: #{celeba_vae_forward.37} parent=1 // loop_footer
      %s13 = sadd.s32 1, %s9
    $region7: #{celeba_vae_forward.37} parent=1 // loop_footer_branch
      %8 = sbr.rel target = $region3
    $region8: #{celeba_vae_forward.37} parent=1 // loop_exit
      _

// kernel: celeba_vae_forward.36
$region0: #{celeba_vae_forward.36}
  #allocation0 [shape = 'u32[]', space=smem, size = 0x4, offset = 0x4, fixed_abs, tag = 'smem constant byte address 0x4 - core index']
  #allocation1 [shape = 'u32[72,128]{1,0:T(1,128)}', space=vmem, size = 0x9000, scoped, tag = 'internal scratch']
  #allocation2 [shape = 'f32[16,1024]{1,0:T(8,128)}', space=vmem, size = 0x10000, scoped, tag = 'scratch operand']
  %s0 = inlined_call_operand.vmem [shape: bf16[16,4], index: 0, kind: input, shape index: {}]
  %s1 = inlined_call_operand.vmem [shape: bf16[4,2048], index: 1, kind: input, shape index: {}]
  %s2 = inlined_call_operand.vmem [shape: f32[16,1], index: 2, kind: input, shape index: {}]
  %s3 = inlined_call_operand.vmem [shape: bf16[16,2048], index: 3, kind: output, shape index: {}]
  %s4 = sld [smem:[#allocation0]]
  $region72: #{celeba_vae_forward.36} parent=0
    _
  %s6 = ssub.s32 1, %s4
  %s7 = scalar_select 0, %s6, %s4
  $region1: #{celeba_vae_forward.36} parent=0
    #allocation3 [shape = 'u8[65536]{0}', space=vmem, size = 0x10000, scoped, tag = 'output window, operand 0']
    loop: start=0, step=1, limit=4
    $region2: #{celeba_vae_forward.36} parent=1 // loop_pre_header
      _
    $region3: #{celeba_vae_forward.36} parent=1 // loop_header
      %s9 = sphi 0, %s13
      %p10 = scmp.ge.s32.totalorder %s9, 4
      %s16 = sphi 0, %s28
      %s17 = sphi 0, %s24
      %s18 = sphi 0, %s16
      %s19 = sphi 0, %s17
      %s20 = sphi 0, %s18
      %s21 = sphi 0, %s19
      %s31 = sphi 0, %s33
      %s34 = sphi 0, %s31
      %s35 = sphi 0, %s34
      %s51 = sphi 0, %s35
      %s59 = sphi 0, %s61
      %s62 = sphi 0, %s59
      %s63 = sphi 0, %s62
      %s79 = sphi 0, %s63
      %s83 = sphi 0, %s83
      %s85 = sphi 0, %s83
      %s86 = sphi 0, %s85
      %s100 = sphi 0, %s86
      %s106 = sphi 0, %s108
      %s109 = sphi 0, %s106
      %s110 = sphi 0, %s109
      %s126 = sphi 0, %s110
    $region4: #{celeba_vae_forward.36} parent=1 // loop_header_branch
      %12 = sbr.rel (%p10) target = $region8
    $region5: #{celeba_vae_forward.36} parent=1 // loop_body
      %s14 = ssub.s32 %s9, 1
      %s15 = ssub.s32 %s9, 2
      %s22 = sadd.s32 1, %s17
      %p23 = scmp.ge.s32.totalorder %s22, 1
      %s24 = scalar_select %p23, 0, %s22
      %s25 = sadd.s32 1, %s16
      %s26 = scalar_select %p23, %s25, %s16
      %p27 = scmp.ge.s32.totalorder %s26, 2
      %s28 = scalar_select %p27, 0, %s26
      %s29 = ssub.s32 %s17, %s24
      %p30 = scmp.eq.s32.totalorder %s29, 0
      %s32 = sadd.s32 %s31, 1
      %s33 = scalar_select %p30, %s31, %s32
      %p36 = pneg %p30
      %p37 = scmp.eq.s32.totalorder %s9, 1
      %p38 = por %p36, %p37
      %p39 = scmp.ne.s32.totalorder %s31, %s34
      %p40 = scmp.eq.s32.totalorder %s9, 0
      %p41 = por %p39, %p40
      %p42 = scmp.ne.s32.totalorder %s31, %s34
      %p43 = scmp.eq.s32.totalorder %s14, 1
      %p44 = por %p42, %p43
      %p45 = scmp.ne.s32.totalorder %s34, %s35
      %p46 = scmp.eq.s32.totalorder %s14, 0
      %p47 = por %p45, %p46
      %p48 = scmp.ne.s32.totalorder %s34, %s35
      %p49 = scmp.eq.s32.totalorder %s15, 1
      %p50 = por %p48, %p49
      %p52 = scmp.ne.s32.totalorder %s35, %s51
      %p53 = scmp.eq.s32.totalorder %s15, 0
      %p54 = por %p52, %p53
      %s55 = ssub.s32 %s17, %s24
      %s56 = ssub.s32 %s16, %s28
      %s57 = sor.u32 %s55, %s56
      %p58 = scmp.eq.s32.totalorder %s57, 0
      %s60 = sadd.s32 %s59, 1
      %s61 = scalar_select %p58, %s59, %s60
      %p64 = pneg %p58
      %p65 = scmp.eq.s32.totalorder %s9, 1
      %p66 = por %p64, %p65
      %p67 = scmp.ne.s32.totalorder %s59, %s62
      %p68 = scmp.eq.s32.totalorder %s9, 0
      %p69 = por %p67, %p68
      %p70 = scmp.ne.s32.totalorder %s59, %s62
      %p71 = scmp.eq.s32.totalorder %s14, 1
      %p72 = por %p70, %p71
      %p73 = scmp.ne.s32.totalorder %s62, %s63
      %p74 = scmp.eq.s32.totalorder %s14, 0
      %p75 = por %p73, %p74
      %p76 = scmp.ne.s32.totalorder %s62, %s63
      %p77 = scmp.eq.s32.totalorder %s15, 1
      %p78 = por %p76, %p77
      %p80 = scmp.ne.s32.totalorder %s63, %s79
      %p81 = scmp.eq.s32.totalorder %s15, 0
      %p82 = por %p80, %p81
      %s84 = sadd.s32 %s83, 1
      %p87 = scmp.eq.s32.totalorder %s9, 1
      %p88 = scmp.ne.s32.totalorder %s83, %s85
      %p89 = scmp.eq.s32.totalorder %s9, 0
      %p90 = por %p88, %p89
      %p91 = scmp.ne.s32.totalorder %s83, %s85
      %p92 = scmp.eq.s32.totalorder %s14, 1
      %p93 = por %p91, %p92
      %p94 = scmp.ne.s32.totalorder %s85, %s86
      %p95 = scmp.eq.s32.totalorder %s14, 0
      %p96 = por %p94, %p95
      %p97 = scmp.ne.s32.totalorder %s85, %s86
      %p98 = scmp.eq.s32.totalorder %s15, 1
      %p99 = por %p97, %p98
      %p101 = scmp.ne.s32.totalorder %s86, %s100
      %p102 = scmp.eq.s32.totalorder %s15, 0
      %p103 = por %p101, %p102
      %s104 = ssub.s32 %s16, %s28
      %p105 = scmp.eq.s32.totalorder %s104, 0
      %s107 = sadd.s32 %s106, 1
      %s108 = scalar_select %p105, %s106, %s107
      %p111 = pneg %p105
      %p112 = scmp.eq.s32.totalorder %s9, 1
      %p113 = por %p111, %p112
      %p114 = scmp.ne.s32.totalorder %s106, %s109
      %p115 = scmp.eq.s32.totalorder %s9, 0
      %p116 = por %p114, %p115
      %p117 = scmp.ne.s32.totalorder %s106, %s109
      %p118 = scmp.eq.s32.totalorder %s14, 1
      %p119 = por %p117, %p118
      %p120 = scmp.ne.s32.totalorder %s109, %s110
      %p121 = scmp.eq.s32.totalorder %s14, 0
      %p122 = por %p120, %p121
      %p123 = scmp.ne.s32.totalorder %s109, %s110
      %p124 = scmp.eq.s32.totalorder %s15, 1
      %p125 = por %p123, %p124
      %p127 = scmp.ne.s32.totalorder %s110, %s126
      %p128 = scmp.eq.s32.totalorder %s15, 0
      %p129 = por %p127, %p128
      %p130 = scmp.le.s32.totalorder 1, %s9
      %p131 = scmp.lt.s32.totalorder %s9, 3
      %p132 = pnand %p130, %p131
      %p133 = pneg %p132
      // Predicated region
      $region9: #{celeba_vae_forward.36} parent=5 // pred_check
        _
      $region10: #{celeba_vae_forward.36} parent=5 // pred_check_branch
        %135 = sbr.rel (%p132) target = $region12
      $region11: #{celeba_vae_forward.36} parent=5 // pred_region
        %s136 = ssub.s32 %s9, 1
        // Predicated region
        $region13: #{celeba_vae_forward.36} parent=11 // pred_check
          %p137 = pneg %p47
        $region14: #{celeba_vae_forward.36} parent=11 // pred_check_branch
          %139 = sbr.rel (%p137) target = $region16
        $region15: #{celeba_vae_forward.36} parent=11 // pred_region
          %p140 = scmp.lt.s32.totalorder %s19, 0
          %s141 = scalar_select %p140, %s19, 0
          %s142 = smul.addr %s141, 4
          %s143 = scalar_lea.vmem %s0, %s142
        $region16: #{celeba_vae_forward.36} parent=11 // pred_fallthru
          _
        // Predicated region
        $region17: #{celeba_vae_forward.36} parent=11 // pred_check
          %p144 = pneg %p96
        $region18: #{celeba_vae_forward.36} parent=11 // pred_check_branch
          %146 = sbr.rel (%p144) target = $region20
        $region19: #{celeba_vae_forward.36} parent=11 // pred_region
          _
        $region20: #{celeba_vae_forward.36} parent=11 // pred_fallthru
          _
      $region12: #{celeba_vae_forward.36} parent=5 // pred_fallthru
        _
      %p147 = scmp.lt.s32.totalorder %s9, 2
      // Predicated region
      $region21: #{celeba_vae_forward.36} parent=5 // pred_check
        %p148 = pneg %p147
      $region22: #{celeba_vae_forward.36} parent=5 // pred_check_branch
        %150 = sbr.rel (%p148) target = $region24
      $region23: #{celeba_vae_forward.36} parent=5 // pred_region
        // Predicated region
        $region25: #{celeba_vae_forward.36} parent=23 // pred_check
          %p151 = pneg %p69
        $region26: #{celeba_vae_forward.36} parent=23 // pred_check_branch
          %153 = sbr.rel (%p151) target = $region28
        $region27: #{celeba_vae_forward.36} parent=23 // pred_region
          %s154 = smul.u32 8, %s16
          %p155 = scmp.lt.s32.totalorder %s17, 0
          %s156 = scalar_select %p155, %s17, 0
          %p157 = scmp.lt.s32.totalorder %s154, 15
          %s158 = scalar_select %p157, %s154, 15
          %s159 = smul.addr %s156, 16
          %s160 = sadd.s32 %s158, %s159
          %s161 = smul.addr %s160, 2
          %s162 = scalar_lea.vmem %s1, %s161
          %s163 = smul.u32 8, %s16
        $region28: #{celeba_vae_forward.36} parent=23 // pred_fallthru
          _
      $region24: #{celeba_vae_forward.36} parent=5 // pred_fallthru
        _
      %p164 = scmp.le.s32.totalorder 1, %s9
      %p165 = scmp.lt.s32.totalorder %s9, 3
      %p166 = pnand %p164, %p165
      %p167 = pneg %p166
      // Predicated region
      $region29: #{celeba_vae_forward.36} parent=5 // pred_check
        _
      $region30: #{celeba_vae_forward.36} parent=5 // pred_check_branch
        %169 = sbr.rel (%p166) target = $region32
      $region31: #{celeba_vae_forward.36} parent=5 // pred_region
        %s170 = ssub.s32 %s9, 1
        %p171 = scmp.lt.s32.totalorder %s19, 0
        %s172 = scalar_select %p171, %s19, 0
        %s173 = smul.addr %s172, 4
        %s174 = scalar_lea.vmem %s0, %s173
        %p175 = pneg %p47
        %p176 = pneg %p44
        %s177 = smul.u32 8, %s18
        %p178 = scmp.lt.s32.totalorder %s19, 0
        %s179 = scalar_select %p178, %s19, 0
        %p180 = scmp.lt.s32.totalorder %s177, 15
        %s181 = scalar_select %p180, %s177, 15
        %s182 = smul.addr %s179, 16
        %s183 = sadd.s32 %s181, %s182
        %s184 = smul.addr %s183, 2
        %s185 = scalar_lea.vmem %s1, %s184
        %p186 = pneg %p75
        %p187 = pneg %p72
        %p188 = pneg %p96
        %p189 = pneg %p93
        %p190 = pneg %p122
        %p191 = pneg %p119
        %s192 = sand.u32 %s109, 1
        %s193 = sand.u32 %s109, 1
        %s194 = smul.addr %s193, 64
        %s195 = scalar_lea.vmem [#allocation3], %s194
        %p196 = scmp.lt.s32.totalorder %s19, 0
        %s197 = scalar_select %p196, %s19, 0
        %s198 = smul.addr %s197, 4
        %s199 = scalar_lea.vmem %s0, %s198
        %s200 = smul.u32 8, %s18
        %p201 = scmp.lt.s32.totalorder %s19, 0
        %s202 = scalar_select %p201, %s19, 0
        %p203 = scmp.lt.s32.totalorder %s200, 15
        %s204 = scalar_select %p203, %s200, 15
        %s205 = smul.addr %s202, 16
        %s206 = sadd.s32 %s204, %s205
        %s207 = smul.addr %s206, 2
        %s208 = scalar_lea.vmem %s1, %s207
        %s209 = smul.u32 8, %s18
        %s210 = smul.u32 8, %s18
        %p212 = scmp.eq.s32.totalorder %s19, 0
        // Predicated region
        $region33: #{celeba_vae_forward.36} parent=31 // pred_check
          %p213 = pneg %p212
        $region34: #{celeba_vae_forward.36} parent=31 // pred_check_branch
          %215 = sbr.rel (%p213) target = $region36
        $region35: #{celeba_vae_forward.36} parent=31 // pred_region
          %v216 = vld [vmem:[%s2] sm:$0xff]
          %v217 = vld [vmem:[%s2 + $0x8] sm:$0xff]
          %219 = vset.pattern.permute.xlu0 0
          %220 = vperm.xlu0 %219, %v216
          %v221 = vpop.permute.xlu0 %220
          %224 = vset.pattern.permute.xlu0 0
          %225 = vperm.xlu0 %224, %v217
          %v226 = vpop.permute.xlu0 %225
          %v228 = vadd.f32 %v221, 0.0
          %v229 = vadd.f32 %v226, 0.0
          %230 = vst [vmem:[#allocation2] sm:$0xff] %v228
          %231 = vst [vmem:[#allocation2 + $0x8] sm:$0xff] %v228
          %232 = vst [vmem:[#allocation2 + $0x10] sm:$0xff] %v228
          %233 = vst [vmem:[#allocation2 + $0x18] sm:$0xff] %v228
          %234 = vst [vmem:[#allocation2 + $0x20] sm:$0xff] %v228
          %235 = vst [vmem:[#allocation2 + $0x28] sm:$0xff] %v228
          %236 = vst [vmem:[#allocation2 + $0x30] sm:$0xff] %v228
          %237 = vst [vmem:[#allocation2 + $0x38] sm:$0xff] %v228
          %238 = vst [vmem:[#allocation2 + $0x40] sm:$0xff] %v229
          %239 = vst [vmem:[#allocation2 + $0x48] sm:$0xff] %v229
          %240 = vst [vmem:[#allocation2 + $0x50] sm:$0xff] %v229
          %241 = vst [vmem:[#allocation2 + $0x58] sm:$0xff] %v229
          %242 = vst [vmem:[#allocation2 + $0x60] sm:$0xff] %v229
          %243 = vst [vmem:[#allocation2 + $0x68] sm:$0xff] %v229
          %244 = vst [vmem:[#allocation2 + $0x70] sm:$0xff] %v229
          %245 = vst [vmem:[#allocation2 + $0x78] sm:$0xff] %v229
        $region36: #{celeba_vae_forward.36} parent=31 // pred_fallthru
          _
        %v246 = vld [vmem:[#allocation2] sm:$0xff]
        %v247 = vld [vmem:[#allocation2 + $0x8] sm:$0xff]
        %v248 = vld [vmem:[#allocation2 + $0x10] sm:$0xff]
        %v249 = vld [vmem:[#allocation2 + $0x18] sm:$0xff]
        %v250 = vld [vmem:[#allocation2 + $0x20] sm:$0xff]
        %v251 = vld [vmem:[#allocation2 + $0x28] sm:$0xff]
        %v252 = vld [vmem:[#allocation2 + $0x30] sm:$0xff]
        %v253 = vld [vmem:[#allocation2 + $0x38] sm:$0xff]
        %v254 = vld [vmem:[#allocation2 + $0x40] sm:$0xff]
        %v255 = vld [vmem:[#allocation2 + $0x48] sm:$0xff]
        %v256 = vld [vmem:[#allocation2 + $0x50] sm:$0xff]
        %v257 = vld [vmem:[#allocation2 + $0x58] sm:$0xff]
        %v258 = vld [vmem:[#allocation2 + $0x60] sm:$0xff]
        %v259 = vld [vmem:[#allocation2 + $0x68] sm:$0xff]
        %v260 = vld [vmem:[#allocation2 + $0x70] sm:$0xff]
        %v261 = vld [vmem:[#allocation2 + $0x78] sm:$0xff]
        %v262 = vld [vmem:[%s199] sm:$0xf]
        %v263 = vld [vmem:[%s199 + $0x4] sm:$0xf]
        %v264 = vld [vmem:[%s208] sm:$0xff]
        %v265 = vld [vmem:[%s208 + $0x8] sm:$0xff]
        %v268 = vunpack.c.l.b16 %v262
        %v269 = vunpack.c.l.b16 %v263
        %v270 = vpack.c.b16 %v269, %v268
        %272 = vst [vmem:[#allocation1] ss:$4 sm:$0xff] %v264
        %s274 = scalar_lea.vmem [#allocation1], 32
        %275 = vst [vmem:[%s274] ss:$4 sm:$0xff] %v265
        %v276 = vld.sshfl [vmem:[#allocation1] sm:$0xff pattern:$0x73625140]
        %v277 = vld.sshfl [vmem:[#allocation1 + $0x8] sm:$0xff pattern:$0x73625140]
        %v278 = vld.sshfl [vmem:[#allocation1 + $0x10] sm:$0xff pattern:$0x73625140]
        %v279 = vld.sshfl [vmem:[#allocation1 + $0x18] sm:$0xff pattern:$0x73625140]
        %v280 = vld.sshfl [vmem:[#allocation1 + $0x20] sm:$0xff pattern:$0x73625140]
        %v281 = vld.sshfl [vmem:[#allocation1 + $0x28] sm:$0xff pattern:$0x73625140]
        %v282 = vld.sshfl [vmem:[#allocation1 + $0x30] sm:$0xff pattern:$0x73625140]
        %v283 = vld.sshfl [vmem:[#allocation1 + $0x38] sm:$0xff pattern:$0x73625140]
        %vm284 = vcmask 31744
        %v286 = vsel %vm284, %v270, 0
        %vm288 = vcmask 1041408
        %v289 = vsel %vm288, %v276, 0
        %v291 = vsel %vm288, %v277, 0
        %v293 = vsel %vm288, %v278, 0
        %v295 = vsel %vm288, %v279, 0
        %v297 = vsel %vm288, %v280, 0
        %v299 = vsel %vm288, %v281, 0
        %v301 = vsel %vm288, %v282, 0
        %v303 = vsel %vm288, %v283, 0
        %305 = vmatpush.bf16.msra.mxu0 0
        %306 = vmatpush.bf16.msra.mxu0 0
        %307 = vmatpush.bf16.msra.mxu0 0
        %308 = vmatpush.bf16.msra.mxu0 0
        %309 = vmatpush.bf16.msra.mxu0 0
        %310 = vmatpush.bf16.msra.mxu0 0
        %311 = vmatpush.bf16.msra.mxu0 0
        %312 = vmatpush.bf16.msra.mxu0 %v289
        %313 = vmatmul.bf16.gmra.mxu0 %v286
        %v314 = vpop.f32.mrf.mxu0
        %v315 = vadd.f32 0.0, %v314
        %v316 = vpop.f32.mrf.mxu0
        %v317 = vadd.f32 0.0, %v316
        %318 = vdwg.mxu0
        %319 = vmatpush.bf16.msra.mxu0 0
        %320 = vmatpush.bf16.msra.mxu0 0
        %321 = vmatpush.bf16.msra.mxu0 0
        %322 = vmatpush.bf16.msra.mxu0 0
        %323 = vmatpush.bf16.msra.mxu0 0
        %324 = vmatpush.bf16.msra.mxu0 0
        %325 = vmatpush.bf16.msra.mxu0 0
        %326 = vmatpush.bf16.msra.mxu0 %v291
        %327 = vmatmul.bf16.gmra.mxu0 %v286
        %v328 = vpop.f32.mrf.mxu0
        %v329 = vadd.f32 0.0, %v328
        %v330 = vpop.f32.mrf.mxu0
        %v331 = vadd.f32 0.0, %v330
        %332 = vdwg.mxu0
        %333 = vmatpush.bf16.msra.mxu0 0
        %334 = vmatpush.bf16.msra.mxu0 0
        %335 = vmatpush.bf16.msra.mxu0 0
        %336 = vmatpush.bf16.msra.mxu0 0
        %337 = vmatpush.bf16.msra.mxu0 0
        %338 = vmatpush.bf16.msra.mxu0 0
        %339 = vmatpush.bf16.msra.mxu0 0
        %340 = vmatpush.bf16.msra.mxu0 %v293
        %341 = vmatmul.bf16.gmra.mxu0 %v286
        %v342 = vpop.f32.mrf.mxu0
        %v343 = vadd.f32 0.0, %v342
        %v344 = vpop.f32.mrf.mxu0
        %v345 = vadd.f32 0.0, %v344
        %346 = vdwg.mxu0
        %347 = vmatpush.bf16.msra.mxu0 0
        %348 = vmatpush.bf16.msra.mxu0 0
        %349 = vmatpush.bf16.msra.mxu0 0
        %350 = vmatpush.bf16.msra.mxu0 0
        %351 = vmatpush.bf16.msra.mxu0 0
        %352 = vmatpush.bf16.msra.mxu0 0
        %353 = vmatpush.bf16.msra.mxu0 0
        %354 = vmatpush.bf16.msra.mxu0 %v295
        %355 = vmatmul.bf16.gmra.mxu0 %v286
        %v356 = vpop.f32.mrf.mxu0
        %v357 = vadd.f32 0.0, %v356
        %v358 = vpop.f32.mrf.mxu0
        %v359 = vadd.f32 0.0, %v358
        %360 = vdwg.mxu0
        %361 = vmatpush.bf16.msra.mxu0 0
        %362 = vmatpush.bf16.msra.mxu0 0
        %363 = vmatpush.bf16.msra.mxu0 0
        %364 = vmatpush.bf16.msra.mxu0 0
        %365 = vmatpush.bf16.msra.mxu0 0
        %366 = vmatpush.bf16.msra.mxu0 0
        %367 = vmatpush.bf16.msra.mxu0 0
        %368 = vmatpush.bf16.msra.mxu0 %v297
        %369 = vmatmul.bf16.gmra.mxu0 %v286
        %v370 = vpop.f32.mrf.mxu0
        %v371 = vadd.f32 0.0, %v370
        %v372 = vpop.f32.mrf.mxu0
        %v373 = vadd.f32 0.0, %v372
        %374 = vdwg.mxu0
        %375 = vmatpush.bf16.msra.mxu0 0
        %376 = vmatpush.bf16.msra.mxu0 0
        %377 = vmatpush.bf16.msra.mxu0 0
        %378 = vmatpush.bf16.msra.mxu0 0
        %379 = vmatpush.bf16.msra.mxu0 0
        %380 = vmatpush.bf16.msra.mxu0 0
        %381 = vmatpush.bf16.msra.mxu0 0
        %382 = vmatpush.bf16.msra.mxu0 %v299
        %383 = vmatmul.bf16.gmra.mxu0 %v286
        %v384 = vpop.f32.mrf.mxu0
        %v385 = vadd.f32 0.0, %v384
        %v386 = vpop.f32.mrf.mxu0
        %v387 = vadd.f32 0.0, %v386
        %388 = vdwg.mxu0
        %389 = vmatpush.bf16.msra.mxu0 0
        %390 = vmatpush.bf16.msra.mxu0 0
        %391 = vmatpush.bf16.msra.mxu0 0
        %392 = vmatpush.bf16.msra.mxu0 0
        %393 = vmatpush.bf16.msra.mxu0 0
        %394 = vmatpush.bf16.msra.mxu0 0
        %395 = vmatpush.bf16.msra.mxu0 0
        %396 = vmatpush.bf16.msra.mxu0 %v301
        %397 = vmatmul.bf16.gmra.mxu0 %v286
        %v398 = vpop.f32.mrf.mxu0
        %v399 = vadd.f32 0.0, %v398
        %v400 = vpop.f32.mrf.mxu0
        %v401 = vadd.f32 0.0, %v400
        %402 = vdwg.mxu0
        %403 = vmatpush.bf16.msra.mxu0 0
        %404 = vmatpush.bf16.msra.mxu0 0
        %405 = vmatpush.bf16.msra.mxu0 0
        %406 = vmatpush.bf16.msra.mxu0 0
        %407 = vmatpush.bf16.msra.mxu0 0
        %408 = vmatpush.bf16.msra.mxu0 0
        %409 = vmatpush.bf16.msra.mxu0 0
        %410 = vmatpush.bf16.msra.mxu0 %v303
        %411 = vmatmul.bf16.gmra.mxu0 %v286
        %v412 = vpop.f32.mrf.mxu0
        %v413 = vadd.f32 0.0, %v412
        %v414 = vpop.f32.mrf.mxu0
        %v415 = vadd.f32 0.0, %v414
        %416 = vdwg.mxu0
        %v417 = vadd.f32 %v246, %v315
        %v418 = vadd.f32 %v247, %v329
        %v419 = vadd.f32 %v248, %v343
        %v420 = vadd.f32 %v249, %v357
        %v421 = vadd.f32 %v250, %v371
        %v422 = vadd.f32 %v251, %v385
        %v423 = vadd.f32 %v252, %v399
        %v424 = vadd.f32 %v253, %v413
        %v425 = vadd.f32 %v254, %v317
        %v426 = vadd.f32 %v255, %v331
        %v427 = vadd.f32 %v256, %v345
        %v428 = vadd.f32 %v257, %v359
        %v429 = vadd.f32 %v258, %v373
        %v430 = vadd.f32 %v259, %v387
        %v431 = vadd.f32 %v260, %v401
        %v432 = vadd.f32 %v261, %v415
        %433 = vst [vmem:[#allocation2] sm:$0xff] %v417
        %434 = vst [vmem:[#allocation2 + $0x8] sm:$0xff] %v418
        %435 = vst [vmem:[#allocation2 + $0x10] sm:$0xff] %v419
        %436 = vst [vmem:[#allocation2 + $0x18] sm:$0xff] %v420
        %437 = vst [vmem:[#allocation2 + $0x20] sm:$0xff] %v421
        %438 = vst [vmem:[#allocation2 + $0x28] sm:$0xff] %v422
        %439 = vst [vmem:[#allocation2 + $0x30] sm:$0xff] %v423
        %440 = vst [vmem:[#allocation2 + $0x38] sm:$0xff] %v424
        %441 = vst [vmem:[#allocation2 + $0x40] sm:$0xff] %v425
        %442 = vst [vmem:[#allocation2 + $0x48] sm:$0xff] %v426
        %443 = vst [vmem:[#allocation2 + $0x50] sm:$0xff] %v427
        %444 = vst [vmem:[#allocation2 + $0x58] sm:$0xff] %v428
        %445 = vst [vmem:[#allocation2 + $0x60] sm:$0xff] %v429
        %446 = vst [vmem:[#allocation2 + $0x68] sm:$0xff] %v430
        %447 = vst [vmem:[#allocation2 + $0x70] sm:$0xff] %v431
        %448 = vst [vmem:[#allocation2 + $0x78] sm:$0xff] %v432
        // Predicated region
        $region37: #{celeba_vae_forward.36} parent=31 // pred_check
          %p449 = pneg %p212
        $region38: #{celeba_vae_forward.36} parent=31 // pred_check_branch
          %451 = sbr.rel (%p449) target = $region40
        $region39: #{celeba_vae_forward.36} parent=31 // pred_region
          %v452 = vld [vmem:[#allocation2] sm:$0xff]
          %v453 = vld [vmem:[#allocation2 + $0x8] sm:$0xff]
          %v454 = vld [vmem:[#allocation2 + $0x10] sm:$0xff]
          %v455 = vld [vmem:[#allocation2 + $0x18] sm:$0xff]
          %v456 = vld [vmem:[#allocation2 + $0x20] sm:$0xff]
          %v457 = vld [vmem:[#allocation2 + $0x28] sm:$0xff]
          %v458 = vld [vmem:[#allocation2 + $0x30] sm:$0xff]
          %v459 = vld [vmem:[#allocation2 + $0x38] sm:$0xff]
          %v460 = vld [vmem:[#allocation2 + $0x40] sm:$0xff]
          %v461 = vld [vmem:[#allocation2 + $0x48] sm:$0xff]
          %v462 = vld [vmem:[#allocation2 + $0x50] sm:$0xff]
          %v463 = vld [vmem:[#allocation2 + $0x58] sm:$0xff]
          %v464 = vld [vmem:[#allocation2 + $0x60] sm:$0xff]
          %v465 = vld [vmem:[#allocation2 + $0x68] sm:$0xff]
          %v466 = vld [vmem:[#allocation2 + $0x70] sm:$0xff]
          %v467 = vld [vmem:[#allocation2 + $0x78] sm:$0xff]
          %v468 = vmul.f32 %v452, 0.5
          %v469 = vmul.f32 %v453, 0.5
          %v470 = vmul.f32 %v454, 0.5
          %v471 = vmul.f32 %v455, 0.5
          %v472 = vmul.f32 %v456, 0.5
          %v473 = vmul.f32 %v457, 0.5
          %v474 = vmul.f32 %v458, 0.5
          %v475 = vmul.f32 %v459, 0.5
          %v476 = vmul.f32 %v460, 0.5
          %v477 = vmul.f32 %v461, 0.5
          %v478 = vmul.f32 %v462, 0.5
          %v479 = vmul.f32 %v463, 0.5
          %v480 = vmul.f32 %v464, 0.5
          %v481 = vmul.f32 %v465, 0.5
          %v482 = vmul.f32 %v466, 0.5
          %v483 = vmul.f32 %v467, 0.5
          %v484 = vtanh.pop %v468
          %v485 = vtanh.pop %v469
          %v486 = vtanh.pop %v470
          %v487 = vtanh.pop %v471
          %v488 = vtanh.pop %v472
          %v489 = vtanh.pop %v473
          %v490 = vtanh.pop %v474
          %v491 = vtanh.pop %v475
          %v492 = vtanh.pop %v476
          %v493 = vtanh.pop %v477
          %v494 = vtanh.pop %v478
          %v495 = vtanh.pop %v479
          %v496 = vtanh.pop %v480
          %v497 = vtanh.pop %v481
          %v498 = vtanh.pop %v482
          %v499 = vtanh.pop %v483
          %v500 = vmul.f32 %v484, 0.5
          %v501 = vmul.f32 %v485, 0.5
          %v502 = vmul.f32 %v486, 0.5
          %v503 = vmul.f32 %v487, 0.5
          %v504 = vmul.f32 %v488, 0.5
          %v505 = vmul.f32 %v489, 0.5
          %v506 = vmul.f32 %v490, 0.5
          %v507 = vmul.f32 %v491, 0.5
          %v508 = vmul.f32 %v492, 0.5
          %v509 = vmul.f32 %v493, 0.5
          %v510 = vmul.f32 %v494, 0.5
          %v511 = vmul.f32 %v495, 0.5
          %v512 = vmul.f32 %v496, 0.5
          %v513 = vmul.f32 %v497, 0.5
          %v514 = vmul.f32 %v498, 0.5
          %v515 = vmul.f32 %v499, 0.5
          %v516 = vadd.f32 %v500, 0.5
          %v517 = vadd.f32 %v501, 0.5
          %v518 = vadd.f32 %v502, 0.5
          %v519 = vadd.f32 %v503, 0.5
          %v520 = vadd.f32 %v504, 0.5
          %v521 = vadd.f32 %v505, 0.5
          %v522 = vadd.f32 %v506, 0.5
          %v523 = vadd.f32 %v507, 0.5
          %v524 = vadd.f32 %v508, 0.5
          %v525 = vadd.f32 %v509, 0.5
          %v526 = vadd.f32 %v510, 0.5
          %v527 = vadd.f32 %v511, 0.5
          %v528 = vadd.f32 %v512, 0.5
          %v529 = vadd.f32 %v513, 0.5
          %v530 = vadd.f32 %v514, 0.5
          %v531 = vadd.f32 %v515, 0.5
          %v532 = vpack.c.bf16 %v517, %v516
          %v533 = vpack.c.bf16 %v519, %v518
          %v534 = vpack.c.bf16 %v521, %v520
          %v535 = vpack.c.bf16 %v523, %v522
          %v536 = vpack.c.bf16 %v525, %v524
          %v537 = vpack.c.bf16 %v527, %v526
          %v538 = vpack.c.bf16 %v529, %v528
          %v539 = vpack.c.bf16 %v531, %v530
          %540 = vst [vmem:[%s195] sm:$0xff] %v532
          %541 = vst [vmem:[%s195 + $0x8] sm:$0xff] %v533
          %542 = vst [vmem:[%s195 + $0x10] sm:$0xff] %v534
          %543 = vst [vmem:[%s195 + $0x18] sm:$0xff] %v535
          %544 = vst [vmem:[%s195 + $0x20] sm:$0xff] %v536
          %545 = vst [vmem:[%s195 + $0x28] sm:$0xff] %v537
          %546 = vst [vmem:[%s195 + $0x30] sm:$0xff] %v538
          %547 = vst [vmem:[%s195 + $0x38] sm:$0xff] %v539
        $region40: #{celeba_vae_forward.36} parent=31 // pred_fallthru
          _
        %s548 = sand.u32 %s109, 1
        %s549 = sand.u32 %s109, 1
        %s550 = smul.addr %s549, 64
        %s551 = scalar_lea.vmem [#allocation3], %s550
        // Predicated region
        $region41: #{celeba_vae_forward.36} parent=31 // pred_check
          %p552 = pneg %p119
        $region42: #{celeba_vae_forward.36} parent=31 // pred_check_branch
          %554 = sbr.rel (%p552) target = $region44
        $region43: #{celeba_vae_forward.36} parent=31 // pred_region
          %s555 = smul.u32 8, %s18
          %s556 = smul.addr %s555, 4
          %s557 = scalar_lea.vmem %s3, %s556
          // Predicated region
          $region45: #{celeba_vae_forward.36} parent=43 // pred_check
            _
          $region46: #{celeba_vae_forward.36} parent=43 // pred_check_branch
            %559 = sbr.rel (0) target = $region48
          $region47: #{celeba_vae_forward.36} parent=43 // pred_region
            // Predicated region
            $region49: #{celeba_vae_forward.36} parent=47 // pred_check
              _
            $region50: #{celeba_vae_forward.36} parent=47 // pred_check_branch
              %561 = sbr.rel (0) target = $region52
            $region51: #{celeba_vae_forward.36} parent=47 // pred_region
              loop: start=0, step=1, limit=1
              $region53: #{celeba_vae_forward.36} parent=51 // loop_pre_header
                _
              $region54: #{celeba_vae_forward.36} parent=51 // loop_header
                %s563 = sphi 0, %s567
                %p564 = scmp.ge.s32.totalorder %s563, 1
                %s568 = sphi %s551, %s551
                %s569 = sphi %s557, %s557
              $region55: #{celeba_vae_forward.36} parent=51 // loop_header_branch
                %566 = sbr.rel (%p564) target = $region59
              $region56: #{celeba_vae_forward.36} parent=51 // loop_body
                %v570 = vld [vmem:[%s568] sm:$0xff]
                %571 = vst [vmem:[%s569] sm:$0xff] %v570
                %v572 = vld [vmem:[%s568 + $0x8] sm:$0xff]
                %573 = vst [vmem:[%s569 + $0x8] sm:$0xff] %v572
                %v574 = vld [vmem:[%s568 + $0x10] sm:$0xff]
                %575 = vst [vmem:[%s569 + $0x10] sm:$0xff] %v574
                %v576 = vld [vmem:[%s568 + $0x18] sm:$0xff]
                %577 = vst [vmem:[%s569 + $0x18] sm:$0xff] %v576
                %v578 = vld [vmem:[%s568 + $0x20] sm:$0xff]
                %579 = vst [vmem:[%s569 + $0x40] sm:$0xff] %v578
                %v580 = vld [vmem:[%s568 + $0x28] sm:$0xff]
                %581 = vst [vmem:[%s569 + $0x48] sm:$0xff] %v580
                %v582 = vld [vmem:[%s568 + $0x30] sm:$0xff]
                %583 = vst [vmem:[%s569 + $0x50] sm:$0xff] %v582
                %v584 = vld [vmem:[%s568 + $0x38] sm:$0xff]
                %585 = vst [vmem:[%s569 + $0x58] sm:$0xff] %v584
              $region57: #{celeba_vae_forward.36} parent=51 // loop_footer
                %s567 = sadd.s32 1, %s563
              $region58: #{celeba_vae_forward.36} parent=51 // loop_footer_branch
                %562 = sbr.rel target = $region54
              $region59: #{celeba_vae_forward.36} parent=51 // loop_exit
                _
            $region52: #{celeba_vae_forward.36} parent=47 // pred_fallthru
              _
            // Predicated region
            $region60: #{celeba_vae_forward.36} parent=47 // pred_check
              _
            $region61: #{celeba_vae_forward.36} parent=47 // pred_check_branch
              %587 = sbr.rel target = $region63
            $region62: #{celeba_vae_forward.36} parent=47 // pred_region
              _
            $region63: #{celeba_vae_forward.36} parent=47 // pred_fallthru
              _
          $region48: #{celeba_vae_forward.36} parent=43 // pred_fallthru
            _
          %588 = vnop
        $region44: #{celeba_vae_forward.36} parent=31 // pred_fallthru
          _
      $region32: #{celeba_vae_forward.36} parent=5 // pred_fallthru
        _
      %p589 = scmp.le.s32.totalorder 2, %s9
      // Predicated region
      $region64: #{celeba_vae_forward.36} parent=5 // pred_check
        %p590 = pneg %p589
      $region65: #{celeba_vae_forward.36} parent=5 // pred_check_branch
        %592 = sbr.rel (%p590) target = $region67
      $region66: #{celeba_vae_forward.36} parent=5 // pred_region
        %s593 = ssub.s32 %s9, 2
        // Predicated region
        $region68: #{celeba_vae_forward.36} parent=66 // pred_check
          %p594 = pneg %p125
        $region69: #{celeba_vae_forward.36} parent=66 // pred_check_branch
          %596 = sbr.rel (%p594) target = $region71
        $region70: #{celeba_vae_forward.36} parent=66 // pred_region
          %s597 = sand.u32 %s110, 1
          %s598 = sand.u32 %s110, 1
          %s599 = smul.addr %s598, 64
          %s600 = scalar_lea.vmem [#allocation3], %s599
        $region71: #{celeba_vae_forward.36} parent=66 // pred_fallthru
          _
      $region67: #{celeba_vae_forward.36} parent=5 // pred_fallthru
        _
    $region6: #{celeba_vae_forward.36} parent=1 // loop_footer
      %s13 = sadd.s32 1, %s9
    $region7: #{celeba_vae_forward.36} parent=1 // loop_footer_branch
      %8 = sbr.rel target = $region3
    $region8: #{celeba_vae_forward.36} parent=1 // loop_exit
      _

// kernel: celeba_vae_forward.39
$region0: #{celeba_vae_forward.39}
  #allocation0 [shape = 'u32[]', space=smem, size = 0x4, offset = 0x4, fixed_abs, tag = 'smem constant byte address 0x4 - core index']
  #allocation1 [shape = 'u32[72,128]{1,0:T(1,128)}', space=vmem, size = 0x9000, scoped, tag = 'internal scratch']
  #allocation2 [shape = 'f32[16,1024]{1,0:T(8,128)}', space=vmem, size = 0x10000, scoped, tag = 'scratch operand']
  %s0 = inlined_call_operand.vmem [shape: bf16[16,16], index: 0, kind: input, shape index: {}]
  %s1 = inlined_call_operand.vmem [shape: bf16[16,2048], index: 1, kind: input, shape index: {}]
  %s2 = inlined_call_operand.vmem [shape: f32[16,1], index: 2, kind: input, shape index: {}]
  %s3 = inlined_call_operand.vmem [shape: bf16[16,2048], index: 3, kind: output, shape index: {}]
  %s4 = sld [smem:[#allocation0]]
  $region95: #{celeba_vae_forward.39} parent=0
    _
  %s6 = ssub.s32 1, %s4
  %s7 = scalar_select 0, %s6, %s4
  $region1: #{celeba_vae_forward.39} parent=0
    #allocation3 [shape = 'u8[65536]{0}', space=vmem, size = 0x10000, scoped, tag = 'input window, operand 1']
    #allocation4 [shape = 'u8[65536]{0}', space=vmem, size = 0x10000, scoped, tag = 'output window, operand 0']
    loop: start=0, step=1, limit=4
    $region2: #{celeba_vae_forward.39} parent=1 // loop_pre_header
      _
    $region3: #{celeba_vae_forward.39} parent=1 // loop_header
      %s9 = sphi 0, %s13
      %p10 = scmp.ge.s32.totalorder %s9, 4
      %s16 = sphi 0, %s28
      %s17 = sphi 0, %s24
      %s18 = sphi 0, %s16
      %s19 = sphi 0, %s17
      %s20 = sphi 0, %s18
      %s21 = sphi 0, %s19
      %s31 = sphi 0, %s33
      %s34 = sphi 0, %s31
      %s35 = sphi 0, %s34
      %s51 = sphi 0, %s35
      %s59 = sphi 0, %s61
      %s62 = sphi 0, %s59
      %s63 = sphi 0, %s62
      %s79 = sphi 0, %s63
      %s83 = sphi 0, %s83
      %s85 = sphi 0, %s83
      %s86 = sphi 0, %s85
      %s100 = sphi 0, %s86
      %s106 = sphi 0, %s108
      %s109 = sphi 0, %s106
      %s110 = sphi 0, %s109
      %s126 = sphi 0, %s110
    $region4: #{celeba_vae_forward.39} parent=1 // loop_header_branch
      %12 = sbr.rel (%p10) target = $region8
    $region5: #{celeba_vae_forward.39} parent=1 // loop_body
      %s14 = ssub.s32 %s9, 1
      %s15 = ssub.s32 %s9, 2
      %s22 = sadd.s32 1, %s17
      %p23 = scmp.ge.s32.totalorder %s22, 1
      %s24 = scalar_select %p23, 0, %s22
      %s25 = sadd.s32 1, %s16
      %s26 = scalar_select %p23, %s25, %s16
      %p27 = scmp.ge.s32.totalorder %s26, 2
      %s28 = scalar_select %p27, 0, %s26
      %s29 = ssub.s32 %s17, %s24
      %p30 = scmp.eq.s32.totalorder %s29, 0
      %s32 = sadd.s32 %s31, 1
      %s33 = scalar_select %p30, %s31, %s32
      %p36 = pneg %p30
      %p37 = scmp.eq.s32.totalorder %s9, 1
      %p38 = por %p36, %p37
      %p39 = scmp.ne.s32.totalorder %s31, %s34
      %p40 = scmp.eq.s32.totalorder %s9, 0
      %p41 = por %p39, %p40
      %p42 = scmp.ne.s32.totalorder %s31, %s34
      %p43 = scmp.eq.s32.totalorder %s14, 1
      %p44 = por %p42, %p43
      %p45 = scmp.ne.s32.totalorder %s34, %s35
      %p46 = scmp.eq.s32.totalorder %s14, 0
      %p47 = por %p45, %p46
      %p48 = scmp.ne.s32.totalorder %s34, %s35
      %p49 = scmp.eq.s32.totalorder %s15, 1
      %p50 = por %p48, %p49
      %p52 = scmp.ne.s32.totalorder %s35, %s51
      %p53 = scmp.eq.s32.totalorder %s15, 0
      %p54 = por %p52, %p53
      %s55 = ssub.s32 %s17, %s24
      %s56 = ssub.s32 %s16, %s28
      %s57 = sor.u32 %s55, %s56
      %p58 = scmp.eq.s32.totalorder %s57, 0
      %s60 = sadd.s32 %s59, 1
      %s61 = scalar_select %p58, %s59, %s60
      %p64 = pneg %p58
      %p65 = scmp.eq.s32.totalorder %s9, 1
      %p66 = por %p64, %p65
      %p67 = scmp.ne.s32.totalorder %s59, %s62
      %p68 = scmp.eq.s32.totalorder %s9, 0
      %p69 = por %p67, %p68
      %p70 = scmp.ne.s32.totalorder %s59, %s62
      %p71 = scmp.eq.s32.totalorder %s14, 1
      %p72 = por %p70, %p71
      %p73 = scmp.ne.s32.totalorder %s62, %s63
      %p74 = scmp.eq.s32.totalorder %s14, 0
      %p75 = por %p73, %p74
      %p76 = scmp.ne.s32.totalorder %s62, %s63
      %p77 = scmp.eq.s32.totalorder %s15, 1
      %p78 = por %p76, %p77
      %p80 = scmp.ne.s32.totalorder %s63, %s79
      %p81 = scmp.eq.s32.totalorder %s15, 0
      %p82 = por %p80, %p81
      %s84 = sadd.s32 %s83, 1
      %p87 = scmp.eq.s32.totalorder %s9, 1
      %p88 = scmp.ne.s32.totalorder %s83, %s85
      %p89 = scmp.eq.s32.totalorder %s9, 0
      %p90 = por %p88, %p89
      %p91 = scmp.ne.s32.totalorder %s83, %s85
      %p92 = scmp.eq.s32.totalorder %s14, 1
      %p93 = por %p91, %p92
      %p94 = scmp.ne.s32.totalorder %s85, %s86
      %p95 = scmp.eq.s32.totalorder %s14, 0
      %p96 = por %p94, %p95
      %p97 = scmp.ne.s32.totalorder %s85, %s86
      %p98 = scmp.eq.s32.totalorder %s15, 1
      %p99 = por %p97, %p98
      %p101 = scmp.ne.s32.totalorder %s86, %s100
      %p102 = scmp.eq.s32.totalorder %s15, 0
      %p103 = por %p101, %p102
      %s104 = ssub.s32 %s16, %s28
      %p105 = scmp.eq.s32.totalorder %s104, 0
      %s107 = sadd.s32 %s106, 1
      %s108 = scalar_select %p105, %s106, %s107
      %p111 = pneg %p105
      %p112 = scmp.eq.s32.totalorder %s9, 1
      %p113 = por %p111, %p112
      %p114 = scmp.ne.s32.totalorder %s106, %s109
      %p115 = scmp.eq.s32.totalorder %s9, 0
      %p116 = por %p114, %p115
      %p117 = scmp.ne.s32.totalorder %s106, %s109
      %p118 = scmp.eq.s32.totalorder %s14, 1
      %p119 = por %p117, %p118
      %p120 = scmp.ne.s32.totalorder %s109, %s110
      %p121 = scmp.eq.s32.totalorder %s14, 0
      %p122 = por %p120, %p121
      %p123 = scmp.ne.s32.totalorder %s109, %s110
      %p124 = scmp.eq.s32.totalorder %s15, 1
      %p125 = por %p123, %p124
      %p127 = scmp.ne.s32.totalorder %s110, %s126
      %p128 = scmp.eq.s32.totalorder %s15, 0
      %p129 = por %p127, %p128
      %p130 = scmp.le.s32.totalorder 1, %s9
      %p131 = scmp.lt.s32.totalorder %s9, 3
      %p132 = pnand %p130, %p131
      %p133 = pneg %p132
      // Predicated region
      $region9: #{celeba_vae_forward.39} parent=5 // pred_check
        _
      $region10: #{celeba_vae_forward.39} parent=5 // pred_check_branch
        %135 = sbr.rel (%p132) target = $region12
      $region11: #{celeba_vae_forward.39} parent=5 // pred_region
        %s136 = ssub.s32 %s9, 1
        // Predicated region
        $region13: #{celeba_vae_forward.39} parent=11 // pred_check
          %p137 = pneg %p47
        $region14: #{celeba_vae_forward.39} parent=11 // pred_check_branch
          %139 = sbr.rel (%p137) target = $region16
        $region15: #{celeba_vae_forward.39} parent=11 // pred_region
          %p140 = scmp.lt.s32.totalorder %s19, 0
          %s141 = scalar_select %p140, %s19, 0
          %s142 = smul.addr %s141, 4
          %s143 = scalar_lea.vmem %s0, %s142
        $region16: #{celeba_vae_forward.39} parent=11 // pred_fallthru
          _
        // Predicated region
        $region17: #{celeba_vae_forward.39} parent=11 // pred_check
          %p144 = pneg %p96
        $region18: #{celeba_vae_forward.39} parent=11 // pred_check_branch
          %146 = sbr.rel (%p144) target = $region20
        $region19: #{celeba_vae_forward.39} parent=11 // pred_region
          _
        $region20: #{celeba_vae_forward.39} parent=11 // pred_fallthru
          _
      $region12: #{celeba_vae_forward.39} parent=5 // pred_fallthru
        _
      %p147 = scmp.lt.s32.totalorder %s9, 2
      // Predicated region
      $region21: #{celeba_vae_forward.39} parent=5 // pred_check
        %p148 = pneg %p147
      $region22: #{celeba_vae_forward.39} parent=5 // pred_check_branch
        %150 = sbr.rel (%p148) target = $region24
      $region23: #{celeba_vae_forward.39} parent=5 // pred_region
        // Predicated region
        $region25: #{celeba_vae_forward.39} parent=23 // pred_check
          %p151 = pneg %p69
        $region26: #{celeba_vae_forward.39} parent=23 // pred_check_branch
          %153 = sbr.rel (%p151) target = $region28
        $region27: #{celeba_vae_forward.39} parent=23 // pred_region
          %s154 = sand.u32 %s59, 1
          %s155 = sand.u32 %s59, 1
          %s156 = smul.addr %s155, 64
          %s157 = scalar_lea.vmem [#allocation3], %s156
          %s158 = smul.u32 2, %s17
          %s159 = smul.u32 8, %s16
          %s160 = smul.addr %s158, 16
          %s161 = sadd.s32 %s159, %s160
          %s162 = smul.addr %s161, 4
          %s163 = scalar_lea.vmem %s1, %s162
          // Predicated region
          $region29: #{celeba_vae_forward.39} parent=27 // pred_check
            _
          $region30: #{celeba_vae_forward.39} parent=27 // pred_check_branch
            %165 = sbr.rel (0) target = $region32
          $region31: #{celeba_vae_forward.39} parent=27 // pred_region
            // Predicated region
            $region33: #{celeba_vae_forward.39} parent=31 // pred_check
              _
            $region34: #{celeba_vae_forward.39} parent=31 // pred_check_branch
              %167 = sbr.rel (0) target = $region36
            $region35: #{celeba_vae_forward.39} parent=31 // pred_region
              loop: start=0, step=1, limit=1
              $region37: #{celeba_vae_forward.39} parent=35 // loop_pre_header
                _
              $region38: #{celeba_vae_forward.39} parent=35 // loop_header
                %s169 = sphi 0, %s173
                %p170 = scmp.ge.s32.totalorder %s169, 1
                %s174 = sphi %s163, %s163
                %s175 = sphi %s157, %s157
              $region39: #{celeba_vae_forward.39} parent=35 // loop_header_branch
                %172 = sbr.rel (%p170) target = $region43
              $region40: #{celeba_vae_forward.39} parent=35 // loop_body
                %v176 = vld [vmem:[%s174] sm:$0xff]
                %177 = vst [vmem:[%s175] sm:$0xff] %v176
                %v178 = vld [vmem:[%s174 + $0x8] sm:$0xff]
                %179 = vst [vmem:[%s175 + $0x8] sm:$0xff] %v178
                %v180 = vld [vmem:[%s174 + $0x10] sm:$0xff]
                %181 = vst [vmem:[%s175 + $0x10] sm:$0xff] %v180
                %v182 = vld [vmem:[%s174 + $0x18] sm:$0xff]
                %183 = vst [vmem:[%s175 + $0x18] sm:$0xff] %v182
                %v184 = vld [vmem:[%s174 + $0x40] sm:$0xff]
                %185 = vst [vmem:[%s175 + $0x20] sm:$0xff] %v184
                %v186 = vld [vmem:[%s174 + $0x48] sm:$0xff]
                %187 = vst [vmem:[%s175 + $0x28] sm:$0xff] %v186
                %v188 = vld [vmem:[%s174 + $0x50] sm:$0xff]
                %189 = vst [vmem:[%s175 + $0x30] sm:$0xff] %v188
                %v190 = vld [vmem:[%s174 + $0x58] sm:$0xff]
                %191 = vst [vmem:[%s175 + $0x38] sm:$0xff] %v190
              $region41: #{celeba_vae_forward.39} parent=35 // loop_footer
                %s173 = sadd.s32 1, %s169
              $region42: #{celeba_vae_forward.39} parent=35 // loop_footer_branch
                %168 = sbr.rel target = $region38
              $region43: #{celeba_vae_forward.39} parent=35 // loop_exit
                _
            $region36: #{celeba_vae_forward.39} parent=31 // pred_fallthru
              _
            // Predicated region
            $region44: #{celeba_vae_forward.39} parent=31 // pred_check
              _
            $region45: #{celeba_vae_forward.39} parent=31 // pred_check_branch
              %193 = sbr.rel target = $region47
            $region46: #{celeba_vae_forward.39} parent=31 // pred_region
              _
            $region47: #{celeba_vae_forward.39} parent=31 // pred_fallthru
              _
          $region32: #{celeba_vae_forward.39} parent=27 // pred_fallthru
            _
          %194 = vnop
        $region28: #{celeba_vae_forward.39} parent=23 // pred_fallthru
          _
      $region24: #{celeba_vae_forward.39} parent=5 // pred_fallthru
        _
      %p195 = scmp.le.s32.totalorder 1, %s9
      %p196 = scmp.lt.s32.totalorder %s9, 3
      %p197 = pnand %p195, %p196
      %p198 = pneg %p197
      // Predicated region
      $region48: #{celeba_vae_forward.39} parent=5 // pred_check
        _
      $region49: #{celeba_vae_forward.39} parent=5 // pred_check_branch
        %200 = sbr.rel (%p197) target = $region51
      $region50: #{celeba_vae_forward.39} parent=5 // pred_region
        %s201 = ssub.s32 %s9, 1
        %s202 = sand.u32 %s62, 1
        %s203 = sand.u32 %s62, 1
        %s204 = smul.addr %s203, 64
        %s205 = scalar_lea.vmem [#allocation3], %s204
        // Predicated region
        $region52: #{celeba_vae_forward.39} parent=50 // pred_check
          %p206 = pneg %p75
        $region53: #{celeba_vae_forward.39} parent=50 // pred_check_branch
          %208 = sbr.rel (%p206) target = $region55
        $region54: #{celeba_vae_forward.39} parent=50 // pred_region
          _
        $region55: #{celeba_vae_forward.39} parent=50 // pred_fallthru
          _
        %p209 = scmp.lt.s32.totalorder %s19, 0
        %s210 = scalar_select %p209, %s19, 0
        %s211 = smul.addr %s210, 4
        %s212 = scalar_lea.vmem %s0, %s211
        %p213 = pneg %p47
        %p214 = pneg %p44
        %s215 = sand.u32 %s62, 1
        %s216 = sand.u32 %s62, 1
        %s217 = smul.addr %s216, 64
        %s218 = scalar_lea.vmem [#allocation3], %s217
        %p219 = pneg %p75
        %p220 = pneg %p72
        %p221 = pneg %p96
        %p222 = pneg %p93
        %p223 = pneg %p122
        %p224 = pneg %p119
        %s225 = sand.u32 %s109, 1
        %s226 = sand.u32 %s109, 1
        %s227 = smul.addr %s226, 64
        %s228 = scalar_lea.vmem [#allocation4], %s227
        %p229 = scmp.lt.s32.totalorder %s19, 0
        %s230 = scalar_select %p229, %s19, 0
        %s231 = smul.addr %s230, 4
        %s232 = scalar_lea.vmem %s0, %s231
        %s233 = smul.u32 2, %s19
        %s234 = smul.u32 8, %s18
        %s235 = smul.u32 8, %s18
        %p237 = scmp.eq.s32.totalorder %s19, 0
        // Predicated region
        $region56: #{celeba_vae_forward.39} parent=50 // pred_check
          %p238 = pneg %p237
        $region57: #{celeba_vae_forward.39} parent=50 // pred_check_branch
          %240 = sbr.rel (%p238) target = $region59
        $region58: #{celeba_vae_forward.39} parent=50 // pred_region
          %v241 = vld [vmem:[%s2] sm:$0xff]
          %v242 = vld [vmem:[%s2 + $0x8] sm:$0xff]
          %244 = vset.pattern.permute.xlu0 0
          %245 = vperm.xlu0 %244, %v241
          %v246 = vpop.permute.xlu0 %245
          %249 = vset.pattern.permute.xlu0 0
          %250 = vperm.xlu0 %249, %v242
          %v251 = vpop.permute.xlu0 %250
          %v253 = vadd.f32 %v246, 0.0
          %v254 = vadd.f32 %v251, 0.0
          %255 = vst [vmem:[#allocation2] sm:$0xff] %v253
          %256 = vst [vmem:[#allocation2 + $0x8] sm:$0xff] %v253
          %257 = vst [vmem:[#allocation2 + $0x10] sm:$0xff] %v253
          %258 = vst [vmem:[#allocation2 + $0x18] sm:$0xff] %v253
          %259 = vst [vmem:[#allocation2 + $0x20] sm:$0xff] %v253
          %260 = vst [vmem:[#allocation2 + $0x28] sm:$0xff] %v253
          %261 = vst [vmem:[#allocation2 + $0x30] sm:$0xff] %v253
          %262 = vst [vmem:[#allocation2 + $0x38] sm:$0xff] %v253
          %263 = vst [vmem:[#allocation2 + $0x40] sm:$0xff] %v254
          %264 = vst [vmem:[#allocation2 + $0x48] sm:$0xff] %v254
          %265 = vst [vmem:[#allocation2 + $0x50] sm:$0xff] %v254
          %266 = vst [vmem:[#allocation2 + $0x58] sm:$0xff] %v254
          %267 = vst [vmem:[#allocation2 + $0x60] sm:$0xff] %v254
          %268 = vst [vmem:[#allocation2 + $0x68] sm:$0xff] %v254
          %269 = vst [vmem:[#allocation2 + $0x70] sm:$0xff] %v254
          %270 = vst [vmem:[#allocation2 + $0x78] sm:$0xff] %v254
        $region59: #{celeba_vae_forward.39} parent=50 // pred_fallthru
          _
        %v271 = vld [vmem:[#allocation2] sm:$0xff]
        %v272 = vld [vmem:[#allocation2 + $0x8] sm:$0xff]
        %v273 = vld [vmem:[#allocation2 + $0x10] sm:$0xff]
        %v274 = vld [vmem:[#allocation2 + $0x18] sm:$0xff]
        %v275 = vld [vmem:[#allocation2 + $0x20] sm:$0xff]
        %v276 = vld [vmem:[#allocation2 + $0x28] sm:$0xff]
        %v277 = vld [vmem:[#allocation2 + $0x30] sm:$0xff]
        %v278 = vld [vmem:[#allocation2 + $0x38] sm:$0xff]
        %v279 = vld [vmem:[#allocation2 + $0x40] sm:$0xff]
        %v280 = vld [vmem:[#allocation2 + $0x48] sm:$0xff]
        %v281 = vld [vmem:[#allocation2 + $0x50] sm:$0xff]
        %v282 = vld [vmem:[#allocation2 + $0x58] sm:$0xff]
        %v283 = vld [vmem:[#allocation2 + $0x60] sm:$0xff]
        %v284 = vld [vmem:[#allocation2 + $0x68] sm:$0xff]
        %v285 = vld [vmem:[#allocation2 + $0x70] sm:$0xff]
        %v286 = vld [vmem:[#allocation2 + $0x78] sm:$0xff]
        %v287 = vld [vmem:[%s232] sm:$0xf]
        %v288 = vld [vmem:[%s232 + $0x4] sm:$0xf]
        %v289 = vld [vmem:[%s205] sm:$0xff]
        %v290 = vld [vmem:[%s205 + $0x8] sm:$0xff]
        %v291 = vld [vmem:[%s205 + $0x10] sm:$0xff]
        %v292 = vld [vmem:[%s205 + $0x18] sm:$0xff]
        %v293 = vld [vmem:[%s205 + $0x20] sm:$0xff]
        %v294 = vld [vmem:[%s205 + $0x28] sm:$0xff]
        %v295 = vld [vmem:[%s205 + $0x30] sm:$0xff]
        %v296 = vld [vmem:[%s205 + $0x38] sm:$0xff]
        %v299 = vunpack.c.l.b16 %v287
        %v300 = vunpack.c.l.b16 %v288
        %v301 = vpack.c.b16 %v300, %v299
        %v310 = vunpack.c.l.b16 %v289
        %v311 = vunpack.c.h.b16 %v289
        %v312 = vunpack.c.l.b16 %v290
        %v313 = vunpack.c.h.b16 %v290
        %v314 = vunpack.c.l.b16 %v291
        %v315 = vunpack.c.h.b16 %v291
        %v316 = vunpack.c.l.b16 %v292
        %v317 = vunpack.c.h.b16 %v292
        %v318 = vunpack.c.l.b16 %v293
        %v319 = vunpack.c.h.b16 %v293
        %v320 = vunpack.c.l.b16 %v294
        %v321 = vunpack.c.h.b16 %v294
        %v322 = vunpack.c.l.b16 %v295
        %v323 = vunpack.c.h.b16 %v295
        %v324 = vunpack.c.l.b16 %v296
        %v325 = vunpack.c.h.b16 %v296
        %v326 = vpack.c.b16 %v318, %v310
        %v327 = vpack.c.b16 %v319, %v311
        %v328 = vpack.c.b16 %v320, %v312
        %v329 = vpack.c.b16 %v321, %v313
        %v330 = vpack.c.b16 %v322, %v314
        %v331 = vpack.c.b16 %v323, %v315
        %v332 = vpack.c.b16 %v324, %v316
        %v333 = vpack.c.b16 %v325, %v317
        %vm342 = vcmask 130048
        %v344 = vsel %vm342, %v301, 0
        %346 = vmatpush.bf16.msra.mxu0 0
        %347 = vmatpush.bf16.msra.mxu0 0
        %348 = vmatpush.bf16.msra.mxu0 0
        %349 = vmatpush.bf16.msra.mxu0 0
        %350 = vmatpush.bf16.msra.mxu0 0
        %351 = vmatpush.bf16.msra.mxu0 0
        %352 = vmatpush.bf16.msra.mxu0 0
        %353 = vmatpush.bf16.msra.mxu0 %v326
        %354 = vmatmul.bf16.gmra.mxu0 %v344
        %v355 = vpop.f32.mrf.mxu0
        %v356 = vadd.f32 0.0, %v355
        %v357 = vpop.f32.mrf.mxu0
        %v358 = vadd.f32 0.0, %v357
        %359 = vdwg.mxu0
        %360 = vmatpush.bf16.msra.mxu0 0
        %361 = vmatpush.bf16.msra.mxu0 0
        %362 = vmatpush.bf16.msra.mxu0 0
        %363 = vmatpush.bf16.msra.mxu0 0
        %364 = vmatpush.bf16.msra.mxu0 0
        %365 = vmatpush.bf16.msra.mxu0 0
        %366 = vmatpush.bf16.msra.mxu0 0
        %367 = vmatpush.bf16.msra.mxu0 %v327
        %368 = vmatmul.bf16.gmra.mxu0 %v344
        %v369 = vpop.f32.mrf.mxu0
        %v370 = vadd.f32 0.0, %v369
        %v371 = vpop.f32.mrf.mxu0
        %v372 = vadd.f32 0.0, %v371
        %373 = vdwg.mxu0
        %374 = vmatpush.bf16.msra.mxu0 0
        %375 = vmatpush.bf16.msra.mxu0 0
        %376 = vmatpush.bf16.msra.mxu0 0
        %377 = vmatpush.bf16.msra.mxu0 0
        %378 = vmatpush.bf16.msra.mxu0 0
        %379 = vmatpush.bf16.msra.mxu0 0
        %380 = vmatpush.bf16.msra.mxu0 0
        %381 = vmatpush.bf16.msra.mxu0 %v328
        %382 = vmatmul.bf16.gmra.mxu0 %v344
        %v383 = vpop.f32.mrf.mxu0
        %v384 = vadd.f32 0.0, %v383
        %v385 = vpop.f32.mrf.mxu0
        %v386 = vadd.f32 0.0, %v385
        %387 = vdwg.mxu0
        %388 = vmatpush.bf16.msra.mxu0 0
        %389 = vmatpush.bf16.msra.mxu0 0
        %390 = vmatpush.bf16.msra.mxu0 0
        %391 = vmatpush.bf16.msra.mxu0 0
        %392 = vmatpush.bf16.msra.mxu0 0
        %393 = vmatpush.bf16.msra.mxu0 0
        %394 = vmatpush.bf16.msra.mxu0 0
        %395 = vmatpush.bf16.msra.mxu0 %v329
        %396 = vmatmul.bf16.gmra.mxu0 %v344
        %v397 = vpop.f32.mrf.mxu0
        %v398 = vadd.f32 0.0, %v397
        %v399 = vpop.f32.mrf.mxu0
        %v400 = vadd.f32 0.0, %v399
        %401 = vdwg.mxu0
        %402 = vmatpush.bf16.msra.mxu0 0
        %403 = vmatpush.bf16.msra.mxu0 0
        %404 = vmatpush.bf16.msra.mxu0 0
        %405 = vmatpush.bf16.msra.mxu0 0
        %406 = vmatpush.bf16.msra.mxu0 0
        %407 = vmatpush.bf16.msra.mxu0 0
        %408 = vmatpush.bf16.msra.mxu0 0
        %409 = vmatpush.bf16.msra.mxu0 %v330
        %410 = vmatmul.bf16.gmra.mxu0 %v344
        %v411 = vpop.f32.mrf.mxu0
        %v412 = vadd.f32 0.0, %v411
        %v413 = vpop.f32.mrf.mxu0
        %v414 = vadd.f32 0.0, %v413
        %415 = vdwg.mxu0
        %416 = vmatpush.bf16.msra.mxu0 0
        %417 = vmatpush.bf16.msra.mxu0 0
        %418 = vmatpush.bf16.msra.mxu0 0
        %419 = vmatpush.bf16.msra.mxu0 0
        %420 = vmatpush.bf16.msra.mxu0 0
        %421 = vmatpush.bf16.msra.mxu0 0
        %422 = vmatpush.bf16.msra.mxu0 0
        %423 = vmatpush.bf16.msra.mxu0 %v331
        %424 = vmatmul.bf16.gmra.mxu0 %v344
        %v425 = vpop.f32.mrf.mxu0
        %v426 = vadd.f32 0.0, %v425
        %v427 = vpop.f32.mrf.mxu0
        %v428 = vadd.f32 0.0, %v427
        %429 = vdwg.mxu0
        %430 = vmatpush.bf16.msra.mxu0 0
        %431 = vmatpush.bf16.msra.mxu0 0
        %432 = vmatpush.bf16.msra.mxu0 0
        %433 = vmatpush.bf16.msra.mxu0 0
        %434 = vmatpush.bf16.msra.mxu0 0
        %435 = vmatpush.bf16.msra.mxu0 0
        %436 = vmatpush.bf16.msra.mxu0 0
        %437 = vmatpush.bf16.msra.mxu0 %v332
        %438 = vmatmul.bf16.gmra.mxu0 %v344
        %v439 = vpop.f32.mrf.mxu0
        %v440 = vadd.f32 0.0, %v439
        %v441 = vpop.f32.mrf.mxu0
        %v442 = vadd.f32 0.0, %v441
        %443 = vdwg.mxu0
        %444 = vmatpush.bf16.msra.mxu0 0
        %445 = vmatpush.bf16.msra.mxu0 0
        %446 = vmatpush.bf16.msra.mxu0 0
        %447 = vmatpush.bf16.msra.mxu0 0
        %448 = vmatpush.bf16.msra.mxu0 0
        %449 = vmatpush.bf16.msra.mxu0 0
        %450 = vmatpush.bf16.msra.mxu0 0
        %451 = vmatpush.bf16.msra.mxu0 %v333
        %452 = vmatmul.bf16.gmra.mxu0 %v344
        %v453 = vpop.f32.mrf.mxu0
        %v454 = vadd.f32 0.0, %v453
        %v455 = vpop.f32.mrf.mxu0
        %v456 = vadd.f32 0.0, %v455
        %457 = vdwg.mxu0
        %v458 = vadd.f32 %v271, %v356
        %v459 = vadd.f32 %v272, %v370
        %v460 = vadd.f32 %v273, %v384
        %v461 = vadd.f32 %v274, %v398
        %v462 = vadd.f32 %v275, %v412
        %v463 = vadd.f32 %v276, %v426
        %v464 = vadd.f32 %v277, %v440
        %v465 = vadd.f32 %v278, %v454
        %v466 = vadd.f32 %v279, %v358
        %v467 = vadd.f32 %v280, %v372
        %v468 = vadd.f32 %v281, %v386
        %v469 = vadd.f32 %v282, %v400
        %v470 = vadd.f32 %v283, %v414
        %v471 = vadd.f32 %v284, %v428
        %v472 = vadd.f32 %v285, %v442
        %v473 = vadd.f32 %v286, %v456
        %474 = vst [vmem:[#allocation2] sm:$0xff] %v458
        %475 = vst [vmem:[#allocation2 + $0x8] sm:$0xff] %v459
        %476 = vst [vmem:[#allocation2 + $0x10] sm:$0xff] %v460
        %477 = vst [vmem:[#allocation2 + $0x18] sm:$0xff] %v461
        %478 = vst [vmem:[#allocation2 + $0x20] sm:$0xff] %v462
        %479 = vst [vmem:[#allocation2 + $0x28] sm:$0xff] %v463
        %480 = vst [vmem:[#allocation2 + $0x30] sm:$0xff] %v464
        %481 = vst [vmem:[#allocation2 + $0x38] sm:$0xff] %v465
        %482 = vst [vmem:[#allocation2 + $0x40] sm:$0xff] %v466
        %483 = vst [vmem:[#allocation2 + $0x48] sm:$0xff] %v467
        %484 = vst [vmem:[#allocation2 + $0x50] sm:$0xff] %v468
        %485 = vst [vmem:[#allocation2 + $0x58] sm:$0xff] %v469
        %486 = vst [vmem:[#allocation2 + $0x60] sm:$0xff] %v470
        %487 = vst [vmem:[#allocation2 + $0x68] sm:$0xff] %v471
        %488 = vst [vmem:[#allocation2 + $0x70] sm:$0xff] %v472
        %489 = vst [vmem:[#allocation2 + $0x78] sm:$0xff] %v473
        // Predicated region
        $region60: #{celeba_vae_forward.39} parent=50 // pred_check
          %p490 = pneg %p237
        $region61: #{celeba_vae_forward.39} parent=50 // pred_check_branch
          %492 = sbr.rel (%p490) target = $region63
        $region62: #{celeba_vae_forward.39} parent=50 // pred_region
          %v493 = vld [vmem:[#allocation2] sm:$0xff]
          %v494 = vld [vmem:[#allocation2 + $0x8] sm:$0xff]
          %v495 = vld [vmem:[#allocation2 + $0x10] sm:$0xff]
          %v496 = vld [vmem:[#allocation2 + $0x18] sm:$0xff]
          %v497 = vld [vmem:[#allocation2 + $0x20] sm:$0xff]
          %v498 = vld [vmem:[#allocation2 + $0x28] sm:$0xff]
          %v499 = vld [vmem:[#allocation2 + $0x30] sm:$0xff]
          %v500 = vld [vmem:[#allocation2 + $0x38] sm:$0xff]
          %v501 = vld [vmem:[#allocation2 + $0x40] sm:$0xff]
          %v502 = vld [vmem:[#allocation2 + $0x48] sm:$0xff]
          %v503 = vld [vmem:[#allocation2 + $0x50] sm:$0xff]
          %v504 = vld [vmem:[#allocation2 + $0x58] sm:$0xff]
          %v505 = vld [vmem:[#allocation2 + $0x60] sm:$0xff]
          %v506 = vld [vmem:[#allocation2 + $0x68] sm:$0xff]
          %v507 = vld [vmem:[#allocation2 + $0x70] sm:$0xff]
          %v508 = vld [vmem:[#allocation2 + $0x78] sm:$0xff]
          %v509 = vmul.f32 %v493, 0.5
          %v510 = vmul.f32 %v494, 0.5
          %v511 = vmul.f32 %v495, 0.5
          %v512 = vmul.f32 %v496, 0.5
          %v513 = vmul.f32 %v497, 0.5
          %v514 = vmul.f32 %v498, 0.5
          %v515 = vmul.f32 %v499, 0.5
          %v516 = vmul.f32 %v500, 0.5
          %v517 = vmul.f32 %v501, 0.5
          %v518 = vmul.f32 %v502, 0.5
          %v519 = vmul.f32 %v503, 0.5
          %v520 = vmul.f32 %v504, 0.5
          %v521 = vmul.f32 %v505, 0.5
          %v522 = vmul.f32 %v506, 0.5
          %v523 = vmul.f32 %v507, 0.5
          %v524 = vmul.f32 %v508, 0.5
          %v525 = vtanh.pop %v509
          %v526 = vtanh.pop %v510
          %v527 = vtanh.pop %v511
          %v528 = vtanh.pop %v512
          %v529 = vtanh.pop %v513
          %v530 = vtanh.pop %v514
          %v531 = vtanh.pop %v515
          %v532 = vtanh.pop %v516
          %v533 = vtanh.pop %v517
          %v534 = vtanh.pop %v518
          %v535 = vtanh.pop %v519
          %v536 = vtanh.pop %v520
          %v537 = vtanh.pop %v521
          %v538 = vtanh.pop %v522
          %v539 = vtanh.pop %v523
          %v540 = vtanh.pop %v524
          %v541 = vmul.f32 %v525, 0.5
          %v542 = vmul.f32 %v526, 0.5
          %v543 = vmul.f32 %v527, 0.5
          %v544 = vmul.f32 %v528, 0.5
          %v545 = vmul.f32 %v529, 0.5
          %v546 = vmul.f32 %v530, 0.5
          %v547 = vmul.f32 %v531, 0.5
          %v548 = vmul.f32 %v532, 0.5
          %v549 = vmul.f32 %v533, 0.5
          %v550 = vmul.f32 %v534, 0.5
          %v551 = vmul.f32 %v535, 0.5
          %v552 = vmul.f32 %v536, 0.5
          %v553 = vmul.f32 %v537, 0.5
          %v554 = vmul.f32 %v538, 0.5
          %v555 = vmul.f32 %v539, 0.5
          %v556 = vmul.f32 %v540, 0.5
          %v557 = vadd.f32 %v541, 0.5
          %v558 = vadd.f32 %v542, 0.5
          %v559 = vadd.f32 %v543, 0.5
          %v560 = vadd.f32 %v544, 0.5
          %v561 = vadd.f32 %v545, 0.5
          %v562 = vadd.f32 %v546, 0.5
          %v563 = vadd.f32 %v547, 0.5
          %v564 = vadd.f32 %v548, 0.5
          %v565 = vadd.f32 %v549, 0.5
          %v566 = vadd.f32 %v550, 0.5
          %v567 = vadd.f32 %v551, 0.5
          %v568 = vadd.f32 %v552, 0.5
          %v569 = vadd.f32 %v553, 0.5
          %v570 = vadd.f32 %v554, 0.5
          %v571 = vadd.f32 %v555, 0.5
          %v572 = vadd.f32 %v556, 0.5
          %v573 = vpack.c.bf16 %v558, %v557
          %v574 = vpack.c.bf16 %v560, %v559
          %v575 = vpack.c.bf16 %v562, %v561
          %v576 = vpack.c.bf16 %v564, %v563
          %v577 = vpack.c.bf16 %v566, %v565
          %v578 = vpack.c.bf16 %v568, %v567
          %v579 = vpack.c.bf16 %v570, %v569
          %v580 = vpack.c.bf16 %v572, %v571
          %581 = vst [vmem:[%s228] sm:$0xff] %v573
          %582 = vst [vmem:[%s228 + $0x8] sm:$0xff] %v574
          %583 = vst [vmem:[%s228 + $0x10] sm:$0xff] %v575
          %584 = vst [vmem:[%s228 + $0x18] sm:$0xff] %v576
          %585 = vst [vmem:[%s228 + $0x20] sm:$0xff] %v577
          %586 = vst [vmem:[%s228 + $0x28] sm:$0xff] %v578
          %587 = vst [vmem:[%s228 + $0x30] sm:$0xff] %v579
          %588 = vst [vmem:[%s228 + $0x38] sm:$0xff] %v580
        $region63: #{celeba_vae_forward.39} parent=50 // pred_fallthru
          _
        %s589 = sand.u32 %s109, 1
        %s590 = sand.u32 %s109, 1
        %s591 = smul.addr %s590, 64
        %s592 = scalar_lea.vmem [#allocation4], %s591
        // Predicated region
        $region64: #{celeba_vae_forward.39} parent=50 // pred_check
          %p593 = pneg %p119
        $region65: #{celeba_vae_forward.39} parent=50 // pred_check_branch
          %595 = sbr.rel (%p593) target = $region67
        $region66: #{celeba_vae_forward.39} parent=50 // pred_region
          %s596 = smul.u32 8, %s18
          %s597 = smul.addr %s596, 4
          %s598 = scalar_lea.vmem %s3, %s597
          // Predicated region
          $region68: #{celeba_vae_forward.39} parent=66 // pred_check
            _
          $region69: #{celeba_vae_forward.39} parent=66 // pred_check_branch
            %600 = sbr.rel (0) target = $region71
          $region70: #{celeba_vae_forward.39} parent=66 // pred_region
            // Predicated region
            $region72: #{celeba_vae_forward.39} parent=70 // pred_check
              _
            $region73: #{celeba_vae_forward.39} parent=70 // pred_check_branch
              %602 = sbr.rel (0) target = $region75
            $region74: #{celeba_vae_forward.39} parent=70 // pred_region
              loop: start=0, step=1, limit=1
              $region76: #{celeba_vae_forward.39} parent=74 // loop_pre_header
                _
              $region77: #{celeba_vae_forward.39} parent=74 // loop_header
                %s604 = sphi 0, %s608
                %p605 = scmp.ge.s32.totalorder %s604, 1
                %s609 = sphi %s592, %s592
                %s610 = sphi %s598, %s598
              $region78: #{celeba_vae_forward.39} parent=74 // loop_header_branch
                %607 = sbr.rel (%p605) target = $region82
              $region79: #{celeba_vae_forward.39} parent=74 // loop_body
                %v611 = vld [vmem:[%s609] sm:$0xff]
                %612 = vst [vmem:[%s610] sm:$0xff] %v611
                %v613 = vld [vmem:[%s609 + $0x8] sm:$0xff]
                %614 = vst [vmem:[%s610 + $0x8] sm:$0xff] %v613
                %v615 = vld [vmem:[%s609 + $0x10] sm:$0xff]
                %616 = vst [vmem:[%s610 + $0x10] sm:$0xff] %v615
                %v617 = vld [vmem:[%s609 + $0x18] sm:$0xff]
                %618 = vst [vmem:[%s610 + $0x18] sm:$0xff] %v617
                %v619 = vld [vmem:[%s609 + $0x20] sm:$0xff]
                %620 = vst [vmem:[%s610 + $0x40] sm:$0xff] %v619
                %v621 = vld [vmem:[%s609 + $0x28] sm:$0xff]
                %622 = vst [vmem:[%s610 + $0x48] sm:$0xff] %v621
                %v623 = vld [vmem:[%s609 + $0x30] sm:$0xff]
                %624 = vst [vmem:[%s610 + $0x50] sm:$0xff] %v623
                %v625 = vld [vmem:[%s609 + $0x38] sm:$0xff]
                %626 = vst [vmem:[%s610 + $0x58] sm:$0xff] %v625
              $region80: #{celeba_vae_forward.39} parent=74 // loop_footer
                %s608 = sadd.s32 1, %s604
              $region81: #{celeba_vae_forward.39} parent=74 // loop_footer_branch
                %603 = sbr.rel target = $region77
              $region82: #{celeba_vae_forward.39} parent=74 // loop_exit
                _
            $region75: #{celeba_vae_forward.39} parent=70 // pred_fallthru
              _
            // Predicated region
            $region83: #{celeba_vae_forward.39} parent=70 // pred_check
              _
            $region84: #{celeba_vae_forward.39} parent=70 // pred_check_branch
              %628 = sbr.rel target = $region86
            $region85: #{celeba_vae_forward.39} parent=70 // pred_region
              _
            $region86: #{celeba_vae_forward.39} parent=70 // pred_fallthru
              _
          $region71: #{celeba_vae_forward.39} parent=66 // pred_fallthru
            _
          %629 = vnop
        $region67: #{celeba_vae_forward.39} parent=50 // pred_fallthru
          _
      $region51: #{celeba_vae_forward.39} parent=5 // pred_fallthru
        _
      %p630 = scmp.le.s32.totalorder 2, %s9
      // Predicated region
      $region87: #{celeba_vae_forward.39} parent=5 // pred_check
        %p631 = pneg %p630
      $region88: #{celeba_vae_forward.39} parent=5 // pred_check_branch
        %633 = sbr.rel (%p631) target = $region90
      $region89: #{celeba_vae_forward.39} parent=5 // pred_region
        %s634 = ssub.s32 %s9, 2
        // Predicated region
        $region91: #{celeba_vae_forward.39} parent=89 // pred_check
          %p635 = pneg %p125
        $region92: #{celeba_vae_forward.39} parent=89 // pred_check_branch
          %637 = sbr.rel (%p635) target = $region94
        $region93: #{celeba_vae_forward.39} parent=89 // pred_region
          %s638 = sand.u32 %s110, 1
          %s639 = sand.u32 %s110, 1
          %s640 = smul.addr %s639, 64
          %s641 = scalar_lea.vmem [#allocation4], %s640
        $region94: #{celeba_vae_forward.39} parent=89 // pred_fallthru
          _
      $region90: #{celeba_vae_forward.39} parent=5 // pred_fallthru
        _
    $region6: #{celeba_vae_forward.39} parent=1 // loop_footer
      %s13 = sadd.s32 1, %s9
    $region7: #{celeba_vae_forward.39} parent=1 // loop_footer_branch
      %8 = sbr.rel target = $region3
    $region8: #{celeba_vae_forward.39} parent=1 // loop_exit
      _

</llo_original>
